<compile_context>
chip_gen: v6e
topology: v6e:2x2x1
jax: 0.10.0
libtpu: 0.0.40
codegen_flags: <defaults>
</compile_context>

<pallas_src>
import functools
import math

import jax
import jax.numpy as jnp
import numpy as np
from jax.experimental import pallas as pl
from jax.experimental.pallas import tpu as pltpu

# ----------------------------- configuration (scaled-down) -----------------------------
N_BATCH = 2
IN_DIMS = 8
WIDTH = 32        # stands in for 2048
MID = 64          # stands in for 4096
GROUPS = 4        # stands in for 32
REDUCTION = 8
OUT_DIMS = 16     # stands in for 1000
H = W = 16
BN_EPS = 1e-5

# TODO(synk): nn.Dropout / F.dropout are training-time stochastic ops; the eval path
#             (dropout disabled, as in module.eval()) is what is implemented.
# TODO(synk): the normalized=True branch (CosNorm_Classifier) is not the default and
#             is not implemented; the default nn.Linear head is.
# TODO(synk): on v6e the large convs are weight-bandwidth bound at N=2; int8 weight
#             quantization (MXU-native on v6e) would give ~2x there; not implemented.


# ----------------------------- per-generation budgets -----------------------------
def _hw_budget():
    """(channel-tile cap, vmem_limit_bytes) derived from the detected VMEM size."""
    cap, limit = 512, 32 * 1024 * 1024               # safe default for v7x (64 MiB/TC)
    try:
        info = pltpu.get_tpu_info()
        vmem = getattr(info, "vmem_capacity_bytes", 0) or 0
        if vmem >= 100 * 1024 * 1024:                # v5e / v6e: 128 MiB VMEM
            cap, limit = 1024, 64 * 1024 * 1024
    except Exception:
        pass
    return cap, limit


_TILE_CAP, _VMEM_LIMIT = _hw_budget()
_VMEM_SPEC = pl.BlockSpec(memory_space=pltpu.MemorySpace.VMEM)


def _pick_tile(dim, cap):
    """Largest tile <= cap dividing `dim` (prefer lane-dense multiples of 128)."""
    if dim <= cap:
        return dim
    for t in range((cap // 128) * 128, 0, -128):
        if dim % t == 0:
            return t
    for t in range(cap - cap % 8, 0, -8):
        if dim % t == 0:
            return t
    return math.gcd(dim, cap)


# ----------------------------- Pallas kernels -----------------------------
def _convmm_kernel(x_ref, w_ref, s_ref, b_ref, o_ref, acc_ref):
    """Conv-as-matmul: one (M, tk) x (tk, tn) MXU matmul per K-step (taps folded
    into K, batch folded into M), f32 accumulation in scratch, BN + ReLU epilogue.

    x_ref  : (M, tk)  bf16   im2col activations (M = N*Ho*Wo, K = 9*Cin)
    w_ref  : (tk, tn) bf16
    s_ref  : (1, tn)  f32    per-channel BN scale (kept in the f32 epilogue)
    b_ref  : (1, tn)  f32    conv bias + BN shift
    o_ref  : (M, tn)  bf16
    acc_ref: (M, tn)  f32
    """
    k = pl.program_id(1)
    d = jnp.dot(x_ref[...], w_ref[...], preferred_element_type=jnp.float32)

    @pl.when(k == 0)                       # write-through: no separate zero-init
    def _():
        acc_ref[...] = d

    @pl.when(k != 0)
    def _():
        acc_ref[...] = acc_ref[...] + d

    @pl.when(k == pl.num_programs(1) - 1)
    def _():
        o_ref[...] = jnp.maximum(acc_ref[...] * s_ref[...] + b_ref[...],
                                 0.0).astype(o_ref.dtype)


def _convmm_pool_kernel(x_ref, w_ref, s_ref, b_ref, pm_ref, o_ref, acc_ref):
    """Same as _convmm_kernel, with the global average pool fused in the epilogue.

    pm_ref : (N, M) f32 pooling matrix (1/(Ho*Wo) on each image's rows)
    o_ref  : (N, tn) f32 pooled output
    """
    k = pl.program_id(1)
    d = jnp.dot(x_ref[...], w_ref[...], preferred_element_type=jnp.float32)

    @pl.when(k == 0)
    def _():
        acc_ref[...] = d

    @pl.when(k != 0)
    def _():
        acc_ref[...] = acc_ref[...] + d

    @pl.when(k == pl.num_programs(1) - 1)
    def _():
        y = jnp.maximum(acc_ref[...] * s_ref[...] + b_ref[...], 0.0)
        o_ref[...] = jnp.dot(pm_ref[...], y, preferred_element_type=jnp.float32)


def _grouped_convmm_kernel(x_ref, w_ref, s_ref, b_ref, o_ref, *, coutg):
    """Grouped conv: P groups packed per grid step; one matmul per group, results
    written into lane-consecutive slices of a single lane-dense output tile.

    x_ref : (P, M, 9*cg)     bf16
    w_ref : (P, 9*cg, coutg) bf16
    s_ref : (P, 1, coutg)    f32
    b_ref : (P, 1, coutg)    f32
    o_ref : (M, P*coutg)     bf16
    """
    p = x_ref.shape[0]
    for i in range(p):                               # small static P, unrolled
        d = jnp.dot(x_ref[i], w_ref[i], preferred_element_type=jnp.float32)
        y = jnp.maximum(d * s_ref[i] + b_ref[i], 0.0)
        o_ref[:, i * coutg:(i + 1) * coutg] = y.astype(o_ref.dtype)


def _se_fc_kernel(y_ref, w1_ref, w2_ref, fcw_ref, fcb_ref, o_ref):
    """SE gating on the pooled vector + final Linear.

    Uses mean_{H,W}(x * s) == s * mean_{H,W}(x) (gate is per-(n, c)), so only the
    pooled (N, C) f32 vector is needed.  Weights are bf16 (f32 accumulation).
    """
    y = y_ref[...]                                   # (N, C) f32
    yb = y.astype(jnp.bfloat16)
    h = jnp.maximum(jnp.dot(yb, w1_ref[...], preferred_element_type=jnp.float32), 0.0)
    logits = jnp.dot(h.astype(jnp.bfloat16), w2_ref[...],
                     preferred_element_type=jnp.float32)
    gate = 1.0 / (1.0 + jnp.exp(-logits))            # sigmoid (EUP)
    z = (y * gate).astype(jnp.bfloat16)              # == avgpool(x2 * gate)
    o_ref[...] = jnp.dot(z, fcw_ref[...], preferred_element_type=jnp.float32) + fcb_ref[...]


# ----------------------------- conv wrapper -----------------------------
def conv3x3_bn_relu(x_nhwc, cp, *, pool=False):
    """3x3 conv (stride 1) + BatchNorm(eval) + ReLU via the Pallas kernels above.

    Wrapper-side im2col folds the 3x3 taps into K and the batch into M, so each
    grid step is a single dense MXU matmul.  If pool=True, the global average
    pool is fused into the epilogue and a pooled (N, Cout) f32 tensor is returned.
    """
    n, h, w, c = x_nhwc.shape
    groups, pad = cp["groups"], cp["pad"]
    cout = cp["w"].shape[0]
    assert c % groups == 0 and cout % groups == 0
    cg, coutg = c // groups, cout // groups
    kg = 9 * cg

    hp, wp = h + 2 * pad, w + 2 * pad
    ho, wo = hp - 2, wp - 2
    mtot = n * ho * wo

    # ---- im2col (cheap XLA glue at these shapes): exact Ho*Wo rows, taps in K.
    xp = jnp.pad(x_nhwc, ((0, 0), (pad, pad), (pad, pad), (0, 0))) if pad else x_nhwc
    taps = [xp[:, kh:kh + ho, kw:kw + wo, :] for kh in range(3) for kw in range(3)]
    col = jnp.stack(taps, axis=3)                               # (N, Ho, Wo, 9, C)

    # ---- BN as a per-channel f32 scale/shift in the epilogue (weights stay bf16).
    s = (cp["gamma"] / jnp.sqrt(cp["var"] + BN_EPS)).astype(jnp.float32)      # (Cout,)
    bias = ((cp["b"] - cp["mean"]) * s + cp["beta"]).astype(jnp.float32)      # (Cout,)

    wt = cp["w"].reshape(groups, coutg, cg, 3, 3).transpose(0, 3, 4, 2, 1)
    wt = wt.reshape(groups, kg, coutg).astype(jnp.bfloat16)     # K index = tap*cg + cin

    if groups == 1:
        lhs = col.reshape(mtot, kg).astype(jnp.bfloat16)
        tk = _pick_tile(kg, _TILE_CAP)
        tn = _pick_tile(cout, _TILE_CAP)
        grid = (cout // tn, kg // tk)

        in_specs = [
            pl.BlockSpec((mtot, tk), lambda j, k: (0, k)),
            pl.BlockSpec((tk, tn), lambda j, k: (k, j)),
            pl.BlockSpec((1, tn), lambda j, k: (0, j)),
            pl.BlockSpec((1, tn), lambda j, k: (0, j)),
        ]
        args = [lhs, wt[0], s.reshape(1, cout), bias.reshape(1, cout)]

        if pool:
            pm = jnp.repeat(jnp.eye(n, dtype=jnp.float32), ho * wo, axis=1) / float(ho * wo)
            in_specs.append(pl.BlockSpec((n, mtot), lambda j, k: (0, 0)))
            args.append(pm)
            kernel = _convmm_pool_kernel
            out_shape = jax.ShapeDtypeStruct((n, cout), jnp.float32)
            out_spec = pl.BlockSpec((n, tn), lambda j, k: (0, j))
        else:
            kernel = _convmm_kernel
            out_shape = jax.ShapeDtypeStruct((mtot, cout), jnp.bfloat16)
            out_spec = pl.BlockSpec((mtot, tn), lambda j, k: (0, j))

        out = pl.pallas_call(
            kernel,
            out_shape=out_shape,
            grid_spec=pltpu.PrefetchScalarGridSpec(
                num_scalar_prefetch=0,
                grid=grid,
                in_specs=in_specs,
                out_specs=out_spec,
                scratch_shapes=[pltpu.VMEM((mtot, tn), jnp.float32)],
            ),
            compiler_params=pltpu.CompilerParams(
                dimension_semantics=("parallel", "arbitrary"),
                vmem_limit_bytes=_VMEM_LIMIT,
            ),
        )(*args)
        if pool:
            return out                                           # (N, Cout) f32
        return out.reshape(n, ho, wo, cout)                      # (N, Ho, Wo, Cout)

    # ---- grouped conv: pack P groups per grid step -> lane-dense output tile.
    assert not pool, "pool fusion only used for the last (non-grouped) conv"
    p_pack = math.gcd(groups, max(1, min(groups, 256 // max(coutg, 1))))
    lhs = col.reshape(n, ho, wo, 9, groups, cg).transpose(4, 0, 1, 2, 3, 5)
    lhs = lhs.reshape(groups, mtot, kg).astype(jnp.bfloat16)
    sg = s.reshape(groups, 1, coutg)
    bg = bias.reshape(groups, 1, coutg)

    out = pl.pallas_call(
        functools.partial(_grouped_convmm_kernel, coutg=coutg),
        out_shape=jax.ShapeDtypeStruct((mtot, cout), jnp.bfloat16),
        grid_spec=pltpu.PrefetchScalarGridSpec(
            num_scalar_prefetch=0,
            grid=(groups // p_pack,),
            in_specs=[
                pl.BlockSpec((p_pack, mtot, kg), lambda g: (g, 0, 0)),
                pl.BlockSpec((p_pack, kg, coutg), lambda g: (g, 0, 0)),
                pl.BlockSpec((p_pack, 1, coutg), lambda g: (g, 0, 0)),
                pl.BlockSpec((p_pack, 1, coutg), lambda g: (g, 0, 0)),
            ],
            out_specs=pl.BlockSpec((mtot, p_pack * coutg), lambda g: (0, g)),
        ),
        compiler_params=pltpu.CompilerParams(
            dimension_semantics=("parallel",),
            vmem_limit_bytes=_VMEM_LIMIT,
        ),
    )(lhs, wt, sg, bg)
    return out.reshape(n, ho, wo, cout)


def se_fc(y_pooled, se_w1, se_w2, fc_w, fc_b):
    # TODO(synk): at real sizes (MID=4096, OUT=1000) additionally tile fc_w over
    #             OUT_DIMS; bf16 weights already keep total VMEM ~17 MiB (< limit).
    n = y_pooled.shape[0]
    out_dims = fc_w.shape[0]
    return pl.pallas_call(
        _se_fc_kernel,
        out_shape=jax.ShapeDtypeStruct((n, out_dims), jnp.float32),
        in_specs=[_VMEM_SPEC] * 5,
        out_specs=_VMEM_SPEC,
        compiler_params=pltpu.CompilerParams(vmem_limit_bytes=_VMEM_LIMIT),
    )(y_pooled,
      se_w1.T.astype(jnp.bfloat16),
      se_w2.T.astype(jnp.bfloat16),
      fc_w.T.astype(jnp.bfloat16),
      fc_b.reshape(1, out_dims).astype(jnp.float32))


def aux_classifier_forward(x_nchw, p):
    # layout: NCHW in (PyTorch), NHWC / im2col inside the kernels.
    x = jnp.transpose(x_nchw, (0, 2, 3, 1)).astype(jnp.float32)
    for cp in p["convs"][:-1]:
        x = conv3x3_bn_relu(x, cp, pool=False)
    # last conv fuses BN + ReLU + global average pool -> (N, MID) f32
    y = conv3x3_bn_relu(x, p["convs"][-1], pool=True)
    return se_fc(y, p["se_w1"], p["se_w2"], p["fc_w"], p["fc_b"])


# ----------------------------- deterministic parameter init -----------------------------
def init_params(key):
    keys = iter(jax.random.split(key, 32))

    def conv_p(cin_g, cout, pad, groups):
        w = jax.random.normal(next(keys), (cout, cin_g, 3, 3), jnp.float32) / math.sqrt(cin_g * 9)
        b = 0.05 * jax.random.normal(next(keys), (cout,), jnp.float32)
        gamma = 1.0 + 0.1 * jax.random.normal(next(keys), (cout,), jnp.float32)
        beta = 0.1 * jax.random.normal(next(keys), (cout,), jnp.float32)
        mean = 0.1 * jax.random.normal(next(keys), (cout,), jnp.float32)
        var = 0.5 + jax.random.uniform(next(keys), (cout,), jnp.float32)
        return dict(w=w, b=b, gamma=gamma, beta=beta, mean=mean, var=var, pad=pad, groups=groups)

    convs = [
        conv_p(IN_DIMS, WIDTH, pad=1, groups=1),                 # Conv2d(in_dims, width, 3, padding=1)
        conv_p(WIDTH // GROUPS, WIDTH, pad=0, groups=GROUPS),    # grouped Conv2d(width, width, 3)
        conv_p(WIDTH, WIDTH, pad=0, groups=1),                   # Conv2d(width, width, 3)
        conv_p(WIDTH, MID, pad=0, groups=1),                     # Conv2d(width, mid_channel, 3)
    ]
    se_w1 = jax.random.normal(next(keys), (MID // REDUCTION, MID), jnp.float32) / math.sqrt(MID)
    se_w2 = jax.random.normal(next(keys), (MID, MID // REDUCTION), jnp.float32) / math.sqrt(MID // REDUCTION)
    fc_w = jax.random.normal(next(keys), (OUT_DIMS, MID), jnp.float32) / math.sqrt(MID)
    fc_b = 0.05 * jax.random.normal(next(keys), (OUT_DIMS,), jnp.float32)
    return dict(convs=convs, se_w1=se_w1, se_w2=se_w2, fc_w=fc_w, fc_b=fc_b)


# ----------------------------- pure-JAX f32 reference -----------------------------
def reference_forward(x_nchw, p):
    x = jnp.transpose(x_nchw, (0, 2, 3, 1)).astype(jnp.float32)

    def conv_bn_relu_ref(x, cp):
        w_hwio = jnp.transpose(cp["w"], (2, 3, 1, 0))
        y = jax.lax.conv_general_dilated(
            x, w_hwio, window_strides=(1, 1),
            padding=[(cp["pad"], cp["pad"])] * 2,
            dimension_numbers=("NHWC", "HWIO", "NHWC"),
            feature_group_count=cp["groups"])
        y = y + cp["b"][None, None, None, :]
        y = (y - cp["mean"]) / jnp.sqrt(cp["var"] + BN_EPS) * cp["gamma"] + cp["beta"]
        return jnp.maximum(y, 0.0)

    for cp in p["convs"]:
        x = conv_bn_relu_ref(x, cp)
    y = jnp.mean(x, axis=(1, 2))
    h = jnp.maximum(y @ p["se_w1"].T, 0.0)
    s = jax.nn.sigmoid(h @ p["se_w2"].T)
    z = jnp.mean(x * s[:, None, None, :], axis=(1, 2))
    return z @ p["fc_w"].T + p["fc_b"]


# ----------------------------- main -----------------------------
if __name__ == "__main__":
    key = jax.random.PRNGKey(0)
    k_param, k_x = jax.random.split(key)
    params = init_params(k_param)
    x = jax.random.normal(k_x, (N_BATCH, IN_DIMS, H, W), jnp.float32)   # NCHW like PyTorch

    fwd = jax.jit(lambda xx: aux_classifier_forward(xx, params))
    out = jax.block_until_ready(fwd(x))

    ref = jax.block_until_ready(reference_forward(x, params))
    # bf16 operands / inter-layer activations (f32 accumulation) vs the f32 reference.
    np.testing.assert_allclose(np.asarray(out), np.asarray(ref), rtol=1e-1, atol=1e-1)

    print("KERNEL_OK")
</pallas_src>

<mosaic_0001>
module attributes {stable_mosaic.version = 11 : i64} {
  func.func @_convmm_kernel(%arg0: i32, %arg1: i32, %arg2: memref<512x72xbf16, #tpu.memory_space<vmem>>, %arg3: memref<72x32xbf16, #tpu.memory_space<vmem>>, %arg4: memref<1x32xf32, #tpu.memory_space<vmem>>, %arg5: memref<1x32xf32, #tpu.memory_space<vmem>>, %arg6: memref<512x32xbf16, #tpu.memory_space<vmem>>, %arg7: memref<512x32xf32, #tpu.memory_space<vmem>>) attributes {dimension_semantics = [#tpu.dimension_semantics<parallel>, #tpu.dimension_semantics<arbitrary>], iteration_bounds = array<i64: 1, 1>, scalar_prefetch = 0 : i64, scratch_operands = 1 : i64, tpu.core_type = #tpu.core_type<tc>, window_params = [{transform_indices = @transform_0, window_bounds = array<i64: 512, 72>}, {transform_indices = @transform_1, window_bounds = array<i64: 72, 32>}, {transform_indices = @transform_2, window_bounds = array<i64: 1, 32>}, {transform_indices = @transform_3, window_bounds = array<i64: 1, 32>}, {transform_indices = @transform_4, window_bounds = array<i64: 512, 32>}]} {
    %c0 = arith.constant 0 : index
    %c0_0 = arith.constant 0 : index
    %0 = vector.load %arg2[%c0, %c0_0] : memref<512x72xbf16, #tpu.memory_space<vmem>>, vector<512x72xbf16>
    %c0_1 = arith.constant 0 : index
    %c0_2 = arith.constant 0 : index
    %1 = vector.load %arg3[%c0_1, %c0_2] : memref<72x32xbf16, #tpu.memory_space<vmem>>, vector<72x32xbf16>
    %cst = arith.constant dense<0.000000e+00> : vector<512x32xf32>
    %2 = tpu.matmul %0, %1, %cst {dimension_numbers = #tpu.dot_dimension_numbers<[1], [0], [0], [1], [0, 0, 1, 1], [], []>} : vector<512x72xbf16>, vector<72x32xbf16>, vector<512x32xf32> -> vector<512x32xf32>
    %c0_i32 = arith.constant 0 : i32
    %3 = arith.cmpi eq, %arg1, %c0_i32 : i32
    %4 = arith.extui %3 : i1 to i32
    %c0_i32_3 = arith.constant 0 : i32
    %5 = arith.cmpi ne, %4, %c0_i32_3 : i32
    scf.if %5 {
      %c0_8 = arith.constant 0 : index
      %c0_9 = arith.constant 0 : index
      %12 = vector.load %arg7[%c0_8, %c0_9] : memref<512x32xf32, #tpu.memory_space<vmem>>, vector<512x32xf32>
      tpu.vector_store %arg7[%c0_8, %c0_9], %2 {strides = array<i32>} : memref<512x32xf32, #tpu.memory_space<vmem>>, vector<512x32xf32>,
    } else {
    }
    %c0_i32_4 = arith.constant 0 : i32
    %6 = arith.cmpi ne, %arg1, %c0_i32_4 : i32
    %7 = arith.extui %6 : i1 to i32
    %c0_i32_5 = arith.constant 0 : i32
    %8 = arith.cmpi ne, %7, %c0_i32_5 : i32
    scf.if %8 {
      %c0_8 = arith.constant 0 : index
      %c0_9 = arith.constant 0 : index
      %12 = vector.load %arg7[%c0_8, %c0_9] : memref<512x32xf32, #tpu.memory_space<vmem>>, vector<512x32xf32>
      %13 = arith.addf %12, %2 : vector<512x32xf32>
      %c0_10 = arith.constant 0 : index
      %c0_11 = arith.constant 0 : index
      %14 = vector.load %arg7[%c0_10, %c0_11] : memref<512x32xf32, #tpu.memory_space<vmem>>, vector<512x32xf32>
      tpu.vector_store %arg7[%c0_10, %c0_11], %13 {strides = array<i32>} : memref<512x32xf32, #tpu.memory_space<vmem>>, vector<512x32xf32>,
    } else {
    }
    %c0_i32_6 = arith.constant 0 : i32
    %9 = arith.cmpi eq, %arg1, %c0_i32_6 : i32
    %10 = arith.extui %9 : i1 to i32
    %c0_i32_7 = arith.constant 0 : i32
    %11 = arith.cmpi ne, %10, %c0_i32_7 : i32
    scf.if %11 {
      %c0_8 = arith.constant 0 : index
      %c0_9 = arith.constant 0 : index
      %12 = vector.load %arg7[%c0_8, %c0_9] : memref<512x32xf32, #tpu.memory_space<vmem>>, vector<512x32xf32>
      %c0_10 = arith.constant 0 : index
      %c0_11 = arith.constant 0 : index
      %13 = vector.load %arg4[%c0_10, %c0_11] : memref<1x32xf32, #tpu.memory_space<vmem>>, vector<1x32xf32>
      %14 = vector.broadcast %13 : vector<1x32xf32> to vector<512x32xf32>
      %15 = arith.mulf %12, %14 : vector<512x32xf32>
      %c0_12 = arith.constant 0 : index
      %c0_13 = arith.constant 0 : index
      %16 = vector.load %arg5[%c0_12, %c0_13] : memref<1x32xf32, #tpu.memory_space<vmem>>, vector<1x32xf32>
      %17 = vector.broadcast %16 : vector<1x32xf32> to vector<512x32xf32>
      %18 = arith.addf %15, %17 : vector<512x32xf32>
      %cst_14 = arith.constant 0.000000e+00 : f32
      %19 = vector.broadcast %cst_14 : f32 to vector<512x32xf32>
      %20 = arith.maximumf %18, %19 : vector<512x32xf32>
      %21 = arith.truncf %20 : vector<512x32xf32> to vector<512x32xbf16>
      %c0_15 = arith.constant 0 : index
      %c0_16 = arith.constant 0 : index
      %22 = vector.load %arg6[%c0_15, %c0_16] : memref<512x32xbf16, #tpu.memory_space<vmem>>, vector<512x32xbf16>
      tpu.vector_store %arg6[%c0_15, %c0_16], %21 {strides = array<i32>} : memref<512x32xbf16, #tpu.memory_space<vmem>>, vector<512x32xbf16>,
    } else {
    }
    return
  }
  func.func @transform_0(%arg0: i32, %arg1: i32) -> (i32, i32) {
    %c0_i32 = arith.constant 0 : i32
    %c0_i32_0 = arith.constant 0 : i32
    return %c0_i32, %arg1 : i32, i32
  }
  func.func @transform_1(%arg0: i32, %arg1: i32) -> (i32, i32) {
    %c0_i32 = arith.constant 0 : i32
    return %arg1, %arg0 : i32, i32
  }
  func.func @transform_2(%arg0: i32, %arg1: i32) -> (i32, i32) {
    %c0_i32 = arith.constant 0 : i32
    %c0_i32_0 = arith.constant 0 : i32
    return %c0_i32, %arg0 : i32, i32
  }
  func.func @transform_3(%arg0: i32, %arg1: i32) -> (i32, i32) {
    %c0_i32 = arith.constant 0 : i32
    %c0_i32_0 = arith.constant 0 : i32
    return %c0_i32, %arg0 : i32, i32
  }
  func.func @transform_4(%arg0: i32, %arg1: i32) -> (i32, i32) {
    %c0_i32 = arith.constant 0 : i32
    %c0_i32_0 = arith.constant 0 : i32
    return %c0_i32, %arg0 : i32, i32
  }
}

module attributes {stable_mosaic.version = 11 : i64} {
  func.func @_grouped_convmm_kernel(%arg0: i32, %arg1: memref<4x392x72xbf16, #tpu.memory_space<vmem>>, %arg2: memref<4x72x8xbf16, #tpu.memory_space<vmem>>, %arg3: memref<4x1x8xf32, #tpu.memory_space<vmem>>, %arg4: memref<4x1x8xf32, #tpu.memory_space<vmem>>, %arg5: memref<392x32xbf16, #tpu.memory_space<vmem>>) attributes {dimension_semantics = [#tpu.dimension_semantics<parallel>], iteration_bounds = array<i64: 1>, scalar_prefetch = 0 : i64, scratch_operands = 0 : i64, tpu.core_type = #tpu.core_type<tc>, window_params = [{transform_indices = @transform_0, window_bounds = array<i64: 4, 392, 72>}, {transform_indices = @transform_1, window_bounds = array<i64: 4, 72, 8>}, {transform_indices = @transform_2, window_bounds = array<i64: 4, 1, 8>}, {transform_indices = @transform_3, window_bounds = array<i64: 4, 1, 8>}, {transform_indices = @transform_4, window_bounds = array<i64: 392, 32>}]} {
    %c0 = arith.constant 0 : index
    %c0_0 = arith.constant 0 : index
    %c0_1 = arith.constant 0 : index
    %0 = vector.load %arg1[%c0, %c0_0, %c0_1] : memref<4x392x72xbf16, #tpu.memory_space<vmem>>, vector<1x392x72xbf16>
    %1 = vector.shape_cast %0 : vector<1x392x72xbf16> to vector<392x72xbf16>
    %c0_2 = arith.constant 0 : index
    %c0_3 = arith.constant 0 : index
    %c0_4 = arith.constant 0 : index
    %2 = vector.load %arg2[%c0_2, %c0_3, %c0_4] : memref<4x72x8xbf16, #tpu.memory_space<vmem>>, vector<1x72x8xbf16>
    %3 = vector.shape_cast %2 : vector<1x72x8xbf16> to vector<72x8xbf16>
    %cst = arith.constant dense<0.000000e+00> : vector<392x8xf32>
    %4 = tpu.matmul %1, %3, %cst {dimension_numbers = #tpu.dot_dimension_numbers<[1], [0], [0], [1], [0, 0, 1, 1], [], []>} : vector<392x72xbf16>, vector<72x8xbf16>, vector<392x8xf32> -> vector<392x8xf32>
    %c0_5 = arith.constant 0 : index
    %c0_6 = arith.constant 0 : index
    %c0_7 = arith.constant 0 : index
    %5 = vector.load %arg3[%c0_5, %c0_6, %c0_7] : memref<4x1x8xf32, #tpu.memory_space<vmem>>, vector<1x1x8xf32>
    %6 = vector.shape_cast %5 : vector<1x1x8xf32> to vector<1x8xf32>
    %7 = vector.broadcast %6 : vector<1x8xf32> to vector<392x8xf32>
    %8 = arith.mulf %4, %7 : vector<392x8xf32>
    %c0_8 = arith.constant 0 : index
    %c0_9 = arith.constant 0 : index
    %c0_10 = arith.constant 0 : index
    %9 = vector.load %arg4[%c0_8, %c0_9, %c0_10] : memref<4x1x8xf32, #tpu.memory_space<vmem>>, vector<1x1x8xf32>
    %10 = vector.shape_cast %9 : vector<1x1x8xf32> to vector<1x8xf32>
    %11 = vector.broadcast %10 : vector<1x8xf32> to vector<392x8xf32>
    %12 = arith.addf %8, %11 : vector<392x8xf32>
    %cst_11 = arith.constant 0.000000e+00 : f32
    %13 = vector.broadcast %cst_11 : f32 to vector<392x8xf32>
    %14 = arith.maximumf %12, %13 : vector<392x8xf32>
    %15 = arith.truncf %14 : vector<392x8xf32> to vector<392x8xbf16>
    %c0_12 = arith.constant 0 : index
    %c0_13 = arith.constant 0 : index
    %16 = vector.load %arg5[%c0_12, %c0_13] : memref<392x32xbf16, #tpu.memory_space<vmem>>, vector<392x8xbf16>
    tpu.vector_store %arg5[%c0_12, %c0_13], %15 {strides = array<i32>} : memref<392x32xbf16, #tpu.memory_space<vmem>>, vector<392x8xbf16>,
    %c1 = arith.constant 1 : index
    %c0_14 = arith.constant 0 : index
    %c0_15 = arith.constant 0 : index
    %17 = vector.load %arg1[%c1, %c0_14, %c0_15] : memref<4x392x72xbf16, #tpu.memory_space<vmem>>, vector<1x392x72xbf16>
    %18 = vector.shape_cast %17 : vector<1x392x72xbf16> to vector<392x72xbf16>
    %c1_16 = arith.constant 1 : index
    %c0_17 = arith.constant 0 : index
    %c0_18 = arith.constant 0 : index
    %19 = vector.load %arg2[%c1_16, %c0_17, %c0_18] : memref<4x72x8xbf16, #tpu.memory_space<vmem>>, vector<1x72x8xbf16>
    %20 = vector.shape_cast %19 : vector<1x72x8xbf16> to vector<72x8xbf16>
    %cst_19 = arith.constant dense<0.000000e+00> : vector<392x8xf32>
    %21 = tpu.matmul %18, %20, %cst_19 {dimension_numbers = #tpu.dot_dimension_numbers<[1], [0], [0], [1], [0, 0, 1, 1], [], []>} : vector<392x72xbf16>, vector<72x8xbf16>, vector<392x8xf32> -> vector<392x8xf32>
    %c1_20 = arith.constant 1 : index
    %c0_21 = arith.constant 0 : index
    %c0_22 = arith.constant 0 : index
    %22 = vector.load %arg3[%c1_20, %c0_21, %c0_22] : memref<4x1x8xf32, #tpu.memory_space<vmem>>, vector<1x1x8xf32>
    %23 = vector.shape_cast %22 : vector<1x1x8xf32> to vector<1x8xf32>
    %24 = vector.broadcast %23 : vector<1x8xf32> to vector<392x8xf32>
    %25 = arith.mulf %21, %24 : vector<392x8xf32>
    %c1_23 = arith.constant 1 : index
    %c0_24 = arith.constant 0 : index
    %c0_25 = arith.constant 0 : index
    %26 = vector.load %arg4[%c1_23, %c0_24, %c0_25] : memref<4x1x8xf32, #tpu.memory_space<vmem>>, vector<1x1x8xf32>
    %27 = vector.shape_cast %26 : vector<1x1x8xf32> to vector<1x8xf32>
    %28 = vector.broadcast %27 : vector<1x8xf32> to vector<392x8xf32>
    %29 = arith.addf %25, %28 : vector<392x8xf32>
    %cst_26 = arith.constant 0.000000e+00 : f32
    %30 = vector.broadcast %cst_26 : f32 to vector<392x8xf32>
    %31 = arith.maximumf %29, %30 : vector<392x8xf32>
    %32 = arith.truncf %31 : vector<392x8xf32> to vector<392x8xbf16>
    %c0_27 = arith.constant 0 : index
    %c8 = arith.constant 8 : index
    %33 = vector.load %arg5[%c0_27, %c8] : memref<392x32xbf16, #tpu.memory_space<vmem>>, vector<392x8xbf16>
    tpu.vector_store %arg5[%c0_27, %c8], %32 {strides = array<i32>} : memref<392x32xbf16, #tpu.memory_space<vmem>>, vector<392x8xbf16>,
    %c2 = arith.constant 2 : index
    %c0_28 = arith.constant 0 : index
    %c0_29 = arith.constant 0 : index
    %34 = vector.load %arg1[%c2, %c0_28, %c0_29] : memref<4x392x72xbf16, #tpu.memory_space<vmem>>, vector<1x392x72xbf16>
    %35 = vector.shape_cast %34 : vector<1x392x72xbf16> to vector<392x72xbf16>
    %c2_30 = arith.constant 2 : index
    %c0_31 = arith.constant 0 : index
    %c0_32 = arith.constant 0 : index
    %36 = vector.load %arg2[%c2_30, %c0_31, %c0_32] : memref<4x72x8xbf16, #tpu.memory_space<vmem>>, vector<1x72x8xbf16>
    %37 = vector.shape_cast %36 : vector<1x72x8xbf16> to vector<72x8xbf16>
    %cst_33 = arith.constant dense<0.000000e+00> : vector<392x8xf32>
    %38 = tpu.matmul %35, %37, %cst_33 {dimension_numbers = #tpu.dot_dimension_numbers<[1], [0], [0], [1], [0, 0, 1, 1], [], []>} : vector<392x72xbf16>, vector<72x8xbf16>, vector<392x8xf32> -> vector<392x8xf32>
    %c2_34 = arith.constant 2 : index
    %c0_35 = arith.constant 0 : index
    %c0_36 = arith.constant 0 : index
    %39 = vector.load %arg3[%c2_34, %c0_35, %c0_36] : memref<4x1x8xf32, #tpu.memory_space<vmem>>, vector<1x1x8xf32>
    %40 = vector.shape_cast %39 : vector<1x1x8xf32> to vector<1x8xf32>
    %41 = vector.broadcast %40 : vector<1x8xf32> to vector<392x8xf32>
    %42 = arith.mulf %38, %41 : vector<392x8xf32>
    %c2_37 = arith.constant 2 : index
    %c0_38 = arith.constant 0 : index
    %c0_39 = arith.constant 0 : index
    %43 = vector.load %arg4[%c2_37, %c0_38, %c0_39] : memref<4x1x8xf32, #tpu.memory_space<vmem>>, vector<1x1x8xf32>
    %44 = vector.shape_cast %43 : vector<1x1x8xf32> to vector<1x8xf32>
    %45 = vector.broadcast %44 : vector<1x8xf32> to vector<392x8xf32>
    %46 = arith.addf %42, %45 : vector<392x8xf32>
    %cst_40 = arith.constant 0.000000e+00 : f32
    %47 = vector.broadcast %cst_40 : f32 to vector<392x8xf32>
    %48 = arith.maximumf %46, %47 : vector<392x8xf32>
    %49 = arith.truncf %48 : vector<392x8xf32> to vector<392x8xbf16>
    %c0_41 = arith.constant 0 : index
    %c16 = arith.constant 16 : index
    %50 = vector.load %arg5[%c0_41, %c16] : memref<392x32xbf16, #tpu.memory_space<vmem>>, vector<392x8xbf16>
    tpu.vector_store %arg5[%c0_41, %c16], %49 {strides = array<i32>} : memref<392x32xbf16, #tpu.memory_space<vmem>>, vector<392x8xbf16>,
    %c3 = arith.constant 3 : index
    %c0_42 = arith.constant 0 : index
    %c0_43 = arith.constant 0 : index
    %51 = vector.load %arg1[%c3, %c0_42, %c0_43] : memref<4x392x72xbf16, #tpu.memory_space<vmem>>, vector<1x392x72xbf16>
    %52 = vector.shape_cast %51 : vector<1x392x72xbf16> to vector<392x72xbf16>
    %c3_44 = arith.constant 3 : index
    %c0_45 = arith.constant 0 : index
    %c0_46 = arith.constant 0 : index
    %53 = vector.load %arg2[%c3_44, %c0_45, %c0_46] : memref<4x72x8xbf16, #tpu.memory_space<vmem>>, vector<1x72x8xbf16>
    %54 = vector.shape_cast %53 : vector<1x72x8xbf16> to vector<72x8xbf16>
    %cst_47 = arith.constant dense<0.000000e+00> : vector<392x8xf32>
    %55 = tpu.matmul %52, %54, %cst_47 {dimension_numbers = #tpu.dot_dimension_numbers<[1], [0], [0], [1], [0, 0, 1, 1], [], []>} : vector<392x72xbf16>, vector<72x8xbf16>, vector<392x8xf32> -> vector<392x8xf32>
    %c3_48 = arith.constant 3 : index
    %c0_49 = arith.constant 0 : index
    %c0_50 = arith.constant 0 : index
    %56 = vector.load %arg3[%c3_48, %c0_49, %c0_50] : memref<4x1x8xf32, #tpu.memory_space<vmem>>, vector<1x1x8xf32>
    %57 = vector.shape_cast %56 : vector<1x1x8xf32> to vector<1x8xf32>
    %58 = vector.broadcast %57 : vector<1x8xf32> to vector<392x8xf32>
    %59 = arith.mulf %55, %58 : vector<392x8xf32>
    %c3_51 = arith.constant 3 : index
    %c0_52 = arith.constant 0 : index
    %c0_53 = arith.constant 0 : index
    %60 = vector.load %arg4[%c3_51, %c0_52, %c0_53] : memref<4x1x8xf32, #tpu.memory_space<vmem>>, vector<1x1x8xf32>
    %61 = vector.shape_cast %60 : vector<1x1x8xf32> to vector<1x8xf32>
    %62 = vector.broadcast %61 : vector<1x8xf32> to vector<392x8xf32>
    %63 = arith.addf %59, %62 : vector<392x8xf32>
    %cst_54 = arith.constant 0.000000e+00 : f32
    %64 = vector.broadcast %cst_54 : f32 to vector<392x8xf32>
    %65 = arith.maximumf %63, %64 : vector<392x8xf32>
    %66 = arith.truncf %65 : vector<392x8xf32> to vector<392x8xbf16>
    %c0_55 = arith.constant 0 : index
    %c24 = arith.constant 24 : index
    %67 = vector.load %arg5[%c0_55, %c24] : memref<392x32xbf16, #tpu.memory_space<vmem>>, vector<392x8xbf16>
    tpu.vector_store %arg5[%c0_55, %c24], %66 {strides = array<i32>} : memref<392x32xbf16, #tpu.memory_space<vmem>>, vector<392x8xbf16>,
    return
  }
  func.func @transform_0(%arg0: i32) -> (i32, i32, i32) {
    %c0_i32 = arith.constant 0 : i32
    %c0_i32_0 = arith.constant 0 : i32
    %c0_i32_1 = arith.constant 0 : i32
    return %arg0, %c0_i32, %c0_i32_0 : i32, i32, i32
  }
  func.func @transform_1(%arg0: i32) -> (i32, i32, i32) {
    %c0_i32 = arith.constant 0 : i32
    %c0_i32_0 = arith.constant 0 : i32
    %c0_i32_1 = arith.constant 0 : i32
    return %arg0, %c0_i32, %c0_i32_0 : i32, i32, i32
  }
  func.func @transform_2(%arg0: i32) -> (i32, i32, i32) {
    %c0_i32 = arith.constant 0 : i32
    %c0_i32_0 = arith.constant 0 : i32
    %c0_i32_1 = arith.constant 0 : i32
    return %arg0, %c0_i32, %c0_i32_0 : i32, i32, i32
  }
  func.func @transform_3(%arg0: i32) -> (i32, i32, i32) {
    %c0_i32 = arith.constant 0 : i32
    %c0_i32_0 = arith.constant 0 : i32
    %c0_i32_1 = arith.constant 0 : i32
    return %arg0, %c0_i32, %c0_i32_0 : i32, i32, i32
  }
  func.func @transform_4(%arg0: i32) -> (i32, i32) {
    %c0_i32 = arith.constant 0 : i32
    %c0_i32_0 = arith.constant 0 : i32
    return %c0_i32, %arg0 : i32, i32
  }
}

module attributes {stable_mosaic.version = 11 : i64} {
  func.func @_convmm_kernel(%arg0: i32, %arg1: i32, %arg2: memref<288x288xbf16, #tpu.memory_space<vmem>>, %arg3: memref<288x32xbf16, #tpu.memory_space<vmem>>, %arg4: memref<1x32xf32, #tpu.memory_space<vmem>>, %arg5: memref<1x32xf32, #tpu.memory_space<vmem>>, %arg6: memref<288x32xbf16, #tpu.memory_space<vmem>>, %arg7: memref<288x32xf32, #tpu.memory_space<vmem>>) attributes {dimension_semantics = [#tpu.dimension_semantics<parallel>, #tpu.dimension_semantics<arbitrary>], iteration_bounds = array<i64: 1, 1>, scalar_prefetch = 0 : i64, scratch_operands = 1 : i64, tpu.core_type = #tpu.core_type<tc>, window_params = [{transform_indices = @transform_0, window_bounds = array<i64: 288, 288>}, {transform_indices = @transform_1, window_bounds = array<i64: 288, 32>}, {transform_indices = @transform_2, window_bounds = array<i64: 1, 32>}, {transform_indices = @transform_3, window_bounds = array<i64: 1, 32>}, {transform_indices = @transform_4, window_bounds = array<i64: 288, 32>}]} {
    %c0 = arith.constant 0 : index
    %c0_0 = arith.constant 0 : index
    %0 = vector.load %arg2[%c0, %c0_0] : memref<288x288xbf16, #tpu.memory_space<vmem>>, vector<288x288xbf16>
    %c0_1 = arith.constant 0 : index
    %c0_2 = arith.constant 0 : index
    %1 = vector.load %arg3[%c0_1, %c0_2] : memref<288x32xbf16, #tpu.memory_space<vmem>>, vector<288x32xbf16>
    %cst = arith.constant dense<0.000000e+00> : vector<288x32xf32>
    %2 = tpu.matmul %0, %1, %cst {dimension_numbers = #tpu.dot_dimension_numbers<[1], [0], [0], [1], [0, 0, 1, 1], [], []>} : vector<288x288xbf16>, vector<288x32xbf16>, vector<288x32xf32> -> vector<288x32xf32>
    %c0_i32 = arith.constant 0 : i32
    %3 = arith.cmpi eq, %arg1, %c0_i32 : i32
    %4 = arith.extui %3 : i1 to i32
    %c0_i32_3 = arith.constant 0 : i32
    %5 = arith.cmpi ne, %4, %c0_i32_3 : i32
    scf.if %5 {
      %c0_8 = arith.constant 0 : index
      %c0_9 = arith.constant 0 : index
      %12 = vector.load %arg7[%c0_8, %c0_9] : memref<288x32xf32, #tpu.memory_space<vmem>>, vector<288x32xf32>
      tpu.vector_store %arg7[%c0_8, %c0_9], %2 {strides = array<i32>} : memref<288x32xf32, #tpu.memory_space<vmem>>, vector<288x32xf32>,
    } else {
    }
    %c0_i32_4 = arith.constant 0 : i32
    %6 = arith.cmpi ne, %arg1, %c0_i32_4 : i32
    %7 = arith.extui %6 : i1 to i32
    %c0_i32_5 = arith.constant 0 : i32
    %8 = arith.cmpi ne, %7, %c0_i32_5 : i32
    scf.if %8 {
      %c0_8 = arith.constant 0 : index
      %c0_9 = arith.constant 0 : index
      %12 = vector.load %arg7[%c0_8, %c0_9] : memref<288x32xf32, #tpu.memory_space<vmem>>, vector<288x32xf32>
      %13 = arith.addf %12, %2 : vector<288x32xf32>
      %c0_10 = arith.constant 0 : index
      %c0_11 = arith.constant 0 : index
      %14 = vector.load %arg7[%c0_10, %c0_11] : memref<288x32xf32, #tpu.memory_space<vmem>>, vector<288x32xf32>
      tpu.vector_store %arg7[%c0_10, %c0_11], %13 {strides = array<i32>} : memref<288x32xf32, #tpu.memory_space<vmem>>, vector<288x32xf32>,
    } else {
    }
    %c0_i32_6 = arith.constant 0 : i32
    %9 = arith.cmpi eq, %arg1, %c0_i32_6 : i32
    %10 = arith.extui %9 : i1 to i32
    %c0_i32_7 = arith.constant 0 : i32
    %11 = arith.cmpi ne, %10, %c0_i32_7 : i32
    scf.if %11 {
      %c0_8 = arith.constant 0 : index
      %c0_9 = arith.constant 0 : index
      %12 = vector.load %arg7[%c0_8, %c0_9] : memref<288x32xf32, #tpu.memory_space<vmem>>, vector<288x32xf32>
      %c0_10 = arith.constant 0 : index
      %c0_11 = arith.constant 0 : index
      %13 = vector.load %arg4[%c0_10, %c0_11] : memref<1x32xf32, #tpu.memory_space<vmem>>, vector<1x32xf32>
      %14 = vector.broadcast %13 : vector<1x32xf32> to vector<288x32xf32>
      %15 = arith.mulf %12, %14 : vector<288x32xf32>
      %c0_12 = arith.constant 0 : index
      %c0_13 = arith.constant 0 : index
      %16 = vector.load %arg5[%c0_12, %c0_13] : memref<1x32xf32, #tpu.memory_space<vmem>>, vector<1x32xf32>
      %17 = vector.broadcast %16 : vector<1x32xf32> to vector<288x32xf32>
      %18 = arith.addf %15, %17 : vector<288x32xf32>
      %cst_14 = arith.constant 0.000000e+00 : f32
      %19 = vector.broadcast %cst_14 : f32 to vector<288x32xf32>
      %20 = arith.maximumf %18, %19 : vector<288x32xf32>
      %21 = arith.truncf %20 : vector<288x32xf32> to vector<288x32xbf16>
      %c0_15 = arith.constant 0 : index
      %c0_16 = arith.constant 0 : index
      %22 = vector.load %arg6[%c0_15, %c0_16] : memref<288x32xbf16, #tpu.memory_space<vmem>>, vector<288x32xbf16>
      tpu.vector_store %arg6[%c0_15, %c0_16], %21 {strides = array<i32>} : memref<288x32xbf16, #tpu.memory_space<vmem>>, vector<288x32xbf16>,
    } else {
    }
    return
  }
  func.func @transform_0(%arg0: i32, %arg1: i32) -> (i32, i32) {
    %c0_i32 = arith.constant 0 : i32
    %c0_i32_0 = arith.constant 0 : i32
    return %c0_i32, %arg1 : i32, i32
  }
  func.func @transform_1(%arg0: i32, %arg1: i32) -> (i32, i32) {
    %c0_i32 = arith.constant 0 : i32
    return %arg1, %arg0 : i32, i32
  }
  func.func @transform_2(%arg0: i32, %arg1: i32) -> (i32, i32) {
    %c0_i32 = arith.constant 0 : i32
    %c0_i32_0 = arith.constant 0 : i32
    return %c0_i32, %arg0 : i32, i32
  }
  func.func @transform_3(%arg0: i32, %arg1: i32) -> (i32, i32) {
    %c0_i32 = arith.constant 0 : i32
    %c0_i32_0 = arith.constant 0 : i32
    return %c0_i32, %arg0 : i32, i32
  }
  func.func @transform_4(%arg0: i32, %arg1: i32) -> (i32, i32) {
    %c0_i32 = arith.constant 0 : i32
    %c0_i32_0 = arith.constant 0 : i32
    return %c0_i32, %arg0 : i32, i32
  }
}

module attributes {stable_mosaic.version = 11 : i64} {
  func.func @_convmm_pool_kernel(%arg0: i32, %arg1: i32, %arg2: memref<200x288xbf16, #tpu.memory_space<vmem>>, %arg3: memref<288x64xbf16, #tpu.memory_space<vmem>>, %arg4: memref<1x64xf32, #tpu.memory_space<vmem>>, %arg5: memref<1x64xf32, #tpu.memory_space<vmem>>, %arg6: memref<2x200xf32, #tpu.memory_space<vmem>>, %arg7: memref<2x64xf32, #tpu.memory_space<vmem>>, %arg8: memref<200x64xf32, #tpu.memory_space<vmem>>) attributes {dimension_semantics = [#tpu.dimension_semantics<parallel>, #tpu.dimension_semantics<arbitrary>], iteration_bounds = array<i64: 1, 1>, scalar_prefetch = 0 : i64, scratch_operands = 1 : i64, tpu.core_type = #tpu.core_type<tc>, window_params = [{transform_indices = @transform_0, window_bounds = array<i64: 200, 288>}, {transform_indices = @transform_1, window_bounds = array<i64: 288, 64>}, {transform_indices = @transform_2, window_bounds = array<i64: 1, 64>}, {transform_indices = @transform_3, window_bounds = array<i64: 1, 64>}, {pipeline_mode = #tpu.pipeline_mode<synchronous>, transform_indices = @transform_4, window_bounds = array<i64: 2, 200>}, {transform_indices = @transform_5, window_bounds = array<i64: 2, 64>}]} {
    %c0 = arith.constant 0 : index
    %c0_0 = arith.constant 0 : index
    %0 = vector.load %arg2[%c0, %c0_0] : memref<200x288xbf16, #tpu.memory_space<vmem>>, vector<200x288xbf16>
    %c0_1 = arith.constant 0 : index
    %c0_2 = arith.constant 0 : index
    %1 = vector.load %arg3[%c0_1, %c0_2] : memref<288x64xbf16, #tpu.memory_space<vmem>>, vector<288x64xbf16>
    %cst = arith.constant dense<0.000000e+00> : vector<200x64xf32>
    %2 = tpu.matmul %0, %1, %cst {dimension_numbers = #tpu.dot_dimension_numbers<[1], [0], [0], [1], [0, 0, 1, 1], [], []>} : vector<200x288xbf16>, vector<288x64xbf16>, vector<200x64xf32> -> vector<200x64xf32>
    %c0_i32 = arith.constant 0 : i32
    %3 = arith.cmpi eq, %arg1, %c0_i32 : i32
    %4 = arith.extui %3 : i1 to i32
    %c0_i32_3 = arith.constant 0 : i32
    %5 = arith.cmpi ne, %4, %c0_i32_3 : i32
    scf.if %5 {
      %c0_8 = arith.constant 0 : index
      %c0_9 = arith.constant 0 : index
      %12 = vector.load %arg8[%c0_8, %c0_9] : memref<200x64xf32, #tpu.memory_space<vmem>>, vector<200x64xf32>
      tpu.vector_store %arg8[%c0_8, %c0_9], %2 {strides = array<i32>} : memref<200x64xf32, #tpu.memory_space<vmem>>, vector<200x64xf32>,
    } else {
    }
    %c0_i32_4 = arith.constant 0 : i32
    %6 = arith.cmpi ne, %arg1, %c0_i32_4 : i32
    %7 = arith.extui %6 : i1 to i32
    %c0_i32_5 = arith.constant 0 : i32
    %8 = arith.cmpi ne, %7, %c0_i32_5 : i32
    scf.if %8 {
      %c0_8 = arith.constant 0 : index
      %c0_9 = arith.constant 0 : index
      %12 = vector.load %arg8[%c0_8, %c0_9] : memref<200x64xf32, #tpu.memory_space<vmem>>, vector<200x64xf32>
      %13 = arith.addf %12, %2 : vector<200x64xf32>
      %c0_10 = arith.constant 0 : index
      %c0_11 = arith.constant 0 : index
      %14 = vector.load %arg8[%c0_10, %c0_11] : memref<200x64xf32, #tpu.memory_space<vmem>>, vector<200x64xf32>
      tpu.vector_store %arg8[%c0_10, %c0_11], %13 {strides = array<i32>} : memref<200x64xf32, #tpu.memory_space<vmem>>, vector<200x64xf32>,
    } else {
    }
    %c0_i32_6 = arith.constant 0 : i32
    %9 = arith.cmpi eq, %arg1, %c0_i32_6 : i32
    %10 = arith.extui %9 : i1 to i32
    %c0_i32_7 = arith.constant 0 : i32
    %11 = arith.cmpi ne, %10, %c0_i32_7 : i32
    scf.if %11 {
      %c0_8 = arith.constant 0 : index
      %c0_9 = arith.constant 0 : index
      %12 = vector.load %arg8[%c0_8, %c0_9] : memref<200x64xf32, #tpu.memory_space<vmem>>, vector<200x64xf32>
      %c0_10 = arith.constant 0 : index
      %c0_11 = arith.constant 0 : index
      %13 = vector.load %arg4[%c0_10, %c0_11] : memref<1x64xf32, #tpu.memory_space<vmem>>, vector<1x64xf32>
      %14 = vector.broadcast %13 : vector<1x64xf32> to vector<200x64xf32>
      %15 = arith.mulf %12, %14 : vector<200x64xf32>
      %c0_12 = arith.constant 0 : index
      %c0_13 = arith.constant 0 : index
      %16 = vector.load %arg5[%c0_12, %c0_13] : memref<1x64xf32, #tpu.memory_space<vmem>>, vector<1x64xf32>
      %17 = vector.broadcast %16 : vector<1x64xf32> to vector<200x64xf32>
      %18 = arith.addf %15, %17 : vector<200x64xf32>
      %cst_14 = arith.constant 0.000000e+00 : f32
      %19 = vector.broadcast %cst_14 : f32 to vector<200x64xf32>
      %20 = arith.maximumf %18, %19 : vector<200x64xf32>
      %c0_15 = arith.constant 0 : index
      %c0_16 = arith.constant 0 : index
      %21 = vector.load %arg6[%c0_15, %c0_16] : memref<2x200xf32, #tpu.memory_space<vmem>>, vector<2x200xf32>
      %cst_17 = arith.constant dense<0.000000e+00> : vector<2x64xf32>
      %22 = tpu.matmul %21, %20, %cst_17 {dimension_numbers = #tpu.dot_dimension_numbers<[1], [0], [0], [1], [0, 0, 1, 1], [], []>} : vector<2x200xf32>, vector<200x64xf32>, vector<2x64xf32> -> vector<2x64xf32>
      %c0_18 = arith.constant 0 : index
      %c0_19 = arith.constant 0 : index
      %23 = vector.load %arg7[%c0_18, %c0_19] : memref<2x64xf32, #tpu.memory_space<vmem>>, vector<2x64xf32>
      tpu.vector_store %arg7[%c0_18, %c0_19], %22 {strides = array<i32>} : memref<2x64xf32, #tpu.memory_space<vmem>>, vector<2x64xf32>,
    } else {
    }
    return
  }
  func.func @transform_0(%arg0: i32, %arg1: i32) -> (i32, i32) {
    %c0_i32 = arith.constant 0 : i32
    %c0_i32_0 = arith.constant 0 : i32
    return %c0_i32, %arg1 : i32, i32
  }
  func.func @transform_1(%arg0: i32, %arg1: i32) -> (i32, i32) {
    %c0_i32 = arith.constant 0 : i32
    return %arg1, %arg0 : i32, i32
  }
  func.func @transform_2(%arg0: i32, %arg1: i32) -> (i32, i32) {
    %c0_i32 = arith.constant 0 : i32
    %c0_i32_0 = arith.constant 0 : i32
    return %c0_i32, %arg0 : i32, i32
  }
  func.func @transform_3(%arg0: i32, %arg1: i32) -> (i32, i32) {
    %c0_i32 = arith.constant 0 : i32
    %c0_i32_0 = arith.constant 0 : i32
    return %c0_i32, %arg0 : i32, i32
  }
  func.func @transform_4(%arg0: i32, %arg1: i32) -> (i32, i32) {
    %c0_i32 = arith.constant 0 : i32
    %c0_i32_0 = arith.constant 0 : i32
    %c0_i32_1 = arith.constant 0 : i32
    return %c0_i32, %c0_i32_0 : i32, i32
  }
  func.func @transform_5(%arg0: i32, %arg1: i32) -> (i32, i32) {
    %c0_i32 = arith.constant 0 : i32
    %c0_i32_0 = arith.constant 0 : i32
    return %c0_i32, %arg0 : i32, i32
  }
}

module attributes {stable_mosaic.version = 11 : i64} {
  func.func @_se_fc_kernel(%arg0: memref<2x64xf32, #tpu.memory_space<vmem>>, %arg1: memref<64x8xbf16, #tpu.memory_space<vmem>>, %arg2: memref<8x64xbf16, #tpu.memory_space<vmem>>, %arg3: memref<64x16xbf16, #tpu.memory_space<vmem>>, %arg4: memref<1x16xf32, #tpu.memory_space<vmem>>, %arg5: memref<2x16xf32, #tpu.memory_space<vmem>>) attributes {dimension_semantics = [], scalar_prefetch = 0 : i64, scratch_operands = 0 : i64, tpu.core_type = #tpu.core_type<tc>} {
    %c0 = arith.constant 0 : index
    %c0_0 = arith.constant 0 : index
    %0 = vector.load %arg0[%c0, %c0_0] : memref<2x64xf32, #tpu.memory_space<vmem>>, vector<2x64xf32>
    %1 = arith.truncf %0 : vector<2x64xf32> to vector<2x64xbf16>
    %c0_1 = arith.constant 0 : index
    %c0_2 = arith.constant 0 : index
    %2 = vector.load %arg1[%c0_1, %c0_2] : memref<64x8xbf16, #tpu.memory_space<vmem>>, vector<64x8xbf16>
    %cst = arith.constant dense<0.000000e+00> : vector<2x8xf32>
    %3 = tpu.matmul %1, %2, %cst {dimension_numbers = #tpu.dot_dimension_numbers<[1], [0], [0], [1], [0, 0, 1, 1], [], []>} : vector<2x64xbf16>, vector<64x8xbf16>, vector<2x8xf32> -> vector<2x8xf32>
    %cst_3 = arith.constant 0.000000e+00 : f32
    %4 = vector.broadcast %cst_3 : f32 to vector<2x8xf32>
    %5 = arith.maximumf %3, %4 : vector<2x8xf32>
    %6 = arith.truncf %5 : vector<2x8xf32> to vector<2x8xbf16>
    %c0_4 = arith.constant 0 : index
    %c0_5 = arith.constant 0 : index
    %7 = vector.load %arg2[%c0_4, %c0_5] : memref<8x64xbf16, #tpu.memory_space<vmem>>, vector<8x64xbf16>
    %cst_6 = arith.constant dense<0.000000e+00> : vector<2x64xf32>
    %8 = tpu.matmul %6, %7, %cst_6 {dimension_numbers = #tpu.dot_dimension_numbers<[1], [0], [0], [1], [0, 0, 1, 1], [], []>} : vector<2x8xbf16>, vector<8x64xbf16>, vector<2x64xf32> -> vector<2x64xf32>
    %cst_7 = arith.constant 0.000000e+00 : f32
    %9 = vector.broadcast %cst_7 : f32 to vector<2x64xf32>
    %10 = arith.subf %9, %8 : vector<2x64xf32>
    %11 = math.exp %10 : vector<2x64xf32>
    %cst_8 = arith.constant 1.000000e+00 : f32
    %12 = vector.broadcast %cst_8 : f32 to vector<2x64xf32>
    %13 = arith.addf %12, %11 : vector<2x64xf32>
    %cst_9 = arith.constant 1.000000e+00 : f32
    %14 = vector.broadcast %cst_9 : f32 to vector<2x64xf32>
    %15 = arith.divf %14, %13 : vector<2x64xf32>
    %16 = arith.mulf %0, %15 : vector<2x64xf32>
    %17 = arith.truncf %16 : vector<2x64xf32> to vector<2x64xbf16>
    %c0_10 = arith.constant 0 : index
    %c0_11 = arith.constant 0 : index
    %18 = vector.load %arg3[%c0_10, %c0_11] : memref<64x16xbf16, #tpu.memory_space<vmem>>, vector<64x16xbf16>
    %cst_12 = arith.constant dense<0.000000e+00> : vector<2x16xf32>
    %19 = tpu.matmul %17, %18, %cst_12 {dimension_numbers = #tpu.dot_dimension_numbers<[1], [0], [0], [1], [0, 0, 1, 1], [], []>} : vector<2x64xbf16>, vector<64x16xbf16>, vector<2x16xf32> -> vector<2x16xf32>
    %c0_13 = arith.constant 0 : index
    %c0_14 = arith.constant 0 : index
    %20 = vector.load %arg4[%c0_13, %c0_14] : memref<1x16xf32, #tpu.memory_space<vmem>>, vector<1x16xf32>
    %21 = vector.broadcast %20 : vector<1x16xf32> to vector<2x16xf32>
    %22 = arith.addf %19, %21 : vector<2x16xf32>
    %c0_15 = arith.constant 0 : index
    %c0_16 = arith.constant 0 : index
    %23 = vector.load %arg5[%c0_15, %c0_16] : memref<2x16xf32, #tpu.memory_space<vmem>>, vector<2x16xf32>
    tpu.vector_store %arg5[%c0_15, %c0_16], %22 {strides = array<i32>} : memref<2x16xf32, #tpu.memory_space<vmem>>, vector<2x16xf32>,
    return
  }
}

</mosaic_0001>

<llo_original>
// kernel: _lambda_.5
$region0: #{_lambda_.5}
  #allocation0 [shape = 'u32[]', space=smem, size = 0x4, offset = 0x4, fixed_abs, tag = 'smem constant byte address 0x4 - core index']
  #allocation1 [shape = 'u32[144,128]{1,0:T(1,128)}', space=vmem, size = 0x12000, scoped, tag = 'internal scratch']
  #allocation2 [shape = 'f32[512,32]{1,0:T(8,128)}', space=vmem, size = 0x40000, scoped, tag = 'scratch operand']
  %s0 = inlined_call_operand.vmem [shape: bf16[512,72], index: 0, kind: input, shape index: {}]
  %s1 = inlined_call_operand.vmem [shape: bf16[72,32], index: 1, kind: input, shape index: {}]
  %s2 = inlined_call_operand.vmem [shape: f32[1,32], index: 2, kind: input, shape index: {}]
  %s3 = inlined_call_operand.vmem [shape: f32[1,32], index: 3, kind: input, shape index: {}]
  %s4 = inlined_call_operand.vmem [shape: bf16[512,32], index: 4, kind: output, shape index: {}]
  %s5 = sld [smem:[#allocation0]]
  $region38: #{_lambda_.5} parent=0
    _
  %s7 = ssub.s32 1, %s5
  %s8 = scalar_select 0, %s7, %s5
  // Predicated region
  $region2: #{_lambda_.5} parent=0 // pred_check
    _
  $region3: #{_lambda_.5} parent=0 // pred_check_branch
    %10 = sbr.rel (0) target = $region5
  $region4: #{_lambda_.5} parent=0 // pred_region
    _
  $region5: #{_lambda_.5} parent=0 // pred_fallthru
    _
  // Predicated region
  $region6: #{_lambda_.5} parent=0 // pred_check
    _
  $region7: #{_lambda_.5} parent=0 // pred_check_branch
    %12 = sbr.rel (0) target = $region9
  $region8: #{_lambda_.5} parent=0 // pred_region
    _
  $region9: #{_lambda_.5} parent=0 // pred_fallthru
    _
  // Predicated region
  $region10: #{_lambda_.5} parent=0 // pred_check
    _
  $region11: #{_lambda_.5} parent=0 // pred_check_branch
    %14 = sbr.rel (0) target = $region13
  $region12: #{_lambda_.5} parent=0 // pred_region
    _
  $region13: #{_lambda_.5} parent=0 // pred_fallthru
    _
  // Predicated region
  $region14: #{_lambda_.5} parent=0 // pred_check
    _
  $region15: #{_lambda_.5} parent=0 // pred_check_branch
    %16 = sbr.rel (0) target = $region17
  $region16: #{_lambda_.5} parent=0 // pred_region
    _
  $region17: #{_lambda_.5} parent=0 // pred_fallthru
    _
  %v18 = vld [vmem:[%s0] sm:$0xf]
  %v19 = vld [vmem:[%s0 + $0x4] sm:$0xf]
  %v20 = vld [vmem:[%s0 + $0x8] sm:$0xf]
  %v21 = vld [vmem:[%s0 + $0xc] sm:$0xf]
  %v22 = vld [vmem:[%s0 + $0x10] sm:$0xf]
  %v23 = vld [vmem:[%s0 + $0x14] sm:$0xf]
  %v24 = vld [vmem:[%s0 + $0x18] sm:$0xf]
  %v25 = vld [vmem:[%s0 + $0x1c] sm:$0xf]
  %v26 = vld [vmem:[%s0 + $0x20] sm:$0xf]
  %v27 = vld [vmem:[%s0 + $0x24] sm:$0xf]
  %v28 = vld [vmem:[%s0 + $0x28] sm:$0xf]
  %v29 = vld [vmem:[%s0 + $0x2c] sm:$0xf]
  %v30 = vld [vmem:[%s0 + $0x30] sm:$0xf]
  %v31 = vld [vmem:[%s0 + $0x34] sm:$0xf]
  %v32 = vld [vmem:[%s0 + $0x38] sm:$0xf]
  %v33 = vld [vmem:[%s0 + $0x3c] sm:$0xf]
  %v34 = vld [vmem:[%s0 + $0x40] sm:$0xf]
  %v35 = vld [vmem:[%s0 + $0x44] sm:$0xf]
  %v36 = vld [vmem:[%s0 + $0x48] sm:$0xf]
  %v37 = vld [vmem:[%s0 + $0x4c] sm:$0xf]
  %v38 = vld [vmem:[%s0 + $0x50] sm:$0xf]
  %v39 = vld [vmem:[%s0 + $0x54] sm:$0xf]
  %v40 = vld [vmem:[%s0 + $0x58] sm:$0xf]
  %v41 = vld [vmem:[%s0 + $0x5c] sm:$0xf]
  %v42 = vld [vmem:[%s0 + $0x60] sm:$0xf]
  %v43 = vld [vmem:[%s0 + $0x64] sm:$0xf]
  %v44 = vld [vmem:[%s0 + $0x68] sm:$0xf]
  %v45 = vld [vmem:[%s0 + $0x6c] sm:$0xf]
  %v46 = vld [vmem:[%s0 + $0x70] sm:$0xf]
  %v47 = vld [vmem:[%s0 + $0x74] sm:$0xf]
  %v48 = vld [vmem:[%s0 + $0x78] sm:$0xf]
  %v49 = vld [vmem:[%s0 + $0x7c] sm:$0xf]
  %v50 = vld [vmem:[%s0 + $0x80] sm:$0xf]
  %v51 = vld [vmem:[%s0 + $0x84] sm:$0xf]
  %v52 = vld [vmem:[%s0 + $0x88] sm:$0xf]
  %v53 = vld [vmem:[%s0 + $0x8c] sm:$0xf]
  %v54 = vld [vmem:[%s0 + $0x90] sm:$0xf]
  %v55 = vld [vmem:[%s0 + $0x94] sm:$0xf]
  %v56 = vld [vmem:[%s0 + $0x98] sm:$0xf]
  %v57 = vld [vmem:[%s0 + $0x9c] sm:$0xf]
  %v58 = vld [vmem:[%s0 + $0xa0] sm:$0xf]
  %v59 = vld [vmem:[%s0 + $0xa4] sm:$0xf]
  %v60 = vld [vmem:[%s0 + $0xa8] sm:$0xf]
  %v61 = vld [vmem:[%s0 + $0xac] sm:$0xf]
  %v62 = vld [vmem:[%s0 + $0xb0] sm:$0xf]
  %v63 = vld [vmem:[%s0 + $0xb4] sm:$0xf]
  %v64 = vld [vmem:[%s0 + $0xb8] sm:$0xf]
  %v65 = vld [vmem:[%s0 + $0xbc] sm:$0xf]
  %v66 = vld [vmem:[%s0 + $0xc0] sm:$0xf]
  %v67 = vld [vmem:[%s0 + $0xc4] sm:$0xf]
  %v68 = vld [vmem:[%s0 + $0xc8] sm:$0xf]
  %v69 = vld [vmem:[%s0 + $0xcc] sm:$0xf]
  %v70 = vld [vmem:[%s0 + $0xd0] sm:$0xf]
  %v71 = vld [vmem:[%s0 + $0xd4] sm:$0xf]
  %v72 = vld [vmem:[%s0 + $0xd8] sm:$0xf]
  %v73 = vld [vmem:[%s0 + $0xdc] sm:$0xf]
  %v74 = vld [vmem:[%s0 + $0xe0] sm:$0xf]
  %v75 = vld [vmem:[%s0 + $0xe4] sm:$0xf]
  %v76 = vld [vmem:[%s0 + $0xe8] sm:$0xf]
  %v77 = vld [vmem:[%s0 + $0xec] sm:$0xf]
  %v78 = vld [vmem:[%s0 + $0xf0] sm:$0xf]
  %v79 = vld [vmem:[%s0 + $0xf4] sm:$0xf]
  %v80 = vld [vmem:[%s0 + $0xf8] sm:$0xf]
  %v81 = vld [vmem:[%s0 + $0xfc] sm:$0xf]
  %v82 = vld [vmem:[%s1] sm:$0xf]
  %v83 = vld [vmem:[%s1 + $0x4] sm:$0xf]
  %v84 = vld [vmem:[%s1 + $0x8] sm:$0xf]
  %v85 = vld [vmem:[%s1 + $0xc] sm:$0xf]
  %v86 = vld [vmem:[%s1 + $0x10] sm:$0xf]
  %v87 = vld [vmem:[%s1 + $0x14] sm:$0xf]
  %v88 = vld [vmem:[%s1 + $0x18] sm:$0xf]
  %v89 = vld [vmem:[%s1 + $0x1c] sm:$0xf]
  %v90 = vld [vmem:[%s1 + $0x20] sm:$0xf]
  %v155 = vunpack.c.l.b16 %v18
  %v156 = vunpack.c.l.b16 %v19
  %v157 = vunpack.c.l.b16 %v20
  %v158 = vunpack.c.l.b16 %v21
  %v159 = vunpack.c.l.b16 %v22
  %v160 = vunpack.c.l.b16 %v23
  %v161 = vunpack.c.l.b16 %v24
  %v162 = vunpack.c.l.b16 %v25
  %v163 = vunpack.c.l.b16 %v26
  %v164 = vunpack.c.l.b16 %v27
  %v165 = vunpack.c.l.b16 %v28
  %v166 = vunpack.c.l.b16 %v29
  %v167 = vunpack.c.l.b16 %v30
  %v168 = vunpack.c.l.b16 %v31
  %v169 = vunpack.c.l.b16 %v32
  %v170 = vunpack.c.l.b16 %v33
  %v171 = vunpack.c.l.b16 %v34
  %v172 = vunpack.c.l.b16 %v35
  %v173 = vunpack.c.l.b16 %v36
  %v174 = vunpack.c.l.b16 %v37
  %v175 = vunpack.c.l.b16 %v38
  %v176 = vunpack.c.l.b16 %v39
  %v177 = vunpack.c.l.b16 %v40
  %v178 = vunpack.c.l.b16 %v41
  %v179 = vunpack.c.l.b16 %v42
  %v180 = vunpack.c.l.b16 %v43
  %v181 = vunpack.c.l.b16 %v44
  %v182 = vunpack.c.l.b16 %v45
  %v183 = vunpack.c.l.b16 %v46
  %v184 = vunpack.c.l.b16 %v47
  %v185 = vunpack.c.l.b16 %v48
  %v186 = vunpack.c.l.b16 %v49
  %v187 = vunpack.c.l.b16 %v50
  %v188 = vunpack.c.l.b16 %v51
  %v189 = vunpack.c.l.b16 %v52
  %v190 = vunpack.c.l.b16 %v53
  %v191 = vunpack.c.l.b16 %v54
  %v192 = vunpack.c.l.b16 %v55
  %v193 = vunpack.c.l.b16 %v56
  %v194 = vunpack.c.l.b16 %v57
  %v195 = vunpack.c.l.b16 %v58
  %v196 = vunpack.c.l.b16 %v59
  %v197 = vunpack.c.l.b16 %v60
  %v198 = vunpack.c.l.b16 %v61
  %v199 = vunpack.c.l.b16 %v62
  %v200 = vunpack.c.l.b16 %v63
  %v201 = vunpack.c.l.b16 %v64
  %v202 = vunpack.c.l.b16 %v65
  %v203 = vunpack.c.l.b16 %v66
  %v204 = vunpack.c.l.b16 %v67
  %v205 = vunpack.c.l.b16 %v68
  %v206 = vunpack.c.l.b16 %v69
  %v207 = vunpack.c.l.b16 %v70
  %v208 = vunpack.c.l.b16 %v71
  %v209 = vunpack.c.l.b16 %v72
  %v210 = vunpack.c.l.b16 %v73
  %v211 = vunpack.c.l.b16 %v74
  %v212 = vunpack.c.l.b16 %v75
  %v213 = vunpack.c.l.b16 %v76
  %v214 = vunpack.c.l.b16 %v77
  %v215 = vunpack.c.l.b16 %v78
  %v216 = vunpack.c.l.b16 %v79
  %v217 = vunpack.c.l.b16 %v80
  %v218 = vunpack.c.l.b16 %v81
  %v219 = vpack.c.b16 %v156, %v155
  %v220 = vpack.c.b16 %v158, %v157
  %v221 = vpack.c.b16 %v160, %v159
  %v222 = vpack.c.b16 %v162, %v161
  %v223 = vpack.c.b16 %v164, %v163
  %v224 = vpack.c.b16 %v166, %v165
  %v225 = vpack.c.b16 %v168, %v167
  %v226 = vpack.c.b16 %v170, %v169
  %v227 = vpack.c.b16 %v172, %v171
  %v228 = vpack.c.b16 %v174, %v173
  %v229 = vpack.c.b16 %v176, %v175
  %v230 = vpack.c.b16 %v178, %v177
  %v231 = vpack.c.b16 %v180, %v179
  %v232 = vpack.c.b16 %v182, %v181
  %v233 = vpack.c.b16 %v184, %v183
  %v234 = vpack.c.b16 %v186, %v185
  %v235 = vpack.c.b16 %v188, %v187
  %v236 = vpack.c.b16 %v190, %v189
  %v237 = vpack.c.b16 %v192, %v191
  %v238 = vpack.c.b16 %v194, %v193
  %v239 = vpack.c.b16 %v196, %v195
  %v240 = vpack.c.b16 %v198, %v197
  %v241 = vpack.c.b16 %v200, %v199
  %v242 = vpack.c.b16 %v202, %v201
  %v243 = vpack.c.b16 %v204, %v203
  %v244 = vpack.c.b16 %v206, %v205
  %v245 = vpack.c.b16 %v208, %v207
  %v246 = vpack.c.b16 %v210, %v209
  %v247 = vpack.c.b16 %v212, %v211
  %v248 = vpack.c.b16 %v214, %v213
  %v249 = vpack.c.b16 %v216, %v215
  %v250 = vpack.c.b16 %v218, %v217
  %v260 = vunpack.c.l.b16 %v82
  %v261 = vunpack.c.l.b16 %v83
  %v262 = vunpack.c.l.b16 %v84
  %v263 = vunpack.c.l.b16 %v85
  %v264 = vunpack.c.l.b16 %v86
  %v265 = vunpack.c.l.b16 %v87
  %v266 = vunpack.c.l.b16 %v88
  %v267 = vunpack.c.l.b16 %v89
  %v268 = vunpack.c.l.b16 %v90
  %v269 = vpack.c.b16 %v261, %v260
  %v270 = vpack.c.b16 %v263, %v262
  %v271 = vpack.c.b16 %v265, %v264
  %v272 = vpack.c.b16 %v267, %v266
  %v273 = vpack.c.b16 %v268, %v268
  %vm278 = vcmask 588800
  %v280 = vsel %vm278, %v219, 0
  %v283 = vsel %vm278, %v220, 0
  %v286 = vsel %vm278, %v221, 0
  %v289 = vsel %vm278, %v222, 0
  %v292 = vsel %vm278, %v223, 0
  %v295 = vsel %vm278, %v224, 0
  %v298 = vsel %vm278, %v225, 0
  %v301 = vsel %vm278, %v226, 0
  %v304 = vsel %vm278, %v227, 0
  %v307 = vsel %vm278, %v228, 0
  %v310 = vsel %vm278, %v229, 0
  %v313 = vsel %vm278, %v230, 0
  %v316 = vsel %vm278, %v231, 0
  %v319 = vsel %vm278, %v232, 0
  %v322 = vsel %vm278, %v233, 0
  %v325 = vsel %vm278, %v234, 0
  %v328 = vsel %vm278, %v235, 0
  %v331 = vsel %vm278, %v236, 0
  %v334 = vsel %vm278, %v237, 0
  %v337 = vsel %vm278, %v238, 0
  %v340 = vsel %vm278, %v239, 0
  %v343 = vsel %vm278, %v240, 0
  %v346 = vsel %vm278, %v241, 0
  %v349 = vsel %vm278, %v242, 0
  %v352 = vsel %vm278, %v243, 0
  %v355 = vsel %vm278, %v244, 0
  %v358 = vsel %vm278, %v245, 0
  %v361 = vsel %vm278, %v246, 0
  %v364 = vsel %vm278, %v247, 0
  %v367 = vsel %vm278, %v248, 0
  %v370 = vsel %vm278, %v249, 0
  %v373 = vsel %vm278, %v250, 0
  %vm375 = vcmask 1043456
  %v377 = vsel %vm375, %v273, 0
  %379 = vmatprep.subr.bf16.mxu0 0
  %380 = vmatpush1.bf16.msra.mxu0 0
  %381 = vmatprep.subr.bf16.mxu0 0
  %382 = vmatpush1.bf16.msra.mxu0 0
  %383 = vmatprep.subr.bf16.mxu0 0
  %384 = vmatpush1.bf16.msra.mxu0 0
  %385 = vmatprep.subr.bf16.mxu0 0
  %386 = vmatpush1.bf16.msra.mxu0 %v377
  %387 = vmatprep.subr.bf16.mxu0 0
  %388 = vmatpush1.bf16.msra.mxu0 %v272
  %389 = vmatprep.subr.bf16.mxu0 0
  %390 = vmatpush1.bf16.msra.mxu0 %v271
  %391 = vmatprep.subr.bf16.mxu0 0
  %392 = vmatpush1.bf16.msra.mxu0 %v270
  %393 = vmatprep.subr.bf16.mxu0 0
  %394 = vmatpush1.bf16.msra.mxu0 %v269
  %395 = vmatprep.subr.bf16.mxu0 0
  %396 = vmatpush2.bf16.msra.mxu0 0
  %397 = vmatprep.subr.bf16.mxu0 0
  %398 = vmatpush2.bf16.msra.mxu0 0
  %399 = vmatprep.subr.bf16.mxu0 0
  %400 = vmatpush2.bf16.msra.mxu0 0
  %401 = vmatprep.subr.bf16.mxu0 0
  %402 = vmatpush2.bf16.msra.mxu0 0
  %403 = vmatprep.subr.bf16.mxu0 0
  %404 = vmatpush2.bf16.msra.mxu0 0
  %405 = vmatprep.subr.bf16.mxu0 0
  %406 = vmatpush2.bf16.msra.mxu0 0
  %407 = vmatprep.subr.bf16.mxu0 0
  %408 = vmatpush2.bf16.msra.mxu0 0
  %409 = vmatprep.subr.bf16.mxu0 0
  %410 = vmatpush2.bf16.msra.mxu0 0
  %411 = vmatprep.mubr.bf16.mxu0 0
  %412 = vmatmul.mubr.bf16.gmra.mxu0 %v280
  %v413 = vpop.f32.mrf.mxu0
  %v414 = vadd.f32 0.0, %v413
  %v415 = vpop.f32.mrf.mxu0
  %v416 = vpop.f32.mrf.mxu0
  %v417 = vadd.f32 0.0, %v416
  %v418 = vpop.f32.mrf.mxu0
  %419 = vmatprep.mubr.bf16.mxu0 0
  %420 = vmatmul.mubr.bf16.gmra.mxu0 %v283
  %v421 = vpop.f32.mrf.mxu0
  %v422 = vadd.f32 0.0, %v421
  %v423 = vpop.f32.mrf.mxu0
  %v424 = vpop.f32.mrf.mxu0
  %v425 = vadd.f32 0.0, %v424
  %v426 = vpop.f32.mrf.mxu0
  %427 = vmatprep.mubr.bf16.mxu0 0
  %428 = vmatmul.mubr.bf16.gmra.mxu0 %v286
  %v429 = vpop.f32.mrf.mxu0
  %v430 = vadd.f32 0.0, %v429
  %v431 = vpop.f32.mrf.mxu0
  %v432 = vpop.f32.mrf.mxu0
  %v433 = vadd.f32 0.0, %v432
  %v434 = vpop.f32.mrf.mxu0
  %435 = vmatprep.mubr.bf16.mxu0 0
  %436 = vmatmul.mubr.bf16.gmra.mxu0 %v289
  %v437 = vpop.f32.mrf.mxu0
  %v438 = vadd.f32 0.0, %v437
  %v439 = vpop.f32.mrf.mxu0
  %v440 = vpop.f32.mrf.mxu0
  %v441 = vadd.f32 0.0, %v440
  %v442 = vpop.f32.mrf.mxu0
  %443 = vmatprep.mubr.bf16.mxu0 0
  %444 = vmatmul.mubr.bf16.gmra.mxu0 %v292
  %v445 = vpop.f32.mrf.mxu0
  %v446 = vadd.f32 0.0, %v445
  %v447 = vpop.f32.mrf.mxu0
  %v448 = vpop.f32.mrf.mxu0
  %v449 = vadd.f32 0.0, %v448
  %v450 = vpop.f32.mrf.mxu0
  %451 = vmatprep.mubr.bf16.mxu0 0
  %452 = vmatmul.mubr.bf16.gmra.mxu0 %v295
  %v453 = vpop.f32.mrf.mxu0
  %v454 = vadd.f32 0.0, %v453
  %v455 = vpop.f32.mrf.mxu0
  %v456 = vpop.f32.mrf.mxu0
  %v457 = vadd.f32 0.0, %v456
  %v458 = vpop.f32.mrf.mxu0
  %459 = vmatprep.mubr.bf16.mxu0 0
  %460 = vmatmul.mubr.bf16.gmra.mxu0 %v298
  %v461 = vpop.f32.mrf.mxu0
  %v462 = vadd.f32 0.0, %v461
  %v463 = vpop.f32.mrf.mxu0
  %v464 = vpop.f32.mrf.mxu0
  %v465 = vadd.f32 0.0, %v464
  %v466 = vpop.f32.mrf.mxu0
  %467 = vmatprep.mubr.bf16.mxu0 0
  %468 = vmatmul.mubr.bf16.gmra.mxu0 %v301
  %v469 = vpop.f32.mrf.mxu0
  %v470 = vadd.f32 0.0, %v469
  %v471 = vpop.f32.mrf.mxu0
  %v472 = vpop.f32.mrf.mxu0
  %v473 = vadd.f32 0.0, %v472
  %v474 = vpop.f32.mrf.mxu0
  %475 = vmatprep.mubr.bf16.mxu0 0
  %476 = vmatmul.mubr.bf16.gmra.mxu0 %v304
  %v477 = vpop.f32.mrf.mxu0
  %v478 = vadd.f32 0.0, %v477
  %v479 = vpop.f32.mrf.mxu0
  %v480 = vpop.f32.mrf.mxu0
  %v481 = vadd.f32 0.0, %v480
  %v482 = vpop.f32.mrf.mxu0
  %483 = vmatprep.mubr.bf16.mxu0 0
  %484 = vmatmul.mubr.bf16.gmra.mxu0 %v307
  %v485 = vpop.f32.mrf.mxu0
  %v486 = vadd.f32 0.0, %v485
  %v487 = vpop.f32.mrf.mxu0
  %v488 = vpop.f32.mrf.mxu0
  %v489 = vadd.f32 0.0, %v488
  %v490 = vpop.f32.mrf.mxu0
  %491 = vmatprep.mubr.bf16.mxu0 0
  %492 = vmatmul.mubr.bf16.gmra.mxu0 %v310
  %v493 = vpop.f32.mrf.mxu0
  %v494 = vadd.f32 0.0, %v493
  %v495 = vpop.f32.mrf.mxu0
  %v496 = vpop.f32.mrf.mxu0
  %v497 = vadd.f32 0.0, %v496
  %v498 = vpop.f32.mrf.mxu0
  %499 = vmatprep.mubr.bf16.mxu0 0
  %500 = vmatmul.mubr.bf16.gmra.mxu0 %v313
  %v501 = vpop.f32.mrf.mxu0
  %v502 = vadd.f32 0.0, %v501
  %v503 = vpop.f32.mrf.mxu0
  %v504 = vpop.f32.mrf.mxu0
  %v505 = vadd.f32 0.0, %v504
  %v506 = vpop.f32.mrf.mxu0
  %507 = vmatprep.mubr.bf16.mxu0 0
  %508 = vmatmul.mubr.bf16.gmra.mxu0 %v316
  %v509 = vpop.f32.mrf.mxu0
  %v510 = vadd.f32 0.0, %v509
  %v511 = vpop.f32.mrf.mxu0
  %v512 = vpop.f32.mrf.mxu0
  %v513 = vadd.f32 0.0, %v512
  %v514 = vpop.f32.mrf.mxu0
  %515 = vmatprep.mubr.bf16.mxu0 0
  %516 = vmatmul.mubr.bf16.gmra.mxu0 %v319
  %v517 = vpop.f32.mrf.mxu0
  %v518 = vadd.f32 0.0, %v517
  %v519 = vpop.f32.mrf.mxu0
  %v520 = vpop.f32.mrf.mxu0
  %v521 = vadd.f32 0.0, %v520
  %v522 = vpop.f32.mrf.mxu0
  %523 = vmatprep.mubr.bf16.mxu0 0
  %524 = vmatmul.mubr.bf16.gmra.mxu0 %v322
  %v525 = vpop.f32.mrf.mxu0
  %v526 = vadd.f32 0.0, %v525
  %v527 = vpop.f32.mrf.mxu0
  %v528 = vpop.f32.mrf.mxu0
  %v529 = vadd.f32 0.0, %v528
  %v530 = vpop.f32.mrf.mxu0
  %531 = vmatprep.mubr.bf16.mxu0 0
  %532 = vmatmul.mubr.bf16.gmra.mxu0 %v325
  %v533 = vpop.f32.mrf.mxu0
  %v534 = vadd.f32 0.0, %v533
  %v535 = vpop.f32.mrf.mxu0
  %v536 = vpop.f32.mrf.mxu0
  %v537 = vadd.f32 0.0, %v536
  %v538 = vpop.f32.mrf.mxu0
  %539 = vmatprep.mubr.bf16.mxu0 0
  %540 = vmatmul.mubr.bf16.gmra.mxu0 %v328
  %v541 = vpop.f32.mrf.mxu0
  %v542 = vadd.f32 0.0, %v541
  %v543 = vpop.f32.mrf.mxu0
  %v544 = vpop.f32.mrf.mxu0
  %v545 = vadd.f32 0.0, %v544
  %v546 = vpop.f32.mrf.mxu0
  %547 = vmatprep.mubr.bf16.mxu0 0
  %548 = vmatmul.mubr.bf16.gmra.mxu0 %v331
  %v549 = vpop.f32.mrf.mxu0
  %v550 = vadd.f32 0.0, %v549
  %v551 = vpop.f32.mrf.mxu0
  %v552 = vpop.f32.mrf.mxu0
  %v553 = vadd.f32 0.0, %v552
  %v554 = vpop.f32.mrf.mxu0
  %555 = vmatprep.mubr.bf16.mxu0 0
  %556 = vmatmul.mubr.bf16.gmra.mxu0 %v334
  %v557 = vpop.f32.mrf.mxu0
  %v558 = vadd.f32 0.0, %v557
  %v559 = vpop.f32.mrf.mxu0
  %v560 = vpop.f32.mrf.mxu0
  %v561 = vadd.f32 0.0, %v560
  %v562 = vpop.f32.mrf.mxu0
  %563 = vmatprep.mubr.bf16.mxu0 0
  %564 = vmatmul.mubr.bf16.gmra.mxu0 %v337
  %v565 = vpop.f32.mrf.mxu0
  %v566 = vadd.f32 0.0, %v565
  %v567 = vpop.f32.mrf.mxu0
  %v568 = vpop.f32.mrf.mxu0
  %v569 = vadd.f32 0.0, %v568
  %v570 = vpop.f32.mrf.mxu0
  %571 = vmatprep.mubr.bf16.mxu0 0
  %572 = vmatmul.mubr.bf16.gmra.mxu0 %v340
  %v573 = vpop.f32.mrf.mxu0
  %v574 = vadd.f32 0.0, %v573
  %v575 = vpop.f32.mrf.mxu0
  %v576 = vpop.f32.mrf.mxu0
  %v577 = vadd.f32 0.0, %v576
  %v578 = vpop.f32.mrf.mxu0
  %579 = vmatprep.mubr.bf16.mxu0 0
  %580 = vmatmul.mubr.bf16.gmra.mxu0 %v343
  %v581 = vpop.f32.mrf.mxu0
  %v582 = vadd.f32 0.0, %v581
  %v583 = vpop.f32.mrf.mxu0
  %v584 = vpop.f32.mrf.mxu0
  %v585 = vadd.f32 0.0, %v584
  %v586 = vpop.f32.mrf.mxu0
  %587 = vmatprep.mubr.bf16.mxu0 0
  %588 = vmatmul.mubr.bf16.gmra.mxu0 %v346
  %v589 = vpop.f32.mrf.mxu0
  %v590 = vadd.f32 0.0, %v589
  %v591 = vpop.f32.mrf.mxu0
  %v592 = vpop.f32.mrf.mxu0
  %v593 = vadd.f32 0.0, %v592
  %v594 = vpop.f32.mrf.mxu0
  %595 = vmatprep.mubr.bf16.mxu0 0
  %596 = vmatmul.mubr.bf16.gmra.mxu0 %v349
  %v597 = vpop.f32.mrf.mxu0
  %v598 = vadd.f32 0.0, %v597
  %v599 = vpop.f32.mrf.mxu0
  %v600 = vpop.f32.mrf.mxu0
  %v601 = vadd.f32 0.0, %v600
  %v602 = vpop.f32.mrf.mxu0
  %603 = vmatprep.mubr.bf16.mxu0 0
  %604 = vmatmul.mubr.bf16.gmra.mxu0 %v352
  %v605 = vpop.f32.mrf.mxu0
  %v606 = vadd.f32 0.0, %v605
  %v607 = vpop.f32.mrf.mxu0
  %v608 = vpop.f32.mrf.mxu0
  %v609 = vadd.f32 0.0, %v608
  %v610 = vpop.f32.mrf.mxu0
  %611 = vmatprep.mubr.bf16.mxu0 0
  %612 = vmatmul.mubr.bf16.gmra.mxu0 %v355
  %v613 = vpop.f32.mrf.mxu0
  %v614 = vadd.f32 0.0, %v613
  %v615 = vpop.f32.mrf.mxu0
  %v616 = vpop.f32.mrf.mxu0
  %v617 = vadd.f32 0.0, %v616
  %v618 = vpop.f32.mrf.mxu0
  %619 = vmatprep.mubr.bf16.mxu0 0
  %620 = vmatmul.mubr.bf16.gmra.mxu0 %v358
  %v621 = vpop.f32.mrf.mxu0
  %v622 = vadd.f32 0.0, %v621
  %v623 = vpop.f32.mrf.mxu0
  %v624 = vpop.f32.mrf.mxu0
  %v625 = vadd.f32 0.0, %v624
  %v626 = vpop.f32.mrf.mxu0
  %627 = vmatprep.mubr.bf16.mxu0 0
  %628 = vmatmul.mubr.bf16.gmra.mxu0 %v361
  %v629 = vpop.f32.mrf.mxu0
  %v630 = vadd.f32 0.0, %v629
  %v631 = vpop.f32.mrf.mxu0
  %v632 = vpop.f32.mrf.mxu0
  %v633 = vadd.f32 0.0, %v632
  %v634 = vpop.f32.mrf.mxu0
  %635 = vmatprep.mubr.bf16.mxu0 0
  %636 = vmatmul.mubr.bf16.gmra.mxu0 %v364
  %v637 = vpop.f32.mrf.mxu0
  %v638 = vadd.f32 0.0, %v637
  %v639 = vpop.f32.mrf.mxu0
  %v640 = vpop.f32.mrf.mxu0
  %v641 = vadd.f32 0.0, %v640
  %v642 = vpop.f32.mrf.mxu0
  %643 = vmatprep.mubr.bf16.mxu0 0
  %644 = vmatmul.mubr.bf16.gmra.mxu0 %v367
  %v645 = vpop.f32.mrf.mxu0
  %v646 = vadd.f32 0.0, %v645
  %v647 = vpop.f32.mrf.mxu0
  %v648 = vpop.f32.mrf.mxu0
  %v649 = vadd.f32 0.0, %v648
  %v650 = vpop.f32.mrf.mxu0
  %651 = vmatprep.mubr.bf16.mxu0 0
  %652 = vmatmul.mubr.bf16.gmra.mxu0 %v370
  %v653 = vpop.f32.mrf.mxu0
  %v654 = vadd.f32 0.0, %v653
  %v655 = vpop.f32.mrf.mxu0
  %v656 = vpop.f32.mrf.mxu0
  %v657 = vadd.f32 0.0, %v656
  %v658 = vpop.f32.mrf.mxu0
  %659 = vmatprep.mubr.bf16.mxu0 0
  %660 = vmatmul.mubr.bf16.gmra.mxu0 %v373
  %v661 = vpop.f32.mrf.mxu0
  %v662 = vadd.f32 0.0, %v661
  %v663 = vpop.f32.mrf.mxu0
  %v664 = vpop.f32.mrf.mxu0
  %v665 = vadd.f32 0.0, %v664
  %v666 = vpop.f32.mrf.mxu0
  %667 = vdwg.mxu0
  %p668 = scmp.eq.s32.totalorder 0, 0
  // Predicated region
  $region18: #{_lambda_.5} parent=0 // pred_check
    %p669 = pneg %p668
  $region19: #{_lambda_.5} parent=0 // pred_check_branch
    %671 = sbr.rel (%p669) target = $region21
  $region20: #{_lambda_.5} parent=0 // pred_region
    %vm672 = vcmask 261120
    %673 = vst.msk [vmem:[#allocation2] sm:$0xff] %vm672, %v414
    %674 = vst.msk [vmem:[#allocation2 + $0x8] sm:$0xff] %vm672, %v417
    %675 = vst.msk [vmem:[#allocation2 + $0x10] sm:$0xff] %vm672, %v422
    %676 = vst.msk [vmem:[#allocation2 + $0x18] sm:$0xff] %vm672, %v425
    %677 = vst.msk [vmem:[#allocation2 + $0x20] sm:$0xff] %vm672, %v430
    %678 = vst.msk [vmem:[#allocation2 + $0x28] sm:$0xff] %vm672, %v433
    %679 = vst.msk [vmem:[#allocation2 + $0x30] sm:$0xff] %vm672, %v438
    %680 = vst.msk [vmem:[#allocation2 + $0x38] sm:$0xff] %vm672, %v441
    %681 = vst.msk [vmem:[#allocation2 + $0x40] sm:$0xff] %vm672, %v446
    %682 = vst.msk [vmem:[#allocation2 + $0x48] sm:$0xff] %vm672, %v449
    %683 = vst.msk [vmem:[#allocation2 + $0x50] sm:$0xff] %vm672, %v454
    %684 = vst.msk [vmem:[#allocation2 + $0x58] sm:$0xff] %vm672, %v457
    %685 = vst.msk [vmem:[#allocation2 + $0x60] sm:$0xff] %vm672, %v462
    %686 = vst.msk [vmem:[#allocation2 + $0x68] sm:$0xff] %vm672, %v465
    %687 = vst.msk [vmem:[#allocation2 + $0x70] sm:$0xff] %vm672, %v470
    %688 = vst.msk [vmem:[#allocation2 + $0x78] sm:$0xff] %vm672, %v473
    %689 = vst.msk [vmem:[#allocation2 + $0x80] sm:$0xff] %vm672, %v478
    %690 = vst.msk [vmem:[#allocation2 + $0x88] sm:$0xff] %vm672, %v481
    %691 = vst.msk [vmem:[#allocation2 + $0x90] sm:$0xff] %vm672, %v486
    %692 = vst.msk [vmem:[#allocation2 + $0x98] sm:$0xff] %vm672, %v489
    %693 = vst.msk [vmem:[#allocation2 + $0xa0] sm:$0xff] %vm672, %v494
    %694 = vst.msk [vmem:[#allocation2 + $0xa8] sm:$0xff] %vm672, %v497
    %695 = vst.msk [vmem:[#allocation2 + $0xb0] sm:$0xff] %vm672, %v502
    %696 = vst.msk [vmem:[#allocation2 + $0xb8] sm:$0xff] %vm672, %v505
    %697 = vst.msk [vmem:[#allocation2 + $0xc0] sm:$0xff] %vm672, %v510
    %698 = vst.msk [vmem:[#allocation2 + $0xc8] sm:$0xff] %vm672, %v513
    %699 = vst.msk [vmem:[#allocation2 + $0xd0] sm:$0xff] %vm672, %v518
    %700 = vst.msk [vmem:[#allocation2 + $0xd8] sm:$0xff] %vm672, %v521
    %701 = vst.msk [vmem:[#allocation2 + $0xe0] sm:$0xff] %vm672, %v526
    %702 = vst.msk [vmem:[#allocation2 + $0xe8] sm:$0xff] %vm672, %v529
    %703 = vst.msk [vmem:[#allocation2 + $0xf0] sm:$0xff] %vm672, %v534
    %704 = vst.msk [vmem:[#allocation2 + $0xf8] sm:$0xff] %vm672, %v537
    %705 = vst.msk [vmem:[#allocation2 + $0x100] sm:$0xff] %vm672, %v542
    %706 = vst.msk [vmem:[#allocation2 + $0x108] sm:$0xff] %vm672, %v545
    %707 = vst.msk [vmem:[#allocation2 + $0x110] sm:$0xff] %vm672, %v550
    %708 = vst.msk [vmem:[#allocation2 + $0x118] sm:$0xff] %vm672, %v553
    %709 = vst.msk [vmem:[#allocation2 + $0x120] sm:$0xff] %vm672, %v558
    %710 = vst.msk [vmem:[#allocation2 + $0x128] sm:$0xff] %vm672, %v561
    %711 = vst.msk [vmem:[#allocation2 + $0x130] sm:$0xff] %vm672, %v566
    %712 = vst.msk [vmem:[#allocation2 + $0x138] sm:$0xff] %vm672, %v569
    %713 = vst.msk [vmem:[#allocation2 + $0x140] sm:$0xff] %vm672, %v574
    %714 = vst.msk [vmem:[#allocation2 + $0x148] sm:$0xff] %vm672, %v577
    %715 = vst.msk [vmem:[#allocation2 + $0x150] sm:$0xff] %vm672, %v582
    %716 = vst.msk [vmem:[#allocation2 + $0x158] sm:$0xff] %vm672, %v585
    %717 = vst.msk [vmem:[#allocation2 + $0x160] sm:$0xff] %vm672, %v590
    %718 = vst.msk [vmem:[#allocation2 + $0x168] sm:$0xff] %vm672, %v593
    %719 = vst.msk [vmem:[#allocation2 + $0x170] sm:$0xff] %vm672, %v598
    %720 = vst.msk [vmem:[#allocation2 + $0x178] sm:$0xff] %vm672, %v601
    %721 = vst.msk [vmem:[#allocation2 + $0x180] sm:$0xff] %vm672, %v606
    %722 = vst.msk [vmem:[#allocation2 + $0x188] sm:$0xff] %vm672, %v609
    %723 = vst.msk [vmem:[#allocation2 + $0x190] sm:$0xff] %vm672, %v614
    %724 = vst.msk [vmem:[#allocation2 + $0x198] sm:$0xff] %vm672, %v617
    %725 = vst.msk [vmem:[#allocation2 + $0x1a0] sm:$0xff] %vm672, %v622
    %726 = vst.msk [vmem:[#allocation2 + $0x1a8] sm:$0xff] %vm672, %v625
    %727 = vst.msk [vmem:[#allocation2 + $0x1b0] sm:$0xff] %vm672, %v630
    %728 = vst.msk [vmem:[#allocation2 + $0x1b8] sm:$0xff] %vm672, %v633
    %729 = vst.msk [vmem:[#allocation2 + $0x1c0] sm:$0xff] %vm672, %v638
    %730 = vst.msk [vmem:[#allocation2 + $0x1c8] sm:$0xff] %vm672, %v641
    %731 = vst.msk [vmem:[#allocation2 + $0x1d0] sm:$0xff] %vm672, %v646
    %732 = vst.msk [vmem:[#allocation2 + $0x1d8] sm:$0xff] %vm672, %v649
    %733 = vst.msk [vmem:[#allocation2 + $0x1e0] sm:$0xff] %vm672, %v654
    %734 = vst.msk [vmem:[#allocation2 + $0x1e8] sm:$0xff] %vm672, %v657
    %735 = vst.msk [vmem:[#allocation2 + $0x1f0] sm:$0xff] %vm672, %v662
    %736 = vst.msk [vmem:[#allocation2 + $0x1f8] sm:$0xff] %vm672, %v665
  $region21: #{_lambda_.5} parent=0 // pred_fallthru
    _
  %p737 = scmp.ne.s32.totalorder 0, 0
  // Predicated region
  $region22: #{_lambda_.5} parent=0 // pred_check
    %p738 = pneg %p737
  $region23: #{_lambda_.5} parent=0 // pred_check_branch
    %740 = sbr.rel (%p738) target = $region25
  $region24: #{_lambda_.5} parent=0 // pred_region
    %v741 = vld [vmem:[#allocation2] sm:$0xff]
    %v742 = vld [vmem:[#allocation2 + $0x8] sm:$0xff]
    %v743 = vld [vmem:[#allocation2 + $0x10] sm:$0xff]
    %v744 = vld [vmem:[#allocation2 + $0x18] sm:$0xff]
    %v745 = vld [vmem:[#allocation2 + $0x20] sm:$0xff]
    %v746 = vld [vmem:[#allocation2 + $0x28] sm:$0xff]
    %v747 = vld [vmem:[#allocation2 + $0x30] sm:$0xff]
    %v748 = vld [vmem:[#allocation2 + $0x38] sm:$0xff]
    %v749 = vld [vmem:[#allocation2 + $0x40] sm:$0xff]
    %v750 = vld [vmem:[#allocation2 + $0x48] sm:$0xff]
    %v751 = vld [vmem:[#allocation2 + $0x50] sm:$0xff]
    %v752 = vld [vmem:[#allocation2 + $0x58] sm:$0xff]
    %v753 = vld [vmem:[#allocation2 + $0x60] sm:$0xff]
    %v754 = vld [vmem:[#allocation2 + $0x68] sm:$0xff]
    %v755 = vld [vmem:[#allocation2 + $0x70] sm:$0xff]
    %v756 = vld [vmem:[#allocation2 + $0x78] sm:$0xff]
    %v757 = vld [vmem:[#allocation2 + $0x80] sm:$0xff]
    %v758 = vld [vmem:[#allocation2 + $0x88] sm:$0xff]
    %v759 = vld [vmem:[#allocation2 + $0x90] sm:$0xff]
    %v760 = vld [vmem:[#allocation2 + $0x98] sm:$0xff]
    %v761 = vld [vmem:[#allocation2 + $0xa0] sm:$0xff]
    %v762 = vld [vmem:[#allocation2 + $0xa8] sm:$0xff]
    %v763 = vld [vmem:[#allocation2 + $0xb0] sm:$0xff]
    %v764 = vld [vmem:[#allocation2 + $0xb8] sm:$0xff]
    %v765 = vld [vmem:[#allocation2 + $0xc0] sm:$0xff]
    %v766 = vld [vmem:[#allocation2 + $0xc8] sm:$0xff]
    %v767 = vld [vmem:[#allocation2 + $0xd0] sm:$0xff]
    %v768 = vld [vmem:[#allocation2 + $0xd8] sm:$0xff]
    %v769 = vld [vmem:[#allocation2 + $0xe0] sm:$0xff]
    %v770 = vld [vmem:[#allocation2 + $0xe8] sm:$0xff]
    %v771 = vld [vmem:[#allocation2 + $0xf0] sm:$0xff]
    %v772 = vld [vmem:[#allocation2 + $0xf8] sm:$0xff]
    %v773 = vld [vmem:[#allocation2 + $0x100] sm:$0xff]
    %v774 = vld [vmem:[#allocation2 + $0x108] sm:$0xff]
    %v775 = vld [vmem:[#allocation2 + $0x110] sm:$0xff]
    %v776 = vld [vmem:[#allocation2 + $0x118] sm:$0xff]
    %v777 = vld [vmem:[#allocation2 + $0x120] sm:$0xff]
    %v778 = vld [vmem:[#allocation2 + $0x128] sm:$0xff]
    %v779 = vld [vmem:[#allocation2 + $0x130] sm:$0xff]
    %v780 = vld [vmem:[#allocation2 + $0x138] sm:$0xff]
    %v781 = vld [vmem:[#allocation2 + $0x140] sm:$0xff]
    %v782 = vld [vmem:[#allocation2 + $0x148] sm:$0xff]
    %v783 = vld [vmem:[#allocation2 + $0x150] sm:$0xff]
    %v784 = vld [vmem:[#allocation2 + $0x158] sm:$0xff]
    %v785 = vld [vmem:[#allocation2 + $0x160] sm:$0xff]
    %v786 = vld [vmem:[#allocation2 + $0x168] sm:$0xff]
    %v787 = vld [vmem:[#allocation2 + $0x170] sm:$0xff]
    %v788 = vld [vmem:[#allocation2 + $0x178] sm:$0xff]
    %v789 = vld [vmem:[#allocation2 + $0x180] sm:$0xff]
    %v790 = vld [vmem:[#allocation2 + $0x188] sm:$0xff]
    %v791 = vld [vmem:[#allocation2 + $0x190] sm:$0xff]
    %v792 = vld [vmem:[#allocation2 + $0x198] sm:$0xff]
    %v793 = vld [vmem:[#allocation2 + $0x1a0] sm:$0xff]
    %v794 = vld [vmem:[#allocation2 + $0x1a8] sm:$0xff]
    %v795 = vld [vmem:[#allocation2 + $0x1b0] sm:$0xff]
    %v796 = vld [vmem:[#allocation2 + $0x1b8] sm:$0xff]
    %v797 = vld [vmem:[#allocation2 + $0x1c0] sm:$0xff]
    %v798 = vld [vmem:[#allocation2 + $0x1c8] sm:$0xff]
    %v799 = vld [vmem:[#allocation2 + $0x1d0] sm:$0xff]
    %v800 = vld [vmem:[#allocation2 + $0x1d8] sm:$0xff]
    %v801 = vld [vmem:[#allocation2 + $0x1e0] sm:$0xff]
    %v802 = vld [vmem:[#allocation2 + $0x1e8] sm:$0xff]
    %v803 = vld [vmem:[#allocation2 + $0x1f0] sm:$0xff]
    %v804 = vld [vmem:[#allocation2 + $0x1f8] sm:$0xff]
    %v805 = vadd.f32 %v741, %v414
    %v806 = vadd.f32 %v742, %v417
    %v807 = vadd.f32 %v743, %v422
    %v808 = vadd.f32 %v744, %v425
    %v809 = vadd.f32 %v745, %v430
    %v810 = vadd.f32 %v746, %v433
    %v811 = vadd.f32 %v747, %v438
    %v812 = vadd.f32 %v748, %v441
    %v813 = vadd.f32 %v749, %v446
    %v814 = vadd.f32 %v750, %v449
    %v815 = vadd.f32 %v751, %v454
    %v816 = vadd.f32 %v752, %v457
    %v817 = vadd.f32 %v753, %v462
    %v818 = vadd.f32 %v754, %v465
    %v819 = vadd.f32 %v755, %v470
    %v820 = vadd.f32 %v756, %v473
    %v821 = vadd.f32 %v757, %v478
    %v822 = vadd.f32 %v758, %v481
    %v823 = vadd.f32 %v759, %v486
    %v824 = vadd.f32 %v760, %v489
    %v825 = vadd.f32 %v761, %v494
    %v826 = vadd.f32 %v762, %v497
    %v827 = vadd.f32 %v763, %v502
    %v828 = vadd.f32 %v764, %v505
    %v829 = vadd.f32 %v765, %v510
    %v830 = vadd.f32 %v766, %v513
    %v831 = vadd.f32 %v767, %v518
    %v832 = vadd.f32 %v768, %v521
    %v833 = vadd.f32 %v769, %v526
    %v834 = vadd.f32 %v770, %v529
    %v835 = vadd.f32 %v771, %v534
    %v836 = vadd.f32 %v772, %v537
    %v837 = vadd.f32 %v773, %v542
    %v838 = vadd.f32 %v774, %v545
    %v839 = vadd.f32 %v775, %v550
    %v840 = vadd.f32 %v776, %v553
    %v841 = vadd.f32 %v777, %v558
    %v842 = vadd.f32 %v778, %v561
    %v843 = vadd.f32 %v779, %v566
    %v844 = vadd.f32 %v780, %v569
    %v845 = vadd.f32 %v781, %v574
    %v846 = vadd.f32 %v782, %v577
    %v847 = vadd.f32 %v783, %v582
    %v848 = vadd.f32 %v784, %v585
    %v849 = vadd.f32 %v785, %v590
    %v850 = vadd.f32 %v786, %v593
    %v851 = vadd.f32 %v787, %v598
    %v852 = vadd.f32 %v788, %v601
    %v853 = vadd.f32 %v789, %v606
    %v854 = vadd.f32 %v790, %v609
    %v855 = vadd.f32 %v791, %v614
    %v856 = vadd.f32 %v792, %v617
    %v857 = vadd.f32 %v793, %v622
    %v858 = vadd.f32 %v794, %v625
    %v859 = vadd.f32 %v795, %v630
    %v860 = vadd.f32 %v796, %v633
    %v861 = vadd.f32 %v797, %v638
    %v862 = vadd.f32 %v798, %v641
    %v863 = vadd.f32 %v799, %v646
    %v864 = vadd.f32 %v800, %v649
    %v865 = vadd.f32 %v801, %v654
    %v866 = vadd.f32 %v802, %v657
    %v867 = vadd.f32 %v803, %v662
    %v868 = vadd.f32 %v804, %v665
    %vm869 = vcmask 261120
    %870 = vst.msk [vmem:[#allocation2] sm:$0xff] %vm869, %v805
    %871 = vst.msk [vmem:[#allocation2 + $0x8] sm:$0xff] %vm869, %v806
    %872 = vst.msk [vmem:[#allocation2 + $0x10] sm:$0xff] %vm869, %v807
    %873 = vst.msk [vmem:[#allocation2 + $0x18] sm:$0xff] %vm869, %v808
    %874 = vst.msk [vmem:[#allocation2 + $0x20] sm:$0xff] %vm869, %v809
    %875 = vst.msk [vmem:[#allocation2 + $0x28] sm:$0xff] %vm869, %v810
    %876 = vst.msk [vmem:[#allocation2 + $0x30] sm:$0xff] %vm869, %v811
    %877 = vst.msk [vmem:[#allocation2 + $0x38] sm:$0xff] %vm869, %v812
    %878 = vst.msk [vmem:[#allocation2 + $0x40] sm:$0xff] %vm869, %v813
    %879 = vst.msk [vmem:[#allocation2 + $0x48] sm:$0xff] %vm869, %v814
    %880 = vst.msk [vmem:[#allocation2 + $0x50] sm:$0xff] %vm869, %v815
    %881 = vst.msk [vmem:[#allocation2 + $0x58] sm:$0xff] %vm869, %v816
    %882 = vst.msk [vmem:[#allocation2 + $0x60] sm:$0xff] %vm869, %v817
    %883 = vst.msk [vmem:[#allocation2 + $0x68] sm:$0xff] %vm869, %v818
    %884 = vst.msk [vmem:[#allocation2 + $0x70] sm:$0xff] %vm869, %v819
    %885 = vst.msk [vmem:[#allocation2 + $0x78] sm:$0xff] %vm869, %v820
    %886 = vst.msk [vmem:[#allocation2 + $0x80] sm:$0xff] %vm869, %v821
    %887 = vst.msk [vmem:[#allocation2 + $0x88] sm:$0xff] %vm869, %v822
    %888 = vst.msk [vmem:[#allocation2 + $0x90] sm:$0xff] %vm869, %v823
    %889 = vst.msk [vmem:[#allocation2 + $0x98] sm:$0xff] %vm869, %v824
    %890 = vst.msk [vmem:[#allocation2 + $0xa0] sm:$0xff] %vm869, %v825
    %891 = vst.msk [vmem:[#allocation2 + $0xa8] sm:$0xff] %vm869, %v826
    %892 = vst.msk [vmem:[#allocation2 + $0xb0] sm:$0xff] %vm869, %v827
    %893 = vst.msk [vmem:[#allocation2 + $0xb8] sm:$0xff] %vm869, %v828
    %894 = vst.msk [vmem:[#allocation2 + $0xc0] sm:$0xff] %vm869, %v829
    %895 = vst.msk [vmem:[#allocation2 + $0xc8] sm:$0xff] %vm869, %v830
    %896 = vst.msk [vmem:[#allocation2 + $0xd0] sm:$0xff] %vm869, %v831
    %897 = vst.msk [vmem:[#allocation2 + $0xd8] sm:$0xff] %vm869, %v832
    %898 = vst.msk [vmem:[#allocation2 + $0xe0] sm:$0xff] %vm869, %v833
    %899 = vst.msk [vmem:[#allocation2 + $0xe8] sm:$0xff] %vm869, %v834
    %900 = vst.msk [vmem:[#allocation2 + $0xf0] sm:$0xff] %vm869, %v835
    %901 = vst.msk [vmem:[#allocation2 + $0xf8] sm:$0xff] %vm869, %v836
    %902 = vst.msk [vmem:[#allocation2 + $0x100] sm:$0xff] %vm869, %v837
    %903 = vst.msk [vmem:[#allocation2 + $0x108] sm:$0xff] %vm869, %v838
    %904 = vst.msk [vmem:[#allocation2 + $0x110] sm:$0xff] %vm869, %v839
    %905 = vst.msk [vmem:[#allocation2 + $0x118] sm:$0xff] %vm869, %v840
    %906 = vst.msk [vmem:[#allocation2 + $0x120] sm:$0xff] %vm869, %v841
    %907 = vst.msk [vmem:[#allocation2 + $0x128] sm:$0xff] %vm869, %v842
    %908 = vst.msk [vmem:[#allocation2 + $0x130] sm:$0xff] %vm869, %v843
    %909 = vst.msk [vmem:[#allocation2 + $0x138] sm:$0xff] %vm869, %v844
    %910 = vst.msk [vmem:[#allocation2 + $0x140] sm:$0xff] %vm869, %v845
    %911 = vst.msk [vmem:[#allocation2 + $0x148] sm:$0xff] %vm869, %v846
    %912 = vst.msk [vmem:[#allocation2 + $0x150] sm:$0xff] %vm869, %v847
    %913 = vst.msk [vmem:[#allocation2 + $0x158] sm:$0xff] %vm869, %v848
    %914 = vst.msk [vmem:[#allocation2 + $0x160] sm:$0xff] %vm869, %v849
    %915 = vst.msk [vmem:[#allocation2 + $0x168] sm:$0xff] %vm869, %v850
    %916 = vst.msk [vmem:[#allocation2 + $0x170] sm:$0xff] %vm869, %v851
    %917 = vst.msk [vmem:[#allocation2 + $0x178] sm:$0xff] %vm869, %v852
    %918 = vst.msk [vmem:[#allocation2 + $0x180] sm:$0xff] %vm869, %v853
    %919 = vst.msk [vmem:[#allocation2 + $0x188] sm:$0xff] %vm869, %v854
    %920 = vst.msk [vmem:[#allocation2 + $0x190] sm:$0xff] %vm869, %v855
    %921 = vst.msk [vmem:[#allocation2 + $0x198] sm:$0xff] %vm869, %v856
    %922 = vst.msk [vmem:[#allocation2 + $0x1a0] sm:$0xff] %vm869, %v857
    %923 = vst.msk [vmem:[#allocation2 + $0x1a8] sm:$0xff] %vm869, %v858
    %924 = vst.msk [vmem:[#allocation2 + $0x1b0] sm:$0xff] %vm869, %v859
    %925 = vst.msk [vmem:[#allocation2 + $0x1b8] sm:$0xff] %vm869, %v860
    %926 = vst.msk [vmem:[#allocation2 + $0x1c0] sm:$0xff] %vm869, %v861
    %927 = vst.msk [vmem:[#allocation2 + $0x1c8] sm:$0xff] %vm869, %v862
    %928 = vst.msk [vmem:[#allocation2 + $0x1d0] sm:$0xff] %vm869, %v863
    %929 = vst.msk [vmem:[#allocation2 + $0x1d8] sm:$0xff] %vm869, %v864
    %930 = vst.msk [vmem:[#allocation2 + $0x1e0] sm:$0xff] %vm869, %v865
    %931 = vst.msk [vmem:[#allocation2 + $0x1e8] sm:$0xff] %vm869, %v866
    %932 = vst.msk [vmem:[#allocation2 + $0x1f0] sm:$0xff] %vm869, %v867
    %933 = vst.msk [vmem:[#allocation2 + $0x1f8] sm:$0xff] %vm869, %v868
  $region25: #{_lambda_.5} parent=0 // pred_fallthru
    _
  // Predicated region
  $region26: #{_lambda_.5} parent=0 // pred_check
    %p934 = pneg %p668
  $region27: #{_lambda_.5} parent=0 // pred_check_branch
    %936 = sbr.rel (%p934) target = $region29
  $region28: #{_lambda_.5} parent=0 // pred_region
    %v937 = vld [vmem:[#allocation2] sm:$0xff]
    %v938 = vld [vmem:[#allocation2 + $0x8] sm:$0xff]
    %v939 = vld [vmem:[#allocation2 + $0x10] sm:$0xff]
    %v940 = vld [vmem:[#allocation2 + $0x18] sm:$0xff]
    %v941 = vld [vmem:[#allocation2 + $0x20] sm:$0xff]
    %v942 = vld [vmem:[#allocation2 + $0x28] sm:$0xff]
    %v943 = vld [vmem:[#allocation2 + $0x30] sm:$0xff]
    %v944 = vld [vmem:[#allocation2 + $0x38] sm:$0xff]
    %v945 = vld [vmem:[#allocation2 + $0x40] sm:$0xff]
    %v946 = vld [vmem:[#allocation2 + $0x48] sm:$0xff]
    %v947 = vld [vmem:[#allocation2 + $0x50] sm:$0xff]
    %v948 = vld [vmem:[#allocation2 + $0x58] sm:$0xff]
    %v949 = vld [vmem:[#allocation2 + $0x60] sm:$0xff]
    %v950 = vld [vmem:[#allocation2 + $0x68] sm:$0xff]
    %v951 = vld [vmem:[#allocation2 + $0x70] sm:$0xff]
    %v952 = vld [vmem:[#allocation2 + $0x78] sm:$0xff]
    %v953 = vld [vmem:[#allocation2 + $0x80] sm:$0xff]
    %v954 = vld [vmem:[#allocation2 + $0x88] sm:$0xff]
    %v955 = vld [vmem:[#allocation2 + $0x90] sm:$0xff]
    %v956 = vld [vmem:[#allocation2 + $0x98] sm:$0xff]
    %v957 = vld [vmem:[#allocation2 + $0xa0] sm:$0xff]
    %v958 = vld [vmem:[#allocation2 + $0xa8] sm:$0xff]
    %v959 = vld [vmem:[#allocation2 + $0xb0] sm:$0xff]
    %v960 = vld [vmem:[#allocation2 + $0xb8] sm:$0xff]
    %v961 = vld [vmem:[#allocation2 + $0xc0] sm:$0xff]
    %v962 = vld [vmem:[#allocation2 + $0xc8] sm:$0xff]
    %v963 = vld [vmem:[#allocation2 + $0xd0] sm:$0xff]
    %v964 = vld [vmem:[#allocation2 + $0xd8] sm:$0xff]
    %v965 = vld [vmem:[#allocation2 + $0xe0] sm:$0xff]
    %v966 = vld [vmem:[#allocation2 + $0xe8] sm:$0xff]
    %v967 = vld [vmem:[#allocation2 + $0xf0] sm:$0xff]
    %v968 = vld [vmem:[#allocation2 + $0xf8] sm:$0xff]
    %v969 = vld [vmem:[#allocation2 + $0x100] sm:$0xff]
    %v970 = vld [vmem:[#allocation2 + $0x108] sm:$0xff]
    %v971 = vld [vmem:[#allocation2 + $0x110] sm:$0xff]
    %v972 = vld [vmem:[#allocation2 + $0x118] sm:$0xff]
    %v973 = vld [vmem:[#allocation2 + $0x120] sm:$0xff]
    %v974 = vld [vmem:[#allocation2 + $0x128] sm:$0xff]
    %v975 = vld [vmem:[#allocation2 + $0x130] sm:$0xff]
    %v976 = vld [vmem:[#allocation2 + $0x138] sm:$0xff]
    %v977 = vld [vmem:[#allocation2 + $0x140] sm:$0xff]
    %v978 = vld [vmem:[#allocation2 + $0x148] sm:$0xff]
    %v979 = vld [vmem:[#allocation2 + $0x150] sm:$0xff]
    %v980 = vld [vmem:[#allocation2 + $0x158] sm:$0xff]
    %v981 = vld [vmem:[#allocation2 + $0x160] sm:$0xff]
    %v982 = vld [vmem:[#allocation2 + $0x168] sm:$0xff]
    %v983 = vld [vmem:[#allocation2 + $0x170] sm:$0xff]
    %v984 = vld [vmem:[#allocation2 + $0x178] sm:$0xff]
    %v985 = vld [vmem:[#allocation2 + $0x180] sm:$0xff]
    %v986 = vld [vmem:[#allocation2 + $0x188] sm:$0xff]
    %v987 = vld [vmem:[#allocation2 + $0x190] sm:$0xff]
    %v988 = vld [vmem:[#allocation2 + $0x198] sm:$0xff]
    %v989 = vld [vmem:[#allocation2 + $0x1a0] sm:$0xff]
    %v990 = vld [vmem:[#allocation2 + $0x1a8] sm:$0xff]
    %v991 = vld [vmem:[#allocation2 + $0x1b0] sm:$0xff]
    %v992 = vld [vmem:[#allocation2 + $0x1b8] sm:$0xff]
    %v993 = vld [vmem:[#allocation2 + $0x1c0] sm:$0xff]
    %v994 = vld [vmem:[#allocation2 + $0x1c8] sm:$0xff]
    %v995 = vld [vmem:[#allocation2 + $0x1d0] sm:$0xff]
    %v996 = vld [vmem:[#allocation2 + $0x1d8] sm:$0xff]
    %v997 = vld [vmem:[#allocation2 + $0x1e0] sm:$0xff]
    %v998 = vld [vmem:[#allocation2 + $0x1e8] sm:$0xff]
    %v999 = vld [vmem:[#allocation2 + $0x1f0] sm:$0xff]
    %v1000 = vld [vmem:[#allocation2 + $0x1f8] sm:$0xff]
    %v1001 = vld [vmem:[%s2] sm:$0x1]
    %v1003 = vlaneseq
    %v1004 = vshrl.u32 %v1003, 7
    %v1005 = vsub.s32 0, %v1004
    %v1006 = vrot.slane %v1001, %v1005
    %v1008 = vmul.f32 %v937, %v1006
    %v1009 = vmul.f32 %v938, %v1006
    %v1010 = vmul.f32 %v939, %v1006
    %v1011 = vmul.f32 %v940, %v1006
    %v1012 = vmul.f32 %v941, %v1006
    %v1013 = vmul.f32 %v942, %v1006
    %v1014 = vmul.f32 %v943, %v1006
    %v1015 = vmul.f32 %v944, %v1006
    %v1016 = vmul.f32 %v945, %v1006
    %v1017 = vmul.f32 %v946, %v1006
    %v1018 = vmul.f32 %v947, %v1006
    %v1019 = vmul.f32 %v948, %v1006
    %v1020 = vmul.f32 %v949, %v1006
    %v1021 = vmul.f32 %v950, %v1006
    %v1022 = vmul.f32 %v951, %v1006
    %v1023 = vmul.f32 %v952, %v1006
    %v1024 = vmul.f32 %v953, %v1006
    %v1025 = vmul.f32 %v954, %v1006
    %v1026 = vmul.f32 %v955, %v1006
    %v1027 = vmul.f32 %v956, %v1006
    %v1028 = vmul.f32 %v957, %v1006
    %v1029 = vmul.f32 %v958, %v1006
    %v1030 = vmul.f32 %v959, %v1006
    %v1031 = vmul.f32 %v960, %v1006
    %v1032 = vmul.f32 %v961, %v1006
    %v1033 = vmul.f32 %v962, %v1006
    %v1034 = vmul.f32 %v963, %v1006
    %v1035 = vmul.f32 %v964, %v1006
    %v1036 = vmul.f32 %v965, %v1006
    %v1037 = vmul.f32 %v966, %v1006
    %v1038 = vmul.f32 %v967, %v1006
    %v1039 = vmul.f32 %v968, %v1006
    %v1040 = vmul.f32 %v969, %v1006
    %v1041 = vmul.f32 %v970, %v1006
    %v1042 = vmul.f32 %v971, %v1006
    %v1043 = vmul.f32 %v972, %v1006
    %v1044 = vmul.f32 %v973, %v1006
    %v1045 = vmul.f32 %v974, %v1006
    %v1046 = vmul.f32 %v975, %v1006
    %v1047 = vmul.f32 %v976, %v1006
    %v1048 = vmul.f32 %v977, %v1006
    %v1049 = vmul.f32 %v978, %v1006
    %v1050 = vmul.f32 %v979, %v1006
    %v1051 = vmul.f32 %v980, %v1006
    %v1052 = vmul.f32 %v981, %v1006
    %v1053 = vmul.f32 %v982, %v1006
    %v1054 = vmul.f32 %v983, %v1006
    %v1055 = vmul.f32 %v984, %v1006
    %v1056 = vmul.f32 %v985, %v1006
    %v1057 = vmul.f32 %v986, %v1006
    %v1058 = vmul.f32 %v987, %v1006
    %v1059 = vmul.f32 %v988, %v1006
    %v1060 = vmul.f32 %v989, %v1006
    %v1061 = vmul.f32 %v990, %v1006
    %v1062 = vmul.f32 %v991, %v1006
    %v1063 = vmul.f32 %v992, %v1006
    %v1064 = vmul.f32 %v993, %v1006
    %v1065 = vmul.f32 %v994, %v1006
    %v1066 = vmul.f32 %v995, %v1006
    %v1067 = vmul.f32 %v996, %v1006
    %v1068 = vmul.f32 %v997, %v1006
    %v1069 = vmul.f32 %v998, %v1006
    %v1070 = vmul.f32 %v999, %v1006
    %v1071 = vmul.f32 %v1000, %v1006
    %v1072 = vld [vmem:[%s3] sm:$0x1]
    %v1074 = vlaneseq
    %v1075 = vshrl.u32 %v1074, 7
    %v1076 = vsub.s32 0, %v1075
    %v1077 = vrot.slane %v1072, %v1076
    %v1079 = vadd.f32 %v1008, %v1077
    %v1080 = vadd.f32 %v1009, %v1077
    %v1081 = vadd.f32 %v1010, %v1077
    %v1082 = vadd.f32 %v1011, %v1077
    %v1083 = vadd.f32 %v1012, %v1077
    %v1084 = vadd.f32 %v1013, %v1077
    %v1085 = vadd.f32 %v1014, %v1077
    %v1086 = vadd.f32 %v1015, %v1077
    %v1087 = vadd.f32 %v1016, %v1077
    %v1088 = vadd.f32 %v1017, %v1077
    %v1089 = vadd.f32 %v1018, %v1077
    %v1090 = vadd.f32 %v1019, %v1077
    %v1091 = vadd.f32 %v1020, %v1077
    %v1092 = vadd.f32 %v1021, %v1077
    %v1093 = vadd.f32 %v1022, %v1077
    %v1094 = vadd.f32 %v1023, %v1077
    %v1095 = vadd.f32 %v1024, %v1077
    %v1096 = vadd.f32 %v1025, %v1077
    %v1097 = vadd.f32 %v1026, %v1077
    %v1098 = vadd.f32 %v1027, %v1077
    %v1099 = vadd.f32 %v1028, %v1077
    %v1100 = vadd.f32 %v1029, %v1077
    %v1101 = vadd.f32 %v1030, %v1077
    %v1102 = vadd.f32 %v1031, %v1077
    %v1103 = vadd.f32 %v1032, %v1077
    %v1104 = vadd.f32 %v1033, %v1077
    %v1105 = vadd.f32 %v1034, %v1077
    %v1106 = vadd.f32 %v1035, %v1077
    %v1107 = vadd.f32 %v1036, %v1077
    %v1108 = vadd.f32 %v1037, %v1077
    %v1109 = vadd.f32 %v1038, %v1077
    %v1110 = vadd.f32 %v1039, %v1077
    %v1111 = vadd.f32 %v1040, %v1077
    %v1112 = vadd.f32 %v1041, %v1077
    %v1113 = vadd.f32 %v1042, %v1077
    %v1114 = vadd.f32 %v1043, %v1077
    %v1115 = vadd.f32 %v1044, %v1077
    %v1116 = vadd.f32 %v1045, %v1077
    %v1117 = vadd.f32 %v1046, %v1077
    %v1118 = vadd.f32 %v1047, %v1077
    %v1119 = vadd.f32 %v1048, %v1077
    %v1120 = vadd.f32 %v1049, %v1077
    %v1121 = vadd.f32 %v1050, %v1077
    %v1122 = vadd.f32 %v1051, %v1077
    %v1123 = vadd.f32 %v1052, %v1077
    %v1124 = vadd.f32 %v1053, %v1077
    %v1125 = vadd.f32 %v1054, %v1077
    %v1126 = vadd.f32 %v1055, %v1077
    %v1127 = vadd.f32 %v1056, %v1077
    %v1128 = vadd.f32 %v1057, %v1077
    %v1129 = vadd.f32 %v1058, %v1077
    %v1130 = vadd.f32 %v1059, %v1077
    %v1131 = vadd.f32 %v1060, %v1077
    %v1132 = vadd.f32 %v1061, %v1077
    %v1133 = vadd.f32 %v1062, %v1077
    %v1134 = vadd.f32 %v1063, %v1077
    %v1135 = vadd.f32 %v1064, %v1077
    %v1136 = vadd.f32 %v1065, %v1077
    %v1137 = vadd.f32 %v1066, %v1077
    %v1138 = vadd.f32 %v1067, %v1077
    %v1139 = vadd.f32 %v1068, %v1077
    %v1140 = vadd.f32 %v1069, %v1077
    %v1141 = vadd.f32 %v1070, %v1077
    %v1142 = vadd.f32 %v1071, %v1077
    %v1143 = vmax.f32 %v1079, 0.0
    %v1144 = vmax.f32 %v1080, 0.0
    %v1145 = vmax.f32 %v1081, 0.0
    %v1146 = vmax.f32 %v1082, 0.0
    %v1147 = vmax.f32 %v1083, 0.0
    %v1148 = vmax.f32 %v1084, 0.0
    %v1149 = vmax.f32 %v1085, 0.0
    %v1150 = vmax.f32 %v1086, 0.0
    %v1151 = vmax.f32 %v1087, 0.0
    %v1152 = vmax.f32 %v1088, 0.0
    %v1153 = vmax.f32 %v1089, 0.0
    %v1154 = vmax.f32 %v1090, 0.0
    %v1155 = vmax.f32 %v1091, 0.0
    %v1156 = vmax.f32 %v1092, 0.0
    %v1157 = vmax.f32 %v1093, 0.0
    %v1158 = vmax.f32 %v1094, 0.0
    %v1159 = vmax.f32 %v1095, 0.0
    %v1160 = vmax.f32 %v1096, 0.0
    %v1161 = vmax.f32 %v1097, 0.0
    %v1162 = vmax.f32 %v1098, 0.0
    %v1163 = vmax.f32 %v1099, 0.0
    %v1164 = vmax.f32 %v1100, 0.0
    %v1165 = vmax.f32 %v1101, 0.0
    %v1166 = vmax.f32 %v1102, 0.0
    %v1167 = vmax.f32 %v1103, 0.0
    %v1168 = vmax.f32 %v1104, 0.0
    %v1169 = vmax.f32 %v1105, 0.0
    %v1170 = vmax.f32 %v1106, 0.0
    %v1171 = vmax.f32 %v1107, 0.0
    %v1172 = vmax.f32 %v1108, 0.0
    %v1173 = vmax.f32 %v1109, 0.0
    %v1174 = vmax.f32 %v1110, 0.0
    %v1175 = vmax.f32 %v1111, 0.0
    %v1176 = vmax.f32 %v1112, 0.0
    %v1177 = vmax.f32 %v1113, 0.0
    %v1178 = vmax.f32 %v1114, 0.0
    %v1179 = vmax.f32 %v1115, 0.0
    %v1180 = vmax.f32 %v1116, 0.0
    %v1181 = vmax.f32 %v1117, 0.0
    %v1182 = vmax.f32 %v1118, 0.0
    %v1183 = vmax.f32 %v1119, 0.0
    %v1184 = vmax.f32 %v1120, 0.0
    %v1185 = vmax.f32 %v1121, 0.0
    %v1186 = vmax.f32 %v1122, 0.0
    %v1187 = vmax.f32 %v1123, 0.0
    %v1188 = vmax.f32 %v1124, 0.0
    %v1189 = vmax.f32 %v1125, 0.0
    %v1190 = vmax.f32 %v1126, 0.0
    %v1191 = vmax.f32 %v1127, 0.0
    %v1192 = vmax.f32 %v1128, 0.0
    %v1193 = vmax.f32 %v1129, 0.0
    %v1194 = vmax.f32 %v1130, 0.0
    %v1195 = vmax.f32 %v1131, 0.0
    %v1196 = vmax.f32 %v1132, 0.0
    %v1197 = vmax.f32 %v1133, 0.0
    %v1198 = vmax.f32 %v1134, 0.0
    %v1199 = vmax.f32 %v1135, 0.0
    %v1200 = vmax.f32 %v1136, 0.0
    %v1201 = vmax.f32 %v1137, 0.0
    %v1202 = vmax.f32 %v1138, 0.0
    %v1203 = vmax.f32 %v1139, 0.0
    %v1204 = vmax.f32 %v1140, 0.0
    %v1205 = vmax.f32 %v1141, 0.0
    %v1206 = vmax.f32 %v1142, 0.0
    %v1207 = vpack.c.bf16 %v1144, %v1143
    %v1208 = vpack.c.bf16 %v1146, %v1145
    %v1209 = vpack.c.bf16 %v1148, %v1147
    %v1210 = vpack.c.bf16 %v1150, %v1149
    %v1211 = vpack.c.bf16 %v1152, %v1151
    %v1212 = vpack.c.bf16 %v1154, %v1153
    %v1213 = vpack.c.bf16 %v1156, %v1155
    %v1214 = vpack.c.bf16 %v1158, %v1157
    %v1215 = vpack.c.bf16 %v1160, %v1159
    %v1216 = vpack.c.bf16 %v1162, %v1161
    %v1217 = vpack.c.bf16 %v1164, %v1163
    %v1218 = vpack.c.bf16 %v1166, %v1165
    %v1219 = vpack.c.bf16 %v1168, %v1167
    %v1220 = vpack.c.bf16 %v1170, %v1169
    %v1221 = vpack.c.bf16 %v1172, %v1171
    %v1222 = vpack.c.bf16 %v1174, %v1173
    %v1223 = vpack.c.bf16 %v1176, %v1175
    %v1224 = vpack.c.bf16 %v1178, %v1177
    %v1225 = vpack.c.bf16 %v1180, %v1179
    %v1226 = vpack.c.bf16 %v1182, %v1181
    %v1227 = vpack.c.bf16 %v1184, %v1183
    %v1228 = vpack.c.bf16 %v1186, %v1185
    %v1229 = vpack.c.bf16 %v1188, %v1187
    %v1230 = vpack.c.bf16 %v1190, %v1189
    %v1231 = vpack.c.bf16 %v1192, %v1191
    %v1232 = vpack.c.bf16 %v1194, %v1193
    %v1233 = vpack.c.bf16 %v1196, %v1195
    %v1234 = vpack.c.bf16 %v1198, %v1197
    %v1235 = vpack.c.bf16 %v1200, %v1199
    %v1236 = vpack.c.bf16 %v1202, %v1201
    %v1237 = vpack.c.bf16 %v1204, %v1203
    %v1238 = vpack.c.bf16 %v1206, %v1205
    %v1271 = vunpack.c.l.b16 %v1207
    %v1272 = vunpack.c.h.b16 %v1207
    %v1273 = vunpack.c.l.b16 %v1208
    %v1274 = vunpack.c.h.b16 %v1208
    %v1275 = vunpack.c.l.b16 %v1209
    %v1276 = vunpack.c.h.b16 %v1209
    %v1277 = vunpack.c.l.b16 %v1210
    %v1278 = vunpack.c.h.b16 %v1210
    %v1279 = vunpack.c.l.b16 %v1211
    %v1280 = vunpack.c.h.b16 %v1211
    %v1281 = vunpack.c.l.b16 %v1212
    %v1282 = vunpack.c.h.b16 %v1212
    %v1283 = vunpack.c.l.b16 %v1213
    %v1284 = vunpack.c.h.b16 %v1213
    %v1285 = vunpack.c.l.b16 %v1214
    %v1286 = vunpack.c.h.b16 %v1214
    %v1287 = vunpack.c.l.b16 %v1215
    %v1288 = vunpack.c.h.b16 %v1215
    %v1289 = vunpack.c.l.b16 %v1216
    %v1290 = vunpack.c.h.b16 %v1216
    %v1291 = vunpack.c.l.b16 %v1217
    %v1292 = vunpack.c.h.b16 %v1217
    %v1293 = vunpack.c.l.b16 %v1218
    %v1294 = vunpack.c.h.b16 %v1218
    %v1295 = vunpack.c.l.b16 %v1219
    %v1296 = vunpack.c.h.b16 %v1219
    %v1297 = vunpack.c.l.b16 %v1220
    %v1298 = vunpack.c.h.b16 %v1220
    %v1299 = vunpack.c.l.b16 %v1221
    %v1300 = vunpack.c.h.b16 %v1221
    %v1301 = vunpack.c.l.b16 %v1222
    %v1302 = vunpack.c.h.b16 %v1222
    %v1303 = vunpack.c.l.b16 %v1223
    %v1304 = vunpack.c.h.b16 %v1223
    %v1305 = vunpack.c.l.b16 %v1224
    %v1306 = vunpack.c.h.b16 %v1224
    %v1307 = vunpack.c.l.b16 %v1225
    %v1308 = vunpack.c.h.b16 %v1225
    %v1309 = vunpack.c.l.b16 %v1226
    %v1310 = vunpack.c.h.b16 %v1226
    %v1311 = vunpack.c.l.b16 %v1227
    %v1312 = vunpack.c.h.b16 %v1227
    %v1313 = vunpack.c.l.b16 %v1228
    %v1314 = vunpack.c.h.b16 %v1228
    %v1315 = vunpack.c.l.b16 %v1229
    %v1316 = vunpack.c.h.b16 %v1229
    %v1317 = vunpack.c.l.b16 %v1230
    %v1318 = vunpack.c.h.b16 %v1230
    %v1319 = vunpack.c.l.b16 %v1231
    %v1320 = vunpack.c.h.b16 %v1231
    %v1321 = vunpack.c.l.b16 %v1232
    %v1322 = vunpack.c.h.b16 %v1232
    %v1323 = vunpack.c.l.b16 %v1233
    %v1324 = vunpack.c.h.b16 %v1233
    %v1325 = vunpack.c.l.b16 %v1234
    %v1326 = vunpack.c.h.b16 %v1234
    %v1327 = vunpack.c.l.b16 %v1235
    %v1328 = vunpack.c.h.b16 %v1235
    %v1329 = vunpack.c.l.b16 %v1236
    %v1330 = vunpack.c.h.b16 %v1236
    %v1331 = vunpack.c.l.b16 %v1237
    %v1332 = vunpack.c.h.b16 %v1237
    %v1333 = vunpack.c.l.b16 %v1238
    %v1334 = vunpack.c.h.b16 %v1238
    %v1335 = vpack.c.b16 %v1271, %v1271
    %v1336 = vpack.c.b16 %v1272, %v1272
    %v1337 = vpack.c.b16 %v1273, %v1273
    %v1338 = vpack.c.b16 %v1274, %v1274
    %v1339 = vpack.c.b16 %v1275, %v1275
    %v1340 = vpack.c.b16 %v1276, %v1276
    %v1341 = vpack.c.b16 %v1277, %v1277
    %v1342 = vpack.c.b16 %v1278, %v1278
    %v1343 = vpack.c.b16 %v1279, %v1279
    %v1344 = vpack.c.b16 %v1280, %v1280
    %v1345 = vpack.c.b16 %v1281, %v1281
    %v1346 = vpack.c.b16 %v1282, %v1282
    %v1347 = vpack.c.b16 %v1283, %v1283
    %v1348 = vpack.c.b16 %v1284, %v1284
    %v1349 = vpack.c.b16 %v1285, %v1285
    %v1350 = vpack.c.b16 %v1286, %v1286
    %v1351 = vpack.c.b16 %v1287, %v1287
    %v1352 = vpack.c.b16 %v1288, %v1288
    %v1353 = vpack.c.b16 %v1289, %v1289
    %v1354 = vpack.c.b16 %v1290, %v1290
    %v1355 = vpack.c.b16 %v1291, %v1291
    %v1356 = vpack.c.b16 %v1292, %v1292
    %v1357 = vpack.c.b16 %v1293, %v1293
    %v1358 = vpack.c.b16 %v1294, %v1294
    %v1359 = vpack.c.b16 %v1295, %v1295
    %v1360 = vpack.c.b16 %v1296, %v1296
    %v1361 = vpack.c.b16 %v1297, %v1297
    %v1362 = vpack.c.b16 %v1298, %v1298
    %v1363 = vpack.c.b16 %v1299, %v1299
    %v1364 = vpack.c.b16 %v1300, %v1300
    %v1365 = vpack.c.b16 %v1301, %v1301
    %v1366 = vpack.c.b16 %v1302, %v1302
    %v1367 = vpack.c.b16 %v1303, %v1303
    %v1368 = vpack.c.b16 %v1304, %v1304
    %v1369 = vpack.c.b16 %v1305, %v1305
    %v1370 = vpack.c.b16 %v1306, %v1306
    %v1371 = vpack.c.b16 %v1307, %v1307
    %v1372 = vpack.c.b16 %v1308, %v1308
    %v1373 = vpack.c.b16 %v1309, %v1309
    %v1374 = vpack.c.b16 %v1310, %v1310
    %v1375 = vpack.c.b16 %v1311, %v1311
    %v1376 = vpack.c.b16 %v1312, %v1312
    %v1377 = vpack.c.b16 %v1313, %v1313
    %v1378 = vpack.c.b16 %v1314, %v1314
    %v1379 = vpack.c.b16 %v1315, %v1315
    %v1380 = vpack.c.b16 %v1316, %v1316
    %v1381 = vpack.c.b16 %v1317, %v1317
    %v1382 = vpack.c.b16 %v1318, %v1318
    %v1383 = vpack.c.b16 %v1319, %v1319
    %v1384 = vpack.c.b16 %v1320, %v1320
    %v1385 = vpack.c.b16 %v1321, %v1321
    %v1386 = vpack.c.b16 %v1322, %v1322
    %v1387 = vpack.c.b16 %v1323, %v1323
    %v1388 = vpack.c.b16 %v1324, %v1324
    %v1389 = vpack.c.b16 %v1325, %v1325
    %v1390 = vpack.c.b16 %v1326, %v1326
    %v1391 = vpack.c.b16 %v1327, %v1327
    %v1392 = vpack.c.b16 %v1328, %v1328
    %v1393 = vpack.c.b16 %v1329, %v1329
    %v1394 = vpack.c.b16 %v1330, %v1330
    %v1395 = vpack.c.b16 %v1331, %v1331
    %v1396 = vpack.c.b16 %v1332, %v1332
    %v1397 = vpack.c.b16 %v1333, %v1333
    %v1398 = vpack.c.b16 %v1334, %v1334
    %vm1463 = vcmask 257024
    %1464 = vst.msk [vmem:[%s4] sm:$0xf] %vm1463, %v1335
    %1465 = vst.msk [vmem:[%s4 + $0x4] sm:$0xf] %vm1463, %v1336
    %1466 = vst.msk [vmem:[%s4 + $0x8] sm:$0xf] %vm1463, %v1337
    %1467 = vst.msk [vmem:[%s4 + $0xc] sm:$0xf] %vm1463, %v1338
    %1468 = vst.msk [vmem:[%s4 + $0x10] sm:$0xf] %vm1463, %v1339
    %1469 = vst.msk [vmem:[%s4 + $0x14] sm:$0xf] %vm1463, %v1340
    %1470 = vst.msk [vmem:[%s4 + $0x18] sm:$0xf] %vm1463, %v1341
    %1471 = vst.msk [vmem:[%s4 + $0x1c] sm:$0xf] %vm1463, %v1342
    %1472 = vst.msk [vmem:[%s4 + $0x20] sm:$0xf] %vm1463, %v1343
    %1473 = vst.msk [vmem:[%s4 + $0x24] sm:$0xf] %vm1463, %v1344
    %1474 = vst.msk [vmem:[%s4 + $0x28] sm:$0xf] %vm1463, %v1345
    %1475 = vst.msk [vmem:[%s4 + $0x2c] sm:$0xf] %vm1463, %v1346
    %1476 = vst.msk [vmem:[%s4 + $0x30] sm:$0xf] %vm1463, %v1347
    %1477 = vst.msk [vmem:[%s4 + $0x34] sm:$0xf] %vm1463, %v1348
    %1478 = vst.msk [vmem:[%s4 + $0x38] sm:$0xf] %vm1463, %v1349
    %1479 = vst.msk [vmem:[%s4 + $0x3c] sm:$0xf] %vm1463, %v1350
    %1480 = vst.msk [vmem:[%s4 + $0x40] sm:$0xf] %vm1463, %v1351
    %1481 = vst.msk [vmem:[%s4 + $0x44] sm:$0xf] %vm1463, %v1352
    %1482 = vst.msk [vmem:[%s4 + $0x48] sm:$0xf] %vm1463, %v1353
    %1483 = vst.msk [vmem:[%s4 + $0x4c] sm:$0xf] %vm1463, %v1354
    %1484 = vst.msk [vmem:[%s4 + $0x50] sm:$0xf] %vm1463, %v1355
    %1485 = vst.msk [vmem:[%s4 + $0x54] sm:$0xf] %vm1463, %v1356
    %1486 = vst.msk [vmem:[%s4 + $0x58] sm:$0xf] %vm1463, %v1357
    %1487 = vst.msk [vmem:[%s4 + $0x5c] sm:$0xf] %vm1463, %v1358
    %1488 = vst.msk [vmem:[%s4 + $0x60] sm:$0xf] %vm1463, %v1359
    %1489 = vst.msk [vmem:[%s4 + $0x64] sm:$0xf] %vm1463, %v1360
    %1490 = vst.msk [vmem:[%s4 + $0x68] sm:$0xf] %vm1463, %v1361
    %1491 = vst.msk [vmem:[%s4 + $0x6c] sm:$0xf] %vm1463, %v1362
    %1492 = vst.msk [vmem:[%s4 + $0x70] sm:$0xf] %vm1463, %v1363
    %1493 = vst.msk [vmem:[%s4 + $0x74] sm:$0xf] %vm1463, %v1364
    %1494 = vst.msk [vmem:[%s4 + $0x78] sm:$0xf] %vm1463, %v1365
    %1495 = vst.msk [vmem:[%s4 + $0x7c] sm:$0xf] %vm1463, %v1366
    %1496 = vst.msk [vmem:[%s4 + $0x80] sm:$0xf] %vm1463, %v1367
    %1497 = vst.msk [vmem:[%s4 + $0x84] sm:$0xf] %vm1463, %v1368
    %1498 = vst.msk [vmem:[%s4 + $0x88] sm:$0xf] %vm1463, %v1369
    %1499 = vst.msk [vmem:[%s4 + $0x8c] sm:$0xf] %vm1463, %v1370
    %1500 = vst.msk [vmem:[%s4 + $0x90] sm:$0xf] %vm1463, %v1371
    %1501 = vst.msk [vmem:[%s4 + $0x94] sm:$0xf] %vm1463, %v1372
    %1502 = vst.msk [vmem:[%s4 + $0x98] sm:$0xf] %vm1463, %v1373
    %1503 = vst.msk [vmem:[%s4 + $0x9c] sm:$0xf] %vm1463, %v1374
    %1504 = vst.msk [vmem:[%s4 + $0xa0] sm:$0xf] %vm1463, %v1375
    %1505 = vst.msk [vmem:[%s4 + $0xa4] sm:$0xf] %vm1463, %v1376
    %1506 = vst.msk [vmem:[%s4 + $0xa8] sm:$0xf] %vm1463, %v1377
    %1507 = vst.msk [vmem:[%s4 + $0xac] sm:$0xf] %vm1463, %v1378
    %1508 = vst.msk [vmem:[%s4 + $0xb0] sm:$0xf] %vm1463, %v1379
    %1509 = vst.msk [vmem:[%s4 + $0xb4] sm:$0xf] %vm1463, %v1380
    %1510 = vst.msk [vmem:[%s4 + $0xb8] sm:$0xf] %vm1463, %v1381
    %1511 = vst.msk [vmem:[%s4 + $0xbc] sm:$0xf] %vm1463, %v1382
    %1512 = vst.msk [vmem:[%s4 + $0xc0] sm:$0xf] %vm1463, %v1383
    %1513 = vst.msk [vmem:[%s4 + $0xc4] sm:$0xf] %vm1463, %v1384
    %1514 = vst.msk [vmem:[%s4 + $0xc8] sm:$0xf] %vm1463, %v1385
    %1515 = vst.msk [vmem:[%s4 + $0xcc] sm:$0xf] %vm1463, %v1386
    %1516 = vst.msk [vmem:[%s4 + $0xd0] sm:$0xf] %vm1463, %v1387
    %1517 = vst.msk [vmem:[%s4 + $0xd4] sm:$0xf] %vm1463, %v1388
    %1518 = vst.msk [vmem:[%s4 + $0xd8] sm:$0xf] %vm1463, %v1389
    %1519 = vst.msk [vmem:[%s4 + $0xdc] sm:$0xf] %vm1463, %v1390
    %1520 = vst.msk [vmem:[%s4 + $0xe0] sm:$0xf] %vm1463, %v1391
    %1521 = vst.msk [vmem:[%s4 + $0xe4] sm:$0xf] %vm1463, %v1392
    %1522 = vst.msk [vmem:[%s4 + $0xe8] sm:$0xf] %vm1463, %v1393
    %1523 = vst.msk [vmem:[%s4 + $0xec] sm:$0xf] %vm1463, %v1394
    %1524 = vst.msk [vmem:[%s4 + $0xf0] sm:$0xf] %vm1463, %v1395
    %1525 = vst.msk [vmem:[%s4 + $0xf4] sm:$0xf] %vm1463, %v1396
    %1526 = vst.msk [vmem:[%s4 + $0xf8] sm:$0xf] %vm1463, %v1397
    %1527 = vst.msk [vmem:[%s4 + $0xfc] sm:$0xf] %vm1463, %v1398
  $region29: #{_lambda_.5} parent=0 // pred_fallthru
    _
  // Predicated region
  $region30: #{_lambda_.5} parent=0 // pred_check
    _
  $region31: #{_lambda_.5} parent=0 // pred_check_branch
    %1529 = sbr.rel (0) target = $region33
  $region32: #{_lambda_.5} parent=0 // pred_region
    _
  $region33: #{_lambda_.5} parent=0 // pred_fallthru
    _
  // Predicated region
  $region34: #{_lambda_.5} parent=0 // pred_check
    _
  $region35: #{_lambda_.5} parent=0 // pred_check_branch
    %1531 = sbr.rel (0) target = $region37
  $region36: #{_lambda_.5} parent=0 // pred_region
    _
  $region37: #{_lambda_.5} parent=0 // pred_fallthru
    _

// kernel: _lambda_.6
$region0: #{_lambda_.6}
  #allocation0 [shape = 'u32[]', space=smem, size = 0x4, offset = 0x4, fixed_abs, tag = 'smem constant byte address 0x4 - core index']
  #allocation1 [shape = 'u32[144,128]{1,0:T(1,128)}', space=vmem, size = 0x12000, scoped, tag = 'internal scratch']
  %s0 = inlined_call_operand.vmem [shape: bf16[4,392,72], index: 0, kind: input, shape index: {}]
  %s1 = inlined_call_operand.vmem [shape: bf16[4,72,8], index: 1, kind: input, shape index: {}]
  %s2 = inlined_call_operand.vmem [shape: f32[4,1,8], index: 2, kind: input, shape index: {}]
  %s3 = inlined_call_operand.vmem [shape: f32[4,1,8], index: 3, kind: input, shape index: {}]
  %s4 = inlined_call_operand.vmem [shape: bf16[392,32], index: 4, kind: output, shape index: {}]
  %s5 = sld [smem:[#allocation0]]
  $region26: #{_lambda_.6} parent=0
    _
  %s7 = ssub.s32 1, %s5
  %s8 = scalar_select 0, %s7, %s5
  // Predicated region
  $region2: #{_lambda_.6} parent=0 // pred_check
    _
  $region3: #{_lambda_.6} parent=0 // pred_check_branch
    %10 = sbr.rel (0) target = $region5
  $region4: #{_lambda_.6} parent=0 // pred_region
    _
  $region5: #{_lambda_.6} parent=0 // pred_fallthru
    _
  // Predicated region
  $region6: #{_lambda_.6} parent=0 // pred_check
    _
  $region7: #{_lambda_.6} parent=0 // pred_check_branch
    %12 = sbr.rel (0) target = $region9
  $region8: #{_lambda_.6} parent=0 // pred_region
    _
  $region9: #{_lambda_.6} parent=0 // pred_fallthru
    _
  // Predicated region
  $region10: #{_lambda_.6} parent=0 // pred_check
    _
  $region11: #{_lambda_.6} parent=0 // pred_check_branch
    %14 = sbr.rel (0) target = $region13
  $region12: #{_lambda_.6} parent=0 // pred_region
    _
  $region13: #{_lambda_.6} parent=0 // pred_fallthru
    _
  // Predicated region
  $region14: #{_lambda_.6} parent=0 // pred_check
    _
  $region15: #{_lambda_.6} parent=0 // pred_check_branch
    %16 = sbr.rel (0) target = $region17
  $region16: #{_lambda_.6} parent=0 // pred_region
    _
  $region17: #{_lambda_.6} parent=0 // pred_fallthru
    _
  %v18 = vld [vmem:[%s0] sm:$0xf]
  %v19 = vld [vmem:[%s0 + $0x4] sm:$0xf]
  %v20 = vld [vmem:[%s0 + $0x8] sm:$0xf]
  %v21 = vld [vmem:[%s0 + $0xc] sm:$0xf]
  %v22 = vld [vmem:[%s0 + $0x10] sm:$0xf]
  %v23 = vld [vmem:[%s0 + $0x14] sm:$0xf]
  %v24 = vld [vmem:[%s0 + $0x18] sm:$0xf]
  %v25 = vld [vmem:[%s0 + $0x1c] sm:$0xf]
  %v26 = vld [vmem:[%s0 + $0x20] sm:$0xf]
  %v27 = vld [vmem:[%s0 + $0x24] sm:$0xf]
  %v28 = vld [vmem:[%s0 + $0x28] sm:$0xf]
  %v29 = vld [vmem:[%s0 + $0x2c] sm:$0xf]
  %v30 = vld [vmem:[%s0 + $0x30] sm:$0xf]
  %v31 = vld [vmem:[%s0 + $0x34] sm:$0xf]
  %v32 = vld [vmem:[%s0 + $0x38] sm:$0xf]
  %v33 = vld [vmem:[%s0 + $0x3c] sm:$0xf]
  %v34 = vld [vmem:[%s0 + $0x40] sm:$0xf]
  %v35 = vld [vmem:[%s0 + $0x44] sm:$0xf]
  %v36 = vld [vmem:[%s0 + $0x48] sm:$0xf]
  %v37 = vld [vmem:[%s0 + $0x4c] sm:$0xf]
  %v38 = vld [vmem:[%s0 + $0x50] sm:$0xf]
  %v39 = vld [vmem:[%s0 + $0x54] sm:$0xf]
  %v40 = vld [vmem:[%s0 + $0x58] sm:$0xf]
  %v41 = vld [vmem:[%s0 + $0x5c] sm:$0xf]
  %v42 = vld [vmem:[%s0 + $0x60] sm:$0xf]
  %v43 = vld [vmem:[%s0 + $0x64] sm:$0xf]
  %v44 = vld [vmem:[%s0 + $0x68] sm:$0xf]
  %v45 = vld [vmem:[%s0 + $0x6c] sm:$0xf]
  %v46 = vld [vmem:[%s0 + $0x70] sm:$0xf]
  %v47 = vld [vmem:[%s0 + $0x74] sm:$0xf]
  %v48 = vld [vmem:[%s0 + $0x78] sm:$0xf]
  %v49 = vld [vmem:[%s0 + $0x7c] sm:$0xf]
  %v50 = vld [vmem:[%s0 + $0x80] sm:$0xf]
  %v51 = vld [vmem:[%s0 + $0x84] sm:$0xf]
  %v52 = vld [vmem:[%s0 + $0x88] sm:$0xf]
  %v53 = vld [vmem:[%s0 + $0x8c] sm:$0xf]
  %v54 = vld [vmem:[%s0 + $0x90] sm:$0xf]
  %v55 = vld [vmem:[%s0 + $0x94] sm:$0xf]
  %v56 = vld [vmem:[%s0 + $0x98] sm:$0xf]
  %v57 = vld [vmem:[%s0 + $0x9c] sm:$0xf]
  %v58 = vld [vmem:[%s0 + $0xa0] sm:$0xf]
  %v59 = vld [vmem:[%s0 + $0xa4] sm:$0xf]
  %v60 = vld [vmem:[%s0 + $0xa8] sm:$0xf]
  %v61 = vld [vmem:[%s0 + $0xac] sm:$0xf]
  %v62 = vld [vmem:[%s0 + $0xb0] sm:$0xf]
  %v63 = vld [vmem:[%s0 + $0xb4] sm:$0xf]
  %v64 = vld [vmem:[%s0 + $0xb8] sm:$0xf]
  %v65 = vld [vmem:[%s0 + $0xbc] sm:$0xf]
  %v66 = vld [vmem:[%s0 + $0xc0] sm:$0xf]
  %v67 = vld [vmem:[%s1] sm:$0xf]
  %v68 = vld [vmem:[%s1 + $0x4] sm:$0xf]
  %v69 = vld [vmem:[%s1 + $0x8] sm:$0xf]
  %v70 = vld [vmem:[%s1 + $0xc] sm:$0xf]
  %v71 = vld [vmem:[%s1 + $0x10] sm:$0xf]
  %v72 = vld [vmem:[%s1 + $0x14] sm:$0xf]
  %v73 = vld [vmem:[%s1 + $0x18] sm:$0xf]
  %v74 = vld [vmem:[%s1 + $0x1c] sm:$0xf]
  %v75 = vld [vmem:[%s1 + $0x20] sm:$0xf]
  %v125 = vunpack.c.l.b16 %v18
  %v126 = vunpack.c.l.b16 %v19
  %v127 = vunpack.c.l.b16 %v20
  %v128 = vunpack.c.l.b16 %v21
  %v129 = vunpack.c.l.b16 %v22
  %v130 = vunpack.c.l.b16 %v23
  %v131 = vunpack.c.l.b16 %v24
  %v132 = vunpack.c.l.b16 %v25
  %v133 = vunpack.c.l.b16 %v26
  %v134 = vunpack.c.l.b16 %v27
  %v135 = vunpack.c.l.b16 %v28
  %v136 = vunpack.c.l.b16 %v29
  %v137 = vunpack.c.l.b16 %v30
  %v138 = vunpack.c.l.b16 %v31
  %v139 = vunpack.c.l.b16 %v32
  %v140 = vunpack.c.l.b16 %v33
  %v141 = vunpack.c.l.b16 %v34
  %v142 = vunpack.c.l.b16 %v35
  %v143 = vunpack.c.l.b16 %v36
  %v144 = vunpack.c.l.b16 %v37
  %v145 = vunpack.c.l.b16 %v38
  %v146 = vunpack.c.l.b16 %v39
  %v147 = vunpack.c.l.b16 %v40
  %v148 = vunpack.c.l.b16 %v41
  %v149 = vunpack.c.l.b16 %v42
  %v150 = vunpack.c.l.b16 %v43
  %v151 = vunpack.c.l.b16 %v44
  %v152 = vunpack.c.l.b16 %v45
  %v153 = vunpack.c.l.b16 %v46
  %v154 = vunpack.c.l.b16 %v47
  %v155 = vunpack.c.l.b16 %v48
  %v156 = vunpack.c.l.b16 %v49
  %v157 = vunpack.c.l.b16 %v50
  %v158 = vunpack.c.l.b16 %v51
  %v159 = vunpack.c.l.b16 %v52
  %v160 = vunpack.c.l.b16 %v53
  %v161 = vunpack.c.l.b16 %v54
  %v162 = vunpack.c.l.b16 %v55
  %v163 = vunpack.c.l.b16 %v56
  %v164 = vunpack.c.l.b16 %v57
  %v165 = vunpack.c.l.b16 %v58
  %v166 = vunpack.c.l.b16 %v59
  %v167 = vunpack.c.l.b16 %v60
  %v168 = vunpack.c.l.b16 %v61
  %v169 = vunpack.c.l.b16 %v62
  %v170 = vunpack.c.l.b16 %v63
  %v171 = vunpack.c.l.b16 %v64
  %v172 = vunpack.c.l.b16 %v65
  %v173 = vunpack.c.l.b16 %v66
  %v174 = vpack.c.b16 %v126, %v125
  %v175 = vpack.c.b16 %v128, %v127
  %v176 = vpack.c.b16 %v130, %v129
  %v177 = vpack.c.b16 %v132, %v131
  %v178 = vpack.c.b16 %v134, %v133
  %v179 = vpack.c.b16 %v136, %v135
  %v180 = vpack.c.b16 %v138, %v137
  %v181 = vpack.c.b16 %v140, %v139
  %v182 = vpack.c.b16 %v142, %v141
  %v183 = vpack.c.b16 %v144, %v143
  %v184 = vpack.c.b16 %v146, %v145
  %v185 = vpack.c.b16 %v148, %v147
  %v186 = vpack.c.b16 %v150, %v149
  %v187 = vpack.c.b16 %v152, %v151
  %v188 = vpack.c.b16 %v154, %v153
  %v189 = vpack.c.b16 %v156, %v155
  %v190 = vpack.c.b16 %v158, %v157
  %v191 = vpack.c.b16 %v160, %v159
  %v192 = vpack.c.b16 %v162, %v161
  %v193 = vpack.c.b16 %v164, %v163
  %v194 = vpack.c.b16 %v166, %v165
  %v195 = vpack.c.b16 %v168, %v167
  %v196 = vpack.c.b16 %v170, %v169
  %v197 = vpack.c.b16 %v172, %v171
  %v198 = vpack.c.b16 %v173, %v173
  %v208 = vunpack.c.l.b16 %v67
  %v209 = vunpack.c.l.b16 %v68
  %v210 = vunpack.c.l.b16 %v69
  %v211 = vunpack.c.l.b16 %v70
  %v212 = vunpack.c.l.b16 %v71
  %v213 = vunpack.c.l.b16 %v72
  %v214 = vunpack.c.l.b16 %v73
  %v215 = vunpack.c.l.b16 %v74
  %v216 = vunpack.c.l.b16 %v75
  %v217 = vpack.c.b16 %v209, %v208
  %v218 = vpack.c.b16 %v211, %v210
  %v219 = vpack.c.b16 %v213, %v212
  %v220 = vpack.c.b16 %v215, %v214
  %v221 = vpack.c.b16 %v216, %v216
  %vm226 = vcmask 588800
  %v228 = vsel %vm226, %v174, 0
  %v231 = vsel %vm226, %v175, 0
  %v234 = vsel %vm226, %v176, 0
  %v237 = vsel %vm226, %v177, 0
  %v240 = vsel %vm226, %v178, 0
  %v243 = vsel %vm226, %v179, 0
  %v246 = vsel %vm226, %v180, 0
  %v249 = vsel %vm226, %v181, 0
  %v252 = vsel %vm226, %v182, 0
  %v255 = vsel %vm226, %v183, 0
  %v258 = vsel %vm226, %v184, 0
  %v261 = vsel %vm226, %v185, 0
  %v264 = vsel %vm226, %v186, 0
  %v267 = vsel %vm226, %v187, 0
  %v270 = vsel %vm226, %v188, 0
  %v273 = vsel %vm226, %v189, 0
  %v276 = vsel %vm226, %v190, 0
  %v279 = vsel %vm226, %v191, 0
  %v282 = vsel %vm226, %v192, 0
  %v285 = vsel %vm226, %v193, 0
  %v288 = vsel %vm226, %v194, 0
  %v291 = vsel %vm226, %v195, 0
  %v294 = vsel %vm226, %v196, 0
  %v297 = vsel %vm226, %v197, 0
  %v300 = vsel %vm226, %v198, 0
  %vm302 = vcmask 1043456
  %v304 = vsel %vm302, %v221, 0
  %306 = vmatprep.subr.bf16.mxu0 0
  %307 = vmatpush1.bf16.msra.mxu0 0
  %308 = vmatprep.subr.bf16.mxu0 0
  %309 = vmatpush1.bf16.msra.mxu0 0
  %310 = vmatprep.subr.bf16.mxu0 0
  %311 = vmatpush1.bf16.msra.mxu0 0
  %312 = vmatprep.subr.bf16.mxu0 0
  %313 = vmatpush1.bf16.msra.mxu0 %v304
  %314 = vmatprep.subr.bf16.mxu0 0
  %315 = vmatpush1.bf16.msra.mxu0 %v220
  %316 = vmatprep.subr.bf16.mxu0 0
  %317 = vmatpush1.bf16.msra.mxu0 %v219
  %318 = vmatprep.subr.bf16.mxu0 0
  %319 = vmatpush1.bf16.msra.mxu0 %v218
  %320 = vmatprep.subr.bf16.mxu0 0
  %321 = vmatpush1.bf16.msra.mxu0 %v217
  %322 = vmatprep.subr.bf16.mxu0 0
  %323 = vmatpush2.bf16.msra.mxu0 0
  %324 = vmatprep.subr.bf16.mxu0 0
  %325 = vmatpush2.bf16.msra.mxu0 0
  %326 = vmatprep.subr.bf16.mxu0 0
  %327 = vmatpush2.bf16.msra.mxu0 0
  %328 = vmatprep.subr.bf16.mxu0 0
  %329 = vmatpush2.bf16.msra.mxu0 0
  %330 = vmatprep.subr.bf16.mxu0 0
  %331 = vmatpush2.bf16.msra.mxu0 0
  %332 = vmatprep.subr.bf16.mxu0 0
  %333 = vmatpush2.bf16.msra.mxu0 0
  %334 = vmatprep.subr.bf16.mxu0 0
  %335 = vmatpush2.bf16.msra.mxu0 0
  %336 = vmatprep.subr.bf16.mxu0 0
  %337 = vmatpush2.bf16.msra.mxu0 0
  %338 = vmatprep.mubr.bf16.mxu0 0
  %339 = vmatmul.mubr.bf16.gmra.mxu0 %v228
  %v340 = vpop.f32.mrf.mxu0
  %v341 = vadd.f32 0.0, %v340
  %v342 = vpop.f32.mrf.mxu0
  %v343 = vpop.f32.mrf.mxu0
  %v344 = vadd.f32 0.0, %v343
  %v345 = vpop.f32.mrf.mxu0
  %346 = vmatprep.mubr.bf16.mxu0 0
  %347 = vmatmul.mubr.bf16.gmra.mxu0 %v231
  %v348 = vpop.f32.mrf.mxu0
  %v349 = vadd.f32 0.0, %v348
  %v350 = vpop.f32.mrf.mxu0
  %v351 = vpop.f32.mrf.mxu0
  %v352 = vadd.f32 0.0, %v351
  %v353 = vpop.f32.mrf.mxu0
  %354 = vmatprep.mubr.bf16.mxu0 0
  %355 = vmatmul.mubr.bf16.gmra.mxu0 %v234
  %v356 = vpop.f32.mrf.mxu0
  %v357 = vadd.f32 0.0, %v356
  %v358 = vpop.f32.mrf.mxu0
  %v359 = vpop.f32.mrf.mxu0
  %v360 = vadd.f32 0.0, %v359
  %v361 = vpop.f32.mrf.mxu0
  %362 = vmatprep.mubr.bf16.mxu0 0
  %363 = vmatmul.mubr.bf16.gmra.mxu0 %v237
  %v364 = vpop.f32.mrf.mxu0
  %v365 = vadd.f32 0.0, %v364
  %v366 = vpop.f32.mrf.mxu0
  %v367 = vpop.f32.mrf.mxu0
  %v368 = vadd.f32 0.0, %v367
  %v369 = vpop.f32.mrf.mxu0
  %370 = vmatprep.mubr.bf16.mxu0 0
  %371 = vmatmul.mubr.bf16.gmra.mxu0 %v240
  %v372 = vpop.f32.mrf.mxu0
  %v373 = vadd.f32 0.0, %v372
  %v374 = vpop.f32.mrf.mxu0
  %v375 = vpop.f32.mrf.mxu0
  %v376 = vadd.f32 0.0, %v375
  %v377 = vpop.f32.mrf.mxu0
  %378 = vmatprep.mubr.bf16.mxu0 0
  %379 = vmatmul.mubr.bf16.gmra.mxu0 %v243
  %v380 = vpop.f32.mrf.mxu0
  %v381 = vadd.f32 0.0, %v380
  %v382 = vpop.f32.mrf.mxu0
  %v383 = vpop.f32.mrf.mxu0
  %v384 = vadd.f32 0.0, %v383
  %v385 = vpop.f32.mrf.mxu0
  %386 = vmatprep.mubr.bf16.mxu0 0
  %387 = vmatmul.mubr.bf16.gmra.mxu0 %v246
  %v388 = vpop.f32.mrf.mxu0
  %v389 = vadd.f32 0.0, %v388
  %v390 = vpop.f32.mrf.mxu0
  %v391 = vpop.f32.mrf.mxu0
  %v392 = vadd.f32 0.0, %v391
  %v393 = vpop.f32.mrf.mxu0
  %394 = vmatprep.mubr.bf16.mxu0 0
  %395 = vmatmul.mubr.bf16.gmra.mxu0 %v249
  %v396 = vpop.f32.mrf.mxu0
  %v397 = vadd.f32 0.0, %v396
  %v398 = vpop.f32.mrf.mxu0
  %v399 = vpop.f32.mrf.mxu0
  %v400 = vadd.f32 0.0, %v399
  %v401 = vpop.f32.mrf.mxu0
  %402 = vmatprep.mubr.bf16.mxu0 0
  %403 = vmatmul.mubr.bf16.gmra.mxu0 %v252
  %v404 = vpop.f32.mrf.mxu0
  %v405 = vadd.f32 0.0, %v404
  %v406 = vpop.f32.mrf.mxu0
  %v407 = vpop.f32.mrf.mxu0
  %v408 = vadd.f32 0.0, %v407
  %v409 = vpop.f32.mrf.mxu0
  %410 = vmatprep.mubr.bf16.mxu0 0
  %411 = vmatmul.mubr.bf16.gmra.mxu0 %v255
  %v412 = vpop.f32.mrf.mxu0
  %v413 = vadd.f32 0.0, %v412
  %v414 = vpop.f32.mrf.mxu0
  %v415 = vpop.f32.mrf.mxu0
  %v416 = vadd.f32 0.0, %v415
  %v417 = vpop.f32.mrf.mxu0
  %418 = vmatprep.mubr.bf16.mxu0 0
  %419 = vmatmul.mubr.bf16.gmra.mxu0 %v258
  %v420 = vpop.f32.mrf.mxu0
  %v421 = vadd.f32 0.0, %v420
  %v422 = vpop.f32.mrf.mxu0
  %v423 = vpop.f32.mrf.mxu0
  %v424 = vadd.f32 0.0, %v423
  %v425 = vpop.f32.mrf.mxu0
  %426 = vmatprep.mubr.bf16.mxu0 0
  %427 = vmatmul.mubr.bf16.gmra.mxu0 %v261
  %v428 = vpop.f32.mrf.mxu0
  %v429 = vadd.f32 0.0, %v428
  %v430 = vpop.f32.mrf.mxu0
  %v431 = vpop.f32.mrf.mxu0
  %v432 = vadd.f32 0.0, %v431
  %v433 = vpop.f32.mrf.mxu0
  %434 = vmatprep.mubr.bf16.mxu0 0
  %435 = vmatmul.mubr.bf16.gmra.mxu0 %v264
  %v436 = vpop.f32.mrf.mxu0
  %v437 = vadd.f32 0.0, %v436
  %v438 = vpop.f32.mrf.mxu0
  %v439 = vpop.f32.mrf.mxu0
  %v440 = vadd.f32 0.0, %v439
  %v441 = vpop.f32.mrf.mxu0
  %442 = vmatprep.mubr.bf16.mxu0 0
  %443 = vmatmul.mubr.bf16.gmra.mxu0 %v267
  %v444 = vpop.f32.mrf.mxu0
  %v445 = vadd.f32 0.0, %v444
  %v446 = vpop.f32.mrf.mxu0
  %v447 = vpop.f32.mrf.mxu0
  %v448 = vadd.f32 0.0, %v447
  %v449 = vpop.f32.mrf.mxu0
  %450 = vmatprep.mubr.bf16.mxu0 0
  %451 = vmatmul.mubr.bf16.gmra.mxu0 %v270
  %v452 = vpop.f32.mrf.mxu0
  %v453 = vadd.f32 0.0, %v452
  %v454 = vpop.f32.mrf.mxu0
  %v455 = vpop.f32.mrf.mxu0
  %v456 = vadd.f32 0.0, %v455
  %v457 = vpop.f32.mrf.mxu0
  %458 = vmatprep.mubr.bf16.mxu0 0
  %459 = vmatmul.mubr.bf16.gmra.mxu0 %v273
  %v460 = vpop.f32.mrf.mxu0
  %v461 = vadd.f32 0.0, %v460
  %v462 = vpop.f32.mrf.mxu0
  %v463 = vpop.f32.mrf.mxu0
  %v464 = vadd.f32 0.0, %v463
  %v465 = vpop.f32.mrf.mxu0
  %466 = vmatprep.mubr.bf16.mxu0 0
  %467 = vmatmul.mubr.bf16.gmra.mxu0 %v276
  %v468 = vpop.f32.mrf.mxu0
  %v469 = vadd.f32 0.0, %v468
  %v470 = vpop.f32.mrf.mxu0
  %v471 = vpop.f32.mrf.mxu0
  %v472 = vadd.f32 0.0, %v471
  %v473 = vpop.f32.mrf.mxu0
  %474 = vmatprep.mubr.bf16.mxu0 0
  %475 = vmatmul.mubr.bf16.gmra.mxu0 %v279
  %v476 = vpop.f32.mrf.mxu0
  %v477 = vadd.f32 0.0, %v476
  %v478 = vpop.f32.mrf.mxu0
  %v479 = vpop.f32.mrf.mxu0
  %v480 = vadd.f32 0.0, %v479
  %v481 = vpop.f32.mrf.mxu0
  %482 = vmatprep.mubr.bf16.mxu0 0
  %483 = vmatmul.mubr.bf16.gmra.mxu0 %v282
  %v484 = vpop.f32.mrf.mxu0
  %v485 = vadd.f32 0.0, %v484
  %v486 = vpop.f32.mrf.mxu0
  %v487 = vpop.f32.mrf.mxu0
  %v488 = vadd.f32 0.0, %v487
  %v489 = vpop.f32.mrf.mxu0
  %490 = vmatprep.mubr.bf16.mxu0 0
  %491 = vmatmul.mubr.bf16.gmra.mxu0 %v285
  %v492 = vpop.f32.mrf.mxu0
  %v493 = vadd.f32 0.0, %v492
  %v494 = vpop.f32.mrf.mxu0
  %v495 = vpop.f32.mrf.mxu0
  %v496 = vadd.f32 0.0, %v495
  %v497 = vpop.f32.mrf.mxu0
  %498 = vmatprep.mubr.bf16.mxu0 0
  %499 = vmatmul.mubr.bf16.gmra.mxu0 %v288
  %v500 = vpop.f32.mrf.mxu0
  %v501 = vadd.f32 0.0, %v500
  %v502 = vpop.f32.mrf.mxu0
  %v503 = vpop.f32.mrf.mxu0
  %v504 = vadd.f32 0.0, %v503
  %v505 = vpop.f32.mrf.mxu0
  %506 = vmatprep.mubr.bf16.mxu0 0
  %507 = vmatmul.mubr.bf16.gmra.mxu0 %v291
  %v508 = vpop.f32.mrf.mxu0
  %v509 = vadd.f32 0.0, %v508
  %v510 = vpop.f32.mrf.mxu0
  %v511 = vpop.f32.mrf.mxu0
  %v512 = vadd.f32 0.0, %v511
  %v513 = vpop.f32.mrf.mxu0
  %514 = vmatprep.mubr.bf16.mxu0 0
  %515 = vmatmul.mubr.bf16.gmra.mxu0 %v294
  %v516 = vpop.f32.mrf.mxu0
  %v517 = vadd.f32 0.0, %v516
  %v518 = vpop.f32.mrf.mxu0
  %v519 = vpop.f32.mrf.mxu0
  %v520 = vadd.f32 0.0, %v519
  %v521 = vpop.f32.mrf.mxu0
  %522 = vmatprep.mubr.bf16.mxu0 0
  %523 = vmatmul.mubr.bf16.gmra.mxu0 %v297
  %v524 = vpop.f32.mrf.mxu0
  %v525 = vadd.f32 0.0, %v524
  %v526 = vpop.f32.mrf.mxu0
  %v527 = vpop.f32.mrf.mxu0
  %v528 = vadd.f32 0.0, %v527
  %v529 = vpop.f32.mrf.mxu0
  %530 = vmatprep.mubr.bf16.mxu0 0
  %531 = vmatmul.mubr.bf16.gmra.mxu0 %v300
  %v532 = vpop.f32.mrf.mxu0
  %v533 = vadd.f32 0.0, %v532
  %v534 = vpop.f32.mrf.mxu0
  %v535 = vpop.f32.mrf.mxu0
  %v536 = vpop.f32.mrf.mxu0
  %537 = vdwg.mxu0
  %v538 = vld [vmem:[%s2] sm:$0x1]
  %v540 = vlaneseq
  %v541 = vshrl.u32 %v540, 7
  %v542 = vsub.s32 0, %v541
  %v543 = vrot.slane %v538, %v542
  %v545 = vmul.f32 %v341, %v543
  %v546 = vmul.f32 %v344, %v543
  %v547 = vmul.f32 %v349, %v543
  %v548 = vmul.f32 %v352, %v543
  %v549 = vmul.f32 %v357, %v543
  %v550 = vmul.f32 %v360, %v543
  %v551 = vmul.f32 %v365, %v543
  %v552 = vmul.f32 %v368, %v543
  %v553 = vmul.f32 %v373, %v543
  %v554 = vmul.f32 %v376, %v543
  %v555 = vmul.f32 %v381, %v543
  %v556 = vmul.f32 %v384, %v543
  %v557 = vmul.f32 %v389, %v543
  %v558 = vmul.f32 %v392, %v543
  %v559 = vmul.f32 %v397, %v543
  %v560 = vmul.f32 %v400, %v543
  %v561 = vmul.f32 %v405, %v543
  %v562 = vmul.f32 %v408, %v543
  %v563 = vmul.f32 %v413, %v543
  %v564 = vmul.f32 %v416, %v543
  %v565 = vmul.f32 %v421, %v543
  %v566 = vmul.f32 %v424, %v543
  %v567 = vmul.f32 %v429, %v543
  %v568 = vmul.f32 %v432, %v543
  %v569 = vmul.f32 %v437, %v543
  %v570 = vmul.f32 %v440, %v543
  %v571 = vmul.f32 %v445, %v543
  %v572 = vmul.f32 %v448, %v543
  %v573 = vmul.f32 %v453, %v543
  %v574 = vmul.f32 %v456, %v543
  %v575 = vmul.f32 %v461, %v543
  %v576 = vmul.f32 %v464, %v543
  %v577 = vmul.f32 %v469, %v543
  %v578 = vmul.f32 %v472, %v543
  %v579 = vmul.f32 %v477, %v543
  %v580 = vmul.f32 %v480, %v543
  %v581 = vmul.f32 %v485, %v543
  %v582 = vmul.f32 %v488, %v543
  %v583 = vmul.f32 %v493, %v543
  %v584 = vmul.f32 %v496, %v543
  %v585 = vmul.f32 %v501, %v543
  %v586 = vmul.f32 %v504, %v543
  %v587 = vmul.f32 %v509, %v543
  %v588 = vmul.f32 %v512, %v543
  %v589 = vmul.f32 %v517, %v543
  %v590 = vmul.f32 %v520, %v543
  %v591 = vmul.f32 %v525, %v543
  %v592 = vmul.f32 %v528, %v543
  %v593 = vmul.f32 %v533, %v543
  %v594 = vld [vmem:[%s3] sm:$0x1]
  %v596 = vlaneseq
  %v597 = vshrl.u32 %v596, 7
  %v598 = vsub.s32 0, %v597
  %v599 = vrot.slane %v594, %v598
  %v601 = vadd.f32 %v545, %v599
  %v602 = vadd.f32 %v546, %v599
  %v603 = vadd.f32 %v547, %v599
  %v604 = vadd.f32 %v548, %v599
  %v605 = vadd.f32 %v549, %v599
  %v606 = vadd.f32 %v550, %v599
  %v607 = vadd.f32 %v551, %v599
  %v608 = vadd.f32 %v552, %v599
  %v609 = vadd.f32 %v553, %v599
  %v610 = vadd.f32 %v554, %v599
  %v611 = vadd.f32 %v555, %v599
  %v612 = vadd.f32 %v556, %v599
  %v613 = vadd.f32 %v557, %v599
  %v614 = vadd.f32 %v558, %v599
  %v615 = vadd.f32 %v559, %v599
  %v616 = vadd.f32 %v560, %v599
  %v617 = vadd.f32 %v561, %v599
  %v618 = vadd.f32 %v562, %v599
  %v619 = vadd.f32 %v563, %v599
  %v620 = vadd.f32 %v564, %v599
  %v621 = vadd.f32 %v565, %v599
  %v622 = vadd.f32 %v566, %v599
  %v623 = vadd.f32 %v567, %v599
  %v624 = vadd.f32 %v568, %v599
  %v625 = vadd.f32 %v569, %v599
  %v626 = vadd.f32 %v570, %v599
  %v627 = vadd.f32 %v571, %v599
  %v628 = vadd.f32 %v572, %v599
  %v629 = vadd.f32 %v573, %v599
  %v630 = vadd.f32 %v574, %v599
  %v631 = vadd.f32 %v575, %v599
  %v632 = vadd.f32 %v576, %v599
  %v633 = vadd.f32 %v577, %v599
  %v634 = vadd.f32 %v578, %v599
  %v635 = vadd.f32 %v579, %v599
  %v636 = vadd.f32 %v580, %v599
  %v637 = vadd.f32 %v581, %v599
  %v638 = vadd.f32 %v582, %v599
  %v639 = vadd.f32 %v583, %v599
  %v640 = vadd.f32 %v584, %v599
  %v641 = vadd.f32 %v585, %v599
  %v642 = vadd.f32 %v586, %v599
  %v643 = vadd.f32 %v587, %v599
  %v644 = vadd.f32 %v588, %v599
  %v645 = vadd.f32 %v589, %v599
  %v646 = vadd.f32 %v590, %v599
  %v647 = vadd.f32 %v591, %v599
  %v648 = vadd.f32 %v592, %v599
  %v649 = vadd.f32 %v593, %v599
  %v650 = vmax.f32 %v601, 0.0
  %v651 = vmax.f32 %v602, 0.0
  %v652 = vmax.f32 %v603, 0.0
  %v653 = vmax.f32 %v604, 0.0
  %v654 = vmax.f32 %v605, 0.0
  %v655 = vmax.f32 %v606, 0.0
  %v656 = vmax.f32 %v607, 0.0
  %v657 = vmax.f32 %v608, 0.0
  %v658 = vmax.f32 %v609, 0.0
  %v659 = vmax.f32 %v610, 0.0
  %v660 = vmax.f32 %v611, 0.0
  %v661 = vmax.f32 %v612, 0.0
  %v662 = vmax.f32 %v613, 0.0
  %v663 = vmax.f32 %v614, 0.0
  %v664 = vmax.f32 %v615, 0.0
  %v665 = vmax.f32 %v616, 0.0
  %v666 = vmax.f32 %v617, 0.0
  %v667 = vmax.f32 %v618, 0.0
  %v668 = vmax.f32 %v619, 0.0
  %v669 = vmax.f32 %v620, 0.0
  %v670 = vmax.f32 %v621, 0.0
  %v671 = vmax.f32 %v622, 0.0
  %v672 = vmax.f32 %v623, 0.0
  %v673 = vmax.f32 %v624, 0.0
  %v674 = vmax.f32 %v625, 0.0
  %v675 = vmax.f32 %v626, 0.0
  %v676 = vmax.f32 %v627, 0.0
  %v677 = vmax.f32 %v628, 0.0
  %v678 = vmax.f32 %v629, 0.0
  %v679 = vmax.f32 %v630, 0.0
  %v680 = vmax.f32 %v631, 0.0
  %v681 = vmax.f32 %v632, 0.0
  %v682 = vmax.f32 %v633, 0.0
  %v683 = vmax.f32 %v634, 0.0
  %v684 = vmax.f32 %v635, 0.0
  %v685 = vmax.f32 %v636, 0.0
  %v686 = vmax.f32 %v637, 0.0
  %v687 = vmax.f32 %v638, 0.0
  %v688 = vmax.f32 %v639, 0.0
  %v689 = vmax.f32 %v640, 0.0
  %v690 = vmax.f32 %v641, 0.0
  %v691 = vmax.f32 %v642, 0.0
  %v692 = vmax.f32 %v643, 0.0
  %v693 = vmax.f32 %v644, 0.0
  %v694 = vmax.f32 %v645, 0.0
  %v695 = vmax.f32 %v646, 0.0
  %v696 = vmax.f32 %v647, 0.0
  %v697 = vmax.f32 %v648, 0.0
  %v698 = vmax.f32 %v649, 0.0
  %v699 = vpack.c.bf16 %v651, %v650
  %v700 = vpack.c.bf16 %v653, %v652
  %v701 = vpack.c.bf16 %v655, %v654
  %v702 = vpack.c.bf16 %v657, %v656
  %v703 = vpack.c.bf16 %v659, %v658
  %v704 = vpack.c.bf16 %v661, %v660
  %v705 = vpack.c.bf16 %v663, %v662
  %v706 = vpack.c.bf16 %v665, %v664
  %v707 = vpack.c.bf16 %v667, %v666
  %v708 = vpack.c.bf16 %v669, %v668
  %v709 = vpack.c.bf16 %v671, %v670
  %v710 = vpack.c.bf16 %v673, %v672
  %v711 = vpack.c.bf16 %v675, %v674
  %v712 = vpack.c.bf16 %v677, %v676
  %v713 = vpack.c.bf16 %v679, %v678
  %v714 = vpack.c.bf16 %v681, %v680
  %v715 = vpack.c.bf16 %v683, %v682
  %v716 = vpack.c.bf16 %v685, %v684
  %v717 = vpack.c.bf16 %v687, %v686
  %v718 = vpack.c.bf16 %v689, %v688
  %v719 = vpack.c.bf16 %v691, %v690
  %v720 = vpack.c.bf16 %v693, %v692
  %v721 = vpack.c.bf16 %v695, %v694
  %v722 = vpack.c.bf16 %v697, %v696
  %v723 = vpack.c.bf16 %v698, %v698
  %v749 = vunpack.c.l.b16 %v699
  %v750 = vunpack.c.h.b16 %v699
  %v751 = vunpack.c.l.b16 %v700
  %v752 = vunpack.c.h.b16 %v700
  %v753 = vunpack.c.l.b16 %v701
  %v754 = vunpack.c.h.b16 %v701
  %v755 = vunpack.c.l.b16 %v702
  %v756 = vunpack.c.h.b16 %v702
  %v757 = vunpack.c.l.b16 %v703
  %v758 = vunpack.c.h.b16 %v703
  %v759 = vunpack.c.l.b16 %v704
  %v760 = vunpack.c.h.b16 %v704
  %v761 = vunpack.c.l.b16 %v705
  %v762 = vunpack.c.h.b16 %v705
  %v763 = vunpack.c.l.b16 %v706
  %v764 = vunpack.c.h.b16 %v706
  %v765 = vunpack.c.l.b16 %v707
  %v766 = vunpack.c.h.b16 %v707
  %v767 = vunpack.c.l.b16 %v708
  %v768 = vunpack.c.h.b16 %v708
  %v769 = vunpack.c.l.b16 %v709
  %v770 = vunpack.c.h.b16 %v709
  %v771 = vunpack.c.l.b16 %v710
  %v772 = vunpack.c.h.b16 %v710
  %v773 = vunpack.c.l.b16 %v711
  %v774 = vunpack.c.h.b16 %v711
  %v775 = vunpack.c.l.b16 %v712
  %v776 = vunpack.c.h.b16 %v712
  %v777 = vunpack.c.l.b16 %v713
  %v778 = vunpack.c.h.b16 %v713
  %v779 = vunpack.c.l.b16 %v714
  %v780 = vunpack.c.h.b16 %v714
  %v781 = vunpack.c.l.b16 %v715
  %v782 = vunpack.c.h.b16 %v715
  %v783 = vunpack.c.l.b16 %v716
  %v784 = vunpack.c.h.b16 %v716
  %v785 = vunpack.c.l.b16 %v717
  %v786 = vunpack.c.h.b16 %v717
  %v787 = vunpack.c.l.b16 %v718
  %v788 = vunpack.c.h.b16 %v718
  %v789 = vunpack.c.l.b16 %v719
  %v790 = vunpack.c.h.b16 %v719
  %v791 = vunpack.c.l.b16 %v720
  %v792 = vunpack.c.h.b16 %v720
  %v793 = vunpack.c.l.b16 %v721
  %v794 = vunpack.c.h.b16 %v721
  %v795 = vunpack.c.l.b16 %v722
  %v796 = vunpack.c.h.b16 %v722
  %v797 = vunpack.c.l.b16 %v723
  %v798 = vpack.c.b16 %v749, %v749
  %v799 = vpack.c.b16 %v750, %v750
  %v800 = vpack.c.b16 %v751, %v751
  %v801 = vpack.c.b16 %v752, %v752
  %v802 = vpack.c.b16 %v753, %v753
  %v803 = vpack.c.b16 %v754, %v754
  %v804 = vpack.c.b16 %v755, %v755
  %v805 = vpack.c.b16 %v756, %v756
  %v806 = vpack.c.b16 %v757, %v757
  %v807 = vpack.c.b16 %v758, %v758
  %v808 = vpack.c.b16 %v759, %v759
  %v809 = vpack.c.b16 %v760, %v760
  %v810 = vpack.c.b16 %v761, %v761
  %v811 = vpack.c.b16 %v762, %v762
  %v812 = vpack.c.b16 %v763, %v763
  %v813 = vpack.c.b16 %v764, %v764
  %v814 = vpack.c.b16 %v765, %v765
  %v815 = vpack.c.b16 %v766, %v766
  %v816 = vpack.c.b16 %v767, %v767
  %v817 = vpack.c.b16 %v768, %v768
  %v818 = vpack.c.b16 %v769, %v769
  %v819 = vpack.c.b16 %v770, %v770
  %v820 = vpack.c.b16 %v771, %v771
  %v821 = vpack.c.b16 %v772, %v772
  %v822 = vpack.c.b16 %v773, %v773
  %v823 = vpack.c.b16 %v774, %v774
  %v824 = vpack.c.b16 %v775, %v775
  %v825 = vpack.c.b16 %v776, %v776
  %v826 = vpack.c.b16 %v777, %v777
  %v827 = vpack.c.b16 %v778, %v778
  %v828 = vpack.c.b16 %v779, %v779
  %v829 = vpack.c.b16 %v780, %v780
  %v830 = vpack.c.b16 %v781, %v781
  %v831 = vpack.c.b16 %v782, %v782
  %v832 = vpack.c.b16 %v783, %v783
  %v833 = vpack.c.b16 %v784, %v784
  %v834 = vpack.c.b16 %v785, %v785
  %v835 = vpack.c.b16 %v786, %v786
  %v836 = vpack.c.b16 %v787, %v787
  %v837 = vpack.c.b16 %v788, %v788
  %v838 = vpack.c.b16 %v789, %v789
  %v839 = vpack.c.b16 %v790, %v790
  %v840 = vpack.c.b16 %v791, %v791
  %v841 = vpack.c.b16 %v792, %v792
  %v842 = vpack.c.b16 %v793, %v793
  %v843 = vpack.c.b16 %v794, %v794
  %v844 = vpack.c.b16 %v795, %v795
  %v845 = vpack.c.b16 %v796, %v796
  %v846 = vpack.c.b16 %v797, %v797
  %vm896 = vcmask 60416
  %897 = vst.msk [vmem:[%s4] sm:$0xf] %vm896, %v798
  %898 = vst.msk [vmem:[%s4 + $0x4] sm:$0xf] %vm896, %v799
  %899 = vst.msk [vmem:[%s4 + $0x8] sm:$0xf] %vm896, %v800
  %900 = vst.msk [vmem:[%s4 + $0xc] sm:$0xf] %vm896, %v801
  %901 = vst.msk [vmem:[%s4 + $0x10] sm:$0xf] %vm896, %v802
  %902 = vst.msk [vmem:[%s4 + $0x14] sm:$0xf] %vm896, %v803
  %903 = vst.msk [vmem:[%s4 + $0x18] sm:$0xf] %vm896, %v804
  %904 = vst.msk [vmem:[%s4 + $0x1c] sm:$0xf] %vm896, %v805
  %905 = vst.msk [vmem:[%s4 + $0x20] sm:$0xf] %vm896, %v806
  %906 = vst.msk [vmem:[%s4 + $0x24] sm:$0xf] %vm896, %v807
  %907 = vst.msk [vmem:[%s4 + $0x28] sm:$0xf] %vm896, %v808
  %908 = vst.msk [vmem:[%s4 + $0x2c] sm:$0xf] %vm896, %v809
  %909 = vst.msk [vmem:[%s4 + $0x30] sm:$0xf] %vm896, %v810
  %910 = vst.msk [vmem:[%s4 + $0x34] sm:$0xf] %vm896, %v811
  %911 = vst.msk [vmem:[%s4 + $0x38] sm:$0xf] %vm896, %v812
  %912 = vst.msk [vmem:[%s4 + $0x3c] sm:$0xf] %vm896, %v813
  %913 = vst.msk [vmem:[%s4 + $0x40] sm:$0xf] %vm896, %v814
  %914 = vst.msk [vmem:[%s4 + $0x44] sm:$0xf] %vm896, %v815
  %915 = vst.msk [vmem:[%s4 + $0x48] sm:$0xf] %vm896, %v816
  %916 = vst.msk [vmem:[%s4 + $0x4c] sm:$0xf] %vm896, %v817
  %917 = vst.msk [vmem:[%s4 + $0x50] sm:$0xf] %vm896, %v818
  %918 = vst.msk [vmem:[%s4 + $0x54] sm:$0xf] %vm896, %v819
  %919 = vst.msk [vmem:[%s4 + $0x58] sm:$0xf] %vm896, %v820
  %920 = vst.msk [vmem:[%s4 + $0x5c] sm:$0xf] %vm896, %v821
  %921 = vst.msk [vmem:[%s4 + $0x60] sm:$0xf] %vm896, %v822
  %922 = vst.msk [vmem:[%s4 + $0x64] sm:$0xf] %vm896, %v823
  %923 = vst.msk [vmem:[%s4 + $0x68] sm:$0xf] %vm896, %v824
  %924 = vst.msk [vmem:[%s4 + $0x6c] sm:$0xf] %vm896, %v825
  %925 = vst.msk [vmem:[%s4 + $0x70] sm:$0xf] %vm896, %v826
  %926 = vst.msk [vmem:[%s4 + $0x74] sm:$0xf] %vm896, %v827
  %927 = vst.msk [vmem:[%s4 + $0x78] sm:$0xf] %vm896, %v828
  %928 = vst.msk [vmem:[%s4 + $0x7c] sm:$0xf] %vm896, %v829
  %929 = vst.msk [vmem:[%s4 + $0x80] sm:$0xf] %vm896, %v830
  %930 = vst.msk [vmem:[%s4 + $0x84] sm:$0xf] %vm896, %v831
  %931 = vst.msk [vmem:[%s4 + $0x88] sm:$0xf] %vm896, %v832
  %932 = vst.msk [vmem:[%s4 + $0x8c] sm:$0xf] %vm896, %v833
  %933 = vst.msk [vmem:[%s4 + $0x90] sm:$0xf] %vm896, %v834
  %934 = vst.msk [vmem:[%s4 + $0x94] sm:$0xf] %vm896, %v835
  %935 = vst.msk [vmem:[%s4 + $0x98] sm:$0xf] %vm896, %v836
  %936 = vst.msk [vmem:[%s4 + $0x9c] sm:$0xf] %vm896, %v837
  %937 = vst.msk [vmem:[%s4 + $0xa0] sm:$0xf] %vm896, %v838
  %938 = vst.msk [vmem:[%s4 + $0xa4] sm:$0xf] %vm896, %v839
  %939 = vst.msk [vmem:[%s4 + $0xa8] sm:$0xf] %vm896, %v840
  %940 = vst.msk [vmem:[%s4 + $0xac] sm:$0xf] %vm896, %v841
  %941 = vst.msk [vmem:[%s4 + $0xb0] sm:$0xf] %vm896, %v842
  %942 = vst.msk [vmem:[%s4 + $0xb4] sm:$0xf] %vm896, %v843
  %943 = vst.msk [vmem:[%s4 + $0xb8] sm:$0xf] %vm896, %v844
  %944 = vst.msk [vmem:[%s4 + $0xbc] sm:$0xf] %vm896, %v845
  %945 = vst.msk [vmem:[%s4 + $0xc0] sm:$0xf] %vm896, %v846
  %s946 = scalar_lea.vmem %s0, 196
  %v947 = vld [vmem:[%s946] sm:$0xf]
  %v948 = vld [vmem:[%s946 + $0x4] sm:$0xf]
  %v949 = vld [vmem:[%s946 + $0x8] sm:$0xf]
  %v950 = vld [vmem:[%s946 + $0xc] sm:$0xf]
  %v951 = vld [vmem:[%s946 + $0x10] sm:$0xf]
  %v952 = vld [vmem:[%s946 + $0x14] sm:$0xf]
  %v953 = vld [vmem:[%s946 + $0x18] sm:$0xf]
  %v954 = vld [vmem:[%s946 + $0x1c] sm:$0xf]
  %v955 = vld [vmem:[%s946 + $0x20] sm:$0xf]
  %v956 = vld [vmem:[%s946 + $0x24] sm:$0xf]
  %v957 = vld [vmem:[%s946 + $0x28] sm:$0xf]
  %v958 = vld [vmem:[%s946 + $0x2c] sm:$0xf]
  %v959 = vld [vmem:[%s946 + $0x30] sm:$0xf]
  %v960 = vld [vmem:[%s946 + $0x34] sm:$0xf]
  %v961 = vld [vmem:[%s946 + $0x38] sm:$0xf]
  %v962 = vld [vmem:[%s946 + $0x3c] sm:$0xf]
  %v963 = vld [vmem:[%s946 + $0x40] sm:$0xf]
  %v964 = vld [vmem:[%s946 + $0x44] sm:$0xf]
  %v965 = vld [vmem:[%s946 + $0x48] sm:$0xf]
  %v966 = vld [vmem:[%s946 + $0x4c] sm:$0xf]
  %v967 = vld [vmem:[%s946 + $0x50] sm:$0xf]
  %v968 = vld [vmem:[%s946 + $0x54] sm:$0xf]
  %v969 = vld [vmem:[%s946 + $0x58] sm:$0xf]
  %v970 = vld [vmem:[%s946 + $0x5c] sm:$0xf]
  %v971 = vld [vmem:[%s946 + $0x60] sm:$0xf]
  %v972 = vld [vmem:[%s946 + $0x64] sm:$0xf]
  %v973 = vld [vmem:[%s946 + $0x68] sm:$0xf]
  %v974 = vld [vmem:[%s946 + $0x6c] sm:$0xf]
  %v975 = vld [vmem:[%s946 + $0x70] sm:$0xf]
  %v976 = vld [vmem:[%s946 + $0x74] sm:$0xf]
  %v977 = vld [vmem:[%s946 + $0x78] sm:$0xf]
  %v978 = vld [vmem:[%s946 + $0x7c] sm:$0xf]
  %v979 = vld [vmem:[%s946 + $0x80] sm:$0xf]
  %v980 = vld [vmem:[%s946 + $0x84] sm:$0xf]
  %v981 = vld [vmem:[%s946 + $0x88] sm:$0xf]
  %v982 = vld [vmem:[%s946 + $0x8c] sm:$0xf]
  %v983 = vld [vmem:[%s946 + $0x90] sm:$0xf]
  %v984 = vld [vmem:[%s946 + $0x94] sm:$0xf]
  %v985 = vld [vmem:[%s946 + $0x98] sm:$0xf]
  %v986 = vld [vmem:[%s946 + $0x9c] sm:$0xf]
  %v987 = vld [vmem:[%s946 + $0xa0] sm:$0xf]
  %v988 = vld [vmem:[%s946 + $0xa4] sm:$0xf]
  %v989 = vld [vmem:[%s946 + $0xa8] sm:$0xf]
  %v990 = vld [vmem:[%s946 + $0xac] sm:$0xf]
  %v991 = vld [vmem:[%s946 + $0xb0] sm:$0xf]
  %v992 = vld [vmem:[%s946 + $0xb4] sm:$0xf]
  %v993 = vld [vmem:[%s946 + $0xb8] sm:$0xf]
  %v994 = vld [vmem:[%s946 + $0xbc] sm:$0xf]
  %v995 = vld [vmem:[%s946 + $0xc0] sm:$0xf]
  %s996 = scalar_lea.vmem %s1, 36
  %v997 = vld [vmem:[%s996] sm:$0xf]
  %v998 = vld [vmem:[%s996 + $0x4] sm:$0xf]
  %v999 = vld [vmem:[%s996 + $0x8] sm:$0xf]
  %v1000 = vld [vmem:[%s996 + $0xc] sm:$0xf]
  %v1001 = vld [vmem:[%s996 + $0x10] sm:$0xf]
  %v1002 = vld [vmem:[%s996 + $0x14] sm:$0xf]
  %v1003 = vld [vmem:[%s996 + $0x18] sm:$0xf]
  %v1004 = vld [vmem:[%s996 + $0x1c] sm:$0xf]
  %v1005 = vld [vmem:[%s996 + $0x20] sm:$0xf]
  %v1055 = vunpack.c.l.b16 %v947
  %v1056 = vunpack.c.l.b16 %v948
  %v1057 = vunpack.c.l.b16 %v949
  %v1058 = vunpack.c.l.b16 %v950
  %v1059 = vunpack.c.l.b16 %v951
  %v1060 = vunpack.c.l.b16 %v952
  %v1061 = vunpack.c.l.b16 %v953
  %v1062 = vunpack.c.l.b16 %v954
  %v1063 = vunpack.c.l.b16 %v955
  %v1064 = vunpack.c.l.b16 %v956
  %v1065 = vunpack.c.l.b16 %v957
  %v1066 = vunpack.c.l.b16 %v958
  %v1067 = vunpack.c.l.b16 %v959
  %v1068 = vunpack.c.l.b16 %v960
  %v1069 = vunpack.c.l.b16 %v961
  %v1070 = vunpack.c.l.b16 %v962
  %v1071 = vunpack.c.l.b16 %v963
  %v1072 = vunpack.c.l.b16 %v964
  %v1073 = vunpack.c.l.b16 %v965
  %v1074 = vunpack.c.l.b16 %v966
  %v1075 = vunpack.c.l.b16 %v967
  %v1076 = vunpack.c.l.b16 %v968
  %v1077 = vunpack.c.l.b16 %v969
  %v1078 = vunpack.c.l.b16 %v970
  %v1079 = vunpack.c.l.b16 %v971
  %v1080 = vunpack.c.l.b16 %v972
  %v1081 = vunpack.c.l.b16 %v973
  %v1082 = vunpack.c.l.b16 %v974
  %v1083 = vunpack.c.l.b16 %v975
  %v1084 = vunpack.c.l.b16 %v976
  %v1085 = vunpack.c.l.b16 %v977
  %v1086 = vunpack.c.l.b16 %v978
  %v1087 = vunpack.c.l.b16 %v979
  %v1088 = vunpack.c.l.b16 %v980
  %v1089 = vunpack.c.l.b16 %v981
  %v1090 = vunpack.c.l.b16 %v982
  %v1091 = vunpack.c.l.b16 %v983
  %v1092 = vunpack.c.l.b16 %v984
  %v1093 = vunpack.c.l.b16 %v985
  %v1094 = vunpack.c.l.b16 %v986
  %v1095 = vunpack.c.l.b16 %v987
  %v1096 = vunpack.c.l.b16 %v988
  %v1097 = vunpack.c.l.b16 %v989
  %v1098 = vunpack.c.l.b16 %v990
  %v1099 = vunpack.c.l.b16 %v991
  %v1100 = vunpack.c.l.b16 %v992
  %v1101 = vunpack.c.l.b16 %v993
  %v1102 = vunpack.c.l.b16 %v994
  %v1103 = vunpack.c.l.b16 %v995
  %v1104 = vpack.c.b16 %v1056, %v1055
  %v1105 = vpack.c.b16 %v1058, %v1057
  %v1106 = vpack.c.b16 %v1060, %v1059
  %v1107 = vpack.c.b16 %v1062, %v1061
  %v1108 = vpack.c.b16 %v1064, %v1063
  %v1109 = vpack.c.b16 %v1066, %v1065
  %v1110 = vpack.c.b16 %v1068, %v1067
  %v1111 = vpack.c.b16 %v1070, %v1069
  %v1112 = vpack.c.b16 %v1072, %v1071
  %v1113 = vpack.c.b16 %v1074, %v1073
  %v1114 = vpack.c.b16 %v1076, %v1075
  %v1115 = vpack.c.b16 %v1078, %v1077
  %v1116 = vpack.c.b16 %v1080, %v1079
  %v1117 = vpack.c.b16 %v1082, %v1081
  %v1118 = vpack.c.b16 %v1084, %v1083
  %v1119 = vpack.c.b16 %v1086, %v1085
  %v1120 = vpack.c.b16 %v1088, %v1087
  %v1121 = vpack.c.b16 %v1090, %v1089
  %v1122 = vpack.c.b16 %v1092, %v1091
  %v1123 = vpack.c.b16 %v1094, %v1093
  %v1124 = vpack.c.b16 %v1096, %v1095
  %v1125 = vpack.c.b16 %v1098, %v1097
  %v1126 = vpack.c.b16 %v1100, %v1099
  %v1127 = vpack.c.b16 %v1102, %v1101
  %v1128 = vpack.c.b16 %v1103, %v1103
  %v1138 = vunpack.c.l.b16 %v997
  %v1139 = vunpack.c.l.b16 %v998
  %v1140 = vunpack.c.l.b16 %v999
  %v1141 = vunpack.c.l.b16 %v1000
  %v1142 = vunpack.c.l.b16 %v1001
  %v1143 = vunpack.c.l.b16 %v1002
  %v1144 = vunpack.c.l.b16 %v1003
  %v1145 = vunpack.c.l.b16 %v1004
  %v1146 = vunpack.c.l.b16 %v1005
  %v1147 = vpack.c.b16 %v1139, %v1138
  %v1148 = vpack.c.b16 %v1141, %v1140
  %v1149 = vpack.c.b16 %v1143, %v1142
  %v1150 = vpack.c.b16 %v1145, %v1144
  %v1151 = vpack.c.b16 %v1146, %v1146
  %v1157 = vsel %vm226, %v1104, 0
  %v1160 = vsel %vm226, %v1105, 0
  %v1163 = vsel %vm226, %v1106, 0
  %v1166 = vsel %vm226, %v1107, 0
  %v1169 = vsel %vm226, %v1108, 0
  %v1172 = vsel %vm226, %v1109, 0
  %v1175 = vsel %vm226, %v1110, 0
  %v1178 = vsel %vm226, %v1111, 0
  %v1181 = vsel %vm226, %v1112, 0
  %v1184 = vsel %vm226, %v1113, 0
  %v1187 = vsel %vm226, %v1114, 0
  %v1190 = vsel %vm226, %v1115, 0
  %v1193 = vsel %vm226, %v1116, 0
  %v1196 = vsel %vm226, %v1117, 0
  %v1199 = vsel %vm226, %v1118, 0
  %v1202 = vsel %vm226, %v1119, 0
  %v1205 = vsel %vm226, %v1120, 0
  %v1208 = vsel %vm226, %v1121, 0
  %v1211 = vsel %vm226, %v1122, 0
  %v1214 = vsel %vm226, %v1123, 0
  %v1217 = vsel %vm226, %v1124, 0
  %v1220 = vsel %vm226, %v1125, 0
  %v1223 = vsel %vm226, %v1126, 0
  %v1226 = vsel %vm226, %v1127, 0
  %v1229 = vsel %vm226, %v1128, 0
  %v1232 = vsel %vm302, %v1151, 0
  %1234 = vmatprep.subr.bf16.mxu0 0
  %1235 = vmatpush1.bf16.msra.mxu0 0
  %1236 = vmatprep.subr.bf16.mxu0 0
  %1237 = vmatpush1.bf16.msra.mxu0 0
  %1238 = vmatprep.subr.bf16.mxu0 0
  %1239 = vmatpush1.bf16.msra.mxu0 0
  %1240 = vmatprep.subr.bf16.mxu0 0
  %1241 = vmatpush1.bf16.msra.mxu0 %v1232
  %1242 = vmatprep.subr.bf16.mxu0 0
  %1243 = vmatpush1.bf16.msra.mxu0 %v1150
  %1244 = vmatprep.subr.bf16.mxu0 0
  %1245 = vmatpush1.bf16.msra.mxu0 %v1149
  %1246 = vmatprep.subr.bf16.mxu0 0
  %1247 = vmatpush1.bf16.msra.mxu0 %v1148
  %1248 = vmatprep.subr.bf16.mxu0 0
  %1249 = vmatpush1.bf16.msra.mxu0 %v1147
  %1250 = vmatprep.subr.bf16.mxu0 0
  %1251 = vmatpush2.bf16.msra.mxu0 0
  %1252 = vmatprep.subr.bf16.mxu0 0
  %1253 = vmatpush2.bf16.msra.mxu0 0
  %1254 = vmatprep.subr.bf16.mxu0 0
  %1255 = vmatpush2.bf16.msra.mxu0 0
  %1256 = vmatprep.subr.bf16.mxu0 0
  %1257 = vmatpush2.bf16.msra.mxu0 0
  %1258 = vmatprep.subr.bf16.mxu0 0
  %1259 = vmatpush2.bf16.msra.mxu0 0
  %1260 = vmatprep.subr.bf16.mxu0 0
  %1261 = vmatpush2.bf16.msra.mxu0 0
  %1262 = vmatprep.subr.bf16.mxu0 0
  %1263 = vmatpush2.bf16.msra.mxu0 0
  %1264 = vmatprep.subr.bf16.mxu0 0
  %1265 = vmatpush2.bf16.msra.mxu0 0
  %1266 = vmatprep.mubr.bf16.mxu0 0
  %1267 = vmatmul.mubr.bf16.gmra.mxu0 %v1157
  %v1268 = vpop.f32.mrf.mxu0
  %v1269 = vadd.f32 0.0, %v1268
  %v1270 = vpop.f32.mrf.mxu0
  %v1271 = vpop.f32.mrf.mxu0
  %v1272 = vadd.f32 0.0, %v1271
  %v1273 = vpop.f32.mrf.mxu0
  %1274 = vmatprep.mubr.bf16.mxu0 0
  %1275 = vmatmul.mubr.bf16.gmra.mxu0 %v1160
  %v1276 = vpop.f32.mrf.mxu0
  %v1277 = vadd.f32 0.0, %v1276
  %v1278 = vpop.f32.mrf.mxu0
  %v1279 = vpop.f32.mrf.mxu0
  %v1280 = vadd.f32 0.0, %v1279
  %v1281 = vpop.f32.mrf.mxu0
  %1282 = vmatprep.mubr.bf16.mxu0 0
  %1283 = vmatmul.mubr.bf16.gmra.mxu0 %v1163
  %v1284 = vpop.f32.mrf.mxu0
  %v1285 = vadd.f32 0.0, %v1284
  %v1286 = vpop.f32.mrf.mxu0
  %v1287 = vpop.f32.mrf.mxu0
  %v1288 = vadd.f32 0.0, %v1287
  %v1289 = vpop.f32.mrf.mxu0
  %1290 = vmatprep.mubr.bf16.mxu0 0
  %1291 = vmatmul.mubr.bf16.gmra.mxu0 %v1166
  %v1292 = vpop.f32.mrf.mxu0
  %v1293 = vadd.f32 0.0, %v1292
  %v1294 = vpop.f32.mrf.mxu0
  %v1295 = vpop.f32.mrf.mxu0
  %v1296 = vadd.f32 0.0, %v1295
  %v1297 = vpop.f32.mrf.mxu0
  %1298 = vmatprep.mubr.bf16.mxu0 0
  %1299 = vmatmul.mubr.bf16.gmra.mxu0 %v1169
  %v1300 = vpop.f32.mrf.mxu0
  %v1301 = vadd.f32 0.0, %v1300
  %v1302 = vpop.f32.mrf.mxu0
  %v1303 = vpop.f32.mrf.mxu0
  %v1304 = vadd.f32 0.0, %v1303
  %v1305 = vpop.f32.mrf.mxu0
  %1306 = vmatprep.mubr.bf16.mxu0 0
  %1307 = vmatmul.mubr.bf16.gmra.mxu0 %v1172
  %v1308 = vpop.f32.mrf.mxu0
  %v1309 = vadd.f32 0.0, %v1308
  %v1310 = vpop.f32.mrf.mxu0
  %v1311 = vpop.f32.mrf.mxu0
  %v1312 = vadd.f32 0.0, %v1311
  %v1313 = vpop.f32.mrf.mxu0
  %1314 = vmatprep.mubr.bf16.mxu0 0
  %1315 = vmatmul.mubr.bf16.gmra.mxu0 %v1175
  %v1316 = vpop.f32.mrf.mxu0
  %v1317 = vadd.f32 0.0, %v1316
  %v1318 = vpop.f32.mrf.mxu0
  %v1319 = vpop.f32.mrf.mxu0
  %v1320 = vadd.f32 0.0, %v1319
  %v1321 = vpop.f32.mrf.mxu0
  %1322 = vmatprep.mubr.bf16.mxu0 0
  %1323 = vmatmul.mubr.bf16.gmra.mxu0 %v1178
  %v1324 = vpop.f32.mrf.mxu0
  %v1325 = vadd.f32 0.0, %v1324
  %v1326 = vpop.f32.mrf.mxu0
  %v1327 = vpop.f32.mrf.mxu0
  %v1328 = vadd.f32 0.0, %v1327
  %v1329 = vpop.f32.mrf.mxu0
  %1330 = vmatprep.mubr.bf16.mxu0 0
  %1331 = vmatmul.mubr.bf16.gmra.mxu0 %v1181
  %v1332 = vpop.f32.mrf.mxu0
  %v1333 = vadd.f32 0.0, %v1332
  %v1334 = vpop.f32.mrf.mxu0
  %v1335 = vpop.f32.mrf.mxu0
  %v1336 = vadd.f32 0.0, %v1335
  %v1337 = vpop.f32.mrf.mxu0
  %1338 = vmatprep.mubr.bf16.mxu0 0
  %1339 = vmatmul.mubr.bf16.gmra.mxu0 %v1184
  %v1340 = vpop.f32.mrf.mxu0
  %v1341 = vadd.f32 0.0, %v1340
  %v1342 = vpop.f32.mrf.mxu0
  %v1343 = vpop.f32.mrf.mxu0
  %v1344 = vadd.f32 0.0, %v1343
  %v1345 = vpop.f32.mrf.mxu0
  %1346 = vmatprep.mubr.bf16.mxu0 0
  %1347 = vmatmul.mubr.bf16.gmra.mxu0 %v1187
  %v1348 = vpop.f32.mrf.mxu0
  %v1349 = vadd.f32 0.0, %v1348
  %v1350 = vpop.f32.mrf.mxu0
  %v1351 = vpop.f32.mrf.mxu0
  %v1352 = vadd.f32 0.0, %v1351
  %v1353 = vpop.f32.mrf.mxu0
  %1354 = vmatprep.mubr.bf16.mxu0 0
  %1355 = vmatmul.mubr.bf16.gmra.mxu0 %v1190
  %v1356 = vpop.f32.mrf.mxu0
  %v1357 = vadd.f32 0.0, %v1356
  %v1358 = vpop.f32.mrf.mxu0
  %v1359 = vpop.f32.mrf.mxu0
  %v1360 = vadd.f32 0.0, %v1359
  %v1361 = vpop.f32.mrf.mxu0
  %1362 = vmatprep.mubr.bf16.mxu0 0
  %1363 = vmatmul.mubr.bf16.gmra.mxu0 %v1193
  %v1364 = vpop.f32.mrf.mxu0
  %v1365 = vadd.f32 0.0, %v1364
  %v1366 = vpop.f32.mrf.mxu0
  %v1367 = vpop.f32.mrf.mxu0
  %v1368 = vadd.f32 0.0, %v1367
  %v1369 = vpop.f32.mrf.mxu0
  %1370 = vmatprep.mubr.bf16.mxu0 0
  %1371 = vmatmul.mubr.bf16.gmra.mxu0 %v1196
  %v1372 = vpop.f32.mrf.mxu0
  %v1373 = vadd.f32 0.0, %v1372
  %v1374 = vpop.f32.mrf.mxu0
  %v1375 = vpop.f32.mrf.mxu0
  %v1376 = vadd.f32 0.0, %v1375
  %v1377 = vpop.f32.mrf.mxu0
  %1378 = vmatprep.mubr.bf16.mxu0 0
  %1379 = vmatmul.mubr.bf16.gmra.mxu0 %v1199
  %v1380 = vpop.f32.mrf.mxu0
  %v1381 = vadd.f32 0.0, %v1380
  %v1382 = vpop.f32.mrf.mxu0
  %v1383 = vpop.f32.mrf.mxu0
  %v1384 = vadd.f32 0.0, %v1383
  %v1385 = vpop.f32.mrf.mxu0
  %1386 = vmatprep.mubr.bf16.mxu0 0
  %1387 = vmatmul.mubr.bf16.gmra.mxu0 %v1202
  %v1388 = vpop.f32.mrf.mxu0
  %v1389 = vadd.f32 0.0, %v1388
  %v1390 = vpop.f32.mrf.mxu0
  %v1391 = vpop.f32.mrf.mxu0
  %v1392 = vadd.f32 0.0, %v1391
  %v1393 = vpop.f32.mrf.mxu0
  %1394 = vmatprep.mubr.bf16.mxu0 0
  %1395 = vmatmul.mubr.bf16.gmra.mxu0 %v1205
  %v1396 = vpop.f32.mrf.mxu0
  %v1397 = vadd.f32 0.0, %v1396
  %v1398 = vpop.f32.mrf.mxu0
  %v1399 = vpop.f32.mrf.mxu0
  %v1400 = vadd.f32 0.0, %v1399
  %v1401 = vpop.f32.mrf.mxu0
  %1402 = vmatprep.mubr.bf16.mxu0 0
  %1403 = vmatmul.mubr.bf16.gmra.mxu0 %v1208
  %v1404 = vpop.f32.mrf.mxu0
  %v1405 = vadd.f32 0.0, %v1404
  %v1406 = vpop.f32.mrf.mxu0
  %v1407 = vpop.f32.mrf.mxu0
  %v1408 = vadd.f32 0.0, %v1407
  %v1409 = vpop.f32.mrf.mxu0
  %1410 = vmatprep.mubr.bf16.mxu0 0
  %1411 = vmatmul.mubr.bf16.gmra.mxu0 %v1211
  %v1412 = vpop.f32.mrf.mxu0
  %v1413 = vadd.f32 0.0, %v1412
  %v1414 = vpop.f32.mrf.mxu0
  %v1415 = vpop.f32.mrf.mxu0
  %v1416 = vadd.f32 0.0, %v1415
  %v1417 = vpop.f32.mrf.mxu0
  %1418 = vmatprep.mubr.bf16.mxu0 0
  %1419 = vmatmul.mubr.bf16.gmra.mxu0 %v1214
  %v1420 = vpop.f32.mrf.mxu0
  %v1421 = vadd.f32 0.0, %v1420
  %v1422 = vpop.f32.mrf.mxu0
  %v1423 = vpop.f32.mrf.mxu0
  %v1424 = vadd.f32 0.0, %v1423
  %v1425 = vpop.f32.mrf.mxu0
  %1426 = vmatprep.mubr.bf16.mxu0 0
  %1427 = vmatmul.mubr.bf16.gmra.mxu0 %v1217
  %v1428 = vpop.f32.mrf.mxu0
  %v1429 = vadd.f32 0.0, %v1428
  %v1430 = vpop.f32.mrf.mxu0
  %v1431 = vpop.f32.mrf.mxu0
  %v1432 = vadd.f32 0.0, %v1431
  %v1433 = vpop.f32.mrf.mxu0
  %1434 = vmatprep.mubr.bf16.mxu0 0
  %1435 = vmatmul.mubr.bf16.gmra.mxu0 %v1220
  %v1436 = vpop.f32.mrf.mxu0
  %v1437 = vadd.f32 0.0, %v1436
  %v1438 = vpop.f32.mrf.mxu0
  %v1439 = vpop.f32.mrf.mxu0
  %v1440 = vadd.f32 0.0, %v1439
  %v1441 = vpop.f32.mrf.mxu0
  %1442 = vmatprep.mubr.bf16.mxu0 0
  %1443 = vmatmul.mubr.bf16.gmra.mxu0 %v1223
  %v1444 = vpop.f32.mrf.mxu0
  %v1445 = vadd.f32 0.0, %v1444
  %v1446 = vpop.f32.mrf.mxu0
  %v1447 = vpop.f32.mrf.mxu0
  %v1448 = vadd.f32 0.0, %v1447
  %v1449 = vpop.f32.mrf.mxu0
  %1450 = vmatprep.mubr.bf16.mxu0 0
  %1451 = vmatmul.mubr.bf16.gmra.mxu0 %v1226
  %v1452 = vpop.f32.mrf.mxu0
  %v1453 = vadd.f32 0.0, %v1452
  %v1454 = vpop.f32.mrf.mxu0
  %v1455 = vpop.f32.mrf.mxu0
  %v1456 = vadd.f32 0.0, %v1455
  %v1457 = vpop.f32.mrf.mxu0
  %1458 = vmatprep.mubr.bf16.mxu0 0
  %1459 = vmatmul.mubr.bf16.gmra.mxu0 %v1229
  %v1460 = vpop.f32.mrf.mxu0
  %v1461 = vadd.f32 0.0, %v1460
  %v1462 = vpop.f32.mrf.mxu0
  %v1463 = vpop.f32.mrf.mxu0
  %v1464 = vpop.f32.mrf.mxu0
  %1465 = vdwg.mxu0
  %s1466 = scalar_lea.vmem %s2, 1
  %v1467 = vld [vmem:[%s1466] sm:$0x1]
  %v1469 = vlaneseq
  %v1470 = vshrl.u32 %v1469, 7
  %v1471 = vsub.s32 0, %v1470
  %v1472 = vrot.slane %v1467, %v1471
  %v1474 = vmul.f32 %v1269, %v1472
  %v1475 = vmul.f32 %v1272, %v1472
  %v1476 = vmul.f32 %v1277, %v1472
  %v1477 = vmul.f32 %v1280, %v1472
  %v1478 = vmul.f32 %v1285, %v1472
  %v1479 = vmul.f32 %v1288, %v1472
  %v1480 = vmul.f32 %v1293, %v1472
  %v1481 = vmul.f32 %v1296, %v1472
  %v1482 = vmul.f32 %v1301, %v1472
  %v1483 = vmul.f32 %v1304, %v1472
  %v1484 = vmul.f32 %v1309, %v1472
  %v1485 = vmul.f32 %v1312, %v1472
  %v1486 = vmul.f32 %v1317, %v1472
  %v1487 = vmul.f32 %v1320, %v1472
  %v1488 = vmul.f32 %v1325, %v1472
  %v1489 = vmul.f32 %v1328, %v1472
  %v1490 = vmul.f32 %v1333, %v1472
  %v1491 = vmul.f32 %v1336, %v1472
  %v1492 = vmul.f32 %v1341, %v1472
  %v1493 = vmul.f32 %v1344, %v1472
  %v1494 = vmul.f32 %v1349, %v1472
  %v1495 = vmul.f32 %v1352, %v1472
  %v1496 = vmul.f32 %v1357, %v1472
  %v1497 = vmul.f32 %v1360, %v1472
  %v1498 = vmul.f32 %v1365, %v1472
  %v1499 = vmul.f32 %v1368, %v1472
  %v1500 = vmul.f32 %v1373, %v1472
  %v1501 = vmul.f32 %v1376, %v1472
  %v1502 = vmul.f32 %v1381, %v1472
  %v1503 = vmul.f32 %v1384, %v1472
  %v1504 = vmul.f32 %v1389, %v1472
  %v1505 = vmul.f32 %v1392, %v1472
  %v1506 = vmul.f32 %v1397, %v1472
  %v1507 = vmul.f32 %v1400, %v1472
  %v1508 = vmul.f32 %v1405, %v1472
  %v1509 = vmul.f32 %v1408, %v1472
  %v1510 = vmul.f32 %v1413, %v1472
  %v1511 = vmul.f32 %v1416, %v1472
  %v1512 = vmul.f32 %v1421, %v1472
  %v1513 = vmul.f32 %v1424, %v1472
  %v1514 = vmul.f32 %v1429, %v1472
  %v1515 = vmul.f32 %v1432, %v1472
  %v1516 = vmul.f32 %v1437, %v1472
  %v1517 = vmul.f32 %v1440, %v1472
  %v1518 = vmul.f32 %v1445, %v1472
  %v1519 = vmul.f32 %v1448, %v1472
  %v1520 = vmul.f32 %v1453, %v1472
  %v1521 = vmul.f32 %v1456, %v1472
  %v1522 = vmul.f32 %v1461, %v1472
  %s1523 = scalar_lea.vmem %s3, 1
  %v1524 = vld [vmem:[%s1523] sm:$0x1]
  %v1526 = vlaneseq
  %v1527 = vshrl.u32 %v1526, 7
  %v1528 = vsub.s32 0, %v1527
  %v1529 = vrot.slane %v1524, %v1528
  %v1531 = vadd.f32 %v1474, %v1529
  %v1532 = vadd.f32 %v1475, %v1529
  %v1533 = vadd.f32 %v1476, %v1529
  %v1534 = vadd.f32 %v1477, %v1529
  %v1535 = vadd.f32 %v1478, %v1529
  %v1536 = vadd.f32 %v1479, %v1529
  %v1537 = vadd.f32 %v1480, %v1529
  %v1538 = vadd.f32 %v1481, %v1529
  %v1539 = vadd.f32 %v1482, %v1529
  %v1540 = vadd.f32 %v1483, %v1529
  %v1541 = vadd.f32 %v1484, %v1529
  %v1542 = vadd.f32 %v1485, %v1529
  %v1543 = vadd.f32 %v1486, %v1529
  %v1544 = vadd.f32 %v1487, %v1529
  %v1545 = vadd.f32 %v1488, %v1529
  %v1546 = vadd.f32 %v1489, %v1529
  %v1547 = vadd.f32 %v1490, %v1529
  %v1548 = vadd.f32 %v1491, %v1529
  %v1549 = vadd.f32 %v1492, %v1529
  %v1550 = vadd.f32 %v1493, %v1529
  %v1551 = vadd.f32 %v1494, %v1529
  %v1552 = vadd.f32 %v1495, %v1529
  %v1553 = vadd.f32 %v1496, %v1529
  %v1554 = vadd.f32 %v1497, %v1529
  %v1555 = vadd.f32 %v1498, %v1529
  %v1556 = vadd.f32 %v1499, %v1529
  %v1557 = vadd.f32 %v1500, %v1529
  %v1558 = vadd.f32 %v1501, %v1529
  %v1559 = vadd.f32 %v1502, %v1529
  %v1560 = vadd.f32 %v1503, %v1529
  %v1561 = vadd.f32 %v1504, %v1529
  %v1562 = vadd.f32 %v1505, %v1529
  %v1563 = vadd.f32 %v1506, %v1529
  %v1564 = vadd.f32 %v1507, %v1529
  %v1565 = vadd.f32 %v1508, %v1529
  %v1566 = vadd.f32 %v1509, %v1529
  %v1567 = vadd.f32 %v1510, %v1529
  %v1568 = vadd.f32 %v1511, %v1529
  %v1569 = vadd.f32 %v1512, %v1529
  %v1570 = vadd.f32 %v1513, %v1529
  %v1571 = vadd.f32 %v1514, %v1529
  %v1572 = vadd.f32 %v1515, %v1529
  %v1573 = vadd.f32 %v1516, %v1529
  %v1574 = vadd.f32 %v1517, %v1529
  %v1575 = vadd.f32 %v1518, %v1529
  %v1576 = vadd.f32 %v1519, %v1529
  %v1577 = vadd.f32 %v1520, %v1529
  %v1578 = vadd.f32 %v1521, %v1529
  %v1579 = vadd.f32 %v1522, %v1529
  %v1580 = vmax.f32 %v1531, 0.0
  %v1581 = vmax.f32 %v1532, 0.0
  %v1582 = vmax.f32 %v1533, 0.0
  %v1583 = vmax.f32 %v1534, 0.0
  %v1584 = vmax.f32 %v1535, 0.0
  %v1585 = vmax.f32 %v1536, 0.0
  %v1586 = vmax.f32 %v1537, 0.0
  %v1587 = vmax.f32 %v1538, 0.0
  %v1588 = vmax.f32 %v1539, 0.0
  %v1589 = vmax.f32 %v1540, 0.0
  %v1590 = vmax.f32 %v1541, 0.0
  %v1591 = vmax.f32 %v1542, 0.0
  %v1592 = vmax.f32 %v1543, 0.0
  %v1593 = vmax.f32 %v1544, 0.0
  %v1594 = vmax.f32 %v1545, 0.0
  %v1595 = vmax.f32 %v1546, 0.0
  %v1596 = vmax.f32 %v1547, 0.0
  %v1597 = vmax.f32 %v1548, 0.0
  %v1598 = vmax.f32 %v1549, 0.0
  %v1599 = vmax.f32 %v1550, 0.0
  %v1600 = vmax.f32 %v1551, 0.0
  %v1601 = vmax.f32 %v1552, 0.0
  %v1602 = vmax.f32 %v1553, 0.0
  %v1603 = vmax.f32 %v1554, 0.0
  %v1604 = vmax.f32 %v1555, 0.0
  %v1605 = vmax.f32 %v1556, 0.0
  %v1606 = vmax.f32 %v1557, 0.0
  %v1607 = vmax.f32 %v1558, 0.0
  %v1608 = vmax.f32 %v1559, 0.0
  %v1609 = vmax.f32 %v1560, 0.0
  %v1610 = vmax.f32 %v1561, 0.0
  %v1611 = vmax.f32 %v1562, 0.0
  %v1612 = vmax.f32 %v1563, 0.0
  %v1613 = vmax.f32 %v1564, 0.0
  %v1614 = vmax.f32 %v1565, 0.0
  %v1615 = vmax.f32 %v1566, 0.0
  %v1616 = vmax.f32 %v1567, 0.0
  %v1617 = vmax.f32 %v1568, 0.0
  %v1618 = vmax.f32 %v1569, 0.0
  %v1619 = vmax.f32 %v1570, 0.0
  %v1620 = vmax.f32 %v1571, 0.0
  %v1621 = vmax.f32 %v1572, 0.0
  %v1622 = vmax.f32 %v1573, 0.0
  %v1623 = vmax.f32 %v1574, 0.0
  %v1624 = vmax.f32 %v1575, 0.0
  %v1625 = vmax.f32 %v1576, 0.0
  %v1626 = vmax.f32 %v1577, 0.0
  %v1627 = vmax.f32 %v1578, 0.0
  %v1628 = vmax.f32 %v1579, 0.0
  %v1629 = vpack.c.bf16 %v1581, %v1580
  %v1630 = vpack.c.bf16 %v1583, %v1582
  %v1631 = vpack.c.bf16 %v1585, %v1584
  %v1632 = vpack.c.bf16 %v1587, %v1586
  %v1633 = vpack.c.bf16 %v1589, %v1588
  %v1634 = vpack.c.bf16 %v1591, %v1590
  %v1635 = vpack.c.bf16 %v1593, %v1592
  %v1636 = vpack.c.bf16 %v1595, %v1594
  %v1637 = vpack.c.bf16 %v1597, %v1596
  %v1638 = vpack.c.bf16 %v1599, %v1598
  %v1639 = vpack.c.bf16 %v1601, %v1600
  %v1640 = vpack.c.bf16 %v1603, %v1602
  %v1641 = vpack.c.bf16 %v1605, %v1604
  %v1642 = vpack.c.bf16 %v1607, %v1606
  %v1643 = vpack.c.bf16 %v1609, %v1608
  %v1644 = vpack.c.bf16 %v1611, %v1610
  %v1645 = vpack.c.bf16 %v1613, %v1612
  %v1646 = vpack.c.bf16 %v1615, %v1614
  %v1647 = vpack.c.bf16 %v1617, %v1616
  %v1648 = vpack.c.bf16 %v1619, %v1618
  %v1649 = vpack.c.bf16 %v1621, %v1620
  %v1650 = vpack.c.bf16 %v1623, %v1622
  %v1651 = vpack.c.bf16 %v1625, %v1624
  %v1652 = vpack.c.bf16 %v1627, %v1626
  %v1653 = vpack.c.bf16 %v1628, %v1628
  %v1679 = vunpack.c.l.b16 %v1629
  %v1680 = vunpack.c.h.b16 %v1629
  %v1681 = vunpack.c.l.b16 %v1630
  %v1682 = vunpack.c.h.b16 %v1630
  %v1683 = vunpack.c.l.b16 %v1631
  %v1684 = vunpack.c.h.b16 %v1631
  %v1685 = vunpack.c.l.b16 %v1632
  %v1686 = vunpack.c.h.b16 %v1632
  %v1687 = vunpack.c.l.b16 %v1633
  %v1688 = vunpack.c.h.b16 %v1633
  %v1689 = vunpack.c.l.b16 %v1634
  %v1690 = vunpack.c.h.b16 %v1634
  %v1691 = vunpack.c.l.b16 %v1635
  %v1692 = vunpack.c.h.b16 %v1635
  %v1693 = vunpack.c.l.b16 %v1636
  %v1694 = vunpack.c.h.b16 %v1636
  %v1695 = vunpack.c.l.b16 %v1637
  %v1696 = vunpack.c.h.b16 %v1637
  %v1697 = vunpack.c.l.b16 %v1638
  %v1698 = vunpack.c.h.b16 %v1638
  %v1699 = vunpack.c.l.b16 %v1639
  %v1700 = vunpack.c.h.b16 %v1639
  %v1701 = vunpack.c.l.b16 %v1640
  %v1702 = vunpack.c.h.b16 %v1640
  %v1703 = vunpack.c.l.b16 %v1641
  %v1704 = vunpack.c.h.b16 %v1641
  %v1705 = vunpack.c.l.b16 %v1642
  %v1706 = vunpack.c.h.b16 %v1642
  %v1707 = vunpack.c.l.b16 %v1643
  %v1708 = vunpack.c.h.b16 %v1643
  %v1709 = vunpack.c.l.b16 %v1644
  %v1710 = vunpack.c.h.b16 %v1644
  %v1711 = vunpack.c.l.b16 %v1645
  %v1712 = vunpack.c.h.b16 %v1645
  %v1713 = vunpack.c.l.b16 %v1646
  %v1714 = vunpack.c.h.b16 %v1646
  %v1715 = vunpack.c.l.b16 %v1647
  %v1716 = vunpack.c.h.b16 %v1647
  %v1717 = vunpack.c.l.b16 %v1648
  %v1718 = vunpack.c.h.b16 %v1648
  %v1719 = vunpack.c.l.b16 %v1649
  %v1720 = vunpack.c.h.b16 %v1649
  %v1721 = vunpack.c.l.b16 %v1650
  %v1722 = vunpack.c.h.b16 %v1650
  %v1723 = vunpack.c.l.b16 %v1651
  %v1724 = vunpack.c.h.b16 %v1651
  %v1725 = vunpack.c.l.b16 %v1652
  %v1726 = vunpack.c.h.b16 %v1652
  %v1727 = vunpack.c.l.b16 %v1653
  %v1728 = vpack.c.b16 %v1679, %v1679
  %v1729 = vpack.c.b16 %v1680, %v1680
  %v1730 = vpack.c.b16 %v1681, %v1681
  %v1731 = vpack.c.b16 %v1682, %v1682
  %v1732 = vpack.c.b16 %v1683, %v1683
  %v1733 = vpack.c.b16 %v1684, %v1684
  %v1734 = vpack.c.b16 %v1685, %v1685
  %v1735 = vpack.c.b16 %v1686, %v1686
  %v1736 = vpack.c.b16 %v1687, %v1687
  %v1737 = vpack.c.b16 %v1688, %v1688
  %v1738 = vpack.c.b16 %v1689, %v1689
  %v1739 = vpack.c.b16 %v1690, %v1690
  %v1740 = vpack.c.b16 %v1691, %v1691
  %v1741 = vpack.c.b16 %v1692, %v1692
  %v1742 = vpack.c.b16 %v1693, %v1693
  %v1743 = vpack.c.b16 %v1694, %v1694
  %v1744 = vpack.c.b16 %v1695, %v1695
  %v1745 = vpack.c.b16 %v1696, %v1696
  %v1746 = vpack.c.b16 %v1697, %v1697
  %v1747 = vpack.c.b16 %v1698, %v1698
  %v1748 = vpack.c.b16 %v1699, %v1699
  %v1749 = vpack.c.b16 %v1700, %v1700
  %v1750 = vpack.c.b16 %v1701, %v1701
  %v1751 = vpack.c.b16 %v1702, %v1702
  %v1752 = vpack.c.b16 %v1703, %v1703
  %v1753 = vpack.c.b16 %v1704, %v1704
  %v1754 = vpack.c.b16 %v1705, %v1705
  %v1755 = vpack.c.b16 %v1706, %v1706
  %v1756 = vpack.c.b16 %v1707, %v1707
  %v1757 = vpack.c.b16 %v1708, %v1708
  %v1758 = vpack.c.b16 %v1709, %v1709
  %v1759 = vpack.c.b16 %v1710, %v1710
  %v1760 = vpack.c.b16 %v1711, %v1711
  %v1761 = vpack.c.b16 %v1712, %v1712
  %v1762 = vpack.c.b16 %v1713, %v1713
  %v1763 = vpack.c.b16 %v1714, %v1714
  %v1764 = vpack.c.b16 %v1715, %v1715
  %v1765 = vpack.c.b16 %v1716, %v1716
  %v1766 = vpack.c.b16 %v1717, %v1717
  %v1767 = vpack.c.b16 %v1718, %v1718
  %v1768 = vpack.c.b16 %v1719, %v1719
  %v1769 = vpack.c.b16 %v1720, %v1720
  %v1770 = vpack.c.b16 %v1721, %v1721
  %v1771 = vpack.c.b16 %v1722, %v1722
  %v1772 = vpack.c.b16 %v1723, %v1723
  %v1773 = vpack.c.b16 %v1724, %v1724
  %v1774 = vpack.c.b16 %v1725, %v1725
  %v1775 = vpack.c.b16 %v1726, %v1726
  %v1776 = vpack.c.b16 %v1727, %v1727
  %1777 = vrot.lane.b32.xlu0 %v1728, 8
  %v1778 = vpop.permute.xlu0 %1777
  %1779 = vrot.lane.b32.xlu0 %v1729, 8
  %v1780 = vpop.permute.xlu0 %1779
  %1781 = vrot.lane.b32.xlu0 %v1730, 8
  %v1782 = vpop.permute.xlu0 %1781
  %1783 = vrot.lane.b32.xlu0 %v1731, 8
  %v1784 = vpop.permute.xlu0 %1783
  %1785 = vrot.lane.b32.xlu0 %v1732, 8
  %v1786 = vpop.permute.xlu0 %1785
  %1787 = vrot.lane.b32.xlu0 %v1733, 8
  %v1788 = vpop.permute.xlu0 %1787
  %1789 = vrot.lane.b32.xlu0 %v1734, 8
  %v1790 = vpop.permute.xlu0 %1789
  %1791 = vrot.lane.b32.xlu0 %v1735, 8
  %v1792 = vpop.permute.xlu0 %1791
  %1793 = vrot.lane.b32.xlu0 %v1736, 8
  %v1794 = vpop.permute.xlu0 %1793
  %1795 = vrot.lane.b32.xlu0 %v1737, 8
  %v1796 = vpop.permute.xlu0 %1795
  %1797 = vrot.lane.b32.xlu0 %v1738, 8
  %v1798 = vpop.permute.xlu0 %1797
  %1799 = vrot.lane.b32.xlu0 %v1739, 8
  %v1800 = vpop.permute.xlu0 %1799
  %1801 = vrot.lane.b32.xlu0 %v1740, 8
  %v1802 = vpop.permute.xlu0 %1801
  %1803 = vrot.lane.b32.xlu0 %v1741, 8
  %v1804 = vpop.permute.xlu0 %1803
  %1805 = vrot.lane.b32.xlu0 %v1742, 8
  %v1806 = vpop.permute.xlu0 %1805
  %1807 = vrot.lane.b32.xlu0 %v1743, 8
  %v1808 = vpop.permute.xlu0 %1807
  %1809 = vrot.lane.b32.xlu0 %v1744, 8
  %v1810 = vpop.permute.xlu0 %1809
  %1811 = vrot.lane.b32.xlu0 %v1745, 8
  %v1812 = vpop.permute.xlu0 %1811
  %1813 = vrot.lane.b32.xlu0 %v1746, 8
  %v1814 = vpop.permute.xlu0 %1813
  %1815 = vrot.lane.b32.xlu0 %v1747, 8
  %v1816 = vpop.permute.xlu0 %1815
  %1817 = vrot.lane.b32.xlu0 %v1748, 8
  %v1818 = vpop.permute.xlu0 %1817
  %1819 = vrot.lane.b32.xlu0 %v1749, 8
  %v1820 = vpop.permute.xlu0 %1819
  %1821 = vrot.lane.b32.xlu0 %v1750, 8
  %v1822 = vpop.permute.xlu0 %1821
  %1823 = vrot.lane.b32.xlu0 %v1751, 8
  %v1824 = vpop.permute.xlu0 %1823
  %1825 = vrot.lane.b32.xlu0 %v1752, 8
  %v1826 = vpop.permute.xlu0 %1825
  %1827 = vrot.lane.b32.xlu0 %v1753, 8
  %v1828 = vpop.permute.xlu0 %1827
  %1829 = vrot.lane.b32.xlu0 %v1754, 8
  %v1830 = vpop.permute.xlu0 %1829
  %1831 = vrot.lane.b32.xlu0 %v1755, 8
  %v1832 = vpop.permute.xlu0 %1831
  %1833 = vrot.lane.b32.xlu0 %v1756, 8
  %v1834 = vpop.permute.xlu0 %1833
  %1835 = vrot.lane.b32.xlu0 %v1757, 8
  %v1836 = vpop.permute.xlu0 %1835
  %1837 = vrot.lane.b32.xlu0 %v1758, 8
  %v1838 = vpop.permute.xlu0 %1837
  %1839 = vrot.lane.b32.xlu0 %v1759, 8
  %v1840 = vpop.permute.xlu0 %1839
  %1841 = vrot.lane.b32.xlu0 %v1760, 8
  %v1842 = vpop.permute.xlu0 %1841
  %1843 = vrot.lane.b32.xlu0 %v1761, 8
  %v1844 = vpop.permute.xlu0 %1843
  %1845 = vrot.lane.b32.xlu0 %v1762, 8
  %v1846 = vpop.permute.xlu0 %1845
  %1847 = vrot.lane.b32.xlu0 %v1763, 8
  %v1848 = vpop.permute.xlu0 %1847
  %1849 = vrot.lane.b32.xlu0 %v1764, 8
  %v1850 = vpop.permute.xlu0 %1849
  %1851 = vrot.lane.b32.xlu0 %v1765, 8
  %v1852 = vpop.permute.xlu0 %1851
  %1853 = vrot.lane.b32.xlu0 %v1766, 8
  %v1854 = vpop.permute.xlu0 %1853
  %1855 = vrot.lane.b32.xlu0 %v1767, 8
  %v1856 = vpop.permute.xlu0 %1855
  %1857 = vrot.lane.b32.xlu0 %v1768, 8
  %v1858 = vpop.permute.xlu0 %1857
  %1859 = vrot.lane.b32.xlu0 %v1769, 8
  %v1860 = vpop.permute.xlu0 %1859
  %1861 = vrot.lane.b32.xlu0 %v1770, 8
  %v1862 = vpop.permute.xlu0 %1861
  %1863 = vrot.lane.b32.xlu0 %v1771, 8
  %v1864 = vpop.permute.xlu0 %1863
  %1865 = vrot.lane.b32.xlu0 %v1772, 8
  %v1866 = vpop.permute.xlu0 %1865
  %1867 = vrot.lane.b32.xlu0 %v1773, 8
  %v1868 = vpop.permute.xlu0 %1867
  %1869 = vrot.lane.b32.xlu0 %v1774, 8
  %v1870 = vpop.permute.xlu0 %1869
  %1871 = vrot.lane.b32.xlu0 %v1775, 8
  %v1872 = vpop.permute.xlu0 %1871
  %1873 = vrot.lane.b32.xlu0 %v1776, 8
  %v1874 = vpop.permute.xlu0 %1873
  %vm1924 = vcmask 126016
  %1925 = vst.msk [vmem:[%s4] sm:$0xf] %vm1924, %v1778
  %1926 = vst.msk [vmem:[%s4 + $0x4] sm:$0xf] %vm1924, %v1780
  %1927 = vst.msk [vmem:[%s4 + $0x8] sm:$0xf] %vm1924, %v1782
  %1928 = vst.msk [vmem:[%s4 + $0xc] sm:$0xf] %vm1924, %v1784
  %1929 = vst.msk [vmem:[%s4 + $0x10] sm:$0xf] %vm1924, %v1786
  %1930 = vst.msk [vmem:[%s4 + $0x14] sm:$0xf] %vm1924, %v1788
  %1931 = vst.msk [vmem:[%s4 + $0x18] sm:$0xf] %vm1924, %v1790
  %1932 = vst.msk [vmem:[%s4 + $0x1c] sm:$0xf] %vm1924, %v1792
  %1933 = vst.msk [vmem:[%s4 + $0x20] sm:$0xf] %vm1924, %v1794
  %1934 = vst.msk [vmem:[%s4 + $0x24] sm:$0xf] %vm1924, %v1796
  %1935 = vst.msk [vmem:[%s4 + $0x28] sm:$0xf] %vm1924, %v1798
  %1936 = vst.msk [vmem:[%s4 + $0x2c] sm:$0xf] %vm1924, %v1800
  %1937 = vst.msk [vmem:[%s4 + $0x30] sm:$0xf] %vm1924, %v1802
  %1938 = vst.msk [vmem:[%s4 + $0x34] sm:$0xf] %vm1924, %v1804
  %1939 = vst.msk [vmem:[%s4 + $0x38] sm:$0xf] %vm1924, %v1806
  %1940 = vst.msk [vmem:[%s4 + $0x3c] sm:$0xf] %vm1924, %v1808
  %1941 = vst.msk [vmem:[%s4 + $0x40] sm:$0xf] %vm1924, %v1810
  %1942 = vst.msk [vmem:[%s4 + $0x44] sm:$0xf] %vm1924, %v1812
  %1943 = vst.msk [vmem:[%s4 + $0x48] sm:$0xf] %vm1924, %v1814
  %1944 = vst.msk [vmem:[%s4 + $0x4c] sm:$0xf] %vm1924, %v1816
  %1945 = vst.msk [vmem:[%s4 + $0x50] sm:$0xf] %vm1924, %v1818
  %1946 = vst.msk [vmem:[%s4 + $0x54] sm:$0xf] %vm1924, %v1820
  %1947 = vst.msk [vmem:[%s4 + $0x58] sm:$0xf] %vm1924, %v1822
  %1948 = vst.msk [vmem:[%s4 + $0x5c] sm:$0xf] %vm1924, %v1824
  %1949 = vst.msk [vmem:[%s4 + $0x60] sm:$0xf] %vm1924, %v1826
  %1950 = vst.msk [vmem:[%s4 + $0x64] sm:$0xf] %vm1924, %v1828
  %1951 = vst.msk [vmem:[%s4 + $0x68] sm:$0xf] %vm1924, %v1830
  %1952 = vst.msk [vmem:[%s4 + $0x6c] sm:$0xf] %vm1924, %v1832
  %1953 = vst.msk [vmem:[%s4 + $0x70] sm:$0xf] %vm1924, %v1834
  %1954 = vst.msk [vmem:[%s4 + $0x74] sm:$0xf] %vm1924, %v1836
  %1955 = vst.msk [vmem:[%s4 + $0x78] sm:$0xf] %vm1924, %v1838
  %1956 = vst.msk [vmem:[%s4 + $0x7c] sm:$0xf] %vm1924, %v1840
  %1957 = vst.msk [vmem:[%s4 + $0x80] sm:$0xf] %vm1924, %v1842
  %1958 = vst.msk [vmem:[%s4 + $0x84] sm:$0xf] %vm1924, %v1844
  %1959 = vst.msk [vmem:[%s4 + $0x88] sm:$0xf] %vm1924, %v1846
  %1960 = vst.msk [vmem:[%s4 + $0x8c] sm:$0xf] %vm1924, %v1848
  %1961 = vst.msk [vmem:[%s4 + $0x90] sm:$0xf] %vm1924, %v1850
  %1962 = vst.msk [vmem:[%s4 + $0x94] sm:$0xf] %vm1924, %v1852
  %1963 = vst.msk [vmem:[%s4 + $0x98] sm:$0xf] %vm1924, %v1854
  %1964 = vst.msk [vmem:[%s4 + $0x9c] sm:$0xf] %vm1924, %v1856
  %1965 = vst.msk [vmem:[%s4 + $0xa0] sm:$0xf] %vm1924, %v1858
  %1966 = vst.msk [vmem:[%s4 + $0xa4] sm:$0xf] %vm1924, %v1860
  %1967 = vst.msk [vmem:[%s4 + $0xa8] sm:$0xf] %vm1924, %v1862
  %1968 = vst.msk [vmem:[%s4 + $0xac] sm:$0xf] %vm1924, %v1864
  %1969 = vst.msk [vmem:[%s4 + $0xb0] sm:$0xf] %vm1924, %v1866
  %1970 = vst.msk [vmem:[%s4 + $0xb4] sm:$0xf] %vm1924, %v1868
  %1971 = vst.msk [vmem:[%s4 + $0xb8] sm:$0xf] %vm1924, %v1870
  %1972 = vst.msk [vmem:[%s4 + $0xbc] sm:$0xf] %vm1924, %v1872
  %1973 = vst.msk [vmem:[%s4 + $0xc0] sm:$0xf] %vm1924, %v1874
  %s1974 = scalar_lea.vmem %s0, 392
  %v1975 = vld [vmem:[%s1974] sm:$0xf]
  %v1976 = vld [vmem:[%s1974 + $0x4] sm:$0xf]
  %v1977 = vld [vmem:[%s1974 + $0x8] sm:$0xf]
  %v1978 = vld [vmem:[%s1974 + $0xc] sm:$0xf]
  %v1979 = vld [vmem:[%s1974 + $0x10] sm:$0xf]
  %v1980 = vld [vmem:[%s1974 + $0x14] sm:$0xf]
  %v1981 = vld [vmem:[%s1974 + $0x18] sm:$0xf]
  %v1982 = vld [vmem:[%s1974 + $0x1c] sm:$0xf]
  %v1983 = vld [vmem:[%s1974 + $0x20] sm:$0xf]
  %v1984 = vld [vmem:[%s1974 + $0x24] sm:$0xf]
  %v1985 = vld [vmem:[%s1974 + $0x28] sm:$0xf]
  %v1986 = vld [vmem:[%s1974 + $0x2c] sm:$0xf]
  %v1987 = vld [vmem:[%s1974 + $0x30] sm:$0xf]
  %v1988 = vld [vmem:[%s1974 + $0x34] sm:$0xf]
  %v1989 = vld [vmem:[%s1974 + $0x38] sm:$0xf]
  %v1990 = vld [vmem:[%s1974 + $0x3c] sm:$0xf]
  %v1991 = vld [vmem:[%s1974 + $0x40] sm:$0xf]
  %v1992 = vld [vmem:[%s1974 + $0x44] sm:$0xf]
  %v1993 = vld [vmem:[%s1974 + $0x48] sm:$0xf]
  %v1994 = vld [vmem:[%s1974 + $0x4c] sm:$0xf]
  %v1995 = vld [vmem:[%s1974 + $0x50] sm:$0xf]
  %v1996 = vld [vmem:[%s1974 + $0x54] sm:$0xf]
  %v1997 = vld [vmem:[%s1974 + $0x58] sm:$0xf]
  %v1998 = vld [vmem:[%s1974 + $0x5c] sm:$0xf]
  %v1999 = vld [vmem:[%s1974 + $0x60] sm:$0xf]
  %v2000 = vld [vmem:[%s1974 + $0x64] sm:$0xf]
  %v2001 = vld [vmem:[%s1974 + $0x68] sm:$0xf]
  %v2002 = vld [vmem:[%s1974 + $0x6c] sm:$0xf]
  %v2003 = vld [vmem:[%s1974 + $0x70] sm:$0xf]
  %v2004 = vld [vmem:[%s1974 + $0x74] sm:$0xf]
  %v2005 = vld [vmem:[%s1974 + $0x78] sm:$0xf]
  %v2006 = vld [vmem:[%s1974 + $0x7c] sm:$0xf]
  %v2007 = vld [vmem:[%s1974 + $0x80] sm:$0xf]
  %v2008 = vld [vmem:[%s1974 + $0x84] sm:$0xf]
  %v2009 = vld [vmem:[%s1974 + $0x88] sm:$0xf]
  %v2010 = vld [vmem:[%s1974 + $0x8c] sm:$0xf]
  %v2011 = vld [vmem:[%s1974 + $0x90] sm:$0xf]
  %v2012 = vld [vmem:[%s1974 + $0x94] sm:$0xf]
  %v2013 = vld [vmem:[%s1974 + $0x98] sm:$0xf]
  %v2014 = vld [vmem:[%s1974 + $0x9c] sm:$0xf]
  %v2015 = vld [vmem:[%s1974 + $0xa0] sm:$0xf]
  %v2016 = vld [vmem:[%s1974 + $0xa4] sm:$0xf]
  %v2017 = vld [vmem:[%s1974 + $0xa8] sm:$0xf]
  %v2018 = vld [vmem:[%s1974 + $0xac] sm:$0xf]
  %v2019 = vld [vmem:[%s1974 + $0xb0] sm:$0xf]
  %v2020 = vld [vmem:[%s1974 + $0xb4] sm:$0xf]
  %v2021 = vld [vmem:[%s1974 + $0xb8] sm:$0xf]
  %v2022 = vld [vmem:[%s1974 + $0xbc] sm:$0xf]
  %v2023 = vld [vmem:[%s1974 + $0xc0] sm:$0xf]
  %s2024 = scalar_lea.vmem %s1, 72
  %v2025 = vld [vmem:[%s2024] sm:$0xf]
  %v2026 = vld [vmem:[%s2024 + $0x4] sm:$0xf]
  %v2027 = vld [vmem:[%s2024 + $0x8] sm:$0xf]
  %v2028 = vld [vmem:[%s2024 + $0xc] sm:$0xf]
  %v2029 = vld [vmem:[%s2024 + $0x10] sm:$0xf]
  %v2030 = vld [vmem:[%s2024 + $0x14] sm:$0xf]
  %v2031 = vld [vmem:[%s2024 + $0x18] sm:$0xf]
  %v2032 = vld [vmem:[%s2024 + $0x1c] sm:$0xf]
  %v2033 = vld [vmem:[%s2024 + $0x20] sm:$0xf]
  %v2083 = vunpack.c.l.b16 %v1975
  %v2084 = vunpack.c.l.b16 %v1976
  %v2085 = vunpack.c.l.b16 %v1977
  %v2086 = vunpack.c.l.b16 %v1978
  %v2087 = vunpack.c.l.b16 %v1979
  %v2088 = vunpack.c.l.b16 %v1980
  %v2089 = vunpack.c.l.b16 %v1981
  %v2090 = vunpack.c.l.b16 %v1982
  %v2091 = vunpack.c.l.b16 %v1983
  %v2092 = vunpack.c.l.b16 %v1984
  %v2093 = vunpack.c.l.b16 %v1985
  %v2094 = vunpack.c.l.b16 %v1986
  %v2095 = vunpack.c.l.b16 %v1987
  %v2096 = vunpack.c.l.b16 %v1988
  %v2097 = vunpack.c.l.b16 %v1989
  %v2098 = vunpack.c.l.b16 %v1990
  %v2099 = vunpack.c.l.b16 %v1991
  %v2100 = vunpack.c.l.b16 %v1992
  %v2101 = vunpack.c.l.b16 %v1993
  %v2102 = vunpack.c.l.b16 %v1994
  %v2103 = vunpack.c.l.b16 %v1995
  %v2104 = vunpack.c.l.b16 %v1996
  %v2105 = vunpack.c.l.b16 %v1997
  %v2106 = vunpack.c.l.b16 %v1998
  %v2107 = vunpack.c.l.b16 %v1999
  %v2108 = vunpack.c.l.b16 %v2000
  %v2109 = vunpack.c.l.b16 %v2001
  %v2110 = vunpack.c.l.b16 %v2002
  %v2111 = vunpack.c.l.b16 %v2003
  %v2112 = vunpack.c.l.b16 %v2004
  %v2113 = vunpack.c.l.b16 %v2005
  %v2114 = vunpack.c.l.b16 %v2006
  %v2115 = vunpack.c.l.b16 %v2007
  %v2116 = vunpack.c.l.b16 %v2008
  %v2117 = vunpack.c.l.b16 %v2009
  %v2118 = vunpack.c.l.b16 %v2010
  %v2119 = vunpack.c.l.b16 %v2011
  %v2120 = vunpack.c.l.b16 %v2012
  %v2121 = vunpack.c.l.b16 %v2013
  %v2122 = vunpack.c.l.b16 %v2014
  %v2123 = vunpack.c.l.b16 %v2015
  %v2124 = vunpack.c.l.b16 %v2016
  %v2125 = vunpack.c.l.b16 %v2017
  %v2126 = vunpack.c.l.b16 %v2018
  %v2127 = vunpack.c.l.b16 %v2019
  %v2128 = vunpack.c.l.b16 %v2020
  %v2129 = vunpack.c.l.b16 %v2021
  %v2130 = vunpack.c.l.b16 %v2022
  %v2131 = vunpack.c.l.b16 %v2023
  %v2132 = vpack.c.b16 %v2084, %v2083
  %v2133 = vpack.c.b16 %v2086, %v2085
  %v2134 = vpack.c.b16 %v2088, %v2087
  %v2135 = vpack.c.b16 %v2090, %v2089
  %v2136 = vpack.c.b16 %v2092, %v2091
  %v2137 = vpack.c.b16 %v2094, %v2093
  %v2138 = vpack.c.b16 %v2096, %v2095
  %v2139 = vpack.c.b16 %v2098, %v2097
  %v2140 = vpack.c.b16 %v2100, %v2099
  %v2141 = vpack.c.b16 %v2102, %v2101
  %v2142 = vpack.c.b16 %v2104, %v2103
  %v2143 = vpack.c.b16 %v2106, %v2105
  %v2144 = vpack.c.b16 %v2108, %v2107
  %v2145 = vpack.c.b16 %v2110, %v2109
  %v2146 = vpack.c.b16 %v2112, %v2111
  %v2147 = vpack.c.b16 %v2114, %v2113
  %v2148 = vpack.c.b16 %v2116, %v2115
  %v2149 = vpack.c.b16 %v2118, %v2117
  %v2150 = vpack.c.b16 %v2120, %v2119
  %v2151 = vpack.c.b16 %v2122, %v2121
  %v2152 = vpack.c.b16 %v2124, %v2123
  %v2153 = vpack.c.b16 %v2126, %v2125
  %v2154 = vpack.c.b16 %v2128, %v2127
  %v2155 = vpack.c.b16 %v2130, %v2129
  %v2156 = vpack.c.b16 %v2131, %v2131
  %v2166 = vunpack.c.l.b16 %v2025
  %v2167 = vunpack.c.l.b16 %v2026
  %v2168 = vunpack.c.l.b16 %v2027
  %v2169 = vunpack.c.l.b16 %v2028
  %v2170 = vunpack.c.l.b16 %v2029
  %v2171 = vunpack.c.l.b16 %v2030
  %v2172 = vunpack.c.l.b16 %v2031
  %v2173 = vunpack.c.l.b16 %v2032
  %v2174 = vunpack.c.l.b16 %v2033
  %v2175 = vpack.c.b16 %v2167, %v2166
  %v2176 = vpack.c.b16 %v2169, %v2168
  %v2177 = vpack.c.b16 %v2171, %v2170
  %v2178 = vpack.c.b16 %v2173, %v2172
  %v2179 = vpack.c.b16 %v2174, %v2174
  %v2185 = vsel %vm226, %v2132, 0
  %v2188 = vsel %vm226, %v2133, 0
  %v2191 = vsel %vm226, %v2134, 0
  %v2194 = vsel %vm226, %v2135, 0
  %v2197 = vsel %vm226, %v2136, 0
  %v2200 = vsel %vm226, %v2137, 0
  %v2203 = vsel %vm226, %v2138, 0
  %v2206 = vsel %vm226, %v2139, 0
  %v2209 = vsel %vm226, %v2140, 0
  %v2212 = vsel %vm226, %v2141, 0
  %v2215 = vsel %vm226, %v2142, 0
  %v2218 = vsel %vm226, %v2143, 0
  %v2221 = vsel %vm226, %v2144, 0
  %v2224 = vsel %vm226, %v2145, 0
  %v2227 = vsel %vm226, %v2146, 0
  %v2230 = vsel %vm226, %v2147, 0
  %v2233 = vsel %vm226, %v2148, 0
  %v2236 = vsel %vm226, %v2149, 0
  %v2239 = vsel %vm226, %v2150, 0
  %v2242 = vsel %vm226, %v2151, 0
  %v2245 = vsel %vm226, %v2152, 0
  %v2248 = vsel %vm226, %v2153, 0
  %v2251 = vsel %vm226, %v2154, 0
  %v2254 = vsel %vm226, %v2155, 0
  %v2257 = vsel %vm226, %v2156, 0
  %v2260 = vsel %vm302, %v2179, 0
  %2262 = vmatprep.subr.bf16.mxu0 0
  %2263 = vmatpush1.bf16.msra.mxu0 0
  %2264 = vmatprep.subr.bf16.mxu0 0
  %2265 = vmatpush1.bf16.msra.mxu0 0
  %2266 = vmatprep.subr.bf16.mxu0 0
  %2267 = vmatpush1.bf16.msra.mxu0 0
  %2268 = vmatprep.subr.bf16.mxu0 0
  %2269 = vmatpush1.bf16.msra.mxu0 %v2260
  %2270 = vmatprep.subr.bf16.mxu0 0
  %2271 = vmatpush1.bf16.msra.mxu0 %v2178
  %2272 = vmatprep.subr.bf16.mxu0 0
  %2273 = vmatpush1.bf16.msra.mxu0 %v2177
  %2274 = vmatprep.subr.bf16.mxu0 0
  %2275 = vmatpush1.bf16.msra.mxu0 %v2176
  %2276 = vmatprep.subr.bf16.mxu0 0
  %2277 = vmatpush1.bf16.msra.mxu0 %v2175
  %2278 = vmatprep.subr.bf16.mxu0 0
  %2279 = vmatpush2.bf16.msra.mxu0 0
  %2280 = vmatprep.subr.bf16.mxu0 0
  %2281 = vmatpush2.bf16.msra.mxu0 0
  %2282 = vmatprep.subr.bf16.mxu0 0
  %2283 = vmatpush2.bf16.msra.mxu0 0
  %2284 = vmatprep.subr.bf16.mxu0 0
  %2285 = vmatpush2.bf16.msra.mxu0 0
  %2286 = vmatprep.subr.bf16.mxu0 0
  %2287 = vmatpush2.bf16.msra.mxu0 0
  %2288 = vmatprep.subr.bf16.mxu0 0
  %2289 = vmatpush2.bf16.msra.mxu0 0
  %2290 = vmatprep.subr.bf16.mxu0 0
  %2291 = vmatpush2.bf16.msra.mxu0 0
  %2292 = vmatprep.subr.bf16.mxu0 0
  %2293 = vmatpush2.bf16.msra.mxu0 0
  %2294 = vmatprep.mubr.bf16.mxu0 0
  %2295 = vmatmul.mubr.bf16.gmra.mxu0 %v2185
  %v2296 = vpop.f32.mrf.mxu0
  %v2297 = vadd.f32 0.0, %v2296
  %v2298 = vpop.f32.mrf.mxu0
  %v2299 = vpop.f32.mrf.mxu0
  %v2300 = vadd.f32 0.0, %v2299
  %v2301 = vpop.f32.mrf.mxu0
  %2302 = vmatprep.mubr.bf16.mxu0 0
  %2303 = vmatmul.mubr.bf16.gmra.mxu0 %v2188
  %v2304 = vpop.f32.mrf.mxu0
  %v2305 = vadd.f32 0.0, %v2304
  %v2306 = vpop.f32.mrf.mxu0
  %v2307 = vpop.f32.mrf.mxu0
  %v2308 = vadd.f32 0.0, %v2307
  %v2309 = vpop.f32.mrf.mxu0
  %2310 = vmatprep.mubr.bf16.mxu0 0
  %2311 = vmatmul.mubr.bf16.gmra.mxu0 %v2191
  %v2312 = vpop.f32.mrf.mxu0
  %v2313 = vadd.f32 0.0, %v2312
  %v2314 = vpop.f32.mrf.mxu0
  %v2315 = vpop.f32.mrf.mxu0
  %v2316 = vadd.f32 0.0, %v2315
  %v2317 = vpop.f32.mrf.mxu0
  %2318 = vmatprep.mubr.bf16.mxu0 0
  %2319 = vmatmul.mubr.bf16.gmra.mxu0 %v2194
  %v2320 = vpop.f32.mrf.mxu0
  %v2321 = vadd.f32 0.0, %v2320
  %v2322 = vpop.f32.mrf.mxu0
  %v2323 = vpop.f32.mrf.mxu0
  %v2324 = vadd.f32 0.0, %v2323
  %v2325 = vpop.f32.mrf.mxu0
  %2326 = vmatprep.mubr.bf16.mxu0 0
  %2327 = vmatmul.mubr.bf16.gmra.mxu0 %v2197
  %v2328 = vpop.f32.mrf.mxu0
  %v2329 = vadd.f32 0.0, %v2328
  %v2330 = vpop.f32.mrf.mxu0
  %v2331 = vpop.f32.mrf.mxu0
  %v2332 = vadd.f32 0.0, %v2331
  %v2333 = vpop.f32.mrf.mxu0
  %2334 = vmatprep.mubr.bf16.mxu0 0
  %2335 = vmatmul.mubr.bf16.gmra.mxu0 %v2200
  %v2336 = vpop.f32.mrf.mxu0
  %v2337 = vadd.f32 0.0, %v2336
  %v2338 = vpop.f32.mrf.mxu0
  %v2339 = vpop.f32.mrf.mxu0
  %v2340 = vadd.f32 0.0, %v2339
  %v2341 = vpop.f32.mrf.mxu0
  %2342 = vmatprep.mubr.bf16.mxu0 0
  %2343 = vmatmul.mubr.bf16.gmra.mxu0 %v2203
  %v2344 = vpop.f32.mrf.mxu0
  %v2345 = vadd.f32 0.0, %v2344
  %v2346 = vpop.f32.mrf.mxu0
  %v2347 = vpop.f32.mrf.mxu0
  %v2348 = vadd.f32 0.0, %v2347
  %v2349 = vpop.f32.mrf.mxu0
  %2350 = vmatprep.mubr.bf16.mxu0 0
  %2351 = vmatmul.mubr.bf16.gmra.mxu0 %v2206
  %v2352 = vpop.f32.mrf.mxu0
  %v2353 = vadd.f32 0.0, %v2352
  %v2354 = vpop.f32.mrf.mxu0
  %v2355 = vpop.f32.mrf.mxu0
  %v2356 = vadd.f32 0.0, %v2355
  %v2357 = vpop.f32.mrf.mxu0
  %2358 = vmatprep.mubr.bf16.mxu0 0
  %2359 = vmatmul.mubr.bf16.gmra.mxu0 %v2209
  %v2360 = vpop.f32.mrf.mxu0
  %v2361 = vadd.f32 0.0, %v2360
  %v2362 = vpop.f32.mrf.mxu0
  %v2363 = vpop.f32.mrf.mxu0
  %v2364 = vadd.f32 0.0, %v2363
  %v2365 = vpop.f32.mrf.mxu0
  %2366 = vmatprep.mubr.bf16.mxu0 0
  %2367 = vmatmul.mubr.bf16.gmra.mxu0 %v2212
  %v2368 = vpop.f32.mrf.mxu0
  %v2369 = vadd.f32 0.0, %v2368
  %v2370 = vpop.f32.mrf.mxu0
  %v2371 = vpop.f32.mrf.mxu0
  %v2372 = vadd.f32 0.0, %v2371
  %v2373 = vpop.f32.mrf.mxu0
  %2374 = vmatprep.mubr.bf16.mxu0 0
  %2375 = vmatmul.mubr.bf16.gmra.mxu0 %v2215
  %v2376 = vpop.f32.mrf.mxu0
  %v2377 = vadd.f32 0.0, %v2376
  %v2378 = vpop.f32.mrf.mxu0
  %v2379 = vpop.f32.mrf.mxu0
  %v2380 = vadd.f32 0.0, %v2379
  %v2381 = vpop.f32.mrf.mxu0
  %2382 = vmatprep.mubr.bf16.mxu0 0
  %2383 = vmatmul.mubr.bf16.gmra.mxu0 %v2218
  %v2384 = vpop.f32.mrf.mxu0
  %v2385 = vadd.f32 0.0, %v2384
  %v2386 = vpop.f32.mrf.mxu0
  %v2387 = vpop.f32.mrf.mxu0
  %v2388 = vadd.f32 0.0, %v2387
  %v2389 = vpop.f32.mrf.mxu0
  %2390 = vmatprep.mubr.bf16.mxu0 0
  %2391 = vmatmul.mubr.bf16.gmra.mxu0 %v2221
  %v2392 = vpop.f32.mrf.mxu0
  %v2393 = vadd.f32 0.0, %v2392
  %v2394 = vpop.f32.mrf.mxu0
  %v2395 = vpop.f32.mrf.mxu0
  %v2396 = vadd.f32 0.0, %v2395
  %v2397 = vpop.f32.mrf.mxu0
  %2398 = vmatprep.mubr.bf16.mxu0 0
  %2399 = vmatmul.mubr.bf16.gmra.mxu0 %v2224
  %v2400 = vpop.f32.mrf.mxu0
  %v2401 = vadd.f32 0.0, %v2400
  %v2402 = vpop.f32.mrf.mxu0
  %v2403 = vpop.f32.mrf.mxu0
  %v2404 = vadd.f32 0.0, %v2403
  %v2405 = vpop.f32.mrf.mxu0
  %2406 = vmatprep.mubr.bf16.mxu0 0
  %2407 = vmatmul.mubr.bf16.gmra.mxu0 %v2227
  %v2408 = vpop.f32.mrf.mxu0
  %v2409 = vadd.f32 0.0, %v2408
  %v2410 = vpop.f32.mrf.mxu0
  %v2411 = vpop.f32.mrf.mxu0
  %v2412 = vadd.f32 0.0, %v2411
  %v2413 = vpop.f32.mrf.mxu0
  %2414 = vmatprep.mubr.bf16.mxu0 0
  %2415 = vmatmul.mubr.bf16.gmra.mxu0 %v2230
  %v2416 = vpop.f32.mrf.mxu0
  %v2417 = vadd.f32 0.0, %v2416
  %v2418 = vpop.f32.mrf.mxu0
  %v2419 = vpop.f32.mrf.mxu0
  %v2420 = vadd.f32 0.0, %v2419
  %v2421 = vpop.f32.mrf.mxu0
  %2422 = vmatprep.mubr.bf16.mxu0 0
  %2423 = vmatmul.mubr.bf16.gmra.mxu0 %v2233
  %v2424 = vpop.f32.mrf.mxu0
  %v2425 = vadd.f32 0.0, %v2424
  %v2426 = vpop.f32.mrf.mxu0
  %v2427 = vpop.f32.mrf.mxu0
  %v2428 = vadd.f32 0.0, %v2427
  %v2429 = vpop.f32.mrf.mxu0
  %2430 = vmatprep.mubr.bf16.mxu0 0
  %2431 = vmatmul.mubr.bf16.gmra.mxu0 %v2236
  %v2432 = vpop.f32.mrf.mxu0
  %v2433 = vadd.f32 0.0, %v2432
  %v2434 = vpop.f32.mrf.mxu0
  %v2435 = vpop.f32.mrf.mxu0
  %v2436 = vadd.f32 0.0, %v2435
  %v2437 = vpop.f32.mrf.mxu0
  %2438 = vmatprep.mubr.bf16.mxu0 0
  %2439 = vmatmul.mubr.bf16.gmra.mxu0 %v2239
  %v2440 = vpop.f32.mrf.mxu0
  %v2441 = vadd.f32 0.0, %v2440
  %v2442 = vpop.f32.mrf.mxu0
  %v2443 = vpop.f32.mrf.mxu0
  %v2444 = vadd.f32 0.0, %v2443
  %v2445 = vpop.f32.mrf.mxu0
  %2446 = vmatprep.mubr.bf16.mxu0 0
  %2447 = vmatmul.mubr.bf16.gmra.mxu0 %v2242
  %v2448 = vpop.f32.mrf.mxu0
  %v2449 = vadd.f32 0.0, %v2448
  %v2450 = vpop.f32.mrf.mxu0
  %v2451 = vpop.f32.mrf.mxu0
  %v2452 = vadd.f32 0.0, %v2451
  %v2453 = vpop.f32.mrf.mxu0
  %2454 = vmatprep.mubr.bf16.mxu0 0
  %2455 = vmatmul.mubr.bf16.gmra.mxu0 %v2245
  %v2456 = vpop.f32.mrf.mxu0
  %v2457 = vadd.f32 0.0, %v2456
  %v2458 = vpop.f32.mrf.mxu0
  %v2459 = vpop.f32.mrf.mxu0
  %v2460 = vadd.f32 0.0, %v2459
  %v2461 = vpop.f32.mrf.mxu0
  %2462 = vmatprep.mubr.bf16.mxu0 0
  %2463 = vmatmul.mubr.bf16.gmra.mxu0 %v2248
  %v2464 = vpop.f32.mrf.mxu0
  %v2465 = vadd.f32 0.0, %v2464
  %v2466 = vpop.f32.mrf.mxu0
  %v2467 = vpop.f32.mrf.mxu0
  %v2468 = vadd.f32 0.0, %v2467
  %v2469 = vpop.f32.mrf.mxu0
  %2470 = vmatprep.mubr.bf16.mxu0 0
  %2471 = vmatmul.mubr.bf16.gmra.mxu0 %v2251
  %v2472 = vpop.f32.mrf.mxu0
  %v2473 = vadd.f32 0.0, %v2472
  %v2474 = vpop.f32.mrf.mxu0
  %v2475 = vpop.f32.mrf.mxu0
  %v2476 = vadd.f32 0.0, %v2475
  %v2477 = vpop.f32.mrf.mxu0
  %2478 = vmatprep.mubr.bf16.mxu0 0
  %2479 = vmatmul.mubr.bf16.gmra.mxu0 %v2254
  %v2480 = vpop.f32.mrf.mxu0
  %v2481 = vadd.f32 0.0, %v2480
  %v2482 = vpop.f32.mrf.mxu0
  %v2483 = vpop.f32.mrf.mxu0
  %v2484 = vadd.f32 0.0, %v2483
  %v2485 = vpop.f32.mrf.mxu0
  %2486 = vmatprep.mubr.bf16.mxu0 0
  %2487 = vmatmul.mubr.bf16.gmra.mxu0 %v2257
  %v2488 = vpop.f32.mrf.mxu0
  %v2489 = vadd.f32 0.0, %v2488
  %v2490 = vpop.f32.mrf.mxu0
  %v2491 = vpop.f32.mrf.mxu0
  %v2492 = vpop.f32.mrf.mxu0
  %2493 = vdwg.mxu0
  %s2494 = scalar_lea.vmem %s2, 2
  %v2495 = vld [vmem:[%s2494] sm:$0x1]
  %v2497 = vlaneseq
  %v2498 = vshrl.u32 %v2497, 7
  %v2499 = vsub.s32 0, %v2498
  %v2500 = vrot.slane %v2495, %v2499
  %v2502 = vmul.f32 %v2297, %v2500
  %v2503 = vmul.f32 %v2300, %v2500
  %v2504 = vmul.f32 %v2305, %v2500
  %v2505 = vmul.f32 %v2308, %v2500
  %v2506 = vmul.f32 %v2313, %v2500
  %v2507 = vmul.f32 %v2316, %v2500
  %v2508 = vmul.f32 %v2321, %v2500
  %v2509 = vmul.f32 %v2324, %v2500
  %v2510 = vmul.f32 %v2329, %v2500
  %v2511 = vmul.f32 %v2332, %v2500
  %v2512 = vmul.f32 %v2337, %v2500
  %v2513 = vmul.f32 %v2340, %v2500
  %v2514 = vmul.f32 %v2345, %v2500
  %v2515 = vmul.f32 %v2348, %v2500
  %v2516 = vmul.f32 %v2353, %v2500
  %v2517 = vmul.f32 %v2356, %v2500
  %v2518 = vmul.f32 %v2361, %v2500
  %v2519 = vmul.f32 %v2364, %v2500
  %v2520 = vmul.f32 %v2369, %v2500
  %v2521 = vmul.f32 %v2372, %v2500
  %v2522 = vmul.f32 %v2377, %v2500
  %v2523 = vmul.f32 %v2380, %v2500
  %v2524 = vmul.f32 %v2385, %v2500
  %v2525 = vmul.f32 %v2388, %v2500
  %v2526 = vmul.f32 %v2393, %v2500
  %v2527 = vmul.f32 %v2396, %v2500
  %v2528 = vmul.f32 %v2401, %v2500
  %v2529 = vmul.f32 %v2404, %v2500
  %v2530 = vmul.f32 %v2409, %v2500
  %v2531 = vmul.f32 %v2412, %v2500
  %v2532 = vmul.f32 %v2417, %v2500
  %v2533 = vmul.f32 %v2420, %v2500
  %v2534 = vmul.f32 %v2425, %v2500
  %v2535 = vmul.f32 %v2428, %v2500
  %v2536 = vmul.f32 %v2433, %v2500
  %v2537 = vmul.f32 %v2436, %v2500
  %v2538 = vmul.f32 %v2441, %v2500
  %v2539 = vmul.f32 %v2444, %v2500
  %v2540 = vmul.f32 %v2449, %v2500
  %v2541 = vmul.f32 %v2452, %v2500
  %v2542 = vmul.f32 %v2457, %v2500
  %v2543 = vmul.f32 %v2460, %v2500
  %v2544 = vmul.f32 %v2465, %v2500
  %v2545 = vmul.f32 %v2468, %v2500
  %v2546 = vmul.f32 %v2473, %v2500
  %v2547 = vmul.f32 %v2476, %v2500
  %v2548 = vmul.f32 %v2481, %v2500
  %v2549 = vmul.f32 %v2484, %v2500
  %v2550 = vmul.f32 %v2489, %v2500
  %s2551 = scalar_lea.vmem %s3, 2
  %v2552 = vld [vmem:[%s2551] sm:$0x1]
  %v2554 = vlaneseq
  %v2555 = vshrl.u32 %v2554, 7
  %v2556 = vsub.s32 0, %v2555
  %v2557 = vrot.slane %v2552, %v2556
  %v2559 = vadd.f32 %v2502, %v2557
  %v2560 = vadd.f32 %v2503, %v2557
  %v2561 = vadd.f32 %v2504, %v2557
  %v2562 = vadd.f32 %v2505, %v2557
  %v2563 = vadd.f32 %v2506, %v2557
  %v2564 = vadd.f32 %v2507, %v2557
  %v2565 = vadd.f32 %v2508, %v2557
  %v2566 = vadd.f32 %v2509, %v2557
  %v2567 = vadd.f32 %v2510, %v2557
  %v2568 = vadd.f32 %v2511, %v2557
  %v2569 = vadd.f32 %v2512, %v2557
  %v2570 = vadd.f32 %v2513, %v2557
  %v2571 = vadd.f32 %v2514, %v2557
  %v2572 = vadd.f32 %v2515, %v2557
  %v2573 = vadd.f32 %v2516, %v2557
  %v2574 = vadd.f32 %v2517, %v2557
  %v2575 = vadd.f32 %v2518, %v2557
  %v2576 = vadd.f32 %v2519, %v2557
  %v2577 = vadd.f32 %v2520, %v2557
  %v2578 = vadd.f32 %v2521, %v2557
  %v2579 = vadd.f32 %v2522, %v2557
  %v2580 = vadd.f32 %v2523, %v2557
  %v2581 = vadd.f32 %v2524, %v2557
  %v2582 = vadd.f32 %v2525, %v2557
  %v2583 = vadd.f32 %v2526, %v2557
  %v2584 = vadd.f32 %v2527, %v2557
  %v2585 = vadd.f32 %v2528, %v2557
  %v2586 = vadd.f32 %v2529, %v2557
  %v2587 = vadd.f32 %v2530, %v2557
  %v2588 = vadd.f32 %v2531, %v2557
  %v2589 = vadd.f32 %v2532, %v2557
  %v2590 = vadd.f32 %v2533, %v2557
  %v2591 = vadd.f32 %v2534, %v2557
  %v2592 = vadd.f32 %v2535, %v2557
  %v2593 = vadd.f32 %v2536, %v2557
  %v2594 = vadd.f32 %v2537, %v2557
  %v2595 = vadd.f32 %v2538, %v2557
  %v2596 = vadd.f32 %v2539, %v2557
  %v2597 = vadd.f32 %v2540, %v2557
  %v2598 = vadd.f32 %v2541, %v2557
  %v2599 = vadd.f32 %v2542, %v2557
  %v2600 = vadd.f32 %v2543, %v2557
  %v2601 = vadd.f32 %v2544, %v2557
  %v2602 = vadd.f32 %v2545, %v2557
  %v2603 = vadd.f32 %v2546, %v2557
  %v2604 = vadd.f32 %v2547, %v2557
  %v2605 = vadd.f32 %v2548, %v2557
  %v2606 = vadd.f32 %v2549, %v2557
  %v2607 = vadd.f32 %v2550, %v2557
  %v2608 = vmax.f32 %v2559, 0.0
  %v2609 = vmax.f32 %v2560, 0.0
  %v2610 = vmax.f32 %v2561, 0.0
  %v2611 = vmax.f32 %v2562, 0.0
  %v2612 = vmax.f32 %v2563, 0.0
  %v2613 = vmax.f32 %v2564, 0.0
  %v2614 = vmax.f32 %v2565, 0.0
  %v2615 = vmax.f32 %v2566, 0.0
  %v2616 = vmax.f32 %v2567, 0.0
  %v2617 = vmax.f32 %v2568, 0.0
  %v2618 = vmax.f32 %v2569, 0.0
  %v2619 = vmax.f32 %v2570, 0.0
  %v2620 = vmax.f32 %v2571, 0.0
  %v2621 = vmax.f32 %v2572, 0.0
  %v2622 = vmax.f32 %v2573, 0.0
  %v2623 = vmax.f32 %v2574, 0.0
  %v2624 = vmax.f32 %v2575, 0.0
  %v2625 = vmax.f32 %v2576, 0.0
  %v2626 = vmax.f32 %v2577, 0.0
  %v2627 = vmax.f32 %v2578, 0.0
  %v2628 = vmax.f32 %v2579, 0.0
  %v2629 = vmax.f32 %v2580, 0.0
  %v2630 = vmax.f32 %v2581, 0.0
  %v2631 = vmax.f32 %v2582, 0.0
  %v2632 = vmax.f32 %v2583, 0.0
  %v2633 = vmax.f32 %v2584, 0.0
  %v2634 = vmax.f32 %v2585, 0.0
  %v2635 = vmax.f32 %v2586, 0.0
  %v2636 = vmax.f32 %v2587, 0.0
  %v2637 = vmax.f32 %v2588, 0.0
  %v2638 = vmax.f32 %v2589, 0.0
  %v2639 = vmax.f32 %v2590, 0.0
  %v2640 = vmax.f32 %v2591, 0.0
  %v2641 = vmax.f32 %v2592, 0.0
  %v2642 = vmax.f32 %v2593, 0.0
  %v2643 = vmax.f32 %v2594, 0.0
  %v2644 = vmax.f32 %v2595, 0.0
  %v2645 = vmax.f32 %v2596, 0.0
  %v2646 = vmax.f32 %v2597, 0.0
  %v2647 = vmax.f32 %v2598, 0.0
  %v2648 = vmax.f32 %v2599, 0.0
  %v2649 = vmax.f32 %v2600, 0.0
  %v2650 = vmax.f32 %v2601, 0.0
  %v2651 = vmax.f32 %v2602, 0.0
  %v2652 = vmax.f32 %v2603, 0.0
  %v2653 = vmax.f32 %v2604, 0.0
  %v2654 = vmax.f32 %v2605, 0.0
  %v2655 = vmax.f32 %v2606, 0.0
  %v2656 = vmax.f32 %v2607, 0.0
  %v2657 = vpack.c.bf16 %v2609, %v2608
  %v2658 = vpack.c.bf16 %v2611, %v2610
  %v2659 = vpack.c.bf16 %v2613, %v2612
  %v2660 = vpack.c.bf16 %v2615, %v2614
  %v2661 = vpack.c.bf16 %v2617, %v2616
  %v2662 = vpack.c.bf16 %v2619, %v2618
  %v2663 = vpack.c.bf16 %v2621, %v2620
  %v2664 = vpack.c.bf16 %v2623, %v2622
  %v2665 = vpack.c.bf16 %v2625, %v2624
  %v2666 = vpack.c.bf16 %v2627, %v2626
  %v2667 = vpack.c.bf16 %v2629, %v2628
  %v2668 = vpack.c.bf16 %v2631, %v2630
  %v2669 = vpack.c.bf16 %v2633, %v2632
  %v2670 = vpack.c.bf16 %v2635, %v2634
  %v2671 = vpack.c.bf16 %v2637, %v2636
  %v2672 = vpack.c.bf16 %v2639, %v2638
  %v2673 = vpack.c.bf16 %v2641, %v2640
  %v2674 = vpack.c.bf16 %v2643, %v2642
  %v2675 = vpack.c.bf16 %v2645, %v2644
  %v2676 = vpack.c.bf16 %v2647, %v2646
  %v2677 = vpack.c.bf16 %v2649, %v2648
  %v2678 = vpack.c.bf16 %v2651, %v2650
  %v2679 = vpack.c.bf16 %v2653, %v2652
  %v2680 = vpack.c.bf16 %v2655, %v2654
  %v2681 = vpack.c.bf16 %v2656, %v2656
  %v2707 = vunpack.c.l.b16 %v2657
  %v2708 = vunpack.c.h.b16 %v2657
  %v2709 = vunpack.c.l.b16 %v2658
  %v2710 = vunpack.c.h.b16 %v2658
  %v2711 = vunpack.c.l.b16 %v2659
  %v2712 = vunpack.c.h.b16 %v2659
  %v2713 = vunpack.c.l.b16 %v2660
  %v2714 = vunpack.c.h.b16 %v2660
  %v2715 = vunpack.c.l.b16 %v2661
  %v2716 = vunpack.c.h.b16 %v2661
  %v2717 = vunpack.c.l.b16 %v2662
  %v2718 = vunpack.c.h.b16 %v2662
  %v2719 = vunpack.c.l.b16 %v2663
  %v2720 = vunpack.c.h.b16 %v2663
  %v2721 = vunpack.c.l.b16 %v2664
  %v2722 = vunpack.c.h.b16 %v2664
  %v2723 = vunpack.c.l.b16 %v2665
  %v2724 = vunpack.c.h.b16 %v2665
  %v2725 = vunpack.c.l.b16 %v2666
  %v2726 = vunpack.c.h.b16 %v2666
  %v2727 = vunpack.c.l.b16 %v2667
  %v2728 = vunpack.c.h.b16 %v2667
  %v2729 = vunpack.c.l.b16 %v2668
  %v2730 = vunpack.c.h.b16 %v2668
  %v2731 = vunpack.c.l.b16 %v2669
  %v2732 = vunpack.c.h.b16 %v2669
  %v2733 = vunpack.c.l.b16 %v2670
  %v2734 = vunpack.c.h.b16 %v2670
  %v2735 = vunpack.c.l.b16 %v2671
  %v2736 = vunpack.c.h.b16 %v2671
  %v2737 = vunpack.c.l.b16 %v2672
  %v2738 = vunpack.c.h.b16 %v2672
  %v2739 = vunpack.c.l.b16 %v2673
  %v2740 = vunpack.c.h.b16 %v2673
  %v2741 = vunpack.c.l.b16 %v2674
  %v2742 = vunpack.c.h.b16 %v2674
  %v2743 = vunpack.c.l.b16 %v2675
  %v2744 = vunpack.c.h.b16 %v2675
  %v2745 = vunpack.c.l.b16 %v2676
  %v2746 = vunpack.c.h.b16 %v2676
  %v2747 = vunpack.c.l.b16 %v2677
  %v2748 = vunpack.c.h.b16 %v2677
  %v2749 = vunpack.c.l.b16 %v2678
  %v2750 = vunpack.c.h.b16 %v2678
  %v2751 = vunpack.c.l.b16 %v2679
  %v2752 = vunpack.c.h.b16 %v2679
  %v2753 = vunpack.c.l.b16 %v2680
  %v2754 = vunpack.c.h.b16 %v2680
  %v2755 = vunpack.c.l.b16 %v2681
  %v2756 = vpack.c.b16 %v2707, %v2707
  %v2757 = vpack.c.b16 %v2708, %v2708
  %v2758 = vpack.c.b16 %v2709, %v2709
  %v2759 = vpack.c.b16 %v2710, %v2710
  %v2760 = vpack.c.b16 %v2711, %v2711
  %v2761 = vpack.c.b16 %v2712, %v2712
  %v2762 = vpack.c.b16 %v2713, %v2713
  %v2763 = vpack.c.b16 %v2714, %v2714
  %v2764 = vpack.c.b16 %v2715, %v2715
  %v2765 = vpack.c.b16 %v2716, %v2716
  %v2766 = vpack.c.b16 %v2717, %v2717
  %v2767 = vpack.c.b16 %v2718, %v2718
  %v2768 = vpack.c.b16 %v2719, %v2719
  %v2769 = vpack.c.b16 %v2720, %v2720
  %v2770 = vpack.c.b16 %v2721, %v2721
  %v2771 = vpack.c.b16 %v2722, %v2722
  %v2772 = vpack.c.b16 %v2723, %v2723
  %v2773 = vpack.c.b16 %v2724, %v2724
  %v2774 = vpack.c.b16 %v2725, %v2725
  %v2775 = vpack.c.b16 %v2726, %v2726
  %v2776 = vpack.c.b16 %v2727, %v2727
  %v2777 = vpack.c.b16 %v2728, %v2728
  %v2778 = vpack.c.b16 %v2729, %v2729
  %v2779 = vpack.c.b16 %v2730, %v2730
  %v2780 = vpack.c.b16 %v2731, %v2731
  %v2781 = vpack.c.b16 %v2732, %v2732
  %v2782 = vpack.c.b16 %v2733, %v2733
  %v2783 = vpack.c.b16 %v2734, %v2734
  %v2784 = vpack.c.b16 %v2735, %v2735
  %v2785 = vpack.c.b16 %v2736, %v2736
  %v2786 = vpack.c.b16 %v2737, %v2737
  %v2787 = vpack.c.b16 %v2738, %v2738
  %v2788 = vpack.c.b16 %v2739, %v2739
  %v2789 = vpack.c.b16 %v2740, %v2740
  %v2790 = vpack.c.b16 %v2741, %v2741
  %v2791 = vpack.c.b16 %v2742, %v2742
  %v2792 = vpack.c.b16 %v2743, %v2743
  %v2793 = vpack.c.b16 %v2744, %v2744
  %v2794 = vpack.c.b16 %v2745, %v2745
  %v2795 = vpack.c.b16 %v2746, %v2746
  %v2796 = vpack.c.b16 %v2747, %v2747
  %v2797 = vpack.c.b16 %v2748, %v2748
  %v2798 = vpack.c.b16 %v2749, %v2749
  %v2799 = vpack.c.b16 %v2750, %v2750
  %v2800 = vpack.c.b16 %v2751, %v2751
  %v2801 = vpack.c.b16 %v2752, %v2752
  %v2802 = vpack.c.b16 %v2753, %v2753
  %v2803 = vpack.c.b16 %v2754, %v2754
  %v2804 = vpack.c.b16 %v2755, %v2755
  %2805 = vrot.lane.b32.xlu0 %v2756, 16
  %v2806 = vpop.permute.xlu0 %2805
  %2807 = vrot.lane.b32.xlu0 %v2757, 16
  %v2808 = vpop.permute.xlu0 %2807
  %2809 = vrot.lane.b32.xlu0 %v2758, 16
  %v2810 = vpop.permute.xlu0 %2809
  %2811 = vrot.lane.b32.xlu0 %v2759, 16
  %v2812 = vpop.permute.xlu0 %2811
  %2813 = vrot.lane.b32.xlu0 %v2760, 16
  %v2814 = vpop.permute.xlu0 %2813
  %2815 = vrot.lane.b32.xlu0 %v2761, 16
  %v2816 = vpop.permute.xlu0 %2815
  %2817 = vrot.lane.b32.xlu0 %v2762, 16
  %v2818 = vpop.permute.xlu0 %2817
  %2819 = vrot.lane.b32.xlu0 %v2763, 16
  %v2820 = vpop.permute.xlu0 %2819
  %2821 = vrot.lane.b32.xlu0 %v2764, 16
  %v2822 = vpop.permute.xlu0 %2821
  %2823 = vrot.lane.b32.xlu0 %v2765, 16
  %v2824 = vpop.permute.xlu0 %2823
  %2825 = vrot.lane.b32.xlu0 %v2766, 16
  %v2826 = vpop.permute.xlu0 %2825
  %2827 = vrot.lane.b32.xlu0 %v2767, 16
  %v2828 = vpop.permute.xlu0 %2827
  %2829 = vrot.lane.b32.xlu0 %v2768, 16
  %v2830 = vpop.permute.xlu0 %2829
  %2831 = vrot.lane.b32.xlu0 %v2769, 16
  %v2832 = vpop.permute.xlu0 %2831
  %2833 = vrot.lane.b32.xlu0 %v2770, 16
  %v2834 = vpop.permute.xlu0 %2833
  %2835 = vrot.lane.b32.xlu0 %v2771, 16
  %v2836 = vpop.permute.xlu0 %2835
  %2837 = vrot.lane.b32.xlu0 %v2772, 16
  %v2838 = vpop.permute.xlu0 %2837
  %2839 = vrot.lane.b32.xlu0 %v2773, 16
  %v2840 = vpop.permute.xlu0 %2839
  %2841 = vrot.lane.b32.xlu0 %v2774, 16
  %v2842 = vpop.permute.xlu0 %2841
  %2843 = vrot.lane.b32.xlu0 %v2775, 16
  %v2844 = vpop.permute.xlu0 %2843
  %2845 = vrot.lane.b32.xlu0 %v2776, 16
  %v2846 = vpop.permute.xlu0 %2845
  %2847 = vrot.lane.b32.xlu0 %v2777, 16
  %v2848 = vpop.permute.xlu0 %2847
  %2849 = vrot.lane.b32.xlu0 %v2778, 16
  %v2850 = vpop.permute.xlu0 %2849
  %2851 = vrot.lane.b32.xlu0 %v2779, 16
  %v2852 = vpop.permute.xlu0 %2851
  %2853 = vrot.lane.b32.xlu0 %v2780, 16
  %v2854 = vpop.permute.xlu0 %2853
  %2855 = vrot.lane.b32.xlu0 %v2781, 16
  %v2856 = vpop.permute.xlu0 %2855
  %2857 = vrot.lane.b32.xlu0 %v2782, 16
  %v2858 = vpop.permute.xlu0 %2857
  %2859 = vrot.lane.b32.xlu0 %v2783, 16
  %v2860 = vpop.permute.xlu0 %2859
  %2861 = vrot.lane.b32.xlu0 %v2784, 16
  %v2862 = vpop.permute.xlu0 %2861
  %2863 = vrot.lane.b32.xlu0 %v2785, 16
  %v2864 = vpop.permute.xlu0 %2863
  %2865 = vrot.lane.b32.xlu0 %v2786, 16
  %v2866 = vpop.permute.xlu0 %2865
  %2867 = vrot.lane.b32.xlu0 %v2787, 16
  %v2868 = vpop.permute.xlu0 %2867
  %2869 = vrot.lane.b32.xlu0 %v2788, 16
  %v2870 = vpop.permute.xlu0 %2869
  %2871 = vrot.lane.b32.xlu0 %v2789, 16
  %v2872 = vpop.permute.xlu0 %2871
  %2873 = vrot.lane.b32.xlu0 %v2790, 16
  %v2874 = vpop.permute.xlu0 %2873
  %2875 = vrot.lane.b32.xlu0 %v2791, 16
  %v2876 = vpop.permute.xlu0 %2875
  %2877 = vrot.lane.b32.xlu0 %v2792, 16
  %v2878 = vpop.permute.xlu0 %2877
  %2879 = vrot.lane.b32.xlu0 %v2793, 16
  %v2880 = vpop.permute.xlu0 %2879
  %2881 = vrot.lane.b32.xlu0 %v2794, 16
  %v2882 = vpop.permute.xlu0 %2881
  %2883 = vrot.lane.b32.xlu0 %v2795, 16
  %v2884 = vpop.permute.xlu0 %2883
  %2885 = vrot.lane.b32.xlu0 %v2796, 16
  %v2886 = vpop.permute.xlu0 %2885
  %2887 = vrot.lane.b32.xlu0 %v2797, 16
  %v2888 = vpop.permute.xlu0 %2887
  %2889 = vrot.lane.b32.xlu0 %v2798, 16
  %v2890 = vpop.permute.xlu0 %2889
  %2891 = vrot.lane.b32.xlu0 %v2799, 16
  %v2892 = vpop.permute.xlu0 %2891
  %2893 = vrot.lane.b32.xlu0 %v2800, 16
  %v2894 = vpop.permute.xlu0 %2893
  %2895 = vrot.lane.b32.xlu0 %v2801, 16
  %v2896 = vpop.permute.xlu0 %2895
  %2897 = vrot.lane.b32.xlu0 %v2802, 16
  %v2898 = vpop.permute.xlu0 %2897
  %2899 = vrot.lane.b32.xlu0 %v2803, 16
  %v2900 = vpop.permute.xlu0 %2899
  %2901 = vrot.lane.b32.xlu0 %v2804, 16
  %v2902 = vpop.permute.xlu0 %2901
  %vm2952 = vcmask 191616
  %2953 = vst.msk [vmem:[%s4] sm:$0xf] %vm2952, %v2806
  %2954 = vst.msk [vmem:[%s4 + $0x4] sm:$0xf] %vm2952, %v2808
  %2955 = vst.msk [vmem:[%s4 + $0x8] sm:$0xf] %vm2952, %v2810
  %2956 = vst.msk [vmem:[%s4 + $0xc] sm:$0xf] %vm2952, %v2812
  %2957 = vst.msk [vmem:[%s4 + $0x10] sm:$0xf] %vm2952, %v2814
  %2958 = vst.msk [vmem:[%s4 + $0x14] sm:$0xf] %vm2952, %v2816
  %2959 = vst.msk [vmem:[%s4 + $0x18] sm:$0xf] %vm2952, %v2818
  %2960 = vst.msk [vmem:[%s4 + $0x1c] sm:$0xf] %vm2952, %v2820
  %2961 = vst.msk [vmem:[%s4 + $0x20] sm:$0xf] %vm2952, %v2822
  %2962 = vst.msk [vmem:[%s4 + $0x24] sm:$0xf] %vm2952, %v2824
  %2963 = vst.msk [vmem:[%s4 + $0x28] sm:$0xf] %vm2952, %v2826
  %2964 = vst.msk [vmem:[%s4 + $0x2c] sm:$0xf] %vm2952, %v2828
  %2965 = vst.msk [vmem:[%s4 + $0x30] sm:$0xf] %vm2952, %v2830
  %2966 = vst.msk [vmem:[%s4 + $0x34] sm:$0xf] %vm2952, %v2832
  %2967 = vst.msk [vmem:[%s4 + $0x38] sm:$0xf] %vm2952, %v2834
  %2968 = vst.msk [vmem:[%s4 + $0x3c] sm:$0xf] %vm2952, %v2836
  %2969 = vst.msk [vmem:[%s4 + $0x40] sm:$0xf] %vm2952, %v2838
  %2970 = vst.msk [vmem:[%s4 + $0x44] sm:$0xf] %vm2952, %v2840
  %2971 = vst.msk [vmem:[%s4 + $0x48] sm:$0xf] %vm2952, %v2842
  %2972 = vst.msk [vmem:[%s4 + $0x4c] sm:$0xf] %vm2952, %v2844
  %2973 = vst.msk [vmem:[%s4 + $0x50] sm:$0xf] %vm2952, %v2846
  %2974 = vst.msk [vmem:[%s4 + $0x54] sm:$0xf] %vm2952, %v2848
  %2975 = vst.msk [vmem:[%s4 + $0x58] sm:$0xf] %vm2952, %v2850
  %2976 = vst.msk [vmem:[%s4 + $0x5c] sm:$0xf] %vm2952, %v2852
  %2977 = vst.msk [vmem:[%s4 + $0x60] sm:$0xf] %vm2952, %v2854
  %2978 = vst.msk [vmem:[%s4 + $0x64] sm:$0xf] %vm2952, %v2856
  %2979 = vst.msk [vmem:[%s4 + $0x68] sm:$0xf] %vm2952, %v2858
  %2980 = vst.msk [vmem:[%s4 + $0x6c] sm:$0xf] %vm2952, %v2860
  %2981 = vst.msk [vmem:[%s4 + $0x70] sm:$0xf] %vm2952, %v2862
  %2982 = vst.msk [vmem:[%s4 + $0x74] sm:$0xf] %vm2952, %v2864
  %2983 = vst.msk [vmem:[%s4 + $0x78] sm:$0xf] %vm2952, %v2866
  %2984 = vst.msk [vmem:[%s4 + $0x7c] sm:$0xf] %vm2952, %v2868
  %2985 = vst.msk [vmem:[%s4 + $0x80] sm:$0xf] %vm2952, %v2870
  %2986 = vst.msk [vmem:[%s4 + $0x84] sm:$0xf] %vm2952, %v2872
  %2987 = vst.msk [vmem:[%s4 + $0x88] sm:$0xf] %vm2952, %v2874
  %2988 = vst.msk [vmem:[%s4 + $0x8c] sm:$0xf] %vm2952, %v2876
  %2989 = vst.msk [vmem:[%s4 + $0x90] sm:$0xf] %vm2952, %v2878
  %2990 = vst.msk [vmem:[%s4 + $0x94] sm:$0xf] %vm2952, %v2880
  %2991 = vst.msk [vmem:[%s4 + $0x98] sm:$0xf] %vm2952, %v2882
  %2992 = vst.msk [vmem:[%s4 + $0x9c] sm:$0xf] %vm2952, %v2884
  %2993 = vst.msk [vmem:[%s4 + $0xa0] sm:$0xf] %vm2952, %v2886
  %2994 = vst.msk [vmem:[%s4 + $0xa4] sm:$0xf] %vm2952, %v2888
  %2995 = vst.msk [vmem:[%s4 + $0xa8] sm:$0xf] %vm2952, %v2890
  %2996 = vst.msk [vmem:[%s4 + $0xac] sm:$0xf] %vm2952, %v2892
  %2997 = vst.msk [vmem:[%s4 + $0xb0] sm:$0xf] %vm2952, %v2894
  %2998 = vst.msk [vmem:[%s4 + $0xb4] sm:$0xf] %vm2952, %v2896
  %2999 = vst.msk [vmem:[%s4 + $0xb8] sm:$0xf] %vm2952, %v2898
  %3000 = vst.msk [vmem:[%s4 + $0xbc] sm:$0xf] %vm2952, %v2900
  %3001 = vst.msk [vmem:[%s4 + $0xc0] sm:$0xf] %vm2952, %v2902
  %s3002 = scalar_lea.vmem %s0, 588
  %v3003 = vld [vmem:[%s3002] sm:$0xf]
  %v3004 = vld [vmem:[%s3002 + $0x4] sm:$0xf]
  %v3005 = vld [vmem:[%s3002 + $0x8] sm:$0xf]
  %v3006 = vld [vmem:[%s3002 + $0xc] sm:$0xf]
  %v3007 = vld [vmem:[%s3002 + $0x10] sm:$0xf]
  %v3008 = vld [vmem:[%s3002 + $0x14] sm:$0xf]
  %v3009 = vld [vmem:[%s3002 + $0x18] sm:$0xf]
  %v3010 = vld [vmem:[%s3002 + $0x1c] sm:$0xf]
  %v3011 = vld [vmem:[%s3002 + $0x20] sm:$0xf]
  %v3012 = vld [vmem:[%s3002 + $0x24] sm:$0xf]
  %v3013 = vld [vmem:[%s3002 + $0x28] sm:$0xf]
  %v3014 = vld [vmem:[%s3002 + $0x2c] sm:$0xf]
  %v3015 = vld [vmem:[%s3002 + $0x30] sm:$0xf]
  %v3016 = vld [vmem:[%s3002 + $0x34] sm:$0xf]
  %v3017 = vld [vmem:[%s3002 + $0x38] sm:$0xf]
  %v3018 = vld [vmem:[%s3002 + $0x3c] sm:$0xf]
  %v3019 = vld [vmem:[%s3002 + $0x40] sm:$0xf]
  %v3020 = vld [vmem:[%s3002 + $0x44] sm:$0xf]
  %v3021 = vld [vmem:[%s3002 + $0x48] sm:$0xf]
  %v3022 = vld [vmem:[%s3002 + $0x4c] sm:$0xf]
  %v3023 = vld [vmem:[%s3002 + $0x50] sm:$0xf]
  %v3024 = vld [vmem:[%s3002 + $0x54] sm:$0xf]
  %v3025 = vld [vmem:[%s3002 + $0x58] sm:$0xf]
  %v3026 = vld [vmem:[%s3002 + $0x5c] sm:$0xf]
  %v3027 = vld [vmem:[%s3002 + $0x60] sm:$0xf]
  %v3028 = vld [vmem:[%s3002 + $0x64] sm:$0xf]
  %v3029 = vld [vmem:[%s3002 + $0x68] sm:$0xf]
  %v3030 = vld [vmem:[%s3002 + $0x6c] sm:$0xf]
  %v3031 = vld [vmem:[%s3002 + $0x70] sm:$0xf]
  %v3032 = vld [vmem:[%s3002 + $0x74] sm:$0xf]
  %v3033 = vld [vmem:[%s3002 + $0x78] sm:$0xf]
  %v3034 = vld [vmem:[%s3002 + $0x7c] sm:$0xf]
  %v3035 = vld [vmem:[%s3002 + $0x80] sm:$0xf]
  %v3036 = vld [vmem:[%s3002 + $0x84] sm:$0xf]
  %v3037 = vld [vmem:[%s3002 + $0x88] sm:$0xf]
  %v3038 = vld [vmem:[%s3002 + $0x8c] sm:$0xf]
  %v3039 = vld [vmem:[%s3002 + $0x90] sm:$0xf]
  %v3040 = vld [vmem:[%s3002 + $0x94] sm:$0xf]
  %v3041 = vld [vmem:[%s3002 + $0x98] sm:$0xf]
  %v3042 = vld [vmem:[%s3002 + $0x9c] sm:$0xf]
  %v3043 = vld [vmem:[%s3002 + $0xa0] sm:$0xf]
  %v3044 = vld [vmem:[%s3002 + $0xa4] sm:$0xf]
  %v3045 = vld [vmem:[%s3002 + $0xa8] sm:$0xf]
  %v3046 = vld [vmem:[%s3002 + $0xac] sm:$0xf]
  %v3047 = vld [vmem:[%s3002 + $0xb0] sm:$0xf]
  %v3048 = vld [vmem:[%s3002 + $0xb4] sm:$0xf]
  %v3049 = vld [vmem:[%s3002 + $0xb8] sm:$0xf]
  %v3050 = vld [vmem:[%s3002 + $0xbc] sm:$0xf]
  %v3051 = vld [vmem:[%s3002 + $0xc0] sm:$0xf]
  %s3052 = scalar_lea.vmem %s1, 108
  %v3053 = vld [vmem:[%s3052] sm:$0xf]
  %v3054 = vld [vmem:[%s3052 + $0x4] sm:$0xf]
  %v3055 = vld [vmem:[%s3052 + $0x8] sm:$0xf]
  %v3056 = vld [vmem:[%s3052 + $0xc] sm:$0xf]
  %v3057 = vld [vmem:[%s3052 + $0x10] sm:$0xf]
  %v3058 = vld [vmem:[%s3052 + $0x14] sm:$0xf]
  %v3059 = vld [vmem:[%s3052 + $0x18] sm:$0xf]
  %v3060 = vld [vmem:[%s3052 + $0x1c] sm:$0xf]
  %v3061 = vld [vmem:[%s3052 + $0x20] sm:$0xf]
  %v3111 = vunpack.c.l.b16 %v3003
  %v3112 = vunpack.c.l.b16 %v3004
  %v3113 = vunpack.c.l.b16 %v3005
  %v3114 = vunpack.c.l.b16 %v3006
  %v3115 = vunpack.c.l.b16 %v3007
  %v3116 = vunpack.c.l.b16 %v3008
  %v3117 = vunpack.c.l.b16 %v3009
  %v3118 = vunpack.c.l.b16 %v3010
  %v3119 = vunpack.c.l.b16 %v3011
  %v3120 = vunpack.c.l.b16 %v3012
  %v3121 = vunpack.c.l.b16 %v3013
  %v3122 = vunpack.c.l.b16 %v3014
  %v3123 = vunpack.c.l.b16 %v3015
  %v3124 = vunpack.c.l.b16 %v3016
  %v3125 = vunpack.c.l.b16 %v3017
  %v3126 = vunpack.c.l.b16 %v3018
  %v3127 = vunpack.c.l.b16 %v3019
  %v3128 = vunpack.c.l.b16 %v3020
  %v3129 = vunpack.c.l.b16 %v3021
  %v3130 = vunpack.c.l.b16 %v3022
  %v3131 = vunpack.c.l.b16 %v3023
  %v3132 = vunpack.c.l.b16 %v3024
  %v3133 = vunpack.c.l.b16 %v3025
  %v3134 = vunpack.c.l.b16 %v3026
  %v3135 = vunpack.c.l.b16 %v3027
  %v3136 = vunpack.c.l.b16 %v3028
  %v3137 = vunpack.c.l.b16 %v3029
  %v3138 = vunpack.c.l.b16 %v3030
  %v3139 = vunpack.c.l.b16 %v3031
  %v3140 = vunpack.c.l.b16 %v3032
  %v3141 = vunpack.c.l.b16 %v3033
  %v3142 = vunpack.c.l.b16 %v3034
  %v3143 = vunpack.c.l.b16 %v3035
  %v3144 = vunpack.c.l.b16 %v3036
  %v3145 = vunpack.c.l.b16 %v3037
  %v3146 = vunpack.c.l.b16 %v3038
  %v3147 = vunpack.c.l.b16 %v3039
  %v3148 = vunpack.c.l.b16 %v3040
  %v3149 = vunpack.c.l.b16 %v3041
  %v3150 = vunpack.c.l.b16 %v3042
  %v3151 = vunpack.c.l.b16 %v3043
  %v3152 = vunpack.c.l.b16 %v3044
  %v3153 = vunpack.c.l.b16 %v3045
  %v3154 = vunpack.c.l.b16 %v3046
  %v3155 = vunpack.c.l.b16 %v3047
  %v3156 = vunpack.c.l.b16 %v3048
  %v3157 = vunpack.c.l.b16 %v3049
  %v3158 = vunpack.c.l.b16 %v3050
  %v3159 = vunpack.c.l.b16 %v3051
  %v3160 = vpack.c.b16 %v3112, %v3111
  %v3161 = vpack.c.b16 %v3114, %v3113
  %v3162 = vpack.c.b16 %v3116, %v3115
  %v3163 = vpack.c.b16 %v3118, %v3117
  %v3164 = vpack.c.b16 %v3120, %v3119
  %v3165 = vpack.c.b16 %v3122, %v3121
  %v3166 = vpack.c.b16 %v3124, %v3123
  %v3167 = vpack.c.b16 %v3126, %v3125
  %v3168 = vpack.c.b16 %v3128, %v3127
  %v3169 = vpack.c.b16 %v3130, %v3129
  %v3170 = vpack.c.b16 %v3132, %v3131
  %v3171 = vpack.c.b16 %v3134, %v3133
  %v3172 = vpack.c.b16 %v3136, %v3135
  %v3173 = vpack.c.b16 %v3138, %v3137
  %v3174 = vpack.c.b16 %v3140, %v3139
  %v3175 = vpack.c.b16 %v3142, %v3141
  %v3176 = vpack.c.b16 %v3144, %v3143
  %v3177 = vpack.c.b16 %v3146, %v3145
  %v3178 = vpack.c.b16 %v3148, %v3147
  %v3179 = vpack.c.b16 %v3150, %v3149
  %v3180 = vpack.c.b16 %v3152, %v3151
  %v3181 = vpack.c.b16 %v3154, %v3153
  %v3182 = vpack.c.b16 %v3156, %v3155
  %v3183 = vpack.c.b16 %v3158, %v3157
  %v3184 = vpack.c.b16 %v3159, %v3159
  %v3194 = vunpack.c.l.b16 %v3053
  %v3195 = vunpack.c.l.b16 %v3054
  %v3196 = vunpack.c.l.b16 %v3055
  %v3197 = vunpack.c.l.b16 %v3056
  %v3198 = vunpack.c.l.b16 %v3057
  %v3199 = vunpack.c.l.b16 %v3058
  %v3200 = vunpack.c.l.b16 %v3059
  %v3201 = vunpack.c.l.b16 %v3060
  %v3202 = vunpack.c.l.b16 %v3061
  %v3203 = vpack.c.b16 %v3195, %v3194
  %v3204 = vpack.c.b16 %v3197, %v3196
  %v3205 = vpack.c.b16 %v3199, %v3198
  %v3206 = vpack.c.b16 %v3201, %v3200
  %v3207 = vpack.c.b16 %v3202, %v3202
  %v3213 = vsel %vm226, %v3160, 0
  %v3216 = vsel %vm226, %v3161, 0
  %v3219 = vsel %vm226, %v3162, 0
  %v3222 = vsel %vm226, %v3163, 0
  %v3225 = vsel %vm226, %v3164, 0
  %v3228 = vsel %vm226, %v3165, 0
  %v3231 = vsel %vm226, %v3166, 0
  %v3234 = vsel %vm226, %v3167, 0
  %v3237 = vsel %vm226, %v3168, 0
  %v3240 = vsel %vm226, %v3169, 0
  %v3243 = vsel %vm226, %v3170, 0
  %v3246 = vsel %vm226, %v3171, 0
  %v3249 = vsel %vm226, %v3172, 0
  %v3252 = vsel %vm226, %v3173, 0
  %v3255 = vsel %vm226, %v3174, 0
  %v3258 = vsel %vm226, %v3175, 0
  %v3261 = vsel %vm226, %v3176, 0
  %v3264 = vsel %vm226, %v3177, 0
  %v3267 = vsel %vm226, %v3178, 0
  %v3270 = vsel %vm226, %v3179, 0
  %v3273 = vsel %vm226, %v3180, 0
  %v3276 = vsel %vm226, %v3181, 0
  %v3279 = vsel %vm226, %v3182, 0
  %v3282 = vsel %vm226, %v3183, 0
  %v3285 = vsel %vm226, %v3184, 0
  %v3288 = vsel %vm302, %v3207, 0
  %3290 = vmatprep.subr.bf16.mxu0 0
  %3291 = vmatpush1.bf16.msra.mxu0 0
  %3292 = vmatprep.subr.bf16.mxu0 0
  %3293 = vmatpush1.bf16.msra.mxu0 0
  %3294 = vmatprep.subr.bf16.mxu0 0
  %3295 = vmatpush1.bf16.msra.mxu0 0
  %3296 = vmatprep.subr.bf16.mxu0 0
  %3297 = vmatpush1.bf16.msra.mxu0 %v3288
  %3298 = vmatprep.subr.bf16.mxu0 0
  %3299 = vmatpush1.bf16.msra.mxu0 %v3206
  %3300 = vmatprep.subr.bf16.mxu0 0
  %3301 = vmatpush1.bf16.msra.mxu0 %v3205
  %3302 = vmatprep.subr.bf16.mxu0 0
  %3303 = vmatpush1.bf16.msra.mxu0 %v3204
  %3304 = vmatprep.subr.bf16.mxu0 0
  %3305 = vmatpush1.bf16.msra.mxu0 %v3203
  %3306 = vmatprep.subr.bf16.mxu0 0
  %3307 = vmatpush2.bf16.msra.mxu0 0
  %3308 = vmatprep.subr.bf16.mxu0 0
  %3309 = vmatpush2.bf16.msra.mxu0 0
  %3310 = vmatprep.subr.bf16.mxu0 0
  %3311 = vmatpush2.bf16.msra.mxu0 0
  %3312 = vmatprep.subr.bf16.mxu0 0
  %3313 = vmatpush2.bf16.msra.mxu0 0
  %3314 = vmatprep.subr.bf16.mxu0 0
  %3315 = vmatpush2.bf16.msra.mxu0 0
  %3316 = vmatprep.subr.bf16.mxu0 0
  %3317 = vmatpush2.bf16.msra.mxu0 0
  %3318 = vmatprep.subr.bf16.mxu0 0
  %3319 = vmatpush2.bf16.msra.mxu0 0
  %3320 = vmatprep.subr.bf16.mxu0 0
  %3321 = vmatpush2.bf16.msra.mxu0 0
  %3322 = vmatprep.mubr.bf16.mxu0 0
  %3323 = vmatmul.mubr.bf16.gmra.mxu0 %v3213
  %v3324 = vpop.f32.mrf.mxu0
  %v3325 = vadd.f32 0.0, %v3324
  %v3326 = vpop.f32.mrf.mxu0
  %v3327 = vpop.f32.mrf.mxu0
  %v3328 = vadd.f32 0.0, %v3327
  %v3329 = vpop.f32.mrf.mxu0
  %3330 = vmatprep.mubr.bf16.mxu0 0
  %3331 = vmatmul.mubr.bf16.gmra.mxu0 %v3216
  %v3332 = vpop.f32.mrf.mxu0
  %v3333 = vadd.f32 0.0, %v3332
  %v3334 = vpop.f32.mrf.mxu0
  %v3335 = vpop.f32.mrf.mxu0
  %v3336 = vadd.f32 0.0, %v3335
  %v3337 = vpop.f32.mrf.mxu0
  %3338 = vmatprep.mubr.bf16.mxu0 0
  %3339 = vmatmul.mubr.bf16.gmra.mxu0 %v3219
  %v3340 = vpop.f32.mrf.mxu0
  %v3341 = vadd.f32 0.0, %v3340
  %v3342 = vpop.f32.mrf.mxu0
  %v3343 = vpop.f32.mrf.mxu0
  %v3344 = vadd.f32 0.0, %v3343
  %v3345 = vpop.f32.mrf.mxu0
  %3346 = vmatprep.mubr.bf16.mxu0 0
  %3347 = vmatmul.mubr.bf16.gmra.mxu0 %v3222
  %v3348 = vpop.f32.mrf.mxu0
  %v3349 = vadd.f32 0.0, %v3348
  %v3350 = vpop.f32.mrf.mxu0
  %v3351 = vpop.f32.mrf.mxu0
  %v3352 = vadd.f32 0.0, %v3351
  %v3353 = vpop.f32.mrf.mxu0
  %3354 = vmatprep.mubr.bf16.mxu0 0
  %3355 = vmatmul.mubr.bf16.gmra.mxu0 %v3225
  %v3356 = vpop.f32.mrf.mxu0
  %v3357 = vadd.f32 0.0, %v3356
  %v3358 = vpop.f32.mrf.mxu0
  %v3359 = vpop.f32.mrf.mxu0
  %v3360 = vadd.f32 0.0, %v3359
  %v3361 = vpop.f32.mrf.mxu0
  %3362 = vmatprep.mubr.bf16.mxu0 0
  %3363 = vmatmul.mubr.bf16.gmra.mxu0 %v3228
  %v3364 = vpop.f32.mrf.mxu0
  %v3365 = vadd.f32 0.0, %v3364
  %v3366 = vpop.f32.mrf.mxu0
  %v3367 = vpop.f32.mrf.mxu0
  %v3368 = vadd.f32 0.0, %v3367
  %v3369 = vpop.f32.mrf.mxu0
  %3370 = vmatprep.mubr.bf16.mxu0 0
  %3371 = vmatmul.mubr.bf16.gmra.mxu0 %v3231
  %v3372 = vpop.f32.mrf.mxu0
  %v3373 = vadd.f32 0.0, %v3372
  %v3374 = vpop.f32.mrf.mxu0
  %v3375 = vpop.f32.mrf.mxu0
  %v3376 = vadd.f32 0.0, %v3375
  %v3377 = vpop.f32.mrf.mxu0
  %3378 = vmatprep.mubr.bf16.mxu0 0
  %3379 = vmatmul.mubr.bf16.gmra.mxu0 %v3234
  %v3380 = vpop.f32.mrf.mxu0
  %v3381 = vadd.f32 0.0, %v3380
  %v3382 = vpop.f32.mrf.mxu0
  %v3383 = vpop.f32.mrf.mxu0
  %v3384 = vadd.f32 0.0, %v3383
  %v3385 = vpop.f32.mrf.mxu0
  %3386 = vmatprep.mubr.bf16.mxu0 0
  %3387 = vmatmul.mubr.bf16.gmra.mxu0 %v3237
  %v3388 = vpop.f32.mrf.mxu0
  %v3389 = vadd.f32 0.0, %v3388
  %v3390 = vpop.f32.mrf.mxu0
  %v3391 = vpop.f32.mrf.mxu0
  %v3392 = vadd.f32 0.0, %v3391
  %v3393 = vpop.f32.mrf.mxu0
  %3394 = vmatprep.mubr.bf16.mxu0 0
  %3395 = vmatmul.mubr.bf16.gmra.mxu0 %v3240
  %v3396 = vpop.f32.mrf.mxu0
  %v3397 = vadd.f32 0.0, %v3396
  %v3398 = vpop.f32.mrf.mxu0
  %v3399 = vpop.f32.mrf.mxu0
  %v3400 = vadd.f32 0.0, %v3399
  %v3401 = vpop.f32.mrf.mxu0
  %3402 = vmatprep.mubr.bf16.mxu0 0
  %3403 = vmatmul.mubr.bf16.gmra.mxu0 %v3243
  %v3404 = vpop.f32.mrf.mxu0
  %v3405 = vadd.f32 0.0, %v3404
  %v3406 = vpop.f32.mrf.mxu0
  %v3407 = vpop.f32.mrf.mxu0
  %v3408 = vadd.f32 0.0, %v3407
  %v3409 = vpop.f32.mrf.mxu0
  %3410 = vmatprep.mubr.bf16.mxu0 0
  %3411 = vmatmul.mubr.bf16.gmra.mxu0 %v3246
  %v3412 = vpop.f32.mrf.mxu0
  %v3413 = vadd.f32 0.0, %v3412
  %v3414 = vpop.f32.mrf.mxu0
  %v3415 = vpop.f32.mrf.mxu0
  %v3416 = vadd.f32 0.0, %v3415
  %v3417 = vpop.f32.mrf.mxu0
  %3418 = vmatprep.mubr.bf16.mxu0 0
  %3419 = vmatmul.mubr.bf16.gmra.mxu0 %v3249
  %v3420 = vpop.f32.mrf.mxu0
  %v3421 = vadd.f32 0.0, %v3420
  %v3422 = vpop.f32.mrf.mxu0
  %v3423 = vpop.f32.mrf.mxu0
  %v3424 = vadd.f32 0.0, %v3423
  %v3425 = vpop.f32.mrf.mxu0
  %3426 = vmatprep.mubr.bf16.mxu0 0
  %3427 = vmatmul.mubr.bf16.gmra.mxu0 %v3252
  %v3428 = vpop.f32.mrf.mxu0
  %v3429 = vadd.f32 0.0, %v3428
  %v3430 = vpop.f32.mrf.mxu0
  %v3431 = vpop.f32.mrf.mxu0
  %v3432 = vadd.f32 0.0, %v3431
  %v3433 = vpop.f32.mrf.mxu0
  %3434 = vmatprep.mubr.bf16.mxu0 0
  %3435 = vmatmul.mubr.bf16.gmra.mxu0 %v3255
  %v3436 = vpop.f32.mrf.mxu0
  %v3437 = vadd.f32 0.0, %v3436
  %v3438 = vpop.f32.mrf.mxu0
  %v3439 = vpop.f32.mrf.mxu0
  %v3440 = vadd.f32 0.0, %v3439
  %v3441 = vpop.f32.mrf.mxu0
  %3442 = vmatprep.mubr.bf16.mxu0 0
  %3443 = vmatmul.mubr.bf16.gmra.mxu0 %v3258
  %v3444 = vpop.f32.mrf.mxu0
  %v3445 = vadd.f32 0.0, %v3444
  %v3446 = vpop.f32.mrf.mxu0
  %v3447 = vpop.f32.mrf.mxu0
  %v3448 = vadd.f32 0.0, %v3447
  %v3449 = vpop.f32.mrf.mxu0
  %3450 = vmatprep.mubr.bf16.mxu0 0
  %3451 = vmatmul.mubr.bf16.gmra.mxu0 %v3261
  %v3452 = vpop.f32.mrf.mxu0
  %v3453 = vadd.f32 0.0, %v3452
  %v3454 = vpop.f32.mrf.mxu0
  %v3455 = vpop.f32.mrf.mxu0
  %v3456 = vadd.f32 0.0, %v3455
  %v3457 = vpop.f32.mrf.mxu0
  %3458 = vmatprep.mubr.bf16.mxu0 0
  %3459 = vmatmul.mubr.bf16.gmra.mxu0 %v3264
  %v3460 = vpop.f32.mrf.mxu0
  %v3461 = vadd.f32 0.0, %v3460
  %v3462 = vpop.f32.mrf.mxu0
  %v3463 = vpop.f32.mrf.mxu0
  %v3464 = vadd.f32 0.0, %v3463
  %v3465 = vpop.f32.mrf.mxu0
  %3466 = vmatprep.mubr.bf16.mxu0 0
  %3467 = vmatmul.mubr.bf16.gmra.mxu0 %v3267
  %v3468 = vpop.f32.mrf.mxu0
  %v3469 = vadd.f32 0.0, %v3468
  %v3470 = vpop.f32.mrf.mxu0
  %v3471 = vpop.f32.mrf.mxu0
  %v3472 = vadd.f32 0.0, %v3471
  %v3473 = vpop.f32.mrf.mxu0
  %3474 = vmatprep.mubr.bf16.mxu0 0
  %3475 = vmatmul.mubr.bf16.gmra.mxu0 %v3270
  %v3476 = vpop.f32.mrf.mxu0
  %v3477 = vadd.f32 0.0, %v3476
  %v3478 = vpop.f32.mrf.mxu0
  %v3479 = vpop.f32.mrf.mxu0
  %v3480 = vadd.f32 0.0, %v3479
  %v3481 = vpop.f32.mrf.mxu0
  %3482 = vmatprep.mubr.bf16.mxu0 0
  %3483 = vmatmul.mubr.bf16.gmra.mxu0 %v3273
  %v3484 = vpop.f32.mrf.mxu0
  %v3485 = vadd.f32 0.0, %v3484
  %v3486 = vpop.f32.mrf.mxu0
  %v3487 = vpop.f32.mrf.mxu0
  %v3488 = vadd.f32 0.0, %v3487
  %v3489 = vpop.f32.mrf.mxu0
  %3490 = vmatprep.mubr.bf16.mxu0 0
  %3491 = vmatmul.mubr.bf16.gmra.mxu0 %v3276
  %v3492 = vpop.f32.mrf.mxu0
  %v3493 = vadd.f32 0.0, %v3492
  %v3494 = vpop.f32.mrf.mxu0
  %v3495 = vpop.f32.mrf.mxu0
  %v3496 = vadd.f32 0.0, %v3495
  %v3497 = vpop.f32.mrf.mxu0
  %3498 = vmatprep.mubr.bf16.mxu0 0
  %3499 = vmatmul.mubr.bf16.gmra.mxu0 %v3279
  %v3500 = vpop.f32.mrf.mxu0
  %v3501 = vadd.f32 0.0, %v3500
  %v3502 = vpop.f32.mrf.mxu0
  %v3503 = vpop.f32.mrf.mxu0
  %v3504 = vadd.f32 0.0, %v3503
  %v3505 = vpop.f32.mrf.mxu0
  %3506 = vmatprep.mubr.bf16.mxu0 0
  %3507 = vmatmul.mubr.bf16.gmra.mxu0 %v3282
  %v3508 = vpop.f32.mrf.mxu0
  %v3509 = vadd.f32 0.0, %v3508
  %v3510 = vpop.f32.mrf.mxu0
  %v3511 = vpop.f32.mrf.mxu0
  %v3512 = vadd.f32 0.0, %v3511
  %v3513 = vpop.f32.mrf.mxu0
  %3514 = vmatprep.mubr.bf16.mxu0 0
  %3515 = vmatmul.mubr.bf16.gmra.mxu0 %v3285
  %v3516 = vpop.f32.mrf.mxu0
  %v3517 = vadd.f32 0.0, %v3516
  %v3518 = vpop.f32.mrf.mxu0
  %v3519 = vpop.f32.mrf.mxu0
  %v3520 = vpop.f32.mrf.mxu0
  %3521 = vdwg.mxu0
  %s3522 = scalar_lea.vmem %s2, 3
  %v3523 = vld [vmem:[%s3522] sm:$0x1]
  %v3525 = vlaneseq
  %v3526 = vshrl.u32 %v3525, 7
  %v3527 = vsub.s32 0, %v3526
  %v3528 = vrot.slane %v3523, %v3527
  %v3530 = vmul.f32 %v3325, %v3528
  %v3531 = vmul.f32 %v3328, %v3528
  %v3532 = vmul.f32 %v3333, %v3528
  %v3533 = vmul.f32 %v3336, %v3528
  %v3534 = vmul.f32 %v3341, %v3528
  %v3535 = vmul.f32 %v3344, %v3528
  %v3536 = vmul.f32 %v3349, %v3528
  %v3537 = vmul.f32 %v3352, %v3528
  %v3538 = vmul.f32 %v3357, %v3528
  %v3539 = vmul.f32 %v3360, %v3528
  %v3540 = vmul.f32 %v3365, %v3528
  %v3541 = vmul.f32 %v3368, %v3528
  %v3542 = vmul.f32 %v3373, %v3528
  %v3543 = vmul.f32 %v3376, %v3528
  %v3544 = vmul.f32 %v3381, %v3528
  %v3545 = vmul.f32 %v3384, %v3528
  %v3546 = vmul.f32 %v3389, %v3528
  %v3547 = vmul.f32 %v3392, %v3528
  %v3548 = vmul.f32 %v3397, %v3528
  %v3549 = vmul.f32 %v3400, %v3528
  %v3550 = vmul.f32 %v3405, %v3528
  %v3551 = vmul.f32 %v3408, %v3528
  %v3552 = vmul.f32 %v3413, %v3528
  %v3553 = vmul.f32 %v3416, %v3528
  %v3554 = vmul.f32 %v3421, %v3528
  %v3555 = vmul.f32 %v3424, %v3528
  %v3556 = vmul.f32 %v3429, %v3528
  %v3557 = vmul.f32 %v3432, %v3528
  %v3558 = vmul.f32 %v3437, %v3528
  %v3559 = vmul.f32 %v3440, %v3528
  %v3560 = vmul.f32 %v3445, %v3528
  %v3561 = vmul.f32 %v3448, %v3528
  %v3562 = vmul.f32 %v3453, %v3528
  %v3563 = vmul.f32 %v3456, %v3528
  %v3564 = vmul.f32 %v3461, %v3528
  %v3565 = vmul.f32 %v3464, %v3528
  %v3566 = vmul.f32 %v3469, %v3528
  %v3567 = vmul.f32 %v3472, %v3528
  %v3568 = vmul.f32 %v3477, %v3528
  %v3569 = vmul.f32 %v3480, %v3528
  %v3570 = vmul.f32 %v3485, %v3528
  %v3571 = vmul.f32 %v3488, %v3528
  %v3572 = vmul.f32 %v3493, %v3528
  %v3573 = vmul.f32 %v3496, %v3528
  %v3574 = vmul.f32 %v3501, %v3528
  %v3575 = vmul.f32 %v3504, %v3528
  %v3576 = vmul.f32 %v3509, %v3528
  %v3577 = vmul.f32 %v3512, %v3528
  %v3578 = vmul.f32 %v3517, %v3528
  %s3579 = scalar_lea.vmem %s3, 3
  %v3580 = vld [vmem:[%s3579] sm:$0x1]
  %v3582 = vlaneseq
  %v3583 = vshrl.u32 %v3582, 7
  %v3584 = vsub.s32 0, %v3583
  %v3585 = vrot.slane %v3580, %v3584
  %v3587 = vadd.f32 %v3530, %v3585
  %v3588 = vadd.f32 %v3531, %v3585
  %v3589 = vadd.f32 %v3532, %v3585
  %v3590 = vadd.f32 %v3533, %v3585
  %v3591 = vadd.f32 %v3534, %v3585
  %v3592 = vadd.f32 %v3535, %v3585
  %v3593 = vadd.f32 %v3536, %v3585
  %v3594 = vadd.f32 %v3537, %v3585
  %v3595 = vadd.f32 %v3538, %v3585
  %v3596 = vadd.f32 %v3539, %v3585
  %v3597 = vadd.f32 %v3540, %v3585
  %v3598 = vadd.f32 %v3541, %v3585
  %v3599 = vadd.f32 %v3542, %v3585
  %v3600 = vadd.f32 %v3543, %v3585
  %v3601 = vadd.f32 %v3544, %v3585
  %v3602 = vadd.f32 %v3545, %v3585
  %v3603 = vadd.f32 %v3546, %v3585
  %v3604 = vadd.f32 %v3547, %v3585
  %v3605 = vadd.f32 %v3548, %v3585
  %v3606 = vadd.f32 %v3549, %v3585
  %v3607 = vadd.f32 %v3550, %v3585
  %v3608 = vadd.f32 %v3551, %v3585
  %v3609 = vadd.f32 %v3552, %v3585
  %v3610 = vadd.f32 %v3553, %v3585
  %v3611 = vadd.f32 %v3554, %v3585
  %v3612 = vadd.f32 %v3555, %v3585
  %v3613 = vadd.f32 %v3556, %v3585
  %v3614 = vadd.f32 %v3557, %v3585
  %v3615 = vadd.f32 %v3558, %v3585
  %v3616 = vadd.f32 %v3559, %v3585
  %v3617 = vadd.f32 %v3560, %v3585
  %v3618 = vadd.f32 %v3561, %v3585
  %v3619 = vadd.f32 %v3562, %v3585
  %v3620 = vadd.f32 %v3563, %v3585
  %v3621 = vadd.f32 %v3564, %v3585
  %v3622 = vadd.f32 %v3565, %v3585
  %v3623 = vadd.f32 %v3566, %v3585
  %v3624 = vadd.f32 %v3567, %v3585
  %v3625 = vadd.f32 %v3568, %v3585
  %v3626 = vadd.f32 %v3569, %v3585
  %v3627 = vadd.f32 %v3570, %v3585
  %v3628 = vadd.f32 %v3571, %v3585
  %v3629 = vadd.f32 %v3572, %v3585
  %v3630 = vadd.f32 %v3573, %v3585
  %v3631 = vadd.f32 %v3574, %v3585
  %v3632 = vadd.f32 %v3575, %v3585
  %v3633 = vadd.f32 %v3576, %v3585
  %v3634 = vadd.f32 %v3577, %v3585
  %v3635 = vadd.f32 %v3578, %v3585
  %v3636 = vmax.f32 %v3587, 0.0
  %v3637 = vmax.f32 %v3588, 0.0
  %v3638 = vmax.f32 %v3589, 0.0
  %v3639 = vmax.f32 %v3590, 0.0
  %v3640 = vmax.f32 %v3591, 0.0
  %v3641 = vmax.f32 %v3592, 0.0
  %v3642 = vmax.f32 %v3593, 0.0
  %v3643 = vmax.f32 %v3594, 0.0
  %v3644 = vmax.f32 %v3595, 0.0
  %v3645 = vmax.f32 %v3596, 0.0
  %v3646 = vmax.f32 %v3597, 0.0
  %v3647 = vmax.f32 %v3598, 0.0
  %v3648 = vmax.f32 %v3599, 0.0
  %v3649 = vmax.f32 %v3600, 0.0
  %v3650 = vmax.f32 %v3601, 0.0
  %v3651 = vmax.f32 %v3602, 0.0
  %v3652 = vmax.f32 %v3603, 0.0
  %v3653 = vmax.f32 %v3604, 0.0
  %v3654 = vmax.f32 %v3605, 0.0
  %v3655 = vmax.f32 %v3606, 0.0
  %v3656 = vmax.f32 %v3607, 0.0
  %v3657 = vmax.f32 %v3608, 0.0
  %v3658 = vmax.f32 %v3609, 0.0
  %v3659 = vmax.f32 %v3610, 0.0
  %v3660 = vmax.f32 %v3611, 0.0
  %v3661 = vmax.f32 %v3612, 0.0
  %v3662 = vmax.f32 %v3613, 0.0
  %v3663 = vmax.f32 %v3614, 0.0
  %v3664 = vmax.f32 %v3615, 0.0
  %v3665 = vmax.f32 %v3616, 0.0
  %v3666 = vmax.f32 %v3617, 0.0
  %v3667 = vmax.f32 %v3618, 0.0
  %v3668 = vmax.f32 %v3619, 0.0
  %v3669 = vmax.f32 %v3620, 0.0
  %v3670 = vmax.f32 %v3621, 0.0
  %v3671 = vmax.f32 %v3622, 0.0
  %v3672 = vmax.f32 %v3623, 0.0
  %v3673 = vmax.f32 %v3624, 0.0
  %v3674 = vmax.f32 %v3625, 0.0
  %v3675 = vmax.f32 %v3626, 0.0
  %v3676 = vmax.f32 %v3627, 0.0
  %v3677 = vmax.f32 %v3628, 0.0
  %v3678 = vmax.f32 %v3629, 0.0
  %v3679 = vmax.f32 %v3630, 0.0
  %v3680 = vmax.f32 %v3631, 0.0
  %v3681 = vmax.f32 %v3632, 0.0
  %v3682 = vmax.f32 %v3633, 0.0
  %v3683 = vmax.f32 %v3634, 0.0
  %v3684 = vmax.f32 %v3635, 0.0
  %v3685 = vpack.c.bf16 %v3637, %v3636
  %v3686 = vpack.c.bf16 %v3639, %v3638
  %v3687 = vpack.c.bf16 %v3641, %v3640
  %v3688 = vpack.c.bf16 %v3643, %v3642
  %v3689 = vpack.c.bf16 %v3645, %v3644
  %v3690 = vpack.c.bf16 %v3647, %v3646
  %v3691 = vpack.c.bf16 %v3649, %v3648
  %v3692 = vpack.c.bf16 %v3651, %v3650
  %v3693 = vpack.c.bf16 %v3653, %v3652
  %v3694 = vpack.c.bf16 %v3655, %v3654
  %v3695 = vpack.c.bf16 %v3657, %v3656
  %v3696 = vpack.c.bf16 %v3659, %v3658
  %v3697 = vpack.c.bf16 %v3661, %v3660
  %v3698 = vpack.c.bf16 %v3663, %v3662
  %v3699 = vpack.c.bf16 %v3665, %v3664
  %v3700 = vpack.c.bf16 %v3667, %v3666
  %v3701 = vpack.c.bf16 %v3669, %v3668
  %v3702 = vpack.c.bf16 %v3671, %v3670
  %v3703 = vpack.c.bf16 %v3673, %v3672
  %v3704 = vpack.c.bf16 %v3675, %v3674
  %v3705 = vpack.c.bf16 %v3677, %v3676
  %v3706 = vpack.c.bf16 %v3679, %v3678
  %v3707 = vpack.c.bf16 %v3681, %v3680
  %v3708 = vpack.c.bf16 %v3683, %v3682
  %v3709 = vpack.c.bf16 %v3684, %v3684
  %v3735 = vunpack.c.l.b16 %v3685
  %v3736 = vunpack.c.h.b16 %v3685
  %v3737 = vunpack.c.l.b16 %v3686
  %v3738 = vunpack.c.h.b16 %v3686
  %v3739 = vunpack.c.l.b16 %v3687
  %v3740 = vunpack.c.h.b16 %v3687
  %v3741 = vunpack.c.l.b16 %v3688
  %v3742 = vunpack.c.h.b16 %v3688
  %v3743 = vunpack.c.l.b16 %v3689
  %v3744 = vunpack.c.h.b16 %v3689
  %v3745 = vunpack.c.l.b16 %v3690
  %v3746 = vunpack.c.h.b16 %v3690
  %v3747 = vunpack.c.l.b16 %v3691
  %v3748 = vunpack.c.h.b16 %v3691
  %v3749 = vunpack.c.l.b16 %v3692
  %v3750 = vunpack.c.h.b16 %v3692
  %v3751 = vunpack.c.l.b16 %v3693
  %v3752 = vunpack.c.h.b16 %v3693
  %v3753 = vunpack.c.l.b16 %v3694
  %v3754 = vunpack.c.h.b16 %v3694
  %v3755 = vunpack.c.l.b16 %v3695
  %v3756 = vunpack.c.h.b16 %v3695
  %v3757 = vunpack.c.l.b16 %v3696
  %v3758 = vunpack.c.h.b16 %v3696
  %v3759 = vunpack.c.l.b16 %v3697
  %v3760 = vunpack.c.h.b16 %v3697
  %v3761 = vunpack.c.l.b16 %v3698
  %v3762 = vunpack.c.h.b16 %v3698
  %v3763 = vunpack.c.l.b16 %v3699
  %v3764 = vunpack.c.h.b16 %v3699
  %v3765 = vunpack.c.l.b16 %v3700
  %v3766 = vunpack.c.h.b16 %v3700
  %v3767 = vunpack.c.l.b16 %v3701
  %v3768 = vunpack.c.h.b16 %v3701
  %v3769 = vunpack.c.l.b16 %v3702
  %v3770 = vunpack.c.h.b16 %v3702
  %v3771 = vunpack.c.l.b16 %v3703
  %v3772 = vunpack.c.h.b16 %v3703
  %v3773 = vunpack.c.l.b16 %v3704
  %v3774 = vunpack.c.h.b16 %v3704
  %v3775 = vunpack.c.l.b16 %v3705
  %v3776 = vunpack.c.h.b16 %v3705
  %v3777 = vunpack.c.l.b16 %v3706
  %v3778 = vunpack.c.h.b16 %v3706
  %v3779 = vunpack.c.l.b16 %v3707
  %v3780 = vunpack.c.h.b16 %v3707
  %v3781 = vunpack.c.l.b16 %v3708
  %v3782 = vunpack.c.h.b16 %v3708
  %v3783 = vunpack.c.l.b16 %v3709
  %v3784 = vpack.c.b16 %v3735, %v3735
  %v3785 = vpack.c.b16 %v3736, %v3736
  %v3786 = vpack.c.b16 %v3737, %v3737
  %v3787 = vpack.c.b16 %v3738, %v3738
  %v3788 = vpack.c.b16 %v3739, %v3739
  %v3789 = vpack.c.b16 %v3740, %v3740
  %v3790 = vpack.c.b16 %v3741, %v3741
  %v3791 = vpack.c.b16 %v3742, %v3742
  %v3792 = vpack.c.b16 %v3743, %v3743
  %v3793 = vpack.c.b16 %v3744, %v3744
  %v3794 = vpack.c.b16 %v3745, %v3745
  %v3795 = vpack.c.b16 %v3746, %v3746
  %v3796 = vpack.c.b16 %v3747, %v3747
  %v3797 = vpack.c.b16 %v3748, %v3748
  %v3798 = vpack.c.b16 %v3749, %v3749
  %v3799 = vpack.c.b16 %v3750, %v3750
  %v3800 = vpack.c.b16 %v3751, %v3751
  %v3801 = vpack.c.b16 %v3752, %v3752
  %v3802 = vpack.c.b16 %v3753, %v3753
  %v3803 = vpack.c.b16 %v3754, %v3754
  %v3804 = vpack.c.b16 %v3755, %v3755
  %v3805 = vpack.c.b16 %v3756, %v3756
  %v3806 = vpack.c.b16 %v3757, %v3757
  %v3807 = vpack.c.b16 %v3758, %v3758
  %v3808 = vpack.c.b16 %v3759, %v3759
  %v3809 = vpack.c.b16 %v3760, %v3760
  %v3810 = vpack.c.b16 %v3761, %v3761
  %v3811 = vpack.c.b16 %v3762, %v3762
  %v3812 = vpack.c.b16 %v3763, %v3763
  %v3813 = vpack.c.b16 %v3764, %v3764
  %v3814 = vpack.c.b16 %v3765, %v3765
  %v3815 = vpack.c.b16 %v3766, %v3766
  %v3816 = vpack.c.b16 %v3767, %v3767
  %v3817 = vpack.c.b16 %v3768, %v3768
  %v3818 = vpack.c.b16 %v3769, %v3769
  %v3819 = vpack.c.b16 %v3770, %v3770
  %v3820 = vpack.c.b16 %v3771, %v3771
  %v3821 = vpack.c.b16 %v3772, %v3772
  %v3822 = vpack.c.b16 %v3773, %v3773
  %v3823 = vpack.c.b16 %v3774, %v3774
  %v3824 = vpack.c.b16 %v3775, %v3775
  %v3825 = vpack.c.b16 %v3776, %v3776
  %v3826 = vpack.c.b16 %v3777, %v3777
  %v3827 = vpack.c.b16 %v3778, %v3778
  %v3828 = vpack.c.b16 %v3779, %v3779
  %v3829 = vpack.c.b16 %v3780, %v3780
  %v3830 = vpack.c.b16 %v3781, %v3781
  %v3831 = vpack.c.b16 %v3782, %v3782
  %v3832 = vpack.c.b16 %v3783, %v3783
  %3833 = vrot.lane.b32.xlu0 %v3784, 24
  %v3834 = vpop.permute.xlu0 %3833
  %3835 = vrot.lane.b32.xlu0 %v3785, 24
  %v3836 = vpop.permute.xlu0 %3835
  %3837 = vrot.lane.b32.xlu0 %v3786, 24
  %v3838 = vpop.permute.xlu0 %3837
  %3839 = vrot.lane.b32.xlu0 %v3787, 24
  %v3840 = vpop.permute.xlu0 %3839
  %3841 = vrot.lane.b32.xlu0 %v3788, 24
  %v3842 = vpop.permute.xlu0 %3841
  %3843 = vrot.lane.b32.xlu0 %v3789, 24
  %v3844 = vpop.permute.xlu0 %3843
  %3845 = vrot.lane.b32.xlu0 %v3790, 24
  %v3846 = vpop.permute.xlu0 %3845
  %3847 = vrot.lane.b32.xlu0 %v3791, 24
  %v3848 = vpop.permute.xlu0 %3847
  %3849 = vrot.lane.b32.xlu0 %v3792, 24
  %v3850 = vpop.permute.xlu0 %3849
  %3851 = vrot.lane.b32.xlu0 %v3793, 24
  %v3852 = vpop.permute.xlu0 %3851
  %3853 = vrot.lane.b32.xlu0 %v3794, 24
  %v3854 = vpop.permute.xlu0 %3853
  %3855 = vrot.lane.b32.xlu0 %v3795, 24
  %v3856 = vpop.permute.xlu0 %3855
  %3857 = vrot.lane.b32.xlu0 %v3796, 24
  %v3858 = vpop.permute.xlu0 %3857
  %3859 = vrot.lane.b32.xlu0 %v3797, 24
  %v3860 = vpop.permute.xlu0 %3859
  %3861 = vrot.lane.b32.xlu0 %v3798, 24
  %v3862 = vpop.permute.xlu0 %3861
  %3863 = vrot.lane.b32.xlu0 %v3799, 24
  %v3864 = vpop.permute.xlu0 %3863
  %3865 = vrot.lane.b32.xlu0 %v3800, 24
  %v3866 = vpop.permute.xlu0 %3865
  %3867 = vrot.lane.b32.xlu0 %v3801, 24
  %v3868 = vpop.permute.xlu0 %3867
  %3869 = vrot.lane.b32.xlu0 %v3802, 24
  %v3870 = vpop.permute.xlu0 %3869
  %3871 = vrot.lane.b32.xlu0 %v3803, 24
  %v3872 = vpop.permute.xlu0 %3871
  %3873 = vrot.lane.b32.xlu0 %v3804, 24
  %v3874 = vpop.permute.xlu0 %3873
  %3875 = vrot.lane.b32.xlu0 %v3805, 24
  %v3876 = vpop.permute.xlu0 %3875
  %3877 = vrot.lane.b32.xlu0 %v3806, 24
  %v3878 = vpop.permute.xlu0 %3877
  %3879 = vrot.lane.b32.xlu0 %v3807, 24
  %v3880 = vpop.permute.xlu0 %3879
  %3881 = vrot.lane.b32.xlu0 %v3808, 24
  %v3882 = vpop.permute.xlu0 %3881
  %3883 = vrot.lane.b32.xlu0 %v3809, 24
  %v3884 = vpop.permute.xlu0 %3883
  %3885 = vrot.lane.b32.xlu0 %v3810, 24
  %v3886 = vpop.permute.xlu0 %3885
  %3887 = vrot.lane.b32.xlu0 %v3811, 24
  %v3888 = vpop.permute.xlu0 %3887
  %3889 = vrot.lane.b32.xlu0 %v3812, 24
  %v3890 = vpop.permute.xlu0 %3889
  %3891 = vrot.lane.b32.xlu0 %v3813, 24
  %v3892 = vpop.permute.xlu0 %3891
  %3893 = vrot.lane.b32.xlu0 %v3814, 24
  %v3894 = vpop.permute.xlu0 %3893
  %3895 = vrot.lane.b32.xlu0 %v3815, 24
  %v3896 = vpop.permute.xlu0 %3895
  %3897 = vrot.lane.b32.xlu0 %v3816, 24
  %v3898 = vpop.permute.xlu0 %3897
  %3899 = vrot.lane.b32.xlu0 %v3817, 24
  %v3900 = vpop.permute.xlu0 %3899
  %3901 = vrot.lane.b32.xlu0 %v3818, 24
  %v3902 = vpop.permute.xlu0 %3901
  %3903 = vrot.lane.b32.xlu0 %v3819, 24
  %v3904 = vpop.permute.xlu0 %3903
  %3905 = vrot.lane.b32.xlu0 %v3820, 24
  %v3906 = vpop.permute.xlu0 %3905
  %3907 = vrot.lane.b32.xlu0 %v3821, 24
  %v3908 = vpop.permute.xlu0 %3907
  %3909 = vrot.lane.b32.xlu0 %v3822, 24
  %v3910 = vpop.permute.xlu0 %3909
  %3911 = vrot.lane.b32.xlu0 %v3823, 24
  %v3912 = vpop.permute.xlu0 %3911
  %3913 = vrot.lane.b32.xlu0 %v3824, 24
  %v3914 = vpop.permute.xlu0 %3913
  %3915 = vrot.lane.b32.xlu0 %v3825, 24
  %v3916 = vpop.permute.xlu0 %3915
  %3917 = vrot.lane.b32.xlu0 %v3826, 24
  %v3918 = vpop.permute.xlu0 %3917
  %3919 = vrot.lane.b32.xlu0 %v3827, 24
  %v3920 = vpop.permute.xlu0 %3919
  %3921 = vrot.lane.b32.xlu0 %v3828, 24
  %v3922 = vpop.permute.xlu0 %3921
  %3923 = vrot.lane.b32.xlu0 %v3829, 24
  %v3924 = vpop.permute.xlu0 %3923
  %3925 = vrot.lane.b32.xlu0 %v3830, 24
  %v3926 = vpop.permute.xlu0 %3925
  %3927 = vrot.lane.b32.xlu0 %v3831, 24
  %v3928 = vpop.permute.xlu0 %3927
  %3929 = vrot.lane.b32.xlu0 %v3832, 24
  %v3930 = vpop.permute.xlu0 %3929
  %vm3980 = vcmask 257216
  %3981 = vst.msk [vmem:[%s4] sm:$0xf] %vm3980, %v3834
  %3982 = vst.msk [vmem:[%s4 + $0x4] sm:$0xf] %vm3980, %v3836
  %3983 = vst.msk [vmem:[%s4 + $0x8] sm:$0xf] %vm3980, %v3838
  %3984 = vst.msk [vmem:[%s4 + $0xc] sm:$0xf] %vm3980, %v3840
  %3985 = vst.msk [vmem:[%s4 + $0x10] sm:$0xf] %vm3980, %v3842
  %3986 = vst.msk [vmem:[%s4 + $0x14] sm:$0xf] %vm3980, %v3844
  %3987 = vst.msk [vmem:[%s4 + $0x18] sm:$0xf] %vm3980, %v3846
  %3988 = vst.msk [vmem:[%s4 + $0x1c] sm:$0xf] %vm3980, %v3848
  %3989 = vst.msk [vmem:[%s4 + $0x20] sm:$0xf] %vm3980, %v3850
  %3990 = vst.msk [vmem:[%s4 + $0x24] sm:$0xf] %vm3980, %v3852
  %3991 = vst.msk [vmem:[%s4 + $0x28] sm:$0xf] %vm3980, %v3854
  %3992 = vst.msk [vmem:[%s4 + $0x2c] sm:$0xf] %vm3980, %v3856
  %3993 = vst.msk [vmem:[%s4 + $0x30] sm:$0xf] %vm3980, %v3858
  %3994 = vst.msk [vmem:[%s4 + $0x34] sm:$0xf] %vm3980, %v3860
  %3995 = vst.msk [vmem:[%s4 + $0x38] sm:$0xf] %vm3980, %v3862
  %3996 = vst.msk [vmem:[%s4 + $0x3c] sm:$0xf] %vm3980, %v3864
  %3997 = vst.msk [vmem:[%s4 + $0x40] sm:$0xf] %vm3980, %v3866
  %3998 = vst.msk [vmem:[%s4 + $0x44] sm:$0xf] %vm3980, %v3868
  %3999 = vst.msk [vmem:[%s4 + $0x48] sm:$0xf] %vm3980, %v3870
  %4000 = vst.msk [vmem:[%s4 + $0x4c] sm:$0xf] %vm3980, %v3872
  %4001 = vst.msk [vmem:[%s4 + $0x50] sm:$0xf] %vm3980, %v3874
  %4002 = vst.msk [vmem:[%s4 + $0x54] sm:$0xf] %vm3980, %v3876
  %4003 = vst.msk [vmem:[%s4 + $0x58] sm:$0xf] %vm3980, %v3878
  %4004 = vst.msk [vmem:[%s4 + $0x5c] sm:$0xf] %vm3980, %v3880
  %4005 = vst.msk [vmem:[%s4 + $0x60] sm:$0xf] %vm3980, %v3882
  %4006 = vst.msk [vmem:[%s4 + $0x64] sm:$0xf] %vm3980, %v3884
  %4007 = vst.msk [vmem:[%s4 + $0x68] sm:$0xf] %vm3980, %v3886
  %4008 = vst.msk [vmem:[%s4 + $0x6c] sm:$0xf] %vm3980, %v3888
  %4009 = vst.msk [vmem:[%s4 + $0x70] sm:$0xf] %vm3980, %v3890
  %4010 = vst.msk [vmem:[%s4 + $0x74] sm:$0xf] %vm3980, %v3892
  %4011 = vst.msk [vmem:[%s4 + $0x78] sm:$0xf] %vm3980, %v3894
  %4012 = vst.msk [vmem:[%s4 + $0x7c] sm:$0xf] %vm3980, %v3896
  %4013 = vst.msk [vmem:[%s4 + $0x80] sm:$0xf] %vm3980, %v3898
  %4014 = vst.msk [vmem:[%s4 + $0x84] sm:$0xf] %vm3980, %v3900
  %4015 = vst.msk [vmem:[%s4 + $0x88] sm:$0xf] %vm3980, %v3902
  %4016 = vst.msk [vmem:[%s4 + $0x8c] sm:$0xf] %vm3980, %v3904
  %4017 = vst.msk [vmem:[%s4 + $0x90] sm:$0xf] %vm3980, %v3906
  %4018 = vst.msk [vmem:[%s4 + $0x94] sm:$0xf] %vm3980, %v3908
  %4019 = vst.msk [vmem:[%s4 + $0x98] sm:$0xf] %vm3980, %v3910
  %4020 = vst.msk [vmem:[%s4 + $0x9c] sm:$0xf] %vm3980, %v3912
  %4021 = vst.msk [vmem:[%s4 + $0xa0] sm:$0xf] %vm3980, %v3914
  %4022 = vst.msk [vmem:[%s4 + $0xa4] sm:$0xf] %vm3980, %v3916
  %4023 = vst.msk [vmem:[%s4 + $0xa8] sm:$0xf] %vm3980, %v3918
  %4024 = vst.msk [vmem:[%s4 + $0xac] sm:$0xf] %vm3980, %v3920
  %4025 = vst.msk [vmem:[%s4 + $0xb0] sm:$0xf] %vm3980, %v3922
  %4026 = vst.msk [vmem:[%s4 + $0xb4] sm:$0xf] %vm3980, %v3924
  %4027 = vst.msk [vmem:[%s4 + $0xb8] sm:$0xf] %vm3980, %v3926
  %4028 = vst.msk [vmem:[%s4 + $0xbc] sm:$0xf] %vm3980, %v3928
  %4029 = vst.msk [vmem:[%s4 + $0xc0] sm:$0xf] %vm3980, %v3930
  // Predicated region
  $region18: #{_lambda_.6} parent=0 // pred_check
    _
  $region19: #{_lambda_.6} parent=0 // pred_check_branch
    %4031 = sbr.rel (0) target = $region21
  $region20: #{_lambda_.6} parent=0 // pred_region
    _
  $region21: #{_lambda_.6} parent=0 // pred_fallthru
    _
  // Predicated region
  $region22: #{_lambda_.6} parent=0 // pred_check
    _
  $region23: #{_lambda_.6} parent=0 // pred_check_branch
    %4033 = sbr.rel (0) target = $region25
  $region24: #{_lambda_.6} parent=0 // pred_region
    _
  $region25: #{_lambda_.6} parent=0 // pred_fallthru
    _

// kernel: _lambda_.7
$region0: #{_lambda_.7}
  #allocation0 [shape = 'u32[]', space=smem, size = 0x4, offset = 0x4, fixed_abs, tag = 'smem constant byte address 0x4 - core index']
  #allocation1 [shape = 'u32[144,128]{1,0:T(1,128)}', space=vmem, size = 0x12000, scoped, tag = 'internal scratch']
  #allocation2 [shape = 'f32[288,32]{1,0:T(8,128)}', space=vmem, size = 0x24000, scoped, tag = 'scratch operand']
  %s0 = inlined_call_operand.vmem [shape: bf16[288,288], index: 0, kind: input, shape index: {}]
  %s1 = inlined_call_operand.vmem [shape: bf16[288,32], index: 1, kind: input, shape index: {}]
  %s2 = inlined_call_operand.vmem [shape: f32[1,32], index: 2, kind: input, shape index: {}]
  %s3 = inlined_call_operand.vmem [shape: f32[1,32], index: 3, kind: input, shape index: {}]
  %s4 = inlined_call_operand.vmem [shape: bf16[288,32], index: 4, kind: output, shape index: {}]
  %s5 = sld [smem:[#allocation0]]
  $region38: #{_lambda_.7} parent=0
    _
  %s7 = ssub.s32 1, %s5
  %s8 = scalar_select 0, %s7, %s5
  // Predicated region
  $region2: #{_lambda_.7} parent=0 // pred_check
    _
  $region3: #{_lambda_.7} parent=0 // pred_check_branch
    %10 = sbr.rel (0) target = $region5
  $region4: #{_lambda_.7} parent=0 // pred_region
    _
  $region5: #{_lambda_.7} parent=0 // pred_fallthru
    _
  // Predicated region
  $region6: #{_lambda_.7} parent=0 // pred_check
    _
  $region7: #{_lambda_.7} parent=0 // pred_check_branch
    %12 = sbr.rel (0) target = $region9
  $region8: #{_lambda_.7} parent=0 // pred_region
    _
  $region9: #{_lambda_.7} parent=0 // pred_fallthru
    _
  // Predicated region
  $region10: #{_lambda_.7} parent=0 // pred_check
    _
  $region11: #{_lambda_.7} parent=0 // pred_check_branch
    %14 = sbr.rel (0) target = $region13
  $region12: #{_lambda_.7} parent=0 // pred_region
    _
  $region13: #{_lambda_.7} parent=0 // pred_fallthru
    _
  // Predicated region
  $region14: #{_lambda_.7} parent=0 // pred_check
    _
  $region15: #{_lambda_.7} parent=0 // pred_check_branch
    %16 = sbr.rel (0) target = $region17
  $region16: #{_lambda_.7} parent=0 // pred_region
    _
  $region17: #{_lambda_.7} parent=0 // pred_fallthru
    _
  %v18 = vld [vmem:[%s0] sm:$0xff]
  %v19 = vld [vmem:[%s0 + $0x8] sm:$0xf]
  %v20 = vld [vmem:[%s0 + $0xc] sm:$0xff]
  %v21 = vld [vmem:[%s0 + $0x14] sm:$0xf]
  %v22 = vld [vmem:[%s0 + $0x18] sm:$0xff]
  %v23 = vld [vmem:[%s0 + $0x20] sm:$0xf]
  %v24 = vld [vmem:[%s0 + $0x24] sm:$0xff]
  %v25 = vld [vmem:[%s0 + $0x2c] sm:$0xf]
  %v26 = vld [vmem:[%s0 + $0x30] sm:$0xff]
  %v27 = vld [vmem:[%s0 + $0x38] sm:$0xf]
  %v28 = vld [vmem:[%s0 + $0x3c] sm:$0xff]
  %v29 = vld [vmem:[%s0 + $0x44] sm:$0xf]
  %v30 = vld [vmem:[%s0 + $0x48] sm:$0xff]
  %v31 = vld [vmem:[%s0 + $0x50] sm:$0xf]
  %v32 = vld [vmem:[%s0 + $0x54] sm:$0xff]
  %v33 = vld [vmem:[%s0 + $0x5c] sm:$0xf]
  %v34 = vld [vmem:[%s0 + $0x60] sm:$0xff]
  %v35 = vld [vmem:[%s0 + $0x68] sm:$0xf]
  %v36 = vld [vmem:[%s0 + $0x6c] sm:$0xff]
  %v37 = vld [vmem:[%s0 + $0x74] sm:$0xf]
  %v38 = vld [vmem:[%s0 + $0x78] sm:$0xff]
  %v39 = vld [vmem:[%s0 + $0x80] sm:$0xf]
  %v40 = vld [vmem:[%s0 + $0x84] sm:$0xff]
  %v41 = vld [vmem:[%s0 + $0x8c] sm:$0xf]
  %v42 = vld [vmem:[%s0 + $0x90] sm:$0xff]
  %v43 = vld [vmem:[%s0 + $0x98] sm:$0xf]
  %v44 = vld [vmem:[%s0 + $0x9c] sm:$0xff]
  %v45 = vld [vmem:[%s0 + $0xa4] sm:$0xf]
  %v46 = vld [vmem:[%s0 + $0xa8] sm:$0xff]
  %v47 = vld [vmem:[%s0 + $0xb0] sm:$0xf]
  %v48 = vld [vmem:[%s0 + $0xb4] sm:$0xff]
  %v49 = vld [vmem:[%s0 + $0xbc] sm:$0xf]
  %v50 = vld [vmem:[%s0 + $0xc0] sm:$0xff]
  %v51 = vld [vmem:[%s0 + $0xc8] sm:$0xf]
  %v52 = vld [vmem:[%s0 + $0xcc] sm:$0xff]
  %v53 = vld [vmem:[%s0 + $0xd4] sm:$0xf]
  %v54 = vld [vmem:[%s0 + $0xd8] sm:$0xff]
  %v55 = vld [vmem:[%s0 + $0xe0] sm:$0xf]
  %v56 = vld [vmem:[%s0 + $0xe4] sm:$0xff]
  %v57 = vld [vmem:[%s0 + $0xec] sm:$0xf]
  %v58 = vld [vmem:[%s0 + $0xf0] sm:$0xff]
  %v59 = vld [vmem:[%s0 + $0xf8] sm:$0xf]
  %v60 = vld [vmem:[%s0 + $0xfc] sm:$0xff]
  %v61 = vld [vmem:[%s0 + $0x104] sm:$0xf]
  %v62 = vld [vmem:[%s0 + $0x108] sm:$0xff]
  %v63 = vld [vmem:[%s0 + $0x110] sm:$0xf]
  %v64 = vld [vmem:[%s0 + $0x114] sm:$0xff]
  %v65 = vld [vmem:[%s0 + $0x11c] sm:$0xf]
  %v66 = vld [vmem:[%s0 + $0x120] sm:$0xff]
  %v67 = vld [vmem:[%s0 + $0x128] sm:$0xf]
  %v68 = vld [vmem:[%s0 + $0x12c] sm:$0xff]
  %v69 = vld [vmem:[%s0 + $0x134] sm:$0xf]
  %v70 = vld [vmem:[%s0 + $0x138] sm:$0xff]
  %v71 = vld [vmem:[%s0 + $0x140] sm:$0xf]
  %v72 = vld [vmem:[%s0 + $0x144] sm:$0xff]
  %v73 = vld [vmem:[%s0 + $0x14c] sm:$0xf]
  %v74 = vld [vmem:[%s0 + $0x150] sm:$0xff]
  %v75 = vld [vmem:[%s0 + $0x158] sm:$0xf]
  %v76 = vld [vmem:[%s0 + $0x15c] sm:$0xff]
  %v77 = vld [vmem:[%s0 + $0x164] sm:$0xf]
  %v78 = vld [vmem:[%s0 + $0x168] sm:$0xff]
  %v79 = vld [vmem:[%s0 + $0x170] sm:$0xf]
  %v80 = vld [vmem:[%s0 + $0x174] sm:$0xff]
  %v81 = vld [vmem:[%s0 + $0x17c] sm:$0xf]
  %v82 = vld [vmem:[%s0 + $0x180] sm:$0xff]
  %v83 = vld [vmem:[%s0 + $0x188] sm:$0xf]
  %v84 = vld [vmem:[%s0 + $0x18c] sm:$0xff]
  %v85 = vld [vmem:[%s0 + $0x194] sm:$0xf]
  %v86 = vld [vmem:[%s0 + $0x198] sm:$0xff]
  %v87 = vld [vmem:[%s0 + $0x1a0] sm:$0xf]
  %v88 = vld [vmem:[%s0 + $0x1a4] sm:$0xff]
  %v89 = vld [vmem:[%s0 + $0x1ac] sm:$0xf]
  %v90 = vld [vmem:[%s1] sm:$0xf]
  %v91 = vld [vmem:[%s1 + $0x4] sm:$0xf]
  %v92 = vld [vmem:[%s1 + $0x8] sm:$0xf]
  %v93 = vld [vmem:[%s1 + $0xc] sm:$0xf]
  %v94 = vld [vmem:[%s1 + $0x10] sm:$0xf]
  %v95 = vld [vmem:[%s1 + $0x14] sm:$0xf]
  %v96 = vld [vmem:[%s1 + $0x18] sm:$0xf]
  %v97 = vld [vmem:[%s1 + $0x1c] sm:$0xf]
  %v98 = vld [vmem:[%s1 + $0x20] sm:$0xf]
  %v99 = vld [vmem:[%s1 + $0x24] sm:$0xf]
  %v100 = vld [vmem:[%s1 + $0x28] sm:$0xf]
  %v101 = vld [vmem:[%s1 + $0x2c] sm:$0xf]
  %v102 = vld [vmem:[%s1 + $0x30] sm:$0xf]
  %v103 = vld [vmem:[%s1 + $0x34] sm:$0xf]
  %v104 = vld [vmem:[%s1 + $0x38] sm:$0xf]
  %v105 = vld [vmem:[%s1 + $0x3c] sm:$0xf]
  %v106 = vld [vmem:[%s1 + $0x40] sm:$0xf]
  %v107 = vld [vmem:[%s1 + $0x44] sm:$0xf]
  %v108 = vld [vmem:[%s1 + $0x48] sm:$0xf]
  %v109 = vld [vmem:[%s1 + $0x4c] sm:$0xf]
  %v110 = vld [vmem:[%s1 + $0x50] sm:$0xf]
  %v111 = vld [vmem:[%s1 + $0x54] sm:$0xf]
  %v112 = vld [vmem:[%s1 + $0x58] sm:$0xf]
  %v113 = vld [vmem:[%s1 + $0x5c] sm:$0xf]
  %v114 = vld [vmem:[%s1 + $0x60] sm:$0xf]
  %v115 = vld [vmem:[%s1 + $0x64] sm:$0xf]
  %v116 = vld [vmem:[%s1 + $0x68] sm:$0xf]
  %v117 = vld [vmem:[%s1 + $0x6c] sm:$0xf]
  %v118 = vld [vmem:[%s1 + $0x70] sm:$0xf]
  %v119 = vld [vmem:[%s1 + $0x74] sm:$0xf]
  %v120 = vld [vmem:[%s1 + $0x78] sm:$0xf]
  %v121 = vld [vmem:[%s1 + $0x7c] sm:$0xf]
  %v122 = vld [vmem:[%s1 + $0x80] sm:$0xf]
  %v123 = vld [vmem:[%s1 + $0x84] sm:$0xf]
  %v124 = vld [vmem:[%s1 + $0x88] sm:$0xf]
  %v125 = vld [vmem:[%s1 + $0x8c] sm:$0xf]
  %v198 = vunpack.c.l.b16 %v18
  %v199 = vunpack.c.h.b16 %v18
  %v200 = vunpack.c.l.b16 %v19
  %v201 = vunpack.c.l.b16 %v20
  %v202 = vunpack.c.h.b16 %v20
  %v203 = vunpack.c.l.b16 %v21
  %v204 = vunpack.c.l.b16 %v22
  %v205 = vunpack.c.h.b16 %v22
  %v206 = vunpack.c.l.b16 %v23
  %v207 = vunpack.c.l.b16 %v24
  %v208 = vunpack.c.h.b16 %v24
  %v209 = vunpack.c.l.b16 %v25
  %v210 = vunpack.c.l.b16 %v26
  %v211 = vunpack.c.h.b16 %v26
  %v212 = vunpack.c.l.b16 %v27
  %v213 = vunpack.c.l.b16 %v28
  %v214 = vunpack.c.h.b16 %v28
  %v215 = vunpack.c.l.b16 %v29
  %v216 = vunpack.c.l.b16 %v30
  %v217 = vunpack.c.h.b16 %v30
  %v218 = vunpack.c.l.b16 %v31
  %v219 = vunpack.c.l.b16 %v32
  %v220 = vunpack.c.h.b16 %v32
  %v221 = vunpack.c.l.b16 %v33
  %v222 = vunpack.c.l.b16 %v34
  %v223 = vunpack.c.h.b16 %v34
  %v224 = vunpack.c.l.b16 %v35
  %v225 = vunpack.c.l.b16 %v36
  %v226 = vunpack.c.h.b16 %v36
  %v227 = vunpack.c.l.b16 %v37
  %v228 = vunpack.c.l.b16 %v38
  %v229 = vunpack.c.h.b16 %v38
  %v230 = vunpack.c.l.b16 %v39
  %v231 = vunpack.c.l.b16 %v40
  %v232 = vunpack.c.h.b16 %v40
  %v233 = vunpack.c.l.b16 %v41
  %v234 = vunpack.c.l.b16 %v42
  %v235 = vunpack.c.h.b16 %v42
  %v236 = vunpack.c.l.b16 %v43
  %v237 = vunpack.c.l.b16 %v44
  %v238 = vunpack.c.h.b16 %v44
  %v239 = vunpack.c.l.b16 %v45
  %v240 = vunpack.c.l.b16 %v46
  %v241 = vunpack.c.h.b16 %v46
  %v242 = vunpack.c.l.b16 %v47
  %v243 = vunpack.c.l.b16 %v48
  %v244 = vunpack.c.h.b16 %v48
  %v245 = vunpack.c.l.b16 %v49
  %v246 = vunpack.c.l.b16 %v50
  %v247 = vunpack.c.h.b16 %v50
  %v248 = vunpack.c.l.b16 %v51
  %v249 = vunpack.c.l.b16 %v52
  %v250 = vunpack.c.h.b16 %v52
  %v251 = vunpack.c.l.b16 %v53
  %v252 = vunpack.c.l.b16 %v54
  %v253 = vunpack.c.h.b16 %v54
  %v254 = vunpack.c.l.b16 %v55
  %v255 = vunpack.c.l.b16 %v56
  %v256 = vunpack.c.h.b16 %v56
  %v257 = vunpack.c.l.b16 %v57
  %v258 = vunpack.c.l.b16 %v58
  %v259 = vunpack.c.h.b16 %v58
  %v260 = vunpack.c.l.b16 %v59
  %v261 = vunpack.c.l.b16 %v60
  %v262 = vunpack.c.h.b16 %v60
  %v263 = vunpack.c.l.b16 %v61
  %v264 = vunpack.c.l.b16 %v62
  %v265 = vunpack.c.h.b16 %v62
  %v266 = vunpack.c.l.b16 %v63
  %v267 = vunpack.c.l.b16 %v64
  %v268 = vunpack.c.h.b16 %v64
  %v269 = vunpack.c.l.b16 %v65
  %v270 = vunpack.c.l.b16 %v66
  %v271 = vunpack.c.h.b16 %v66
  %v272 = vunpack.c.l.b16 %v67
  %v273 = vunpack.c.l.b16 %v68
  %v274 = vunpack.c.h.b16 %v68
  %v275 = vunpack.c.l.b16 %v69
  %v276 = vunpack.c.l.b16 %v70
  %v277 = vunpack.c.h.b16 %v70
  %v278 = vunpack.c.l.b16 %v71
  %v279 = vunpack.c.l.b16 %v72
  %v280 = vunpack.c.h.b16 %v72
  %v281 = vunpack.c.l.b16 %v73
  %v282 = vunpack.c.l.b16 %v74
  %v283 = vunpack.c.h.b16 %v74
  %v284 = vunpack.c.l.b16 %v75
  %v285 = vunpack.c.l.b16 %v76
  %v286 = vunpack.c.h.b16 %v76
  %v287 = vunpack.c.l.b16 %v77
  %v288 = vunpack.c.l.b16 %v78
  %v289 = vunpack.c.h.b16 %v78
  %v290 = vunpack.c.l.b16 %v79
  %v291 = vunpack.c.l.b16 %v80
  %v292 = vunpack.c.h.b16 %v80
  %v293 = vunpack.c.l.b16 %v81
  %v294 = vunpack.c.l.b16 %v82
  %v295 = vunpack.c.h.b16 %v82
  %v296 = vunpack.c.l.b16 %v83
  %v297 = vunpack.c.l.b16 %v84
  %v298 = vunpack.c.h.b16 %v84
  %v299 = vunpack.c.l.b16 %v85
  %v300 = vunpack.c.l.b16 %v86
  %v301 = vunpack.c.h.b16 %v86
  %v302 = vunpack.c.l.b16 %v87
  %v303 = vunpack.c.l.b16 %v88
  %v304 = vunpack.c.h.b16 %v88
  %v305 = vunpack.c.l.b16 %v89
  %v306 = vpack.c.b16 %v201, %v198
  %v307 = vpack.c.b16 %v202, %v199
  %v308 = vpack.c.b16 %v203, %v200
  %v309 = vpack.c.b16 %v207, %v204
  %v310 = vpack.c.b16 %v208, %v205
  %v311 = vpack.c.b16 %v209, %v206
  %v312 = vpack.c.b16 %v213, %v210
  %v313 = vpack.c.b16 %v214, %v211
  %v314 = vpack.c.b16 %v215, %v212
  %v315 = vpack.c.b16 %v219, %v216
  %v316 = vpack.c.b16 %v220, %v217
  %v317 = vpack.c.b16 %v221, %v218
  %v318 = vpack.c.b16 %v225, %v222
  %v319 = vpack.c.b16 %v226, %v223
  %v320 = vpack.c.b16 %v227, %v224
  %v321 = vpack.c.b16 %v231, %v228
  %v322 = vpack.c.b16 %v232, %v229
  %v323 = vpack.c.b16 %v233, %v230
  %v324 = vpack.c.b16 %v237, %v234
  %v325 = vpack.c.b16 %v238, %v235
  %v326 = vpack.c.b16 %v239, %v236
  %v327 = vpack.c.b16 %v243, %v240
  %v328 = vpack.c.b16 %v244, %v241
  %v329 = vpack.c.b16 %v245, %v242
  %v330 = vpack.c.b16 %v249, %v246
  %v331 = vpack.c.b16 %v250, %v247
  %v332 = vpack.c.b16 %v251, %v248
  %v333 = vpack.c.b16 %v255, %v252
  %v334 = vpack.c.b16 %v256, %v253
  %v335 = vpack.c.b16 %v257, %v254
  %v336 = vpack.c.b16 %v261, %v258
  %v337 = vpack.c.b16 %v262, %v259
  %v338 = vpack.c.b16 %v263, %v260
  %v339 = vpack.c.b16 %v267, %v264
  %v340 = vpack.c.b16 %v268, %v265
  %v341 = vpack.c.b16 %v269, %v266
  %v342 = vpack.c.b16 %v273, %v270
  %v343 = vpack.c.b16 %v274, %v271
  %v344 = vpack.c.b16 %v275, %v272
  %v345 = vpack.c.b16 %v279, %v276
  %v346 = vpack.c.b16 %v280, %v277
  %v347 = vpack.c.b16 %v281, %v278
  %v348 = vpack.c.b16 %v285, %v282
  %v349 = vpack.c.b16 %v286, %v283
  %v350 = vpack.c.b16 %v287, %v284
  %v351 = vpack.c.b16 %v291, %v288
  %v352 = vpack.c.b16 %v292, %v289
  %v353 = vpack.c.b16 %v293, %v290
  %v354 = vpack.c.b16 %v297, %v294
  %v355 = vpack.c.b16 %v298, %v295
  %v356 = vpack.c.b16 %v299, %v296
  %v357 = vpack.c.b16 %v303, %v300
  %v358 = vpack.c.b16 %v304, %v301
  %v359 = vpack.c.b16 %v305, %v302
  %v432 = vunpack.c.l.b16 %v90
  %v433 = vunpack.c.l.b16 %v91
  %v434 = vunpack.c.l.b16 %v92
  %v435 = vunpack.c.l.b16 %v93
  %v436 = vunpack.c.l.b16 %v94
  %v437 = vunpack.c.l.b16 %v95
  %v438 = vunpack.c.l.b16 %v96
  %v439 = vunpack.c.l.b16 %v97
  %v440 = vunpack.c.l.b16 %v98
  %v441 = vunpack.c.l.b16 %v99
  %v442 = vunpack.c.l.b16 %v100
  %v443 = vunpack.c.l.b16 %v101
  %v444 = vunpack.c.l.b16 %v102
  %v445 = vunpack.c.l.b16 %v103
  %v446 = vunpack.c.l.b16 %v104
  %v447 = vunpack.c.l.b16 %v105
  %v448 = vunpack.c.l.b16 %v106
  %v449 = vunpack.c.l.b16 %v107
  %v450 = vunpack.c.l.b16 %v108
  %v451 = vunpack.c.l.b16 %v109
  %v452 = vunpack.c.l.b16 %v110
  %v453 = vunpack.c.l.b16 %v111
  %v454 = vunpack.c.l.b16 %v112
  %v455 = vunpack.c.l.b16 %v113
  %v456 = vunpack.c.l.b16 %v114
  %v457 = vunpack.c.l.b16 %v115
  %v458 = vunpack.c.l.b16 %v116
  %v459 = vunpack.c.l.b16 %v117
  %v460 = vunpack.c.l.b16 %v118
  %v461 = vunpack.c.l.b16 %v119
  %v462 = vunpack.c.l.b16 %v120
  %v463 = vunpack.c.l.b16 %v121
  %v464 = vunpack.c.l.b16 %v122
  %v465 = vunpack.c.l.b16 %v123
  %v466 = vunpack.c.l.b16 %v124
  %v467 = vunpack.c.l.b16 %v125
  %v468 = vpack.c.b16 %v433, %v432
  %v469 = vpack.c.b16 %v435, %v434
  %v470 = vpack.c.b16 %v437, %v436
  %v471 = vpack.c.b16 %v439, %v438
  %v472 = vpack.c.b16 %v441, %v440
  %v473 = vpack.c.b16 %v443, %v442
  %v474 = vpack.c.b16 %v445, %v444
  %v475 = vpack.c.b16 %v447, %v446
  %v476 = vpack.c.b16 %v449, %v448
  %v477 = vpack.c.b16 %v451, %v450
  %v478 = vpack.c.b16 %v453, %v452
  %v479 = vpack.c.b16 %v455, %v454
  %v480 = vpack.c.b16 %v457, %v456
  %v481 = vpack.c.b16 %v459, %v458
  %v482 = vpack.c.b16 %v461, %v460
  %v483 = vpack.c.b16 %v463, %v462
  %v484 = vpack.c.b16 %v465, %v464
  %v485 = vpack.c.b16 %v467, %v466
  %vm504 = vcmask 261120
  %v506 = vsel %vm504, %v308, 0
  %v509 = vsel %vm504, %v311, 0
  %v512 = vsel %vm504, %v314, 0
  %v515 = vsel %vm504, %v317, 0
  %v518 = vsel %vm504, %v320, 0
  %v521 = vsel %vm504, %v323, 0
  %v524 = vsel %vm504, %v326, 0
  %v527 = vsel %vm504, %v329, 0
  %v530 = vsel %vm504, %v332, 0
  %v533 = vsel %vm504, %v335, 0
  %v536 = vsel %vm504, %v338, 0
  %v539 = vsel %vm504, %v341, 0
  %v542 = vsel %vm504, %v344, 0
  %v545 = vsel %vm504, %v347, 0
  %v548 = vsel %vm504, %v350, 0
  %v551 = vsel %vm504, %v353, 0
  %v554 = vsel %vm504, %v356, 0
  %v557 = vsel %vm504, %v359, 0
  %559 = vmatprep.subr.bf16.mxu0 0
  %560 = vmatpush1.bf16.msra.mxu0 %v475
  %561 = vmatprep.subr.bf16.mxu0 0
  %562 = vmatpush1.bf16.msra.mxu0 %v474
  %563 = vmatprep.subr.bf16.mxu0 0
  %564 = vmatpush1.bf16.msra.mxu0 %v473
  %565 = vmatprep.subr.bf16.mxu0 0
  %566 = vmatpush1.bf16.msra.mxu0 %v472
  %567 = vmatprep.subr.bf16.mxu0 0
  %568 = vmatpush1.bf16.msra.mxu0 %v471
  %569 = vmatprep.subr.bf16.mxu0 0
  %570 = vmatpush1.bf16.msra.mxu0 %v470
  %571 = vmatprep.subr.bf16.mxu0 0
  %572 = vmatpush1.bf16.msra.mxu0 %v469
  %573 = vmatprep.subr.bf16.mxu0 0
  %574 = vmatpush1.bf16.msra.mxu0 %v468
  %575 = vmatprep.subr.bf16.mxu0 0
  %576 = vmatpush2.bf16.msra.mxu0 %v483
  %577 = vmatprep.subr.bf16.mxu0 0
  %578 = vmatpush2.bf16.msra.mxu0 %v482
  %579 = vmatprep.subr.bf16.mxu0 0
  %580 = vmatpush2.bf16.msra.mxu0 %v481
  %581 = vmatprep.subr.bf16.mxu0 0
  %582 = vmatpush2.bf16.msra.mxu0 %v480
  %583 = vmatprep.subr.bf16.mxu0 0
  %584 = vmatpush2.bf16.msra.mxu0 %v479
  %585 = vmatprep.subr.bf16.mxu0 0
  %586 = vmatpush2.bf16.msra.mxu0 %v478
  %587 = vmatprep.subr.bf16.mxu0 0
  %588 = vmatpush2.bf16.msra.mxu0 %v477
  %589 = vmatprep.subr.bf16.mxu0 0
  %590 = vmatpush2.bf16.msra.mxu0 %v476
  %591 = vmatprep.mubr.bf16.mxu0 %v307
  %592 = vmatmul.mubr.bf16.gmra.mxu0 %v306
  %v593 = vpop.f32.mrf.mxu0
  %v594 = vadd.f32 0.0, %v593
  %v595 = vpop.f32.mrf.mxu0
  %v596 = vpop.f32.mrf.mxu0
  %v597 = vadd.f32 0.0, %v596
  %v598 = vpop.f32.mrf.mxu0
  %599 = vmatprep.mubr.bf16.mxu0 %v310
  %600 = vmatmul.mubr.bf16.gmra.mxu0 %v309
  %v601 = vpop.f32.mrf.mxu0
  %v602 = vadd.f32 0.0, %v601
  %v603 = vpop.f32.mrf.mxu0
  %v604 = vpop.f32.mrf.mxu0
  %v605 = vadd.f32 0.0, %v604
  %v606 = vpop.f32.mrf.mxu0
  %607 = vmatprep.mubr.bf16.mxu0 %v313
  %608 = vmatmul.mubr.bf16.gmra.mxu0 %v312
  %v609 = vpop.f32.mrf.mxu0
  %v610 = vadd.f32 0.0, %v609
  %v611 = vpop.f32.mrf.mxu0
  %v612 = vpop.f32.mrf.mxu0
  %v613 = vadd.f32 0.0, %v612
  %v614 = vpop.f32.mrf.mxu0
  %615 = vmatprep.mubr.bf16.mxu0 %v316
  %616 = vmatmul.mubr.bf16.gmra.mxu0 %v315
  %v617 = vpop.f32.mrf.mxu0
  %v618 = vadd.f32 0.0, %v617
  %v619 = vpop.f32.mrf.mxu0
  %v620 = vpop.f32.mrf.mxu0
  %v621 = vadd.f32 0.0, %v620
  %v622 = vpop.f32.mrf.mxu0
  %623 = vmatprep.mubr.bf16.mxu0 %v319
  %624 = vmatmul.mubr.bf16.gmra.mxu0 %v318
  %v625 = vpop.f32.mrf.mxu0
  %v626 = vadd.f32 0.0, %v625
  %v627 = vpop.f32.mrf.mxu0
  %v628 = vpop.f32.mrf.mxu0
  %v629 = vadd.f32 0.0, %v628
  %v630 = vpop.f32.mrf.mxu0
  %631 = vmatprep.mubr.bf16.mxu0 %v322
  %632 = vmatmul.mubr.bf16.gmra.mxu0 %v321
  %v633 = vpop.f32.mrf.mxu0
  %v634 = vadd.f32 0.0, %v633
  %v635 = vpop.f32.mrf.mxu0
  %v636 = vpop.f32.mrf.mxu0
  %v637 = vadd.f32 0.0, %v636
  %v638 = vpop.f32.mrf.mxu0
  %639 = vmatprep.mubr.bf16.mxu0 %v325
  %640 = vmatmul.mubr.bf16.gmra.mxu0 %v324
  %v641 = vpop.f32.mrf.mxu0
  %v642 = vadd.f32 0.0, %v641
  %v643 = vpop.f32.mrf.mxu0
  %v644 = vpop.f32.mrf.mxu0
  %v645 = vadd.f32 0.0, %v644
  %v646 = vpop.f32.mrf.mxu0
  %647 = vmatprep.mubr.bf16.mxu0 %v328
  %648 = vmatmul.mubr.bf16.gmra.mxu0 %v327
  %v649 = vpop.f32.mrf.mxu0
  %v650 = vadd.f32 0.0, %v649
  %v651 = vpop.f32.mrf.mxu0
  %v652 = vpop.f32.mrf.mxu0
  %v653 = vadd.f32 0.0, %v652
  %v654 = vpop.f32.mrf.mxu0
  %655 = vmatprep.mubr.bf16.mxu0 %v331
  %656 = vmatmul.mubr.bf16.gmra.mxu0 %v330
  %v657 = vpop.f32.mrf.mxu0
  %v658 = vadd.f32 0.0, %v657
  %v659 = vpop.f32.mrf.mxu0
  %v660 = vpop.f32.mrf.mxu0
  %v661 = vadd.f32 0.0, %v660
  %v662 = vpop.f32.mrf.mxu0
  %663 = vmatprep.mubr.bf16.mxu0 %v334
  %664 = vmatmul.mubr.bf16.gmra.mxu0 %v333
  %v665 = vpop.f32.mrf.mxu0
  %v666 = vadd.f32 0.0, %v665
  %v667 = vpop.f32.mrf.mxu0
  %v668 = vpop.f32.mrf.mxu0
  %v669 = vadd.f32 0.0, %v668
  %v670 = vpop.f32.mrf.mxu0
  %671 = vmatprep.mubr.bf16.mxu0 %v337
  %672 = vmatmul.mubr.bf16.gmra.mxu0 %v336
  %v673 = vpop.f32.mrf.mxu0
  %v674 = vadd.f32 0.0, %v673
  %v675 = vpop.f32.mrf.mxu0
  %v676 = vpop.f32.mrf.mxu0
  %v677 = vadd.f32 0.0, %v676
  %v678 = vpop.f32.mrf.mxu0
  %679 = vmatprep.mubr.bf16.mxu0 %v340
  %680 = vmatmul.mubr.bf16.gmra.mxu0 %v339
  %v681 = vpop.f32.mrf.mxu0
  %v682 = vadd.f32 0.0, %v681
  %v683 = vpop.f32.mrf.mxu0
  %v684 = vpop.f32.mrf.mxu0
  %v685 = vadd.f32 0.0, %v684
  %v686 = vpop.f32.mrf.mxu0
  %687 = vmatprep.mubr.bf16.mxu0 %v343
  %688 = vmatmul.mubr.bf16.gmra.mxu0 %v342
  %v689 = vpop.f32.mrf.mxu0
  %v690 = vadd.f32 0.0, %v689
  %v691 = vpop.f32.mrf.mxu0
  %v692 = vpop.f32.mrf.mxu0
  %v693 = vadd.f32 0.0, %v692
  %v694 = vpop.f32.mrf.mxu0
  %695 = vmatprep.mubr.bf16.mxu0 %v346
  %696 = vmatmul.mubr.bf16.gmra.mxu0 %v345
  %v697 = vpop.f32.mrf.mxu0
  %v698 = vadd.f32 0.0, %v697
  %v699 = vpop.f32.mrf.mxu0
  %v700 = vpop.f32.mrf.mxu0
  %v701 = vadd.f32 0.0, %v700
  %v702 = vpop.f32.mrf.mxu0
  %703 = vmatprep.mubr.bf16.mxu0 %v349
  %704 = vmatmul.mubr.bf16.gmra.mxu0 %v348
  %v705 = vpop.f32.mrf.mxu0
  %v706 = vadd.f32 0.0, %v705
  %v707 = vpop.f32.mrf.mxu0
  %v708 = vpop.f32.mrf.mxu0
  %v709 = vadd.f32 0.0, %v708
  %v710 = vpop.f32.mrf.mxu0
  %711 = vmatprep.mubr.bf16.mxu0 %v352
  %712 = vmatmul.mubr.bf16.gmra.mxu0 %v351
  %v713 = vpop.f32.mrf.mxu0
  %v714 = vadd.f32 0.0, %v713
  %v715 = vpop.f32.mrf.mxu0
  %v716 = vpop.f32.mrf.mxu0
  %v717 = vadd.f32 0.0, %v716
  %v718 = vpop.f32.mrf.mxu0
  %719 = vmatprep.mubr.bf16.mxu0 %v355
  %720 = vmatmul.mubr.bf16.gmra.mxu0 %v354
  %v721 = vpop.f32.mrf.mxu0
  %v722 = vadd.f32 0.0, %v721
  %v723 = vpop.f32.mrf.mxu0
  %v724 = vpop.f32.mrf.mxu0
  %v725 = vadd.f32 0.0, %v724
  %v726 = vpop.f32.mrf.mxu0
  %727 = vmatprep.mubr.bf16.mxu0 %v358
  %728 = vmatmul.mubr.bf16.gmra.mxu0 %v357
  %v729 = vpop.f32.mrf.mxu0
  %v730 = vadd.f32 0.0, %v729
  %v731 = vpop.f32.mrf.mxu0
  %v732 = vpop.f32.mrf.mxu0
  %v733 = vadd.f32 0.0, %v732
  %v734 = vpop.f32.mrf.mxu0
  %735 = vdwg.mxu0
  %736 = vmatprep.subr.bf16.mxu0 0
  %737 = vmatpush1.bf16.msra.mxu0 0
  %738 = vmatprep.subr.bf16.mxu0 0
  %739 = vmatpush1.bf16.msra.mxu0 0
  %740 = vmatprep.subr.bf16.mxu0 0
  %741 = vmatpush1.bf16.msra.mxu0 0
  %742 = vmatprep.subr.bf16.mxu0 0
  %743 = vmatpush1.bf16.msra.mxu0 0
  %744 = vmatprep.subr.bf16.mxu0 0
  %745 = vmatpush1.bf16.msra.mxu0 0
  %746 = vmatprep.subr.bf16.mxu0 0
  %747 = vmatpush1.bf16.msra.mxu0 0
  %748 = vmatprep.subr.bf16.mxu0 0
  %749 = vmatpush1.bf16.msra.mxu0 %v485
  %750 = vmatprep.subr.bf16.mxu0 0
  %751 = vmatpush1.bf16.msra.mxu0 %v484
  %752 = vmatprep.subr.bf16.mxu0 0
  %753 = vmatpush2.bf16.msra.mxu0 0
  %754 = vmatprep.subr.bf16.mxu0 0
  %755 = vmatpush2.bf16.msra.mxu0 0
  %756 = vmatprep.subr.bf16.mxu0 0
  %757 = vmatpush2.bf16.msra.mxu0 0
  %758 = vmatprep.subr.bf16.mxu0 0
  %759 = vmatpush2.bf16.msra.mxu0 0
  %760 = vmatprep.subr.bf16.mxu0 0
  %761 = vmatpush2.bf16.msra.mxu0 0
  %762 = vmatprep.subr.bf16.mxu0 0
  %763 = vmatpush2.bf16.msra.mxu0 0
  %764 = vmatprep.subr.bf16.mxu0 0
  %765 = vmatpush2.bf16.msra.mxu0 0
  %766 = vmatprep.subr.bf16.mxu0 0
  %767 = vmatpush2.bf16.msra.mxu0 0
  %768 = vmatprep.mubr.bf16.mxu0 0
  %769 = vmatmul.mubr.bf16.gmra.mxu0 %v506
  %v770 = vpop.f32.mrf.mxu0
  %v771 = vadd.f32 %v594, %v770
  %v772 = vpop.f32.mrf.mxu0
  %v773 = vpop.f32.mrf.mxu0
  %v774 = vadd.f32 %v597, %v773
  %v775 = vpop.f32.mrf.mxu0
  %776 = vmatprep.mubr.bf16.mxu0 0
  %777 = vmatmul.mubr.bf16.gmra.mxu0 %v509
  %v778 = vpop.f32.mrf.mxu0
  %v779 = vadd.f32 %v602, %v778
  %v780 = vpop.f32.mrf.mxu0
  %v781 = vpop.f32.mrf.mxu0
  %v782 = vadd.f32 %v605, %v781
  %v783 = vpop.f32.mrf.mxu0
  %784 = vmatprep.mubr.bf16.mxu0 0
  %785 = vmatmul.mubr.bf16.gmra.mxu0 %v512
  %v786 = vpop.f32.mrf.mxu0
  %v787 = vadd.f32 %v610, %v786
  %v788 = vpop.f32.mrf.mxu0
  %v789 = vpop.f32.mrf.mxu0
  %v790 = vadd.f32 %v613, %v789
  %v791 = vpop.f32.mrf.mxu0
  %792 = vmatprep.mubr.bf16.mxu0 0
  %793 = vmatmul.mubr.bf16.gmra.mxu0 %v515
  %v794 = vpop.f32.mrf.mxu0
  %v795 = vadd.f32 %v618, %v794
  %v796 = vpop.f32.mrf.mxu0
  %v797 = vpop.f32.mrf.mxu0
  %v798 = vadd.f32 %v621, %v797
  %v799 = vpop.f32.mrf.mxu0
  %800 = vmatprep.mubr.bf16.mxu0 0
  %801 = vmatmul.mubr.bf16.gmra.mxu0 %v518
  %v802 = vpop.f32.mrf.mxu0
  %v803 = vadd.f32 %v626, %v802
  %v804 = vpop.f32.mrf.mxu0
  %v805 = vpop.f32.mrf.mxu0
  %v806 = vadd.f32 %v629, %v805
  %v807 = vpop.f32.mrf.mxu0
  %808 = vmatprep.mubr.bf16.mxu0 0
  %809 = vmatmul.mubr.bf16.gmra.mxu0 %v521
  %v810 = vpop.f32.mrf.mxu0
  %v811 = vadd.f32 %v634, %v810
  %v812 = vpop.f32.mrf.mxu0
  %v813 = vpop.f32.mrf.mxu0
  %v814 = vadd.f32 %v637, %v813
  %v815 = vpop.f32.mrf.mxu0
  %816 = vmatprep.mubr.bf16.mxu0 0
  %817 = vmatmul.mubr.bf16.gmra.mxu0 %v524
  %v818 = vpop.f32.mrf.mxu0
  %v819 = vadd.f32 %v642, %v818
  %v820 = vpop.f32.mrf.mxu0
  %v821 = vpop.f32.mrf.mxu0
  %v822 = vadd.f32 %v645, %v821
  %v823 = vpop.f32.mrf.mxu0
  %824 = vmatprep.mubr.bf16.mxu0 0
  %825 = vmatmul.mubr.bf16.gmra.mxu0 %v527
  %v826 = vpop.f32.mrf.mxu0
  %v827 = vadd.f32 %v650, %v826
  %v828 = vpop.f32.mrf.mxu0
  %v829 = vpop.f32.mrf.mxu0
  %v830 = vadd.f32 %v653, %v829
  %v831 = vpop.f32.mrf.mxu0
  %832 = vmatprep.mubr.bf16.mxu0 0
  %833 = vmatmul.mubr.bf16.gmra.mxu0 %v530
  %v834 = vpop.f32.mrf.mxu0
  %v835 = vadd.f32 %v658, %v834
  %v836 = vpop.f32.mrf.mxu0
  %v837 = vpop.f32.mrf.mxu0
  %v838 = vadd.f32 %v661, %v837
  %v839 = vpop.f32.mrf.mxu0
  %840 = vmatprep.mubr.bf16.mxu0 0
  %841 = vmatmul.mubr.bf16.gmra.mxu0 %v533
  %v842 = vpop.f32.mrf.mxu0
  %v843 = vadd.f32 %v666, %v842
  %v844 = vpop.f32.mrf.mxu0
  %v845 = vpop.f32.mrf.mxu0
  %v846 = vadd.f32 %v669, %v845
  %v847 = vpop.f32.mrf.mxu0
  %848 = vmatprep.mubr.bf16.mxu0 0
  %849 = vmatmul.mubr.bf16.gmra.mxu0 %v536
  %v850 = vpop.f32.mrf.mxu0
  %v851 = vadd.f32 %v674, %v850
  %v852 = vpop.f32.mrf.mxu0
  %v853 = vpop.f32.mrf.mxu0
  %v854 = vadd.f32 %v677, %v853
  %v855 = vpop.f32.mrf.mxu0
  %856 = vmatprep.mubr.bf16.mxu0 0
  %857 = vmatmul.mubr.bf16.gmra.mxu0 %v539
  %v858 = vpop.f32.mrf.mxu0
  %v859 = vadd.f32 %v682, %v858
  %v860 = vpop.f32.mrf.mxu0
  %v861 = vpop.f32.mrf.mxu0
  %v862 = vadd.f32 %v685, %v861
  %v863 = vpop.f32.mrf.mxu0
  %864 = vmatprep.mubr.bf16.mxu0 0
  %865 = vmatmul.mubr.bf16.gmra.mxu0 %v542
  %v866 = vpop.f32.mrf.mxu0
  %v867 = vadd.f32 %v690, %v866
  %v868 = vpop.f32.mrf.mxu0
  %v869 = vpop.f32.mrf.mxu0
  %v870 = vadd.f32 %v693, %v869
  %v871 = vpop.f32.mrf.mxu0
  %872 = vmatprep.mubr.bf16.mxu0 0
  %873 = vmatmul.mubr.bf16.gmra.mxu0 %v545
  %v874 = vpop.f32.mrf.mxu0
  %v875 = vadd.f32 %v698, %v874
  %v876 = vpop.f32.mrf.mxu0
  %v877 = vpop.f32.mrf.mxu0
  %v878 = vadd.f32 %v701, %v877
  %v879 = vpop.f32.mrf.mxu0
  %880 = vmatprep.mubr.bf16.mxu0 0
  %881 = vmatmul.mubr.bf16.gmra.mxu0 %v548
  %v882 = vpop.f32.mrf.mxu0
  %v883 = vadd.f32 %v706, %v882
  %v884 = vpop.f32.mrf.mxu0
  %v885 = vpop.f32.mrf.mxu0
  %v886 = vadd.f32 %v709, %v885
  %v887 = vpop.f32.mrf.mxu0
  %888 = vmatprep.mubr.bf16.mxu0 0
  %889 = vmatmul.mubr.bf16.gmra.mxu0 %v551
  %v890 = vpop.f32.mrf.mxu0
  %v891 = vadd.f32 %v714, %v890
  %v892 = vpop.f32.mrf.mxu0
  %v893 = vpop.f32.mrf.mxu0
  %v894 = vadd.f32 %v717, %v893
  %v895 = vpop.f32.mrf.mxu0
  %896 = vmatprep.mubr.bf16.mxu0 0
  %897 = vmatmul.mubr.bf16.gmra.mxu0 %v554
  %v898 = vpop.f32.mrf.mxu0
  %v899 = vadd.f32 %v722, %v898
  %v900 = vpop.f32.mrf.mxu0
  %v901 = vpop.f32.mrf.mxu0
  %v902 = vadd.f32 %v725, %v901
  %v903 = vpop.f32.mrf.mxu0
  %904 = vmatprep.mubr.bf16.mxu0 0
  %905 = vmatmul.mubr.bf16.gmra.mxu0 %v557
  %v906 = vpop.f32.mrf.mxu0
  %v907 = vadd.f32 %v730, %v906
  %v908 = vpop.f32.mrf.mxu0
  %v909 = vpop.f32.mrf.mxu0
  %v910 = vadd.f32 %v733, %v909
  %v911 = vpop.f32.mrf.mxu0
  %912 = vdwg.mxu0
  %p913 = scmp.eq.s32.totalorder 0, 0
  // Predicated region
  $region18: #{_lambda_.7} parent=0 // pred_check
    %p914 = pneg %p913
  $region19: #{_lambda_.7} parent=0 // pred_check_branch
    %916 = sbr.rel (%p914) target = $region21
  $region20: #{_lambda_.7} parent=0 // pred_region
    %917 = vst.msk [vmem:[#allocation2] sm:$0xff] %vm504, %v771
    %918 = vst.msk [vmem:[#allocation2 + $0x8] sm:$0xff] %vm504, %v774
    %919 = vst.msk [vmem:[#allocation2 + $0x10] sm:$0xff] %vm504, %v779
    %920 = vst.msk [vmem:[#allocation2 + $0x18] sm:$0xff] %vm504, %v782
    %921 = vst.msk [vmem:[#allocation2 + $0x20] sm:$0xff] %vm504, %v787
    %922 = vst.msk [vmem:[#allocation2 + $0x28] sm:$0xff] %vm504, %v790
    %923 = vst.msk [vmem:[#allocation2 + $0x30] sm:$0xff] %vm504, %v795
    %924 = vst.msk [vmem:[#allocation2 + $0x38] sm:$0xff] %vm504, %v798
    %925 = vst.msk [vmem:[#allocation2 + $0x40] sm:$0xff] %vm504, %v803
    %926 = vst.msk [vmem:[#allocation2 + $0x48] sm:$0xff] %vm504, %v806
    %927 = vst.msk [vmem:[#allocation2 + $0x50] sm:$0xff] %vm504, %v811
    %928 = vst.msk [vmem:[#allocation2 + $0x58] sm:$0xff] %vm504, %v814
    %929 = vst.msk [vmem:[#allocation2 + $0x60] sm:$0xff] %vm504, %v819
    %930 = vst.msk [vmem:[#allocation2 + $0x68] sm:$0xff] %vm504, %v822
    %931 = vst.msk [vmem:[#allocation2 + $0x70] sm:$0xff] %vm504, %v827
    %932 = vst.msk [vmem:[#allocation2 + $0x78] sm:$0xff] %vm504, %v830
    %933 = vst.msk [vmem:[#allocation2 + $0x80] sm:$0xff] %vm504, %v835
    %934 = vst.msk [vmem:[#allocation2 + $0x88] sm:$0xff] %vm504, %v838
    %935 = vst.msk [vmem:[#allocation2 + $0x90] sm:$0xff] %vm504, %v843
    %936 = vst.msk [vmem:[#allocation2 + $0x98] sm:$0xff] %vm504, %v846
    %937 = vst.msk [vmem:[#allocation2 + $0xa0] sm:$0xff] %vm504, %v851
    %938 = vst.msk [vmem:[#allocation2 + $0xa8] sm:$0xff] %vm504, %v854
    %939 = vst.msk [vmem:[#allocation2 + $0xb0] sm:$0xff] %vm504, %v859
    %940 = vst.msk [vmem:[#allocation2 + $0xb8] sm:$0xff] %vm504, %v862
    %941 = vst.msk [vmem:[#allocation2 + $0xc0] sm:$0xff] %vm504, %v867
    %942 = vst.msk [vmem:[#allocation2 + $0xc8] sm:$0xff] %vm504, %v870
    %943 = vst.msk [vmem:[#allocation2 + $0xd0] sm:$0xff] %vm504, %v875
    %944 = vst.msk [vmem:[#allocation2 + $0xd8] sm:$0xff] %vm504, %v878
    %945 = vst.msk [vmem:[#allocation2 + $0xe0] sm:$0xff] %vm504, %v883
    %946 = vst.msk [vmem:[#allocation2 + $0xe8] sm:$0xff] %vm504, %v886
    %947 = vst.msk [vmem:[#allocation2 + $0xf0] sm:$0xff] %vm504, %v891
    %948 = vst.msk [vmem:[#allocation2 + $0xf8] sm:$0xff] %vm504, %v894
    %949 = vst.msk [vmem:[#allocation2 + $0x100] sm:$0xff] %vm504, %v899
    %950 = vst.msk [vmem:[#allocation2 + $0x108] sm:$0xff] %vm504, %v902
    %951 = vst.msk [vmem:[#allocation2 + $0x110] sm:$0xff] %vm504, %v907
    %952 = vst.msk [vmem:[#allocation2 + $0x118] sm:$0xff] %vm504, %v910
  $region21: #{_lambda_.7} parent=0 // pred_fallthru
    _
  %p953 = scmp.ne.s32.totalorder 0, 0
  // Predicated region
  $region22: #{_lambda_.7} parent=0 // pred_check
    %p954 = pneg %p953
  $region23: #{_lambda_.7} parent=0 // pred_check_branch
    %956 = sbr.rel (%p954) target = $region25
  $region24: #{_lambda_.7} parent=0 // pred_region
    %v957 = vld [vmem:[#allocation2] sm:$0xff]
    %v958 = vld [vmem:[#allocation2 + $0x8] sm:$0xff]
    %v959 = vld [vmem:[#allocation2 + $0x10] sm:$0xff]
    %v960 = vld [vmem:[#allocation2 + $0x18] sm:$0xff]
    %v961 = vld [vmem:[#allocation2 + $0x20] sm:$0xff]
    %v962 = vld [vmem:[#allocation2 + $0x28] sm:$0xff]
    %v963 = vld [vmem:[#allocation2 + $0x30] sm:$0xff]
    %v964 = vld [vmem:[#allocation2 + $0x38] sm:$0xff]
    %v965 = vld [vmem:[#allocation2 + $0x40] sm:$0xff]
    %v966 = vld [vmem:[#allocation2 + $0x48] sm:$0xff]
    %v967 = vld [vmem:[#allocation2 + $0x50] sm:$0xff]
    %v968 = vld [vmem:[#allocation2 + $0x58] sm:$0xff]
    %v969 = vld [vmem:[#allocation2 + $0x60] sm:$0xff]
    %v970 = vld [vmem:[#allocation2 + $0x68] sm:$0xff]
    %v971 = vld [vmem:[#allocation2 + $0x70] sm:$0xff]
    %v972 = vld [vmem:[#allocation2 + $0x78] sm:$0xff]
    %v973 = vld [vmem:[#allocation2 + $0x80] sm:$0xff]
    %v974 = vld [vmem:[#allocation2 + $0x88] sm:$0xff]
    %v975 = vld [vmem:[#allocation2 + $0x90] sm:$0xff]
    %v976 = vld [vmem:[#allocation2 + $0x98] sm:$0xff]
    %v977 = vld [vmem:[#allocation2 + $0xa0] sm:$0xff]
    %v978 = vld [vmem:[#allocation2 + $0xa8] sm:$0xff]
    %v979 = vld [vmem:[#allocation2 + $0xb0] sm:$0xff]
    %v980 = vld [vmem:[#allocation2 + $0xb8] sm:$0xff]
    %v981 = vld [vmem:[#allocation2 + $0xc0] sm:$0xff]
    %v982 = vld [vmem:[#allocation2 + $0xc8] sm:$0xff]
    %v983 = vld [vmem:[#allocation2 + $0xd0] sm:$0xff]
    %v984 = vld [vmem:[#allocation2 + $0xd8] sm:$0xff]
    %v985 = vld [vmem:[#allocation2 + $0xe0] sm:$0xff]
    %v986 = vld [vmem:[#allocation2 + $0xe8] sm:$0xff]
    %v987 = vld [vmem:[#allocation2 + $0xf0] sm:$0xff]
    %v988 = vld [vmem:[#allocation2 + $0xf8] sm:$0xff]
    %v989 = vld [vmem:[#allocation2 + $0x100] sm:$0xff]
    %v990 = vld [vmem:[#allocation2 + $0x108] sm:$0xff]
    %v991 = vld [vmem:[#allocation2 + $0x110] sm:$0xff]
    %v992 = vld [vmem:[#allocation2 + $0x118] sm:$0xff]
    %v993 = vadd.f32 %v957, %v771
    %v994 = vadd.f32 %v958, %v774
    %v995 = vadd.f32 %v959, %v779
    %v996 = vadd.f32 %v960, %v782
    %v997 = vadd.f32 %v961, %v787
    %v998 = vadd.f32 %v962, %v790
    %v999 = vadd.f32 %v963, %v795
    %v1000 = vadd.f32 %v964, %v798
    %v1001 = vadd.f32 %v965, %v803
    %v1002 = vadd.f32 %v966, %v806
    %v1003 = vadd.f32 %v967, %v811
    %v1004 = vadd.f32 %v968, %v814
    %v1005 = vadd.f32 %v969, %v819
    %v1006 = vadd.f32 %v970, %v822
    %v1007 = vadd.f32 %v971, %v827
    %v1008 = vadd.f32 %v972, %v830
    %v1009 = vadd.f32 %v973, %v835
    %v1010 = vadd.f32 %v974, %v838
    %v1011 = vadd.f32 %v975, %v843
    %v1012 = vadd.f32 %v976, %v846
    %v1013 = vadd.f32 %v977, %v851
    %v1014 = vadd.f32 %v978, %v854
    %v1015 = vadd.f32 %v979, %v859
    %v1016 = vadd.f32 %v980, %v862
    %v1017 = vadd.f32 %v981, %v867
    %v1018 = vadd.f32 %v982, %v870
    %v1019 = vadd.f32 %v983, %v875
    %v1020 = vadd.f32 %v984, %v878
    %v1021 = vadd.f32 %v985, %v883
    %v1022 = vadd.f32 %v986, %v886
    %v1023 = vadd.f32 %v987, %v891
    %v1024 = vadd.f32 %v988, %v894
    %v1025 = vadd.f32 %v989, %v899
    %v1026 = vadd.f32 %v990, %v902
    %v1027 = vadd.f32 %v991, %v907
    %v1028 = vadd.f32 %v992, %v910
    %1029 = vst.msk [vmem:[#allocation2] sm:$0xff] %vm504, %v993
    %1030 = vst.msk [vmem:[#allocation2 + $0x8] sm:$0xff] %vm504, %v994
    %1031 = vst.msk [vmem:[#allocation2 + $0x10] sm:$0xff] %vm504, %v995
    %1032 = vst.msk [vmem:[#allocation2 + $0x18] sm:$0xff] %vm504, %v996
    %1033 = vst.msk [vmem:[#allocation2 + $0x20] sm:$0xff] %vm504, %v997
    %1034 = vst.msk [vmem:[#allocation2 + $0x28] sm:$0xff] %vm504, %v998
    %1035 = vst.msk [vmem:[#allocation2 + $0x30] sm:$0xff] %vm504, %v999
    %1036 = vst.msk [vmem:[#allocation2 + $0x38] sm:$0xff] %vm504, %v1000
    %1037 = vst.msk [vmem:[#allocation2 + $0x40] sm:$0xff] %vm504, %v1001
    %1038 = vst.msk [vmem:[#allocation2 + $0x48] sm:$0xff] %vm504, %v1002
    %1039 = vst.msk [vmem:[#allocation2 + $0x50] sm:$0xff] %vm504, %v1003
    %1040 = vst.msk [vmem:[#allocation2 + $0x58] sm:$0xff] %vm504, %v1004
    %1041 = vst.msk [vmem:[#allocation2 + $0x60] sm:$0xff] %vm504, %v1005
    %1042 = vst.msk [vmem:[#allocation2 + $0x68] sm:$0xff] %vm504, %v1006
    %1043 = vst.msk [vmem:[#allocation2 + $0x70] sm:$0xff] %vm504, %v1007
    %1044 = vst.msk [vmem:[#allocation2 + $0x78] sm:$0xff] %vm504, %v1008
    %1045 = vst.msk [vmem:[#allocation2 + $0x80] sm:$0xff] %vm504, %v1009
    %1046 = vst.msk [vmem:[#allocation2 + $0x88] sm:$0xff] %vm504, %v1010
    %1047 = vst.msk [vmem:[#allocation2 + $0x90] sm:$0xff] %vm504, %v1011
    %1048 = vst.msk [vmem:[#allocation2 + $0x98] sm:$0xff] %vm504, %v1012
    %1049 = vst.msk [vmem:[#allocation2 + $0xa0] sm:$0xff] %vm504, %v1013
    %1050 = vst.msk [vmem:[#allocation2 + $0xa8] sm:$0xff] %vm504, %v1014
    %1051 = vst.msk [vmem:[#allocation2 + $0xb0] sm:$0xff] %vm504, %v1015
    %1052 = vst.msk [vmem:[#allocation2 + $0xb8] sm:$0xff] %vm504, %v1016
    %1053 = vst.msk [vmem:[#allocation2 + $0xc0] sm:$0xff] %vm504, %v1017
    %1054 = vst.msk [vmem:[#allocation2 + $0xc8] sm:$0xff] %vm504, %v1018
    %1055 = vst.msk [vmem:[#allocation2 + $0xd0] sm:$0xff] %vm504, %v1019
    %1056 = vst.msk [vmem:[#allocation2 + $0xd8] sm:$0xff] %vm504, %v1020
    %1057 = vst.msk [vmem:[#allocation2 + $0xe0] sm:$0xff] %vm504, %v1021
    %1058 = vst.msk [vmem:[#allocation2 + $0xe8] sm:$0xff] %vm504, %v1022
    %1059 = vst.msk [vmem:[#allocation2 + $0xf0] sm:$0xff] %vm504, %v1023
    %1060 = vst.msk [vmem:[#allocation2 + $0xf8] sm:$0xff] %vm504, %v1024
    %1061 = vst.msk [vmem:[#allocation2 + $0x100] sm:$0xff] %vm504, %v1025
    %1062 = vst.msk [vmem:[#allocation2 + $0x108] sm:$0xff] %vm504, %v1026
    %1063 = vst.msk [vmem:[#allocation2 + $0x110] sm:$0xff] %vm504, %v1027
    %1064 = vst.msk [vmem:[#allocation2 + $0x118] sm:$0xff] %vm504, %v1028
  $region25: #{_lambda_.7} parent=0 // pred_fallthru
    _
  // Predicated region
  $region26: #{_lambda_.7} parent=0 // pred_check
    %p1065 = pneg %p913
  $region27: #{_lambda_.7} parent=0 // pred_check_branch
    %1067 = sbr.rel (%p1065) target = $region29
  $region28: #{_lambda_.7} parent=0 // pred_region
    %v1068 = vld [vmem:[#allocation2] sm:$0xff]
    %v1069 = vld [vmem:[#allocation2 + $0x8] sm:$0xff]
    %v1070 = vld [vmem:[#allocation2 + $0x10] sm:$0xff]
    %v1071 = vld [vmem:[#allocation2 + $0x18] sm:$0xff]
    %v1072 = vld [vmem:[#allocation2 + $0x20] sm:$0xff]
    %v1073 = vld [vmem:[#allocation2 + $0x28] sm:$0xff]
    %v1074 = vld [vmem:[#allocation2 + $0x30] sm:$0xff]
    %v1075 = vld [vmem:[#allocation2 + $0x38] sm:$0xff]
    %v1076 = vld [vmem:[#allocation2 + $0x40] sm:$0xff]
    %v1077 = vld [vmem:[#allocation2 + $0x48] sm:$0xff]
    %v1078 = vld [vmem:[#allocation2 + $0x50] sm:$0xff]
    %v1079 = vld [vmem:[#allocation2 + $0x58] sm:$0xff]
    %v1080 = vld [vmem:[#allocation2 + $0x60] sm:$0xff]
    %v1081 = vld [vmem:[#allocation2 + $0x68] sm:$0xff]
    %v1082 = vld [vmem:[#allocation2 + $0x70] sm:$0xff]
    %v1083 = vld [vmem:[#allocation2 + $0x78] sm:$0xff]
    %v1084 = vld [vmem:[#allocation2 + $0x80] sm:$0xff]
    %v1085 = vld [vmem:[#allocation2 + $0x88] sm:$0xff]
    %v1086 = vld [vmem:[#allocation2 + $0x90] sm:$0xff]
    %v1087 = vld [vmem:[#allocation2 + $0x98] sm:$0xff]
    %v1088 = vld [vmem:[#allocation2 + $0xa0] sm:$0xff]
    %v1089 = vld [vmem:[#allocation2 + $0xa8] sm:$0xff]
    %v1090 = vld [vmem:[#allocation2 + $0xb0] sm:$0xff]
    %v1091 = vld [vmem:[#allocation2 + $0xb8] sm:$0xff]
    %v1092 = vld [vmem:[#allocation2 + $0xc0] sm:$0xff]
    %v1093 = vld [vmem:[#allocation2 + $0xc8] sm:$0xff]
    %v1094 = vld [vmem:[#allocation2 + $0xd0] sm:$0xff]
    %v1095 = vld [vmem:[#allocation2 + $0xd8] sm:$0xff]
    %v1096 = vld [vmem:[#allocation2 + $0xe0] sm:$0xff]
    %v1097 = vld [vmem:[#allocation2 + $0xe8] sm:$0xff]
    %v1098 = vld [vmem:[#allocation2 + $0xf0] sm:$0xff]
    %v1099 = vld [vmem:[#allocation2 + $0xf8] sm:$0xff]
    %v1100 = vld [vmem:[#allocation2 + $0x100] sm:$0xff]
    %v1101 = vld [vmem:[#allocation2 + $0x108] sm:$0xff]
    %v1102 = vld [vmem:[#allocation2 + $0x110] sm:$0xff]
    %v1103 = vld [vmem:[#allocation2 + $0x118] sm:$0xff]
    %v1104 = vld [vmem:[%s2] sm:$0x1]
    %v1106 = vlaneseq
    %v1107 = vshrl.u32 %v1106, 7
    %v1108 = vsub.s32 0, %v1107
    %v1109 = vrot.slane %v1104, %v1108
    %v1111 = vmul.f32 %v1068, %v1109
    %v1112 = vmul.f32 %v1069, %v1109
    %v1113 = vmul.f32 %v1070, %v1109
    %v1114 = vmul.f32 %v1071, %v1109
    %v1115 = vmul.f32 %v1072, %v1109
    %v1116 = vmul.f32 %v1073, %v1109
    %v1117 = vmul.f32 %v1074, %v1109
    %v1118 = vmul.f32 %v1075, %v1109
    %v1119 = vmul.f32 %v1076, %v1109
    %v1120 = vmul.f32 %v1077, %v1109
    %v1121 = vmul.f32 %v1078, %v1109
    %v1122 = vmul.f32 %v1079, %v1109
    %v1123 = vmul.f32 %v1080, %v1109
    %v1124 = vmul.f32 %v1081, %v1109
    %v1125 = vmul.f32 %v1082, %v1109
    %v1126 = vmul.f32 %v1083, %v1109
    %v1127 = vmul.f32 %v1084, %v1109
    %v1128 = vmul.f32 %v1085, %v1109
    %v1129 = vmul.f32 %v1086, %v1109
    %v1130 = vmul.f32 %v1087, %v1109
    %v1131 = vmul.f32 %v1088, %v1109
    %v1132 = vmul.f32 %v1089, %v1109
    %v1133 = vmul.f32 %v1090, %v1109
    %v1134 = vmul.f32 %v1091, %v1109
    %v1135 = vmul.f32 %v1092, %v1109
    %v1136 = vmul.f32 %v1093, %v1109
    %v1137 = vmul.f32 %v1094, %v1109
    %v1138 = vmul.f32 %v1095, %v1109
    %v1139 = vmul.f32 %v1096, %v1109
    %v1140 = vmul.f32 %v1097, %v1109
    %v1141 = vmul.f32 %v1098, %v1109
    %v1142 = vmul.f32 %v1099, %v1109
    %v1143 = vmul.f32 %v1100, %v1109
    %v1144 = vmul.f32 %v1101, %v1109
    %v1145 = vmul.f32 %v1102, %v1109
    %v1146 = vmul.f32 %v1103, %v1109
    %v1147 = vld [vmem:[%s3] sm:$0x1]
    %v1149 = vlaneseq
    %v1150 = vshrl.u32 %v1149, 7
    %v1151 = vsub.s32 0, %v1150
    %v1152 = vrot.slane %v1147, %v1151
    %v1154 = vadd.f32 %v1111, %v1152
    %v1155 = vadd.f32 %v1112, %v1152
    %v1156 = vadd.f32 %v1113, %v1152
    %v1157 = vadd.f32 %v1114, %v1152
    %v1158 = vadd.f32 %v1115, %v1152
    %v1159 = vadd.f32 %v1116, %v1152
    %v1160 = vadd.f32 %v1117, %v1152
    %v1161 = vadd.f32 %v1118, %v1152
    %v1162 = vadd.f32 %v1119, %v1152
    %v1163 = vadd.f32 %v1120, %v1152
    %v1164 = vadd.f32 %v1121, %v1152
    %v1165 = vadd.f32 %v1122, %v1152
    %v1166 = vadd.f32 %v1123, %v1152
    %v1167 = vadd.f32 %v1124, %v1152
    %v1168 = vadd.f32 %v1125, %v1152
    %v1169 = vadd.f32 %v1126, %v1152
    %v1170 = vadd.f32 %v1127, %v1152
    %v1171 = vadd.f32 %v1128, %v1152
    %v1172 = vadd.f32 %v1129, %v1152
    %v1173 = vadd.f32 %v1130, %v1152
    %v1174 = vadd.f32 %v1131, %v1152
    %v1175 = vadd.f32 %v1132, %v1152
    %v1176 = vadd.f32 %v1133, %v1152
    %v1177 = vadd.f32 %v1134, %v1152
    %v1178 = vadd.f32 %v1135, %v1152
    %v1179 = vadd.f32 %v1136, %v1152
    %v1180 = vadd.f32 %v1137, %v1152
    %v1181 = vadd.f32 %v1138, %v1152
    %v1182 = vadd.f32 %v1139, %v1152
    %v1183 = vadd.f32 %v1140, %v1152
    %v1184 = vadd.f32 %v1141, %v1152
    %v1185 = vadd.f32 %v1142, %v1152
    %v1186 = vadd.f32 %v1143, %v1152
    %v1187 = vadd.f32 %v1144, %v1152
    %v1188 = vadd.f32 %v1145, %v1152
    %v1189 = vadd.f32 %v1146, %v1152
    %v1190 = vmax.f32 %v1154, 0.0
    %v1191 = vmax.f32 %v1155, 0.0
    %v1192 = vmax.f32 %v1156, 0.0
    %v1193 = vmax.f32 %v1157, 0.0
    %v1194 = vmax.f32 %v1158, 0.0
    %v1195 = vmax.f32 %v1159, 0.0
    %v1196 = vmax.f32 %v1160, 0.0
    %v1197 = vmax.f32 %v1161, 0.0
    %v1198 = vmax.f32 %v1162, 0.0
    %v1199 = vmax.f32 %v1163, 0.0
    %v1200 = vmax.f32 %v1164, 0.0
    %v1201 = vmax.f32 %v1165, 0.0
    %v1202 = vmax.f32 %v1166, 0.0
    %v1203 = vmax.f32 %v1167, 0.0
    %v1204 = vmax.f32 %v1168, 0.0
    %v1205 = vmax.f32 %v1169, 0.0
    %v1206 = vmax.f32 %v1170, 0.0
    %v1207 = vmax.f32 %v1171, 0.0
    %v1208 = vmax.f32 %v1172, 0.0
    %v1209 = vmax.f32 %v1173, 0.0
    %v1210 = vmax.f32 %v1174, 0.0
    %v1211 = vmax.f32 %v1175, 0.0
    %v1212 = vmax.f32 %v1176, 0.0
    %v1213 = vmax.f32 %v1177, 0.0
    %v1214 = vmax.f32 %v1178, 0.0
    %v1215 = vmax.f32 %v1179, 0.0
    %v1216 = vmax.f32 %v1180, 0.0
    %v1217 = vmax.f32 %v1181, 0.0
    %v1218 = vmax.f32 %v1182, 0.0
    %v1219 = vmax.f32 %v1183, 0.0
    %v1220 = vmax.f32 %v1184, 0.0
    %v1221 = vmax.f32 %v1185, 0.0
    %v1222 = vmax.f32 %v1186, 0.0
    %v1223 = vmax.f32 %v1187, 0.0
    %v1224 = vmax.f32 %v1188, 0.0
    %v1225 = vmax.f32 %v1189, 0.0
    %v1226 = vpack.c.bf16 %v1191, %v1190
    %v1227 = vpack.c.bf16 %v1193, %v1192
    %v1228 = vpack.c.bf16 %v1195, %v1194
    %v1229 = vpack.c.bf16 %v1197, %v1196
    %v1230 = vpack.c.bf16 %v1199, %v1198
    %v1231 = vpack.c.bf16 %v1201, %v1200
    %v1232 = vpack.c.bf16 %v1203, %v1202
    %v1233 = vpack.c.bf16 %v1205, %v1204
    %v1234 = vpack.c.bf16 %v1207, %v1206
    %v1235 = vpack.c.bf16 %v1209, %v1208
    %v1236 = vpack.c.bf16 %v1211, %v1210
    %v1237 = vpack.c.bf16 %v1213, %v1212
    %v1238 = vpack.c.bf16 %v1215, %v1214
    %v1239 = vpack.c.bf16 %v1217, %v1216
    %v1240 = vpack.c.bf16 %v1219, %v1218
    %v1241 = vpack.c.bf16 %v1221, %v1220
    %v1242 = vpack.c.bf16 %v1223, %v1222
    %v1243 = vpack.c.bf16 %v1225, %v1224
    %v1262 = vunpack.c.l.b16 %v1226
    %v1263 = vunpack.c.h.b16 %v1226
    %v1264 = vunpack.c.l.b16 %v1227
    %v1265 = vunpack.c.h.b16 %v1227
    %v1266 = vunpack.c.l.b16 %v1228
    %v1267 = vunpack.c.h.b16 %v1228
    %v1268 = vunpack.c.l.b16 %v1229
    %v1269 = vunpack.c.h.b16 %v1229
    %v1270 = vunpack.c.l.b16 %v1230
    %v1271 = vunpack.c.h.b16 %v1230
    %v1272 = vunpack.c.l.b16 %v1231
    %v1273 = vunpack.c.h.b16 %v1231
    %v1274 = vunpack.c.l.b16 %v1232
    %v1275 = vunpack.c.h.b16 %v1232
    %v1276 = vunpack.c.l.b16 %v1233
    %v1277 = vunpack.c.h.b16 %v1233
    %v1278 = vunpack.c.l.b16 %v1234
    %v1279 = vunpack.c.h.b16 %v1234
    %v1280 = vunpack.c.l.b16 %v1235
    %v1281 = vunpack.c.h.b16 %v1235
    %v1282 = vunpack.c.l.b16 %v1236
    %v1283 = vunpack.c.h.b16 %v1236
    %v1284 = vunpack.c.l.b16 %v1237
    %v1285 = vunpack.c.h.b16 %v1237
    %v1286 = vunpack.c.l.b16 %v1238
    %v1287 = vunpack.c.h.b16 %v1238
    %v1288 = vunpack.c.l.b16 %v1239
    %v1289 = vunpack.c.h.b16 %v1239
    %v1290 = vunpack.c.l.b16 %v1240
    %v1291 = vunpack.c.h.b16 %v1240
    %v1292 = vunpack.c.l.b16 %v1241
    %v1293 = vunpack.c.h.b16 %v1241
    %v1294 = vunpack.c.l.b16 %v1242
    %v1295 = vunpack.c.h.b16 %v1242
    %v1296 = vunpack.c.l.b16 %v1243
    %v1297 = vunpack.c.h.b16 %v1243
    %v1298 = vpack.c.b16 %v1262, %v1262
    %v1299 = vpack.c.b16 %v1263, %v1263
    %v1300 = vpack.c.b16 %v1264, %v1264
    %v1301 = vpack.c.b16 %v1265, %v1265
    %v1302 = vpack.c.b16 %v1266, %v1266
    %v1303 = vpack.c.b16 %v1267, %v1267
    %v1304 = vpack.c.b16 %v1268, %v1268
    %v1305 = vpack.c.b16 %v1269, %v1269
    %v1306 = vpack.c.b16 %v1270, %v1270
    %v1307 = vpack.c.b16 %v1271, %v1271
    %v1308 = vpack.c.b16 %v1272, %v1272
    %v1309 = vpack.c.b16 %v1273, %v1273
    %v1310 = vpack.c.b16 %v1274, %v1274
    %v1311 = vpack.c.b16 %v1275, %v1275
    %v1312 = vpack.c.b16 %v1276, %v1276
    %v1313 = vpack.c.b16 %v1277, %v1277
    %v1314 = vpack.c.b16 %v1278, %v1278
    %v1315 = vpack.c.b16 %v1279, %v1279
    %v1316 = vpack.c.b16 %v1280, %v1280
    %v1317 = vpack.c.b16 %v1281, %v1281
    %v1318 = vpack.c.b16 %v1282, %v1282
    %v1319 = vpack.c.b16 %v1283, %v1283
    %v1320 = vpack.c.b16 %v1284, %v1284
    %v1321 = vpack.c.b16 %v1285, %v1285
    %v1322 = vpack.c.b16 %v1286, %v1286
    %v1323 = vpack.c.b16 %v1287, %v1287
    %v1324 = vpack.c.b16 %v1288, %v1288
    %v1325 = vpack.c.b16 %v1289, %v1289
    %v1326 = vpack.c.b16 %v1290, %v1290
    %v1327 = vpack.c.b16 %v1291, %v1291
    %v1328 = vpack.c.b16 %v1292, %v1292
    %v1329 = vpack.c.b16 %v1293, %v1293
    %v1330 = vpack.c.b16 %v1294, %v1294
    %v1331 = vpack.c.b16 %v1295, %v1295
    %v1332 = vpack.c.b16 %v1296, %v1296
    %v1333 = vpack.c.b16 %v1297, %v1297
    %vm1370 = vcmask 257024
    %1371 = vst.msk [vmem:[%s4] sm:$0xf] %vm1370, %v1298
    %1372 = vst.msk [vmem:[%s4 + $0x4] sm:$0xf] %vm1370, %v1299
    %1373 = vst.msk [vmem:[%s4 + $0x8] sm:$0xf] %vm1370, %v1300
    %1374 = vst.msk [vmem:[%s4 + $0xc] sm:$0xf] %vm1370, %v1301
    %1375 = vst.msk [vmem:[%s4 + $0x10] sm:$0xf] %vm1370, %v1302
    %1376 = vst.msk [vmem:[%s4 + $0x14] sm:$0xf] %vm1370, %v1303
    %1377 = vst.msk [vmem:[%s4 + $0x18] sm:$0xf] %vm1370, %v1304
    %1378 = vst.msk [vmem:[%s4 + $0x1c] sm:$0xf] %vm1370, %v1305
    %1379 = vst.msk [vmem:[%s4 + $0x20] sm:$0xf] %vm1370, %v1306
    %1380 = vst.msk [vmem:[%s4 + $0x24] sm:$0xf] %vm1370, %v1307
    %1381 = vst.msk [vmem:[%s4 + $0x28] sm:$0xf] %vm1370, %v1308
    %1382 = vst.msk [vmem:[%s4 + $0x2c] sm:$0xf] %vm1370, %v1309
    %1383 = vst.msk [vmem:[%s4 + $0x30] sm:$0xf] %vm1370, %v1310
    %1384 = vst.msk [vmem:[%s4 + $0x34] sm:$0xf] %vm1370, %v1311
    %1385 = vst.msk [vmem:[%s4 + $0x38] sm:$0xf] %vm1370, %v1312
    %1386 = vst.msk [vmem:[%s4 + $0x3c] sm:$0xf] %vm1370, %v1313
    %1387 = vst.msk [vmem:[%s4 + $0x40] sm:$0xf] %vm1370, %v1314
    %1388 = vst.msk [vmem:[%s4 + $0x44] sm:$0xf] %vm1370, %v1315
    %1389 = vst.msk [vmem:[%s4 + $0x48] sm:$0xf] %vm1370, %v1316
    %1390 = vst.msk [vmem:[%s4 + $0x4c] sm:$0xf] %vm1370, %v1317
    %1391 = vst.msk [vmem:[%s4 + $0x50] sm:$0xf] %vm1370, %v1318
    %1392 = vst.msk [vmem:[%s4 + $0x54] sm:$0xf] %vm1370, %v1319
    %1393 = vst.msk [vmem:[%s4 + $0x58] sm:$0xf] %vm1370, %v1320
    %1394 = vst.msk [vmem:[%s4 + $0x5c] sm:$0xf] %vm1370, %v1321
    %1395 = vst.msk [vmem:[%s4 + $0x60] sm:$0xf] %vm1370, %v1322
    %1396 = vst.msk [vmem:[%s4 + $0x64] sm:$0xf] %vm1370, %v1323
    %1397 = vst.msk [vmem:[%s4 + $0x68] sm:$0xf] %vm1370, %v1324
    %1398 = vst.msk [vmem:[%s4 + $0x6c] sm:$0xf] %vm1370, %v1325
    %1399 = vst.msk [vmem:[%s4 + $0x70] sm:$0xf] %vm1370, %v1326
    %1400 = vst.msk [vmem:[%s4 + $0x74] sm:$0xf] %vm1370, %v1327
    %1401 = vst.msk [vmem:[%s4 + $0x78] sm:$0xf] %vm1370, %v1328
    %1402 = vst.msk [vmem:[%s4 + $0x7c] sm:$0xf] %vm1370, %v1329
    %1403 = vst.msk [vmem:[%s4 + $0x80] sm:$0xf] %vm1370, %v1330
    %1404 = vst.msk [vmem:[%s4 + $0x84] sm:$0xf] %vm1370, %v1331
    %1405 = vst.msk [vmem:[%s4 + $0x88] sm:$0xf] %vm1370, %v1332
    %1406 = vst.msk [vmem:[%s4 + $0x8c] sm:$0xf] %vm1370, %v1333
  $region29: #{_lambda_.7} parent=0 // pred_fallthru
    _
  // Predicated region
  $region30: #{_lambda_.7} parent=0 // pred_check
    _
  $region31: #{_lambda_.7} parent=0 // pred_check_branch
    %1408 = sbr.rel (0) target = $region33
  $region32: #{_lambda_.7} parent=0 // pred_region
    _
  $region33: #{_lambda_.7} parent=0 // pred_fallthru
    _
  // Predicated region
  $region34: #{_lambda_.7} parent=0 // pred_check
    _
  $region35: #{_lambda_.7} parent=0 // pred_check_branch
    %1410 = sbr.rel (0) target = $region37
  $region36: #{_lambda_.7} parent=0 // pred_region
    _
  $region37: #{_lambda_.7} parent=0 // pred_fallthru
    _

// kernel: _lambda_.8
$region0: #{_lambda_.8}
  #allocation0 [shape = 'u32[]', space=smem, size = 0x4, offset = 0x4, fixed_abs, tag = 'smem constant byte address 0x4 - core index']
  #allocation1 [shape = 'u32[144,128]{1,0:T(1,128)}', space=vmem, size = 0x12000, scoped, tag = 'internal scratch']
  #allocation2 [shape = 'f32[200,64]{1,0:T(8,128)}', space=vmem, size = 0x19000, scoped, tag = 'scratch operand']
  %s0 = inlined_call_operand.vmem [shape: bf16[200,288], index: 0, kind: input, shape index: {}]
  %s1 = inlined_call_operand.vmem [shape: bf16[288,64], index: 1, kind: input, shape index: {}]
  %s2 = inlined_call_operand.vmem [shape: f32[1,64], index: 2, kind: input, shape index: {}]
  %s3 = inlined_call_operand.vmem [shape: f32[1,64], index: 3, kind: input, shape index: {}]
  %s4 = inlined_call_operand.vmem [shape: f32[2,200], index: 4, kind: input, shape index: {}]
  %s5 = inlined_call_operand.vmem [shape: f32[2,64], index: 5, kind: output, shape index: {}]
  %s6 = sld [smem:[#allocation0]]
  $region42: #{_lambda_.8} parent=0
    _
  %s8 = ssub.s32 1, %s6
  %s9 = scalar_select 0, %s8, %s6
  // Predicated region
  $region2: #{_lambda_.8} parent=0 // pred_check
    _
  $region3: #{_lambda_.8} parent=0 // pred_check_branch
    %11 = sbr.rel (0) target = $region5
  $region4: #{_lambda_.8} parent=0 // pred_region
    _
  $region5: #{_lambda_.8} parent=0 // pred_fallthru
    _
  // Predicated region
  $region6: #{_lambda_.8} parent=0 // pred_check
    _
  $region7: #{_lambda_.8} parent=0 // pred_check_branch
    %13 = sbr.rel (0) target = $region9
  $region8: #{_lambda_.8} parent=0 // pred_region
    _
  $region9: #{_lambda_.8} parent=0 // pred_fallthru
    _
  // Predicated region
  $region10: #{_lambda_.8} parent=0 // pred_check
    _
  $region11: #{_lambda_.8} parent=0 // pred_check_branch
    %15 = sbr.rel (0) target = $region13
  $region12: #{_lambda_.8} parent=0 // pred_region
    _
  $region13: #{_lambda_.8} parent=0 // pred_fallthru
    _
  // Predicated region
  $region14: #{_lambda_.8} parent=0 // pred_check
    _
  $region15: #{_lambda_.8} parent=0 // pred_check_branch
    %17 = sbr.rel (0) target = $region17
  $region16: #{_lambda_.8} parent=0 // pred_region
    _
  $region17: #{_lambda_.8} parent=0 // pred_fallthru
    _
  // Predicated region
  $region18: #{_lambda_.8} parent=0 // pred_check
    _
  $region19: #{_lambda_.8} parent=0 // pred_check_branch
    %19 = sbr.rel (0) target = $region21
  $region20: #{_lambda_.8} parent=0 // pred_region
    _
  $region21: #{_lambda_.8} parent=0 // pred_fallthru
    _
  %v21 = vld [vmem:[%s0] sm:$0xff]
  %v22 = vld [vmem:[%s0 + $0x8] sm:$0xf]
  %v23 = vld [vmem:[%s0 + $0xc] sm:$0xff]
  %v24 = vld [vmem:[%s0 + $0x14] sm:$0xf]
  %v25 = vld [vmem:[%s0 + $0x18] sm:$0xff]
  %v26 = vld [vmem:[%s0 + $0x20] sm:$0xf]
  %v27 = vld [vmem:[%s0 + $0x24] sm:$0xff]
  %v28 = vld [vmem:[%s0 + $0x2c] sm:$0xf]
  %v29 = vld [vmem:[%s0 + $0x30] sm:$0xff]
  %v30 = vld [vmem:[%s0 + $0x38] sm:$0xf]
  %v31 = vld [vmem:[%s0 + $0x3c] sm:$0xff]
  %v32 = vld [vmem:[%s0 + $0x44] sm:$0xf]
  %v33 = vld [vmem:[%s0 + $0x48] sm:$0xff]
  %v34 = vld [vmem:[%s0 + $0x50] sm:$0xf]
  %v35 = vld [vmem:[%s0 + $0x54] sm:$0xff]
  %v36 = vld [vmem:[%s0 + $0x5c] sm:$0xf]
  %v37 = vld [vmem:[%s0 + $0x60] sm:$0xff]
  %v38 = vld [vmem:[%s0 + $0x68] sm:$0xf]
  %v39 = vld [vmem:[%s0 + $0x6c] sm:$0xff]
  %v40 = vld [vmem:[%s0 + $0x74] sm:$0xf]
  %v41 = vld [vmem:[%s0 + $0x78] sm:$0xff]
  %v42 = vld [vmem:[%s0 + $0x80] sm:$0xf]
  %v43 = vld [vmem:[%s0 + $0x84] sm:$0xff]
  %v44 = vld [vmem:[%s0 + $0x8c] sm:$0xf]
  %v45 = vld [vmem:[%s0 + $0x90] sm:$0xff]
  %v46 = vld [vmem:[%s0 + $0x98] sm:$0xf]
  %v47 = vld [vmem:[%s0 + $0x9c] sm:$0xff]
  %v48 = vld [vmem:[%s0 + $0xa4] sm:$0xf]
  %v49 = vld [vmem:[%s0 + $0xa8] sm:$0xff]
  %v50 = vld [vmem:[%s0 + $0xb0] sm:$0xf]
  %v51 = vld [vmem:[%s0 + $0xb4] sm:$0xff]
  %v52 = vld [vmem:[%s0 + $0xbc] sm:$0xf]
  %v53 = vld [vmem:[%s0 + $0xc0] sm:$0xff]
  %v54 = vld [vmem:[%s0 + $0xc8] sm:$0xf]
  %v55 = vld [vmem:[%s0 + $0xcc] sm:$0xff]
  %v56 = vld [vmem:[%s0 + $0xd4] sm:$0xf]
  %v57 = vld [vmem:[%s0 + $0xd8] sm:$0xff]
  %v58 = vld [vmem:[%s0 + $0xe0] sm:$0xf]
  %v59 = vld [vmem:[%s0 + $0xe4] sm:$0xff]
  %v60 = vld [vmem:[%s0 + $0xec] sm:$0xf]
  %v61 = vld [vmem:[%s0 + $0xf0] sm:$0xff]
  %v62 = vld [vmem:[%s0 + $0xf8] sm:$0xf]
  %v63 = vld [vmem:[%s0 + $0xfc] sm:$0xff]
  %v64 = vld [vmem:[%s0 + $0x104] sm:$0xf]
  %v65 = vld [vmem:[%s0 + $0x108] sm:$0xff]
  %v66 = vld [vmem:[%s0 + $0x110] sm:$0xf]
  %v67 = vld [vmem:[%s0 + $0x114] sm:$0xff]
  %v68 = vld [vmem:[%s0 + $0x11c] sm:$0xf]
  %v69 = vld [vmem:[%s0 + $0x120] sm:$0xff]
  %v70 = vld [vmem:[%s0 + $0x128] sm:$0xf]
  %v71 = vld [vmem:[%s1] sm:$0xf]
  %v72 = vld [vmem:[%s1 + $0x4] sm:$0xf]
  %v73 = vld [vmem:[%s1 + $0x8] sm:$0xf]
  %v74 = vld [vmem:[%s1 + $0xc] sm:$0xf]
  %v75 = vld [vmem:[%s1 + $0x10] sm:$0xf]
  %v76 = vld [vmem:[%s1 + $0x14] sm:$0xf]
  %v77 = vld [vmem:[%s1 + $0x18] sm:$0xf]
  %v78 = vld [vmem:[%s1 + $0x1c] sm:$0xf]
  %v79 = vld [vmem:[%s1 + $0x20] sm:$0xf]
  %v80 = vld [vmem:[%s1 + $0x24] sm:$0xf]
  %v81 = vld [vmem:[%s1 + $0x28] sm:$0xf]
  %v82 = vld [vmem:[%s1 + $0x2c] sm:$0xf]
  %v83 = vld [vmem:[%s1 + $0x30] sm:$0xf]
  %v84 = vld [vmem:[%s1 + $0x34] sm:$0xf]
  %v85 = vld [vmem:[%s1 + $0x38] sm:$0xf]
  %v86 = vld [vmem:[%s1 + $0x3c] sm:$0xf]
  %v87 = vld [vmem:[%s1 + $0x40] sm:$0xf]
  %v88 = vld [vmem:[%s1 + $0x44] sm:$0xf]
  %v89 = vld [vmem:[%s1 + $0x48] sm:$0xf]
  %v90 = vld [vmem:[%s1 + $0x4c] sm:$0xf]
  %v91 = vld [vmem:[%s1 + $0x50] sm:$0xf]
  %v92 = vld [vmem:[%s1 + $0x54] sm:$0xf]
  %v93 = vld [vmem:[%s1 + $0x58] sm:$0xf]
  %v94 = vld [vmem:[%s1 + $0x5c] sm:$0xf]
  %v95 = vld [vmem:[%s1 + $0x60] sm:$0xf]
  %v96 = vld [vmem:[%s1 + $0x64] sm:$0xf]
  %v97 = vld [vmem:[%s1 + $0x68] sm:$0xf]
  %v98 = vld [vmem:[%s1 + $0x6c] sm:$0xf]
  %v99 = vld [vmem:[%s1 + $0x70] sm:$0xf]
  %v100 = vld [vmem:[%s1 + $0x74] sm:$0xf]
  %v101 = vld [vmem:[%s1 + $0x78] sm:$0xf]
  %v102 = vld [vmem:[%s1 + $0x7c] sm:$0xf]
  %v103 = vld [vmem:[%s1 + $0x80] sm:$0xf]
  %v104 = vld [vmem:[%s1 + $0x84] sm:$0xf]
  %v105 = vld [vmem:[%s1 + $0x88] sm:$0xf]
  %v106 = vld [vmem:[%s1 + $0x8c] sm:$0xf]
  %v157 = vunpack.c.l.b16 %v21
  %v158 = vunpack.c.h.b16 %v21
  %v159 = vunpack.c.l.b16 %v22
  %v160 = vunpack.c.l.b16 %v23
  %v161 = vunpack.c.h.b16 %v23
  %v162 = vunpack.c.l.b16 %v24
  %v163 = vunpack.c.l.b16 %v25
  %v164 = vunpack.c.h.b16 %v25
  %v165 = vunpack.c.l.b16 %v26
  %v166 = vunpack.c.l.b16 %v27
  %v167 = vunpack.c.h.b16 %v27
  %v168 = vunpack.c.l.b16 %v28
  %v169 = vunpack.c.l.b16 %v29
  %v170 = vunpack.c.h.b16 %v29
  %v171 = vunpack.c.l.b16 %v30
  %v172 = vunpack.c.l.b16 %v31
  %v173 = vunpack.c.h.b16 %v31
  %v174 = vunpack.c.l.b16 %v32
  %v175 = vunpack.c.l.b16 %v33
  %v176 = vunpack.c.h.b16 %v33
  %v177 = vunpack.c.l.b16 %v34
  %v178 = vunpack.c.l.b16 %v35
  %v179 = vunpack.c.h.b16 %v35
  %v180 = vunpack.c.l.b16 %v36
  %v181 = vunpack.c.l.b16 %v37
  %v182 = vunpack.c.h.b16 %v37
  %v183 = vunpack.c.l.b16 %v38
  %v184 = vunpack.c.l.b16 %v39
  %v185 = vunpack.c.h.b16 %v39
  %v186 = vunpack.c.l.b16 %v40
  %v187 = vunpack.c.l.b16 %v41
  %v188 = vunpack.c.h.b16 %v41
  %v189 = vunpack.c.l.b16 %v42
  %v190 = vunpack.c.l.b16 %v43
  %v191 = vunpack.c.h.b16 %v43
  %v192 = vunpack.c.l.b16 %v44
  %v193 = vunpack.c.l.b16 %v45
  %v194 = vunpack.c.h.b16 %v45
  %v195 = vunpack.c.l.b16 %v46
  %v196 = vunpack.c.l.b16 %v47
  %v197 = vunpack.c.h.b16 %v47
  %v198 = vunpack.c.l.b16 %v48
  %v199 = vunpack.c.l.b16 %v49
  %v200 = vunpack.c.h.b16 %v49
  %v201 = vunpack.c.l.b16 %v50
  %v202 = vunpack.c.l.b16 %v51
  %v203 = vunpack.c.h.b16 %v51
  %v204 = vunpack.c.l.b16 %v52
  %v205 = vunpack.c.l.b16 %v53
  %v206 = vunpack.c.h.b16 %v53
  %v207 = vunpack.c.l.b16 %v54
  %v208 = vunpack.c.l.b16 %v55
  %v209 = vunpack.c.h.b16 %v55
  %v210 = vunpack.c.l.b16 %v56
  %v211 = vunpack.c.l.b16 %v57
  %v212 = vunpack.c.h.b16 %v57
  %v213 = vunpack.c.l.b16 %v58
  %v214 = vunpack.c.l.b16 %v59
  %v215 = vunpack.c.h.b16 %v59
  %v216 = vunpack.c.l.b16 %v60
  %v217 = vunpack.c.l.b16 %v61
  %v218 = vunpack.c.h.b16 %v61
  %v219 = vunpack.c.l.b16 %v62
  %v220 = vunpack.c.l.b16 %v63
  %v221 = vunpack.c.h.b16 %v63
  %v222 = vunpack.c.l.b16 %v64
  %v223 = vunpack.c.l.b16 %v65
  %v224 = vunpack.c.h.b16 %v65
  %v225 = vunpack.c.l.b16 %v66
  %v226 = vunpack.c.l.b16 %v67
  %v227 = vunpack.c.h.b16 %v67
  %v228 = vunpack.c.l.b16 %v68
  %v229 = vunpack.c.l.b16 %v69
  %v230 = vunpack.c.h.b16 %v69
  %v231 = vunpack.c.l.b16 %v70
  %v232 = vpack.c.b16 %v160, %v157
  %v233 = vpack.c.b16 %v161, %v158
  %v234 = vpack.c.b16 %v162, %v159
  %v235 = vpack.c.b16 %v166, %v163
  %v236 = vpack.c.b16 %v167, %v164
  %v237 = vpack.c.b16 %v168, %v165
  %v238 = vpack.c.b16 %v172, %v169
  %v239 = vpack.c.b16 %v173, %v170
  %v240 = vpack.c.b16 %v174, %v171
  %v241 = vpack.c.b16 %v178, %v175
  %v242 = vpack.c.b16 %v179, %v176
  %v243 = vpack.c.b16 %v180, %v177
  %v244 = vpack.c.b16 %v184, %v181
  %v245 = vpack.c.b16 %v185, %v182
  %v246 = vpack.c.b16 %v186, %v183
  %v247 = vpack.c.b16 %v190, %v187
  %v248 = vpack.c.b16 %v191, %v188
  %v249 = vpack.c.b16 %v192, %v189
  %v250 = vpack.c.b16 %v196, %v193
  %v251 = vpack.c.b16 %v197, %v194
  %v252 = vpack.c.b16 %v198, %v195
  %v253 = vpack.c.b16 %v202, %v199
  %v254 = vpack.c.b16 %v203, %v200
  %v255 = vpack.c.b16 %v204, %v201
  %v256 = vpack.c.b16 %v208, %v205
  %v257 = vpack.c.b16 %v209, %v206
  %v258 = vpack.c.b16 %v210, %v207
  %v259 = vpack.c.b16 %v214, %v211
  %v260 = vpack.c.b16 %v215, %v212
  %v261 = vpack.c.b16 %v216, %v213
  %v262 = vpack.c.b16 %v220, %v217
  %v263 = vpack.c.b16 %v221, %v218
  %v264 = vpack.c.b16 %v222, %v219
  %v265 = vpack.c.b16 %v226, %v223
  %v266 = vpack.c.b16 %v227, %v224
  %v267 = vpack.c.b16 %v228, %v225
  %v268 = vpack.c.b16 %v229, %v229
  %v269 = vpack.c.b16 %v230, %v230
  %v270 = vpack.c.b16 %v231, %v231
  %v333 = vunpack.c.l.b16 %v71
  %v334 = vunpack.c.l.b16 %v72
  %v335 = vunpack.c.l.b16 %v73
  %v336 = vunpack.c.l.b16 %v74
  %v337 = vunpack.c.l.b16 %v75
  %v338 = vunpack.c.l.b16 %v76
  %v339 = vunpack.c.l.b16 %v77
  %v340 = vunpack.c.l.b16 %v78
  %v341 = vunpack.c.l.b16 %v79
  %v342 = vunpack.c.l.b16 %v80
  %v343 = vunpack.c.l.b16 %v81
  %v344 = vunpack.c.l.b16 %v82
  %v345 = vunpack.c.l.b16 %v83
  %v346 = vunpack.c.l.b16 %v84
  %v347 = vunpack.c.l.b16 %v85
  %v348 = vunpack.c.l.b16 %v86
  %v349 = vunpack.c.l.b16 %v87
  %v350 = vunpack.c.l.b16 %v88
  %v351 = vunpack.c.l.b16 %v89
  %v352 = vunpack.c.l.b16 %v90
  %v353 = vunpack.c.l.b16 %v91
  %v354 = vunpack.c.l.b16 %v92
  %v355 = vunpack.c.l.b16 %v93
  %v356 = vunpack.c.l.b16 %v94
  %v357 = vunpack.c.l.b16 %v95
  %v358 = vunpack.c.l.b16 %v96
  %v359 = vunpack.c.l.b16 %v97
  %v360 = vunpack.c.l.b16 %v98
  %v361 = vunpack.c.l.b16 %v99
  %v362 = vunpack.c.l.b16 %v100
  %v363 = vunpack.c.l.b16 %v101
  %v364 = vunpack.c.l.b16 %v102
  %v365 = vunpack.c.l.b16 %v103
  %v366 = vunpack.c.l.b16 %v104
  %v367 = vunpack.c.l.b16 %v105
  %v368 = vunpack.c.l.b16 %v106
  %v369 = vpack.c.b16 %v334, %v333
  %v370 = vpack.c.b16 %v336, %v335
  %v371 = vpack.c.b16 %v338, %v337
  %v372 = vpack.c.b16 %v340, %v339
  %v373 = vpack.c.b16 %v342, %v341
  %v374 = vpack.c.b16 %v344, %v343
  %v375 = vpack.c.b16 %v346, %v345
  %v376 = vpack.c.b16 %v348, %v347
  %v377 = vpack.c.b16 %v350, %v349
  %v378 = vpack.c.b16 %v352, %v351
  %v379 = vpack.c.b16 %v354, %v353
  %v380 = vpack.c.b16 %v356, %v355
  %v381 = vpack.c.b16 %v358, %v357
  %v382 = vpack.c.b16 %v360, %v359
  %v383 = vpack.c.b16 %v362, %v361
  %v384 = vpack.c.b16 %v364, %v363
  %v385 = vpack.c.b16 %v366, %v365
  %v386 = vpack.c.b16 %v368, %v367
  %vm405 = vcmask 261120
  %v407 = vsel %vm405, %v234, 0
  %v410 = vsel %vm405, %v237, 0
  %v413 = vsel %vm405, %v240, 0
  %v416 = vsel %vm405, %v243, 0
  %v419 = vsel %vm405, %v246, 0
  %v422 = vsel %vm405, %v249, 0
  %v425 = vsel %vm405, %v252, 0
  %v428 = vsel %vm405, %v255, 0
  %v431 = vsel %vm405, %v258, 0
  %v434 = vsel %vm405, %v261, 0
  %v437 = vsel %vm405, %v264, 0
  %v440 = vsel %vm405, %v267, 0
  %v443 = vsel %vm405, %v270, 0
  %445 = vmatprep.subr.bf16.mxu0 0
  %446 = vmatpush1.bf16.msra.mxu0 %v376
  %447 = vmatprep.subr.bf16.mxu0 0
  %448 = vmatpush1.bf16.msra.mxu0 %v375
  %449 = vmatprep.subr.bf16.mxu0 0
  %450 = vmatpush1.bf16.msra.mxu0 %v374
  %451 = vmatprep.subr.bf16.mxu0 0
  %452 = vmatpush1.bf16.msra.mxu0 %v373
  %453 = vmatprep.subr.bf16.mxu0 0
  %454 = vmatpush1.bf16.msra.mxu0 %v372
  %455 = vmatprep.subr.bf16.mxu0 0
  %456 = vmatpush1.bf16.msra.mxu0 %v371
  %457 = vmatprep.subr.bf16.mxu0 0
  %458 = vmatpush1.bf16.msra.mxu0 %v370
  %459 = vmatprep.subr.bf16.mxu0 0
  %460 = vmatpush1.bf16.msra.mxu0 %v369
  %461 = vmatprep.subr.bf16.mxu0 0
  %462 = vmatpush2.bf16.msra.mxu0 %v384
  %463 = vmatprep.subr.bf16.mxu0 0
  %464 = vmatpush2.bf16.msra.mxu0 %v383
  %465 = vmatprep.subr.bf16.mxu0 0
  %466 = vmatpush2.bf16.msra.mxu0 %v382
  %467 = vmatprep.subr.bf16.mxu0 0
  %468 = vmatpush2.bf16.msra.mxu0 %v381
  %469 = vmatprep.subr.bf16.mxu0 0
  %470 = vmatpush2.bf16.msra.mxu0 %v380
  %471 = vmatprep.subr.bf16.mxu0 0
  %472 = vmatpush2.bf16.msra.mxu0 %v379
  %473 = vmatprep.subr.bf16.mxu0 0
  %474 = vmatpush2.bf16.msra.mxu0 %v378
  %475 = vmatprep.subr.bf16.mxu0 0
  %476 = vmatpush2.bf16.msra.mxu0 %v377
  %477 = vmatprep.mubr.bf16.mxu0 %v233
  %478 = vmatmul.mubr.bf16.gmra.mxu0 %v232
  %v479 = vpop.f32.mrf.mxu0
  %v480 = vadd.f32 0.0, %v479
  %v481 = vpop.f32.mrf.mxu0
  %v482 = vpop.f32.mrf.mxu0
  %v483 = vadd.f32 0.0, %v482
  %v484 = vpop.f32.mrf.mxu0
  %485 = vmatprep.mubr.bf16.mxu0 %v236
  %486 = vmatmul.mubr.bf16.gmra.mxu0 %v235
  %v487 = vpop.f32.mrf.mxu0
  %v488 = vadd.f32 0.0, %v487
  %v489 = vpop.f32.mrf.mxu0
  %v490 = vpop.f32.mrf.mxu0
  %v491 = vadd.f32 0.0, %v490
  %v492 = vpop.f32.mrf.mxu0
  %493 = vmatprep.mubr.bf16.mxu0 %v239
  %494 = vmatmul.mubr.bf16.gmra.mxu0 %v238
  %v495 = vpop.f32.mrf.mxu0
  %v496 = vadd.f32 0.0, %v495
  %v497 = vpop.f32.mrf.mxu0
  %v498 = vpop.f32.mrf.mxu0
  %v499 = vadd.f32 0.0, %v498
  %v500 = vpop.f32.mrf.mxu0
  %501 = vmatprep.mubr.bf16.mxu0 %v242
  %502 = vmatmul.mubr.bf16.gmra.mxu0 %v241
  %v503 = vpop.f32.mrf.mxu0
  %v504 = vadd.f32 0.0, %v503
  %v505 = vpop.f32.mrf.mxu0
  %v506 = vpop.f32.mrf.mxu0
  %v507 = vadd.f32 0.0, %v506
  %v508 = vpop.f32.mrf.mxu0
  %509 = vmatprep.mubr.bf16.mxu0 %v245
  %510 = vmatmul.mubr.bf16.gmra.mxu0 %v244
  %v511 = vpop.f32.mrf.mxu0
  %v512 = vadd.f32 0.0, %v511
  %v513 = vpop.f32.mrf.mxu0
  %v514 = vpop.f32.mrf.mxu0
  %v515 = vadd.f32 0.0, %v514
  %v516 = vpop.f32.mrf.mxu0
  %517 = vmatprep.mubr.bf16.mxu0 %v248
  %518 = vmatmul.mubr.bf16.gmra.mxu0 %v247
  %v519 = vpop.f32.mrf.mxu0
  %v520 = vadd.f32 0.0, %v519
  %v521 = vpop.f32.mrf.mxu0
  %v522 = vpop.f32.mrf.mxu0
  %v523 = vadd.f32 0.0, %v522
  %v524 = vpop.f32.mrf.mxu0
  %525 = vmatprep.mubr.bf16.mxu0 %v251
  %526 = vmatmul.mubr.bf16.gmra.mxu0 %v250
  %v527 = vpop.f32.mrf.mxu0
  %v528 = vadd.f32 0.0, %v527
  %v529 = vpop.f32.mrf.mxu0
  %v530 = vpop.f32.mrf.mxu0
  %v531 = vadd.f32 0.0, %v530
  %v532 = vpop.f32.mrf.mxu0
  %533 = vmatprep.mubr.bf16.mxu0 %v254
  %534 = vmatmul.mubr.bf16.gmra.mxu0 %v253
  %v535 = vpop.f32.mrf.mxu0
  %v536 = vadd.f32 0.0, %v535
  %v537 = vpop.f32.mrf.mxu0
  %v538 = vpop.f32.mrf.mxu0
  %v539 = vadd.f32 0.0, %v538
  %v540 = vpop.f32.mrf.mxu0
  %541 = vmatprep.mubr.bf16.mxu0 %v257
  %542 = vmatmul.mubr.bf16.gmra.mxu0 %v256
  %v543 = vpop.f32.mrf.mxu0
  %v544 = vadd.f32 0.0, %v543
  %v545 = vpop.f32.mrf.mxu0
  %v546 = vpop.f32.mrf.mxu0
  %v547 = vadd.f32 0.0, %v546
  %v548 = vpop.f32.mrf.mxu0
  %549 = vmatprep.mubr.bf16.mxu0 %v260
  %550 = vmatmul.mubr.bf16.gmra.mxu0 %v259
  %v551 = vpop.f32.mrf.mxu0
  %v552 = vadd.f32 0.0, %v551
  %v553 = vpop.f32.mrf.mxu0
  %v554 = vpop.f32.mrf.mxu0
  %v555 = vadd.f32 0.0, %v554
  %v556 = vpop.f32.mrf.mxu0
  %557 = vmatprep.mubr.bf16.mxu0 %v263
  %558 = vmatmul.mubr.bf16.gmra.mxu0 %v262
  %v559 = vpop.f32.mrf.mxu0
  %v560 = vadd.f32 0.0, %v559
  %v561 = vpop.f32.mrf.mxu0
  %v562 = vpop.f32.mrf.mxu0
  %v563 = vadd.f32 0.0, %v562
  %v564 = vpop.f32.mrf.mxu0
  %565 = vmatprep.mubr.bf16.mxu0 %v266
  %566 = vmatmul.mubr.bf16.gmra.mxu0 %v265
  %v567 = vpop.f32.mrf.mxu0
  %v568 = vadd.f32 0.0, %v567
  %v569 = vpop.f32.mrf.mxu0
  %v570 = vpop.f32.mrf.mxu0
  %v571 = vadd.f32 0.0, %v570
  %v572 = vpop.f32.mrf.mxu0
  %573 = vmatprep.mubr.bf16.mxu0 %v269
  %574 = vmatmul.mubr.bf16.gmra.mxu0 %v268
  %v575 = vpop.f32.mrf.mxu0
  %v576 = vadd.f32 0.0, %v575
  %v577 = vpop.f32.mrf.mxu0
  %v578 = vpop.f32.mrf.mxu0
  %v579 = vpop.f32.mrf.mxu0
  %580 = vdwg.mxu0
  %581 = vmatprep.subr.bf16.mxu0 0
  %582 = vmatpush1.bf16.msra.mxu0 0
  %583 = vmatprep.subr.bf16.mxu0 0
  %584 = vmatpush1.bf16.msra.mxu0 0
  %585 = vmatprep.subr.bf16.mxu0 0
  %586 = vmatpush1.bf16.msra.mxu0 0
  %587 = vmatprep.subr.bf16.mxu0 0
  %588 = vmatpush1.bf16.msra.mxu0 0
  %589 = vmatprep.subr.bf16.mxu0 0
  %590 = vmatpush1.bf16.msra.mxu0 0
  %591 = vmatprep.subr.bf16.mxu0 0
  %592 = vmatpush1.bf16.msra.mxu0 0
  %593 = vmatprep.subr.bf16.mxu0 0
  %594 = vmatpush1.bf16.msra.mxu0 %v386
  %595 = vmatprep.subr.bf16.mxu0 0
  %596 = vmatpush1.bf16.msra.mxu0 %v385
  %597 = vmatprep.subr.bf16.mxu0 0
  %598 = vmatpush2.bf16.msra.mxu0 0
  %599 = vmatprep.subr.bf16.mxu0 0
  %600 = vmatpush2.bf16.msra.mxu0 0
  %601 = vmatprep.subr.bf16.mxu0 0
  %602 = vmatpush2.bf16.msra.mxu0 0
  %603 = vmatprep.subr.bf16.mxu0 0
  %604 = vmatpush2.bf16.msra.mxu0 0
  %605 = vmatprep.subr.bf16.mxu0 0
  %606 = vmatpush2.bf16.msra.mxu0 0
  %607 = vmatprep.subr.bf16.mxu0 0
  %608 = vmatpush2.bf16.msra.mxu0 0
  %609 = vmatprep.subr.bf16.mxu0 0
  %610 = vmatpush2.bf16.msra.mxu0 0
  %611 = vmatprep.subr.bf16.mxu0 0
  %612 = vmatpush2.bf16.msra.mxu0 0
  %613 = vmatprep.mubr.bf16.mxu0 0
  %614 = vmatmul.mubr.bf16.gmra.mxu0 %v407
  %v615 = vpop.f32.mrf.mxu0
  %v616 = vadd.f32 %v480, %v615
  %v617 = vpop.f32.mrf.mxu0
  %v618 = vpop.f32.mrf.mxu0
  %v619 = vadd.f32 %v483, %v618
  %v620 = vpop.f32.mrf.mxu0
  %621 = vmatprep.mubr.bf16.mxu0 0
  %622 = vmatmul.mubr.bf16.gmra.mxu0 %v410
  %v623 = vpop.f32.mrf.mxu0
  %v624 = vadd.f32 %v488, %v623
  %v625 = vpop.f32.mrf.mxu0
  %v626 = vpop.f32.mrf.mxu0
  %v627 = vadd.f32 %v491, %v626
  %v628 = vpop.f32.mrf.mxu0
  %629 = vmatprep.mubr.bf16.mxu0 0
  %630 = vmatmul.mubr.bf16.gmra.mxu0 %v413
  %v631 = vpop.f32.mrf.mxu0
  %v632 = vadd.f32 %v496, %v631
  %v633 = vpop.f32.mrf.mxu0
  %v634 = vpop.f32.mrf.mxu0
  %v635 = vadd.f32 %v499, %v634
  %v636 = vpop.f32.mrf.mxu0
  %637 = vmatprep.mubr.bf16.mxu0 0
  %638 = vmatmul.mubr.bf16.gmra.mxu0 %v416
  %v639 = vpop.f32.mrf.mxu0
  %v640 = vadd.f32 %v504, %v639
  %v641 = vpop.f32.mrf.mxu0
  %v642 = vpop.f32.mrf.mxu0
  %v643 = vadd.f32 %v507, %v642
  %v644 = vpop.f32.mrf.mxu0
  %645 = vmatprep.mubr.bf16.mxu0 0
  %646 = vmatmul.mubr.bf16.gmra.mxu0 %v419
  %v647 = vpop.f32.mrf.mxu0
  %v648 = vadd.f32 %v512, %v647
  %v649 = vpop.f32.mrf.mxu0
  %v650 = vpop.f32.mrf.mxu0
  %v651 = vadd.f32 %v515, %v650
  %v652 = vpop.f32.mrf.mxu0
  %653 = vmatprep.mubr.bf16.mxu0 0
  %654 = vmatmul.mubr.bf16.gmra.mxu0 %v422
  %v655 = vpop.f32.mrf.mxu0
  %v656 = vadd.f32 %v520, %v655
  %v657 = vpop.f32.mrf.mxu0
  %v658 = vpop.f32.mrf.mxu0
  %v659 = vadd.f32 %v523, %v658
  %v660 = vpop.f32.mrf.mxu0
  %661 = vmatprep.mubr.bf16.mxu0 0
  %662 = vmatmul.mubr.bf16.gmra.mxu0 %v425
  %v663 = vpop.f32.mrf.mxu0
  %v664 = vadd.f32 %v528, %v663
  %v665 = vpop.f32.mrf.mxu0
  %v666 = vpop.f32.mrf.mxu0
  %v667 = vadd.f32 %v531, %v666
  %v668 = vpop.f32.mrf.mxu0
  %669 = vmatprep.mubr.bf16.mxu0 0
  %670 = vmatmul.mubr.bf16.gmra.mxu0 %v428
  %v671 = vpop.f32.mrf.mxu0
  %v672 = vadd.f32 %v536, %v671
  %v673 = vpop.f32.mrf.mxu0
  %v674 = vpop.f32.mrf.mxu0
  %v675 = vadd.f32 %v539, %v674
  %v676 = vpop.f32.mrf.mxu0
  %677 = vmatprep.mubr.bf16.mxu0 0
  %678 = vmatmul.mubr.bf16.gmra.mxu0 %v431
  %v679 = vpop.f32.mrf.mxu0
  %v680 = vadd.f32 %v544, %v679
  %v681 = vpop.f32.mrf.mxu0
  %v682 = vpop.f32.mrf.mxu0
  %v683 = vadd.f32 %v547, %v682
  %v684 = vpop.f32.mrf.mxu0
  %685 = vmatprep.mubr.bf16.mxu0 0
  %686 = vmatmul.mubr.bf16.gmra.mxu0 %v434
  %v687 = vpop.f32.mrf.mxu0
  %v688 = vadd.f32 %v552, %v687
  %v689 = vpop.f32.mrf.mxu0
  %v690 = vpop.f32.mrf.mxu0
  %v691 = vadd.f32 %v555, %v690
  %v692 = vpop.f32.mrf.mxu0
  %693 = vmatprep.mubr.bf16.mxu0 0
  %694 = vmatmul.mubr.bf16.gmra.mxu0 %v437
  %v695 = vpop.f32.mrf.mxu0
  %v696 = vadd.f32 %v560, %v695
  %v697 = vpop.f32.mrf.mxu0
  %v698 = vpop.f32.mrf.mxu0
  %v699 = vadd.f32 %v563, %v698
  %v700 = vpop.f32.mrf.mxu0
  %701 = vmatprep.mubr.bf16.mxu0 0
  %702 = vmatmul.mubr.bf16.gmra.mxu0 %v440
  %v703 = vpop.f32.mrf.mxu0
  %v704 = vadd.f32 %v568, %v703
  %v705 = vpop.f32.mrf.mxu0
  %v706 = vpop.f32.mrf.mxu0
  %v707 = vadd.f32 %v571, %v706
  %v708 = vpop.f32.mrf.mxu0
  %709 = vmatprep.mubr.bf16.mxu0 0
  %710 = vmatmul.mubr.bf16.gmra.mxu0 %v443
  %v711 = vpop.f32.mrf.mxu0
  %v712 = vadd.f32 %v576, %v711
  %v713 = vpop.f32.mrf.mxu0
  %v714 = vpop.f32.mrf.mxu0
  %v715 = vpop.f32.mrf.mxu0
  %716 = vdwg.mxu0
  %p717 = scmp.eq.s32.totalorder 0, 0
  // Predicated region
  $region22: #{_lambda_.8} parent=0 // pred_check
    %p718 = pneg %p717
  $region23: #{_lambda_.8} parent=0 // pred_check_branch
    %720 = sbr.rel (%p718) target = $region25
  $region24: #{_lambda_.8} parent=0 // pred_region
    %vm721 = vcmask 523264
    %722 = vst.msk [vmem:[#allocation2] sm:$0xff] %vm721, %v616
    %723 = vst.msk [vmem:[#allocation2 + $0x8] sm:$0xff] %vm721, %v619
    %724 = vst.msk [vmem:[#allocation2 + $0x10] sm:$0xff] %vm721, %v624
    %725 = vst.msk [vmem:[#allocation2 + $0x18] sm:$0xff] %vm721, %v627
    %726 = vst.msk [vmem:[#allocation2 + $0x20] sm:$0xff] %vm721, %v632
    %727 = vst.msk [vmem:[#allocation2 + $0x28] sm:$0xff] %vm721, %v635
    %728 = vst.msk [vmem:[#allocation2 + $0x30] sm:$0xff] %vm721, %v640
    %729 = vst.msk [vmem:[#allocation2 + $0x38] sm:$0xff] %vm721, %v643
    %730 = vst.msk [vmem:[#allocation2 + $0x40] sm:$0xff] %vm721, %v648
    %731 = vst.msk [vmem:[#allocation2 + $0x48] sm:$0xff] %vm721, %v651
    %732 = vst.msk [vmem:[#allocation2 + $0x50] sm:$0xff] %vm721, %v656
    %733 = vst.msk [vmem:[#allocation2 + $0x58] sm:$0xff] %vm721, %v659
    %734 = vst.msk [vmem:[#allocation2 + $0x60] sm:$0xff] %vm721, %v664
    %735 = vst.msk [vmem:[#allocation2 + $0x68] sm:$0xff] %vm721, %v667
    %736 = vst.msk [vmem:[#allocation2 + $0x70] sm:$0xff] %vm721, %v672
    %737 = vst.msk [vmem:[#allocation2 + $0x78] sm:$0xff] %vm721, %v675
    %738 = vst.msk [vmem:[#allocation2 + $0x80] sm:$0xff] %vm721, %v680
    %739 = vst.msk [vmem:[#allocation2 + $0x88] sm:$0xff] %vm721, %v683
    %740 = vst.msk [vmem:[#allocation2 + $0x90] sm:$0xff] %vm721, %v688
    %741 = vst.msk [vmem:[#allocation2 + $0x98] sm:$0xff] %vm721, %v691
    %742 = vst.msk [vmem:[#allocation2 + $0xa0] sm:$0xff] %vm721, %v696
    %743 = vst.msk [vmem:[#allocation2 + $0xa8] sm:$0xff] %vm721, %v699
    %744 = vst.msk [vmem:[#allocation2 + $0xb0] sm:$0xff] %vm721, %v704
    %745 = vst.msk [vmem:[#allocation2 + $0xb8] sm:$0xff] %vm721, %v707
    %746 = vst.msk [vmem:[#allocation2 + $0xc0] sm:$0xff] %vm721, %v712
  $region25: #{_lambda_.8} parent=0 // pred_fallthru
    _
  %p747 = scmp.ne.s32.totalorder 0, 0
  // Predicated region
  $region26: #{_lambda_.8} parent=0 // pred_check
    %p748 = pneg %p747
  $region27: #{_lambda_.8} parent=0 // pred_check_branch
    %750 = sbr.rel (%p748) target = $region29
  $region28: #{_lambda_.8} parent=0 // pred_region
    %v751 = vld [vmem:[#allocation2] sm:$0xff]
    %v752 = vld [vmem:[#allocation2 + $0x8] sm:$0xff]
    %v753 = vld [vmem:[#allocation2 + $0x10] sm:$0xff]
    %v754 = vld [vmem:[#allocation2 + $0x18] sm:$0xff]
    %v755 = vld [vmem:[#allocation2 + $0x20] sm:$0xff]
    %v756 = vld [vmem:[#allocation2 + $0x28] sm:$0xff]
    %v757 = vld [vmem:[#allocation2 + $0x30] sm:$0xff]
    %v758 = vld [vmem:[#allocation2 + $0x38] sm:$0xff]
    %v759 = vld [vmem:[#allocation2 + $0x40] sm:$0xff]
    %v760 = vld [vmem:[#allocation2 + $0x48] sm:$0xff]
    %v761 = vld [vmem:[#allocation2 + $0x50] sm:$0xff]
    %v762 = vld [vmem:[#allocation2 + $0x58] sm:$0xff]
    %v763 = vld [vmem:[#allocation2 + $0x60] sm:$0xff]
    %v764 = vld [vmem:[#allocation2 + $0x68] sm:$0xff]
    %v765 = vld [vmem:[#allocation2 + $0x70] sm:$0xff]
    %v766 = vld [vmem:[#allocation2 + $0x78] sm:$0xff]
    %v767 = vld [vmem:[#allocation2 + $0x80] sm:$0xff]
    %v768 = vld [vmem:[#allocation2 + $0x88] sm:$0xff]
    %v769 = vld [vmem:[#allocation2 + $0x90] sm:$0xff]
    %v770 = vld [vmem:[#allocation2 + $0x98] sm:$0xff]
    %v771 = vld [vmem:[#allocation2 + $0xa0] sm:$0xff]
    %v772 = vld [vmem:[#allocation2 + $0xa8] sm:$0xff]
    %v773 = vld [vmem:[#allocation2 + $0xb0] sm:$0xff]
    %v774 = vld [vmem:[#allocation2 + $0xb8] sm:$0xff]
    %v775 = vld [vmem:[#allocation2 + $0xc0] sm:$0xff]
    %v776 = vadd.f32 %v751, %v616
    %v777 = vadd.f32 %v752, %v619
    %v778 = vadd.f32 %v753, %v624
    %v779 = vadd.f32 %v754, %v627
    %v780 = vadd.f32 %v755, %v632
    %v781 = vadd.f32 %v756, %v635
    %v782 = vadd.f32 %v757, %v640
    %v783 = vadd.f32 %v758, %v643
    %v784 = vadd.f32 %v759, %v648
    %v785 = vadd.f32 %v760, %v651
    %v786 = vadd.f32 %v761, %v656
    %v787 = vadd.f32 %v762, %v659
    %v788 = vadd.f32 %v763, %v664
    %v789 = vadd.f32 %v764, %v667
    %v790 = vadd.f32 %v765, %v672
    %v791 = vadd.f32 %v766, %v675
    %v792 = vadd.f32 %v767, %v680
    %v793 = vadd.f32 %v768, %v683
    %v794 = vadd.f32 %v769, %v688
    %v795 = vadd.f32 %v770, %v691
    %v796 = vadd.f32 %v771, %v696
    %v797 = vadd.f32 %v772, %v699
    %v798 = vadd.f32 %v773, %v704
    %v799 = vadd.f32 %v774, %v707
    %v800 = vadd.f32 %v775, %v712
    %vm801 = vcmask 523264
    %802 = vst.msk [vmem:[#allocation2] sm:$0xff] %vm801, %v776
    %803 = vst.msk [vmem:[#allocation2 + $0x8] sm:$0xff] %vm801, %v777
    %804 = vst.msk [vmem:[#allocation2 + $0x10] sm:$0xff] %vm801, %v778
    %805 = vst.msk [vmem:[#allocation2 + $0x18] sm:$0xff] %vm801, %v779
    %806 = vst.msk [vmem:[#allocation2 + $0x20] sm:$0xff] %vm801, %v780
    %807 = vst.msk [vmem:[#allocation2 + $0x28] sm:$0xff] %vm801, %v781
    %808 = vst.msk [vmem:[#allocation2 + $0x30] sm:$0xff] %vm801, %v782
    %809 = vst.msk [vmem:[#allocation2 + $0x38] sm:$0xff] %vm801, %v783
    %810 = vst.msk [vmem:[#allocation2 + $0x40] sm:$0xff] %vm801, %v784
    %811 = vst.msk [vmem:[#allocation2 + $0x48] sm:$0xff] %vm801, %v785
    %812 = vst.msk [vmem:[#allocation2 + $0x50] sm:$0xff] %vm801, %v786
    %813 = vst.msk [vmem:[#allocation2 + $0x58] sm:$0xff] %vm801, %v787
    %814 = vst.msk [vmem:[#allocation2 + $0x60] sm:$0xff] %vm801, %v788
    %815 = vst.msk [vmem:[#allocation2 + $0x68] sm:$0xff] %vm801, %v789
    %816 = vst.msk [vmem:[#allocation2 + $0x70] sm:$0xff] %vm801, %v790
    %817 = vst.msk [vmem:[#allocation2 + $0x78] sm:$0xff] %vm801, %v791
    %818 = vst.msk [vmem:[#allocation2 + $0x80] sm:$0xff] %vm801, %v792
    %819 = vst.msk [vmem:[#allocation2 + $0x88] sm:$0xff] %vm801, %v793
    %820 = vst.msk [vmem:[#allocation2 + $0x90] sm:$0xff] %vm801, %v794
    %821 = vst.msk [vmem:[#allocation2 + $0x98] sm:$0xff] %vm801, %v795
    %822 = vst.msk [vmem:[#allocation2 + $0xa0] sm:$0xff] %vm801, %v796
    %823 = vst.msk [vmem:[#allocation2 + $0xa8] sm:$0xff] %vm801, %v797
    %824 = vst.msk [vmem:[#allocation2 + $0xb0] sm:$0xff] %vm801, %v798
    %825 = vst.msk [vmem:[#allocation2 + $0xb8] sm:$0xff] %vm801, %v799
    %826 = vst.msk [vmem:[#allocation2 + $0xc0] sm:$0xff] %vm801, %v800
  $region29: #{_lambda_.8} parent=0 // pred_fallthru
    _
  // Predicated region
  $region30: #{_lambda_.8} parent=0 // pred_check
    %p827 = pneg %p717
  $region31: #{_lambda_.8} parent=0 // pred_check_branch
    %829 = sbr.rel (%p827) target = $region33
  $region32: #{_lambda_.8} parent=0 // pred_region
    %v830 = vld [vmem:[#allocation2] sm:$0xff]
    %v831 = vld [vmem:[#allocation2 + $0x8] sm:$0xff]
    %v832 = vld [vmem:[#allocation2 + $0x10] sm:$0xff]
    %v833 = vld [vmem:[#allocation2 + $0x18] sm:$0xff]
    %v834 = vld [vmem:[#allocation2 + $0x20] sm:$0xff]
    %v835 = vld [vmem:[#allocation2 + $0x28] sm:$0xff]
    %v836 = vld [vmem:[#allocation2 + $0x30] sm:$0xff]
    %v837 = vld [vmem:[#allocation2 + $0x38] sm:$0xff]
    %v838 = vld [vmem:[#allocation2 + $0x40] sm:$0xff]
    %v839 = vld [vmem:[#allocation2 + $0x48] sm:$0xff]
    %v840 = vld [vmem:[#allocation2 + $0x50] sm:$0xff]
    %v841 = vld [vmem:[#allocation2 + $0x58] sm:$0xff]
    %v842 = vld [vmem:[#allocation2 + $0x60] sm:$0xff]
    %v843 = vld [vmem:[#allocation2 + $0x68] sm:$0xff]
    %v844 = vld [vmem:[#allocation2 + $0x70] sm:$0xff]
    %v845 = vld [vmem:[#allocation2 + $0x78] sm:$0xff]
    %v846 = vld [vmem:[#allocation2 + $0x80] sm:$0xff]
    %v847 = vld [vmem:[#allocation2 + $0x88] sm:$0xff]
    %v848 = vld [vmem:[#allocation2 + $0x90] sm:$0xff]
    %v849 = vld [vmem:[#allocation2 + $0x98] sm:$0xff]
    %v850 = vld [vmem:[#allocation2 + $0xa0] sm:$0xff]
    %v851 = vld [vmem:[#allocation2 + $0xa8] sm:$0xff]
    %v852 = vld [vmem:[#allocation2 + $0xb0] sm:$0xff]
    %v853 = vld [vmem:[#allocation2 + $0xb8] sm:$0xff]
    %v854 = vld [vmem:[#allocation2 + $0xc0] sm:$0xff]
    %v855 = vld [vmem:[%s2] sm:$0x1]
    %v857 = vlaneseq
    %v858 = vshrl.u32 %v857, 7
    %v859 = vsub.s32 0, %v858
    %v860 = vrot.slane %v855, %v859
    %v862 = vmul.f32 %v830, %v860
    %v863 = vmul.f32 %v831, %v860
    %v864 = vmul.f32 %v832, %v860
    %v865 = vmul.f32 %v833, %v860
    %v866 = vmul.f32 %v834, %v860
    %v867 = vmul.f32 %v835, %v860
    %v868 = vmul.f32 %v836, %v860
    %v869 = vmul.f32 %v837, %v860
    %v870 = vmul.f32 %v838, %v860
    %v871 = vmul.f32 %v839, %v860
    %v872 = vmul.f32 %v840, %v860
    %v873 = vmul.f32 %v841, %v860
    %v874 = vmul.f32 %v842, %v860
    %v875 = vmul.f32 %v843, %v860
    %v876 = vmul.f32 %v844, %v860
    %v877 = vmul.f32 %v845, %v860
    %v878 = vmul.f32 %v846, %v860
    %v879 = vmul.f32 %v847, %v860
    %v880 = vmul.f32 %v848, %v860
    %v881 = vmul.f32 %v849, %v860
    %v882 = vmul.f32 %v850, %v860
    %v883 = vmul.f32 %v851, %v860
    %v884 = vmul.f32 %v852, %v860
    %v885 = vmul.f32 %v853, %v860
    %v886 = vmul.f32 %v854, %v860
    %v887 = vld [vmem:[%s3] sm:$0x1]
    %v889 = vlaneseq
    %v890 = vshrl.u32 %v889, 7
    %v891 = vsub.s32 0, %v890
    %v892 = vrot.slane %v887, %v891
    %v894 = vadd.f32 %v862, %v892
    %v895 = vadd.f32 %v863, %v892
    %v896 = vadd.f32 %v864, %v892
    %v897 = vadd.f32 %v865, %v892
    %v898 = vadd.f32 %v866, %v892
    %v899 = vadd.f32 %v867, %v892
    %v900 = vadd.f32 %v868, %v892
    %v901 = vadd.f32 %v869, %v892
    %v902 = vadd.f32 %v870, %v892
    %v903 = vadd.f32 %v871, %v892
    %v904 = vadd.f32 %v872, %v892
    %v905 = vadd.f32 %v873, %v892
    %v906 = vadd.f32 %v874, %v892
    %v907 = vadd.f32 %v875, %v892
    %v908 = vadd.f32 %v876, %v892
    %v909 = vadd.f32 %v877, %v892
    %v910 = vadd.f32 %v878, %v892
    %v911 = vadd.f32 %v879, %v892
    %v912 = vadd.f32 %v880, %v892
    %v913 = vadd.f32 %v881, %v892
    %v914 = vadd.f32 %v882, %v892
    %v915 = vadd.f32 %v883, %v892
    %v916 = vadd.f32 %v884, %v892
    %v917 = vadd.f32 %v885, %v892
    %v918 = vadd.f32 %v886, %v892
    %v919 = vmax.f32 %v894, 0.0
    %v920 = vmax.f32 %v895, 0.0
    %v921 = vmax.f32 %v896, 0.0
    %v922 = vmax.f32 %v897, 0.0
    %v923 = vmax.f32 %v898, 0.0
    %v924 = vmax.f32 %v899, 0.0
    %v925 = vmax.f32 %v900, 0.0
    %v926 = vmax.f32 %v901, 0.0
    %v927 = vmax.f32 %v902, 0.0
    %v928 = vmax.f32 %v903, 0.0
    %v929 = vmax.f32 %v904, 0.0
    %v930 = vmax.f32 %v905, 0.0
    %v931 = vmax.f32 %v906, 0.0
    %v932 = vmax.f32 %v907, 0.0
    %v933 = vmax.f32 %v908, 0.0
    %v934 = vmax.f32 %v909, 0.0
    %v935 = vmax.f32 %v910, 0.0
    %v936 = vmax.f32 %v911, 0.0
    %v937 = vmax.f32 %v912, 0.0
    %v938 = vmax.f32 %v913, 0.0
    %v939 = vmax.f32 %v914, 0.0
    %v940 = vmax.f32 %v915, 0.0
    %v941 = vmax.f32 %v916, 0.0
    %v942 = vmax.f32 %v917, 0.0
    %v943 = vmax.f32 %v918, 0.0
    %v944 = vld [vmem:[%s4] sm:$0xf]
    %v947 = vunpack.c.l.s4 1983009808
    %v948 = vunpack.c.0.s8 %v947
    %v949 = vlaneseq
    %v950 = vshrl.u32 %v949, 7
    %v951 = vsub.s32 %v948, %v950
    %v952 = vrot.slane %v944, %v951
    %v953 = vcombine.high %v952, %v952
    %vm955 = vcmask 588800
    %v956 = vsel %vm955, %v953, 0
    %958 = vmatprep.subr.mxu0 0.0
    %959 = vmatpush1.msra.mxu0 %v934
    %960 = vmatprep.subr.mxu0 0.0
    %961 = vmatpush1.msra.mxu0 %v933
    %962 = vmatprep.subr.mxu0 0.0
    %963 = vmatpush1.msra.mxu0 %v932
    %964 = vmatprep.subr.mxu0 0.0
    %965 = vmatpush1.msra.mxu0 %v931
    %966 = vmatprep.subr.mxu0 0.0
    %967 = vmatpush1.msra.mxu0 %v930
    %968 = vmatprep.subr.mxu0 0.0
    %969 = vmatpush1.msra.mxu0 %v929
    %970 = vmatprep.subr.mxu0 0.0
    %971 = vmatpush1.msra.mxu0 %v928
    %972 = vmatprep.subr.mxu0 0.0
    %973 = vmatpush1.msra.mxu0 %v927
    %974 = vmatprep.subr.mxu0 0.0
    %975 = vmatpush1.msra.mxu0 %v926
    %976 = vmatprep.subr.mxu0 0.0
    %977 = vmatpush1.msra.mxu0 %v925
    %978 = vmatprep.subr.mxu0 0.0
    %979 = vmatpush1.msra.mxu0 %v924
    %980 = vmatprep.subr.mxu0 0.0
    %981 = vmatpush1.msra.mxu0 %v923
    %982 = vmatprep.subr.mxu0 0.0
    %983 = vmatpush1.msra.mxu0 %v922
    %984 = vmatprep.subr.mxu0 0.0
    %985 = vmatpush1.msra.mxu0 %v921
    %986 = vmatprep.subr.mxu0 0.0
    %987 = vmatpush1.msra.mxu0 %v920
    %988 = vmatprep.subr.mxu0 0.0
    %989 = vmatpush1.msra.mxu0 %v919
    %990 = vmatprep.subr.mxu0 0.0
    %991 = vmatpush2.msra.mxu0 0.0
    %992 = vmatprep.subr.mxu0 0.0
    %993 = vmatpush2.msra.mxu0 0.0
    %994 = vmatprep.subr.mxu0 0.0
    %995 = vmatpush2.msra.mxu0 0.0
    %996 = vmatprep.subr.mxu0 0.0
    %997 = vmatpush2.msra.mxu0 0.0
    %998 = vmatprep.subr.mxu0 0.0
    %999 = vmatpush2.msra.mxu0 0.0
    %1000 = vmatprep.subr.mxu0 0.0
    %1001 = vmatpush2.msra.mxu0 0.0
    %1002 = vmatprep.subr.mxu0 0.0
    %1003 = vmatpush2.msra.mxu0 0.0
    %1004 = vmatprep.subr.mxu0 0.0
    %1005 = vmatpush2.msra.mxu0 %v943
    %1006 = vmatprep.subr.mxu0 0.0
    %1007 = vmatpush2.msra.mxu0 %v942
    %1008 = vmatprep.subr.mxu0 0.0
    %1009 = vmatpush2.msra.mxu0 %v941
    %1010 = vmatprep.subr.mxu0 0.0
    %1011 = vmatpush2.msra.mxu0 %v940
    %1012 = vmatprep.subr.mxu0 0.0
    %1013 = vmatpush2.msra.mxu0 %v939
    %1014 = vmatprep.subr.mxu0 0.0
    %1015 = vmatpush2.msra.mxu0 %v938
    %1016 = vmatprep.subr.mxu0 0.0
    %1017 = vmatpush2.msra.mxu0 %v937
    %1018 = vmatprep.subr.mxu0 0.0
    %1019 = vmatpush2.msra.mxu0 %v936
    %1020 = vmatprep.subr.mxu0 0.0
    %1021 = vmatpush2.msra.mxu0 %v935
    %1022 = vmatprep.mubr.f32.mxu0 %v956
    %1023 = vmatmul.mubr.f32.gmra.mxu0 %v952
    %v1024 = vpop.f32.mrf.mxu0
    %v1025 = vadd.f32 0.0, %v1024
    %v1026 = vpop.f32.mrf.mxu0
    %1027 = vdwg.mxu0
    %vm1028 = vcmask 517120
    %1029 = vst.msk [vmem:[%s5] sm:$0x3] %vm1028, %v1025
  $region33: #{_lambda_.8} parent=0 // pred_fallthru
    _
  // Predicated region
  $region34: #{_lambda_.8} parent=0 // pred_check
    _
  $region35: #{_lambda_.8} parent=0 // pred_check_branch
    %1031 = sbr.rel (0) target = $region37
  $region36: #{_lambda_.8} parent=0 // pred_region
    _
  $region37: #{_lambda_.8} parent=0 // pred_fallthru
    _
  // Predicated region
  $region38: #{_lambda_.8} parent=0 // pred_check
    _
  $region39: #{_lambda_.8} parent=0 // pred_check_branch
    %1033 = sbr.rel (0) target = $region41
  $region40: #{_lambda_.8} parent=0 // pred_region
    _
  $region41: #{_lambda_.8} parent=0 // pred_fallthru
    _

// kernel: _lambda_.9
$region0: #{_lambda_.9}
  #allocation0 [shape = 'u32[]', space=smem, size = 0x4, offset = 0x4, fixed_abs, tag = 'smem constant byte address 0x4 - core index']
  #allocation1 [shape = 'u32[144,128]{1,0:T(1,128)}', space=vmem, size = 0x12000, scoped, tag = 'internal scratch']
  %s0 = inlined_call_operand.vmem [shape: f32[2,64], index: 0, kind: input, shape index: {}]
  %s1 = inlined_call_operand.vmem [shape: bf16[64,8], index: 1, kind: input, shape index: {}]
  %s2 = inlined_call_operand.vmem [shape: bf16[8,64], index: 2, kind: input, shape index: {}]
  %s3 = inlined_call_operand.vmem [shape: bf16[64,16], index: 3, kind: input, shape index: {}]
  %s4 = inlined_call_operand.vmem [shape: f32[1,16], index: 4, kind: input, shape index: {}]
  %s5 = inlined_call_operand.hbm [shape: f32[2,16], index: 5, kind: output, shape index: {}]
  %s6 = sld [smem:[#allocation0]]
  $region30: #{_lambda_.9} parent=0
    _
  %s8 = ssub.s32 1, %s6
  %s9 = scalar_select 0, %s8, %s6
  $region1: #{_lambda_.9} parent=0
    #allocation2 [shape = 'u8[1024]{0}', space=vmem, size = 0x400, scoped, tag = 'output window, operand 0, single buffered']
    #allocation3 [shape = 's32[1]{0}', space=sflag, size = 0x4, scoped, tag = 'scoped memory for _lambda_.9']
    %10 = vsyncpa [#allocation3], 0
    // Predicated region
    $region2: #{_lambda_.9} parent=1 // pred_check
      _
    $region3: #{_lambda_.9} parent=1 // pred_check_branch
      %12 = sbr.rel (0) target = $region5
    $region4: #{_lambda_.9} parent=1 // pred_region
      _
    $region5: #{_lambda_.9} parent=1 // pred_fallthru
      _
    // Predicated region
    $region6: #{_lambda_.9} parent=1 // pred_check
      _
    $region7: #{_lambda_.9} parent=1 // pred_check_branch
      %14 = sbr.rel (0) target = $region9
    $region8: #{_lambda_.9} parent=1 // pred_region
      _
    $region9: #{_lambda_.9} parent=1 // pred_fallthru
      _
    // Predicated region
    $region10: #{_lambda_.9} parent=1 // pred_check
      _
    $region11: #{_lambda_.9} parent=1 // pred_check_branch
      %16 = sbr.rel (0) target = $region13
    $region12: #{_lambda_.9} parent=1 // pred_region
      _
    $region13: #{_lambda_.9} parent=1 // pred_fallthru
      _
    // Predicated region
    $region14: #{_lambda_.9} parent=1 // pred_check
      _
    $region15: #{_lambda_.9} parent=1 // pred_check_branch
      %18 = sbr.rel (0) target = $region17
    $region16: #{_lambda_.9} parent=1 // pred_region
      _
    $region17: #{_lambda_.9} parent=1 // pred_fallthru
      _
    // Predicated region
    $region18: #{_lambda_.9} parent=1 // pred_check
      _
    $region19: #{_lambda_.9} parent=1 // pred_check_branch
      %20 = sbr.rel (0) target = $region21
    $region20: #{_lambda_.9} parent=1 // pred_region
      _
    $region21: #{_lambda_.9} parent=1 // pred_fallthru
      _
    %v22 = vld [vmem:[%s0] sm:$0x3]
    %v23 = vpack.c.bf16 %v22, %v22
    %v24 = vld [vmem:[%s1] sm:$0xf]
    %v25 = vld [vmem:[%s1 + $0x4] sm:$0xf]
    %v26 = vld [vmem:[%s1 + $0x8] sm:$0xf]
    %v27 = vld [vmem:[%s1 + $0xc] sm:$0xf]
    %v28 = vld [vmem:[%s1 + $0x10] sm:$0xf]
    %v29 = vld [vmem:[%s1 + $0x14] sm:$0xf]
    %v30 = vld [vmem:[%s1 + $0x18] sm:$0xf]
    %v31 = vld [vmem:[%s1 + $0x1c] sm:$0xf]
    %v40 = vunpack.c.l.b16 %v24
    %v41 = vunpack.c.l.b16 %v25
    %v42 = vunpack.c.l.b16 %v26
    %v43 = vunpack.c.l.b16 %v27
    %v44 = vunpack.c.l.b16 %v28
    %v45 = vunpack.c.l.b16 %v29
    %v46 = vunpack.c.l.b16 %v30
    %v47 = vunpack.c.l.b16 %v31
    %v48 = vpack.c.b16 %v41, %v40
    %v49 = vpack.c.b16 %v43, %v42
    %v50 = vpack.c.b16 %v45, %v44
    %v51 = vpack.c.b16 %v47, %v46
    %vm56 = vcmask 523264
    %v58 = vsel %vm56, %v23, 0
    %60 = vmatprep.subr.bf16.mxu0 0
    %61 = vmatpush1.bf16.msra.mxu0 0
    %62 = vmatprep.subr.bf16.mxu0 0
    %63 = vmatpush1.bf16.msra.mxu0 0
    %64 = vmatprep.subr.bf16.mxu0 0
    %65 = vmatpush1.bf16.msra.mxu0 0
    %66 = vmatprep.subr.bf16.mxu0 0
    %67 = vmatpush1.bf16.msra.mxu0 0
    %68 = vmatprep.subr.bf16.mxu0 0
    %69 = vmatpush1.bf16.msra.mxu0 %v51
    %70 = vmatprep.subr.bf16.mxu0 0
    %71 = vmatpush1.bf16.msra.mxu0 %v50
    %72 = vmatprep.subr.bf16.mxu0 0
    %73 = vmatpush1.bf16.msra.mxu0 %v49
    %74 = vmatprep.subr.bf16.mxu0 0
    %75 = vmatpush1.bf16.msra.mxu0 %v48
    %76 = vmatprep.subr.bf16.mxu0 0
    %77 = vmatpush2.bf16.msra.mxu0 0
    %78 = vmatprep.subr.bf16.mxu0 0
    %79 = vmatpush2.bf16.msra.mxu0 0
    %80 = vmatprep.subr.bf16.mxu0 0
    %81 = vmatpush2.bf16.msra.mxu0 0
    %82 = vmatprep.subr.bf16.mxu0 0
    %83 = vmatpush2.bf16.msra.mxu0 0
    %84 = vmatprep.subr.bf16.mxu0 0
    %85 = vmatpush2.bf16.msra.mxu0 0
    %86 = vmatprep.subr.bf16.mxu0 0
    %87 = vmatpush2.bf16.msra.mxu0 0
    %88 = vmatprep.subr.bf16.mxu0 0
    %89 = vmatpush2.bf16.msra.mxu0 0
    %90 = vmatprep.subr.bf16.mxu0 0
    %91 = vmatpush2.bf16.msra.mxu0 0
    %92 = vmatprep.mubr.bf16.mxu0 0
    %93 = vmatmul.mubr.bf16.gmra.mxu0 %v58
    %v94 = vpop.f32.mrf.mxu0
    %v95 = vadd.f32 0.0, %v94
    %v96 = vpop.f32.mrf.mxu0
    %v97 = vpop.f32.mrf.mxu0
    %v98 = vpop.f32.mrf.mxu0
    %99 = vdwg.mxu0
    %v100 = vmax.f32 %v95, 0.0
    %v101 = vpack.c.bf16 %v100, %v100
    %v102 = vld [vmem:[%s2] sm:$0xf]
    %vm103 = vcmask 64512
    %v105 = vsel %vm103, %v101, 0
    %vm107 = vcmask 1043456
    %v109 = vsel %vm107, %v102, 0
    %111 = vmatprep.subr.bf16.mxu0 0
    %112 = vmatpush1.bf16.msra.mxu0 0
    %113 = vmatprep.subr.bf16.mxu0 0
    %114 = vmatpush1.bf16.msra.mxu0 0
    %115 = vmatprep.subr.bf16.mxu0 0
    %116 = vmatpush1.bf16.msra.mxu0 0
    %117 = vmatprep.subr.bf16.mxu0 0
    %118 = vmatpush1.bf16.msra.mxu0 0
    %119 = vmatprep.subr.bf16.mxu0 0
    %120 = vmatpush1.bf16.msra.mxu0 0
    %121 = vmatprep.subr.bf16.mxu0 0
    %122 = vmatpush1.bf16.msra.mxu0 0
    %123 = vmatprep.subr.bf16.mxu0 0
    %124 = vmatpush1.bf16.msra.mxu0 0
    %125 = vmatprep.subr.bf16.mxu0 0
    %126 = vmatpush1.bf16.msra.mxu0 %v109
    %127 = vmatprep.subr.bf16.mxu0 0
    %128 = vmatpush2.bf16.msra.mxu0 0
    %129 = vmatprep.subr.bf16.mxu0 0
    %130 = vmatpush2.bf16.msra.mxu0 0
    %131 = vmatprep.subr.bf16.mxu0 0
    %132 = vmatpush2.bf16.msra.mxu0 0
    %133 = vmatprep.subr.bf16.mxu0 0
    %134 = vmatpush2.bf16.msra.mxu0 0
    %135 = vmatprep.subr.bf16.mxu0 0
    %136 = vmatpush2.bf16.msra.mxu0 0
    %137 = vmatprep.subr.bf16.mxu0 0
    %138 = vmatpush2.bf16.msra.mxu0 0
    %139 = vmatprep.subr.bf16.mxu0 0
    %140 = vmatpush2.bf16.msra.mxu0 0
    %141 = vmatprep.subr.bf16.mxu0 0
    %142 = vmatpush2.bf16.msra.mxu0 0
    %143 = vmatprep.mubr.bf16.mxu0 0
    %144 = vmatmul.mubr.bf16.gmra.mxu0 %v105
    %v145 = vpop.f32.mrf.mxu0
    %v146 = vadd.f32 0.0, %v145
    %v147 = vpop.f32.mrf.mxu0
    %v148 = vpop.f32.mrf.mxu0
    %v149 = vpop.f32.mrf.mxu0
    %150 = vdwg.mxu0
    %v151 = vsub.f32 0.0, %v146
    %v152 = vmul.f32 %v151, 1.442695
    %v153 = vpow.pop %v152
    %v154 = vadd.f32 %v153, 1.0
    %v155 = vrcp.pop %v154
    %v156 = vmul.f32 1.0, %v155
    %v157 = vmul.f32 %v22, %v156
    %v158 = vpack.c.bf16 %v157, %v157
    %v159 = vld [vmem:[%s3] sm:$0xf]
    %v160 = vld [vmem:[%s3 + $0x4] sm:$0xf]
    %v161 = vld [vmem:[%s3 + $0x8] sm:$0xf]
    %v162 = vld [vmem:[%s3 + $0xc] sm:$0xf]
    %v163 = vld [vmem:[%s3 + $0x10] sm:$0xf]
    %v164 = vld [vmem:[%s3 + $0x14] sm:$0xf]
    %v165 = vld [vmem:[%s3 + $0x18] sm:$0xf]
    %v166 = vld [vmem:[%s3 + $0x1c] sm:$0xf]
    %v167 = vld [vmem:[%s4] sm:$0x1]
    %v169 = vlaneseq
    %v170 = vshrl.u32 %v169, 7
    %v171 = vsub.s32 0, %v170
    %v172 = vrot.slane %v167, %v171
    %v182 = vunpack.c.l.b16 %v159
    %v183 = vunpack.c.l.b16 %v160
    %v184 = vunpack.c.l.b16 %v161
    %v185 = vunpack.c.l.b16 %v162
    %v186 = vunpack.c.l.b16 %v163
    %v187 = vunpack.c.l.b16 %v164
    %v188 = vunpack.c.l.b16 %v165
    %v189 = vunpack.c.l.b16 %v166
    %v190 = vpack.c.b16 %v183, %v182
    %v191 = vpack.c.b16 %v185, %v184
    %v192 = vpack.c.b16 %v187, %v186
    %v193 = vpack.c.b16 %v189, %v188
    %v199 = vsel %vm56, %v158, 0
    %201 = vmatprep.subr.bf16.mxu0 0
    %202 = vmatpush1.bf16.msra.mxu0 0
    %203 = vmatprep.subr.bf16.mxu0 0
    %204 = vmatpush1.bf16.msra.mxu0 0
    %205 = vmatprep.subr.bf16.mxu0 0
    %206 = vmatpush1.bf16.msra.mxu0 0
    %207 = vmatprep.subr.bf16.mxu0 0
    %208 = vmatpush1.bf16.msra.mxu0 0
    %209 = vmatprep.subr.bf16.mxu0 0
    %210 = vmatpush1.bf16.msra.mxu0 %v193
    %211 = vmatprep.subr.bf16.mxu0 0
    %212 = vmatpush1.bf16.msra.mxu0 %v192
    %213 = vmatprep.subr.bf16.mxu0 0
    %214 = vmatpush1.bf16.msra.mxu0 %v191
    %215 = vmatprep.subr.bf16.mxu0 0
    %216 = vmatpush1.bf16.msra.mxu0 %v190
    %217 = vmatprep.subr.bf16.mxu0 0
    %218 = vmatpush2.bf16.msra.mxu0 0
    %219 = vmatprep.subr.bf16.mxu0 0
    %220 = vmatpush2.bf16.msra.mxu0 0
    %221 = vmatprep.subr.bf16.mxu0 0
    %222 = vmatpush2.bf16.msra.mxu0 0
    %223 = vmatprep.subr.bf16.mxu0 0
    %224 = vmatpush2.bf16.msra.mxu0 0
    %225 = vmatprep.subr.bf16.mxu0 0
    %226 = vmatpush2.bf16.msra.mxu0 0
    %227 = vmatprep.subr.bf16.mxu0 0
    %228 = vmatpush2.bf16.msra.mxu0 0
    %229 = vmatprep.subr.bf16.mxu0 0
    %230 = vmatpush2.bf16.msra.mxu0 0
    %231 = vmatprep.subr.bf16.mxu0 0
    %232 = vmatpush2.bf16.msra.mxu0 0
    %233 = vmatprep.mubr.bf16.mxu0 0
    %234 = vmatmul.mubr.bf16.gmra.mxu0 %v199
    %v235 = vpop.f32.mrf.mxu0
    %v236 = vadd.f32 %v172, %v235
    %v237 = vpop.f32.mrf.mxu0
    %v238 = vpop.f32.mrf.mxu0
    %v239 = vpop.f32.mrf.mxu0
    %240 = vdwg.mxu0
    %vm241 = vcmask 123904
    %242 = vst.msk [vmem:[#allocation2] sm:$0x3] %vm241, %v236
    // Predicated region
    $region22: #{_lambda_.9} parent=1 // pred_check
      _
    $region23: #{_lambda_.9} parent=1 // pred_check_branch
      %244 = sbr.rel (0) target = $region25
    $region24: #{_lambda_.9} parent=1 // pred_region
      %s246 = ssub.s32 32, 32
      %247 = vsyncadd [#allocation3], %s246
      %s249 = sshll.u32 [#allocation2], 4
      %s250 = int_to_ptr.vmem [resolvable:$true] %s249
      %252 = dma.vmem_to_hbm [thread:$0]  %s250, 32, %s5, [#allocation3]
    $region25: #{_lambda_.9} parent=1 // pred_fallthru
      _
    // Predicated region
    $region26: #{_lambda_.9} parent=1 // pred_check
      _
    $region27: #{_lambda_.9} parent=1 // pred_check_branch
      %254 = sbr.rel (0) target = $region29
    $region28: #{_lambda_.9} parent=1 // pred_region
      %255 = dma.done [#allocation3], 32
    $region29: #{_lambda_.9} parent=1 // pred_fallthru
      _
    %256 = vsyncpa [#allocation3], 1

</llo_original>
